<compile_context>
chip_gen: v7x
topology: tpu7x:2x2x1
jax: 0.10.0
libtpu: 0.0.40
codegen_flags: <defaults>
</compile_context>

<pallas_src>
import jax
import jax.numpy as jnp
from jax.experimental import pallas as pl
from jax.experimental.pallas import tpu as pltpu

CP = 8                      # internal channel padding (5 real channels -> 8)
_VMEM_LIMIT = 32 * 1024 * 1024


# ----------------------------------------------------------------------------
# In-kernel helpers
# ----------------------------------------------------------------------------
def _edge_pad(a, p):
    """Replicate ('edge') pad the two spatial dims of a (H, W, C) array."""
    if p == 0:
        return a
    a = jnp.concatenate([a[:1]] * p + [a] + [a[-1:]] * p, axis=0)
    a = jnp.concatenate([a[:, :1]] * p + [a] + [a[:, -1:]] * p, axis=1)
    return a


def _conv_taps(xpad, w_ref, acc_ref, H, W, K):
    """'Same' KxK conv of a replicate-padded (H+K-1, W+K-1, C) bf16 input.

    w_ref: (K, K*C, CP) bf16 with w_ref[kh, kw*C + ci, co] == weight[kh, kw, ci, co].
    Does KH matmuls over an im2col-along-W slab (contraction dim K*C), accumulating
    in the f32 VMEM scratch `acc_ref`.  Returns the (H*W, CP) f32 result.
    """
    C = xpad.shape[-1]
    # im2col along W, built once per conv: cols[r, w, kw*C + ci] = xpad[r, w + kw, ci]
    cols = jnp.concatenate([xpad[:, kw:kw + W, :] for kw in range(K)], axis=-1)
    for kh in range(K):
        a = cols[kh:kh + H].reshape(H * W, K * C)          # kh slice = cheap row offset
        t = jnp.dot(a, w_ref[kh], preferred_element_type=jnp.float32)
        if kh == 0:
            acc_ref[...] = t
        else:
            acc_ref[...] += t
    return acc_ref[...]


# ----------------------------------------------------------------------------
# Kernel 1: conv1 + per-image channel sum / sum-of-squares (for BN batch stats)
# ----------------------------------------------------------------------------
def _make_stats_kernel(H, W, K1):
    def kernel(x_ref, w1_ref, s_ref, q_ref, acc_ref):
        y1 = _conv_taps(x_ref[0], w1_ref, acc_ref, H, W, K1)       # (H*W, CP) f32
        s_ref[0] = jnp.sum(y1, axis=0, keepdims=True)
        q_ref[0] = jnp.sum(y1 * y1, axis=0, keepdims=True)
    return kernel


def _conv1_stats(xp, w1, H, W):
    N, Hp, Wp, Cin = xp.shape
    K1 = w1.shape[0]
    return pl.pallas_call(
        _make_stats_kernel(H, W, K1),
        out_shape=(jax.ShapeDtypeStruct((N, 1, CP), jnp.float32),
                   jax.ShapeDtypeStruct((N, 1, CP), jnp.float32)),
        grid=(N,),
        in_specs=[pl.BlockSpec((1, Hp, Wp, Cin), lambda n: (n, 0, 0, 0)),
                  pl.BlockSpec(w1.shape, lambda n: (0, 0, 0))],
        out_specs=(pl.BlockSpec((1, 1, CP), lambda n: (n, 0, 0)),
                   pl.BlockSpec((1, 1, CP), lambda n: (n, 0, 0))),
        scratch_shapes=[pltpu.VMEM((H * W, CP), jnp.float32)],
        compiler_params=pltpu.CompilerParams(
            dimension_semantics=("parallel",),
            vmem_limit_bytes=_VMEM_LIMIT),
    )(xp, w1)


# ----------------------------------------------------------------------------
# Kernel 2: fully fused conv1 -> BN affine -> ReLU -> conv2 -> conv3
# ----------------------------------------------------------------------------
def _make_fused_kernel(H, W, K1, K2, K3):
    def kernel(x_ref, w1_ref, w2_ref, w3_ref, sc_ref, sh_ref, o_ref, acc_ref):
        # conv1 (recomputed; cheaper than a HBM round-trip of its output)
        y1 = _conv_taps(x_ref[0], w1_ref, acc_ref, H, W, K1)        # (H*W, CP) f32
        # BatchNorm affine + ReLU fused into the consumer path
        h = jnp.maximum(y1 * sc_ref[...] + sh_ref[...], 0.0)
        hp = _edge_pad(h.reshape(H, W, CP), K2 // 2).astype(jnp.bfloat16)
        y2 = _conv_taps(hp, w2_ref, acc_ref, H, W, K2)              # (H*W, CP) f32
        hp = _edge_pad(y2.reshape(H, W, CP), K3 // 2).astype(jnp.bfloat16)
        y3 = _conv_taps(hp, w3_ref, acc_ref, H, W, K3)              # (H*W, CP) f32
        o_ref[0] = y3.reshape(H, W, CP).astype(o_ref.dtype)
    return kernel


def _fused_forward(xp, w1, w2, w3, scale, shift, H, W):
    N, Hp, Wp, Cin = xp.shape
    K1, K2, K3 = w1.shape[0], w2.shape[0], w3.shape[0]
    return pl.pallas_call(
        _make_fused_kernel(H, W, K1, K2, K3),
        out_shape=jax.ShapeDtypeStruct((N, H, W, CP), jnp.float32),
        grid=(N,),
        in_specs=[pl.BlockSpec((1, Hp, Wp, Cin), lambda n: (n, 0, 0, 0)),
                  pl.BlockSpec(w1.shape, lambda n: (0, 0, 0)),
                  pl.BlockSpec(w2.shape, lambda n: (0, 0, 0)),
                  pl.BlockSpec(w3.shape, lambda n: (0, 0, 0)),
                  pl.BlockSpec((1, CP), lambda n: (0, 0)),
                  pl.BlockSpec((1, CP), lambda n: (0, 0))],
        out_specs=pl.BlockSpec((1, H, W, CP), lambda n: (n, 0, 0, 0)),
        scratch_shapes=[pltpu.VMEM((H * W, CP), jnp.float32)],
        compiler_params=pltpu.CompilerParams(
            dimension_semantics=("parallel",),
            vmem_limit_bytes=_VMEM_LIMIT),
    )(xp, w1, w2, w3, scale, shift)


# ----------------------------------------------------------------------------
# Glue: parameter packing and full forward pass
# ----------------------------------------------------------------------------
def _pack_conv_weight(w_oihw, cin_pad, cout_pad):
    """PyTorch OIHW conv weight -> (KH, KW*cin_pad, cout_pad) bf16 tap-packed matrix."""
    O, I, KH, KW = w_oihw.shape
    w = jnp.transpose(w_oihw, (2, 3, 1, 0))                          # HWIO
    w = jnp.pad(w, ((0, 0), (0, 0), (0, cin_pad - I), (0, cout_pad - O)))
    return w.reshape(KH, KW * cin_pad, cout_pad).astype(jnp.bfloat16)


def out_module_forward(p, x, eps=1e-5):
    """Pallas forward of OutModule.  x: (N, in_channel, H, W) float32 NCHW."""
    N, CIN, H, W = x.shape
    C1 = p["w1"].shape[0]                  # conv1 / bn1 channels (5)
    C3 = p["w3"].shape[0]                  # final output channels (5)
    K1 = p["w1"].shape[2]

    w1 = _pack_conv_weight(p["w1"], CIN, CP)
    w2 = _pack_conv_weight(p["w2"], CP, CP)
    w3 = _pack_conv_weight(p["w3"], CP, CP)

    # NCHW -> NHWC, replicate pad once for conv1, bf16 to halve HBM->VMEM DMA bytes.
    xn = jnp.transpose(x, (0, 2, 3, 1))
    pad = K1 // 2
    xp = jnp.pad(xn, ((0, 0), (pad, pad), (pad, pad), (0, 0)),
                 mode="edge").astype(jnp.bfloat16)

    # Pass 1: conv1 per-channel batch statistics (training-mode BatchNorm).
    sums, sqs = _conv1_stats(xp, w1, H, W)
    cnt = jnp.float32(N * H * W)
    mean = jnp.sum(sums, axis=0).reshape(-1) / cnt
    var = jnp.maximum(jnp.sum(sqs, axis=0).reshape(-1) / cnt - mean * mean, 0.0)
    gamma = jnp.pad(p["gamma"], (0, CP - C1))
    beta = jnp.pad(p["beta"], (0, CP - C1))
    scale = gamma * jax.lax.rsqrt(var + eps)
    shift = beta - mean * scale

    # Pass 2: fully fused conv1 -> BN affine -> ReLU -> conv2 -> conv3.
    out = _fused_forward(xp, w1, w2, w3,
                         scale.reshape(1, CP), shift.reshape(1, CP), H, W)
    return jnp.transpose(out[..., :C3], (0, 3, 1, 2))                # NCHW like PyTorch


# ----------------------------------------------------------------------------
# Parameters (deterministic init, PyTorch OIHW layout) and pure-JAX reference
# ----------------------------------------------------------------------------
def init_params(key, in_channel):
    k1, k2, k3, kg, kb = jax.random.split(key, 5)

    def conv_w(k, o, i, ks):
        return jax.random.normal(k, (o, i, ks, ks), jnp.float32) / float(i * ks * ks) ** 0.5

    return {
        "w1": conv_w(k1, 5, in_channel, 5),
        "w2": conv_w(k2, 5, 5, 3),
        "w3": conv_w(k3, 5, 5, 5),
        "gamma": 1.0 + 0.1 * jax.random.normal(kg, (5,), jnp.float32),
        "beta": 0.1 * jax.random.normal(kb, (5,), jnp.float32),
    }


def out_module_ref(p, x, eps=1e-5):
    xn = jnp.transpose(x, (0, 2, 3, 1))

    def conv(h, w_oihw):
        w = jnp.transpose(w_oihw, (2, 3, 1, 0))                      # HWIO
        pad = w_oihw.shape[2] // 2
        hp = jnp.pad(h, ((0, 0), (pad, pad), (pad, pad), (0, 0)), mode="edge")
        return jax.lax.conv_general_dilated(
            hp, w, (1, 1), "VALID", dimension_numbers=("NHWC", "HWIO", "NHWC"))

    y1 = conv(xn, p["w1"])
    m = jnp.mean(y1, axis=(0, 1, 2))
    v = jnp.var(y1, axis=(0, 1, 2))
    h = jnp.maximum((y1 - m) * (p["gamma"] / jnp.sqrt(v + eps)) + p["beta"], 0.0)
    y = conv(conv(h, p["w2"]), p["w3"])
    return jnp.transpose(y, (0, 3, 1, 2))


if __name__ == "__main__":
    N, IN_CHANNEL, SPATIAL = 2, 12, 16

    key = jax.random.PRNGKey(0)
    kx, kp = jax.random.split(key)
    params = init_params(kp, IN_CHANNEL)
    x = jax.random.normal(kx, (N, IN_CHANNEL, SPATIAL, SPATIAL), jnp.float32)

    out = jax.block_until_ready(jax.jit(out_module_forward)(params, x))
    assert out.shape == (N, 5, SPATIAL, SPATIAL), out.shape

    ref = out_module_ref(params, x)
    rel_err = float(jnp.max(jnp.abs(out - ref)) / (jnp.max(jnp.abs(ref)) + 1e-6))
    assert bool(jnp.all(jnp.isfinite(out))) and rel_err < 5e-2, rel_err

    print("KERNEL_OK")
</pallas_src>

<mosaic_0001>
module attributes {stable_mosaic.version = 11 : i64} {
  func.func @kernel(%arg0: i32, %arg1: memref<1x20x20x12xbf16, #tpu.memory_space<vmem>>, %arg2: memref<5x60x8xbf16, #tpu.memory_space<vmem>>, %arg3: memref<1x1x8xf32, #tpu.memory_space<vmem>>, %arg4: memref<1x1x8xf32, #tpu.memory_space<vmem>>, %arg5: memref<256x8xf32, #tpu.memory_space<vmem>>) attributes {dimension_semantics = [#tpu.dimension_semantics<parallel>], iteration_bounds = array<i64: 2>, scalar_prefetch = 0 : i64, scratch_operands = 1 : i64, tpu.core_type = #tpu.core_type<tc>, window_params = [{transform_indices = @transform_0, window_bounds = array<i64: 1, 20, 20, 12>}, {pipeline_mode = #tpu.pipeline_mode<synchronous>, transform_indices = @transform_1, window_bounds = array<i64: 5, 60, 8>}, {transform_indices = @transform_2, window_bounds = array<i64: 1, 1, 8>}, {transform_indices = @transform_3, window_bounds = array<i64: 1, 1, 8>}]} {
    %c0 = arith.constant 0 : index
    %c0_0 = arith.constant 0 : index
    %c0_1 = arith.constant 0 : index
    %c0_2 = arith.constant 0 : index
    %0 = vector.load %arg1[%c0, %c0_0, %c0_1, %c0_2] : memref<1x20x20x12xbf16, #tpu.memory_space<vmem>>, vector<1x20x20x12xbf16>
    %1 = vector.shape_cast %0 : vector<1x20x20x12xbf16> to vector<20x20x12xbf16>
    %2 = vector.extract_strided_slice %1 {offsets = [0, 0, 0], sizes = [20, 16, 12], strides = [1, 1, 1]} : vector<20x20x12xbf16> to vector<20x16x12xbf16>
    %3 = vector.extract_strided_slice %1 {offsets = [0, 1, 0], sizes = [20, 16, 12], strides = [1, 1, 1]} : vector<20x20x12xbf16> to vector<20x16x12xbf16>
    %4 = vector.extract_strided_slice %1 {offsets = [0, 2, 0], sizes = [20, 16, 12], strides = [1, 1, 1]} : vector<20x20x12xbf16> to vector<20x16x12xbf16>
    %5 = vector.extract_strided_slice %1 {offsets = [0, 3, 0], sizes = [20, 16, 12], strides = [1, 1, 1]} : vector<20x20x12xbf16> to vector<20x16x12xbf16>
    %6 = vector.extract_strided_slice %1 {offsets = [0, 4, 0], sizes = [20, 16, 12], strides = [1, 1, 1]} : vector<20x20x12xbf16> to vector<20x16x12xbf16>
    %7 = tpu.concatenate %2, %3, %4, %5, %6 in 2 : vector<20x16x12xbf16>, vector<20x16x12xbf16>, vector<20x16x12xbf16>, vector<20x16x12xbf16>, vector<20x16x12xbf16> -> vector<20x16x60xbf16>
    %8 = vector.extract_strided_slice %7 {offsets = [0, 0, 0], sizes = [16, 16, 60], strides = [1, 1, 1]} : vector<20x16x60xbf16> to vector<16x16x60xbf16>
    %9 = vector.shape_cast %8 : vector<16x16x60xbf16> to vector<256x60xbf16>
    %c0_3 = arith.constant 0 : index
    %c0_4 = arith.constant 0 : index
    %c0_5 = arith.constant 0 : index
    %10 = vector.load %arg2[%c0_3, %c0_4, %c0_5] : memref<5x60x8xbf16, #tpu.memory_space<vmem>>, vector<1x60x8xbf16>
    %11 = vector.shape_cast %10 : vector<1x60x8xbf16> to vector<60x8xbf16>
    %cst = arith.constant dense<0.000000e+00> : vector<256x8xf32>
    %12 = tpu.matmul %9, %11, %cst {dimension_numbers = #tpu.dot_dimension_numbers<[1], [0], [0], [1], [0, 0, 1, 1], [], []>} : vector<256x60xbf16>, vector<60x8xbf16>, vector<256x8xf32> -> vector<256x8xf32>
    %c0_6 = arith.constant 0 : index
    %c0_7 = arith.constant 0 : index
    %13 = vector.load %arg5[%c0_6, %c0_7] : memref<256x8xf32, #tpu.memory_space<vmem>>, vector<256x8xf32>
    tpu.vector_store %arg5[%c0_6, %c0_7], %12 {strides = array<i32>} : memref<256x8xf32, #tpu.memory_space<vmem>>, vector<256x8xf32>,
    %14 = vector.extract_strided_slice %7 {offsets = [1, 0, 0], sizes = [16, 16, 60], strides = [1, 1, 1]} : vector<20x16x60xbf16> to vector<16x16x60xbf16>
    %15 = vector.shape_cast %14 : vector<16x16x60xbf16> to vector<256x60xbf16>
    %c1 = arith.constant 1 : index
    %c0_8 = arith.constant 0 : index
    %c0_9 = arith.constant 0 : index
    %16 = vector.load %arg2[%c1, %c0_8, %c0_9] : memref<5x60x8xbf16, #tpu.memory_space<vmem>>, vector<1x60x8xbf16>
    %17 = vector.shape_cast %16 : vector<1x60x8xbf16> to vector<60x8xbf16>
    %cst_10 = arith.constant dense<0.000000e+00> : vector<256x8xf32>
    %18 = tpu.matmul %15, %17, %cst_10 {dimension_numbers = #tpu.dot_dimension_numbers<[1], [0], [0], [1], [0, 0, 1, 1], [], []>} : vector<256x60xbf16>, vector<60x8xbf16>, vector<256x8xf32> -> vector<256x8xf32>
    %c0_11 = arith.constant 0 : index
    %c0_12 = arith.constant 0 : index
    %19 = vector.load %arg5[%c0_11, %c0_12] : memref<256x8xf32, #tpu.memory_space<vmem>>, vector<256x8xf32>
    %20 = arith.addf %19, %18 : vector<256x8xf32>
    %c0_13 = arith.constant 0 : index
    %c0_14 = arith.constant 0 : index
    %21 = vector.load %arg5[%c0_13, %c0_14] : memref<256x8xf32, #tpu.memory_space<vmem>>, vector<256x8xf32>
    tpu.vector_store %arg5[%c0_13, %c0_14], %20 {strides = array<i32>} : memref<256x8xf32, #tpu.memory_space<vmem>>, vector<256x8xf32>,
    %22 = vector.extract_strided_slice %7 {offsets = [2, 0, 0], sizes = [16, 16, 60], strides = [1, 1, 1]} : vector<20x16x60xbf16> to vector<16x16x60xbf16>
    %23 = vector.shape_cast %22 : vector<16x16x60xbf16> to vector<256x60xbf16>
    %c2 = arith.constant 2 : index
    %c0_15 = arith.constant 0 : index
    %c0_16 = arith.constant 0 : index
    %24 = vector.load %arg2[%c2, %c0_15, %c0_16] : memref<5x60x8xbf16, #tpu.memory_space<vmem>>, vector<1x60x8xbf16>
    %25 = vector.shape_cast %24 : vector<1x60x8xbf16> to vector<60x8xbf16>
    %cst_17 = arith.constant dense<0.000000e+00> : vector<256x8xf32>
    %26 = tpu.matmul %23, %25, %cst_17 {dimension_numbers = #tpu.dot_dimension_numbers<[1], [0], [0], [1], [0, 0, 1, 1], [], []>} : vector<256x60xbf16>, vector<60x8xbf16>, vector<256x8xf32> -> vector<256x8xf32>
    %c0_18 = arith.constant 0 : index
    %c0_19 = arith.constant 0 : index
    %27 = vector.load %arg5[%c0_18, %c0_19] : memref<256x8xf32, #tpu.memory_space<vmem>>, vector<256x8xf32>
    %28 = arith.addf %27, %26 : vector<256x8xf32>
    %c0_20 = arith.constant 0 : index
    %c0_21 = arith.constant 0 : index
    %29 = vector.load %arg5[%c0_20, %c0_21] : memref<256x8xf32, #tpu.memory_space<vmem>>, vector<256x8xf32>
    tpu.vector_store %arg5[%c0_20, %c0_21], %28 {strides = array<i32>} : memref<256x8xf32, #tpu.memory_space<vmem>>, vector<256x8xf32>,
    %30 = vector.extract_strided_slice %7 {offsets = [3, 0, 0], sizes = [16, 16, 60], strides = [1, 1, 1]} : vector<20x16x60xbf16> to vector<16x16x60xbf16>
    %31 = vector.shape_cast %30 : vector<16x16x60xbf16> to vector<256x60xbf16>
    %c3 = arith.constant 3 : index
    %c0_22 = arith.constant 0 : index
    %c0_23 = arith.constant 0 : index
    %32 = vector.load %arg2[%c3, %c0_22, %c0_23] : memref<5x60x8xbf16, #tpu.memory_space<vmem>>, vector<1x60x8xbf16>
    %33 = vector.shape_cast %32 : vector<1x60x8xbf16> to vector<60x8xbf16>
    %cst_24 = arith.constant dense<0.000000e+00> : vector<256x8xf32>
    %34 = tpu.matmul %31, %33, %cst_24 {dimension_numbers = #tpu.dot_dimension_numbers<[1], [0], [0], [1], [0, 0, 1, 1], [], []>} : vector<256x60xbf16>, vector<60x8xbf16>, vector<256x8xf32> -> vector<256x8xf32>
    %c0_25 = arith.constant 0 : index
    %c0_26 = arith.constant 0 : index
    %35 = vector.load %arg5[%c0_25, %c0_26] : memref<256x8xf32, #tpu.memory_space<vmem>>, vector<256x8xf32>
    %36 = arith.addf %35, %34 : vector<256x8xf32>
    %c0_27 = arith.constant 0 : index
    %c0_28 = arith.constant 0 : index
    %37 = vector.load %arg5[%c0_27, %c0_28] : memref<256x8xf32, #tpu.memory_space<vmem>>, vector<256x8xf32>
    tpu.vector_store %arg5[%c0_27, %c0_28], %36 {strides = array<i32>} : memref<256x8xf32, #tpu.memory_space<vmem>>, vector<256x8xf32>,
    %38 = vector.extract_strided_slice %7 {offsets = [4, 0, 0], sizes = [16, 16, 60], strides = [1, 1, 1]} : vector<20x16x60xbf16> to vector<16x16x60xbf16>
    %39 = vector.shape_cast %38 : vector<16x16x60xbf16> to vector<256x60xbf16>
    %c4 = arith.constant 4 : index
    %c0_29 = arith.constant 0 : index
    %c0_30 = arith.constant 0 : index
    %40 = vector.load %arg2[%c4, %c0_29, %c0_30] : memref<5x60x8xbf16, #tpu.memory_space<vmem>>, vector<1x60x8xbf16>
    %41 = vector.shape_cast %40 : vector<1x60x8xbf16> to vector<60x8xbf16>
    %cst_31 = arith.constant dense<0.000000e+00> : vector<256x8xf32>
    %42 = tpu.matmul %39, %41, %cst_31 {dimension_numbers = #tpu.dot_dimension_numbers<[1], [0], [0], [1], [0, 0, 1, 1], [], []>} : vector<256x60xbf16>, vector<60x8xbf16>, vector<256x8xf32> -> vector<256x8xf32>
    %c0_32 = arith.constant 0 : index
    %c0_33 = arith.constant 0 : index
    %43 = vector.load %arg5[%c0_32, %c0_33] : memref<256x8xf32, #tpu.memory_space<vmem>>, vector<256x8xf32>
    %44 = arith.addf %43, %42 : vector<256x8xf32>
    %c0_34 = arith.constant 0 : index
    %c0_35 = arith.constant 0 : index
    %45 = vector.load %arg5[%c0_34, %c0_35] : memref<256x8xf32, #tpu.memory_space<vmem>>, vector<256x8xf32>
    tpu.vector_store %arg5[%c0_34, %c0_35], %44 {strides = array<i32>} : memref<256x8xf32, #tpu.memory_space<vmem>>, vector<256x8xf32>,
    %c0_36 = arith.constant 0 : index
    %c0_37 = arith.constant 0 : index
    %46 = vector.load %arg5[%c0_36, %c0_37] : memref<256x8xf32, #tpu.memory_space<vmem>>, vector<256x8xf32>
    %cst_38 = arith.constant dense<0.000000e+00> : vector<8xf32>
    %47 = vector.multi_reduction <add>, %46, %cst_38 [0] : vector<256x8xf32> to vector<8xf32>
    %48 = vector.shape_cast %47 : vector<8xf32> to vector<1x8xf32>
    %c0_39 = arith.constant 0 : index
    %c0_40 = arith.constant 0 : index
    %c0_41 = arith.constant 0 : index
    %49 = vector.load %arg3[%c0_39, %c0_40, %c0_41] : memref<1x1x8xf32, #tpu.memory_space<vmem>>, vector<1x1x8xf32>
    %50 = vector.shape_cast %49 : vector<1x1x8xf32> to vector<1x8xf32>
    %51 = vector.shape_cast %48 : vector<1x8xf32> to vector<1x1x8xf32>
    tpu.vector_store %arg3[%c0_39, %c0_40, %c0_41], %51 {strides = array<i32>} : memref<1x1x8xf32, #tpu.memory_space<vmem>>, vector<1x1x8xf32>,
    %52 = arith.mulf %46, %46 : vector<256x8xf32>
    %cst_42 = arith.constant dense<0.000000e+00> : vector<8xf32>
    %53 = vector.multi_reduction <add>, %52, %cst_42 [0] : vector<256x8xf32> to vector<8xf32>
    %54 = vector.shape_cast %53 : vector<8xf32> to vector<1x8xf32>
    %c0_43 = arith.constant 0 : index
    %c0_44 = arith.constant 0 : index
    %c0_45 = arith.constant 0 : index
    %55 = vector.load %arg4[%c0_43, %c0_44, %c0_45] : memref<1x1x8xf32, #tpu.memory_space<vmem>>, vector<1x1x8xf32>
    %56 = vector.shape_cast %55 : vector<1x1x8xf32> to vector<1x8xf32>
    %57 = vector.shape_cast %54 : vector<1x8xf32> to vector<1x1x8xf32>
    tpu.vector_store %arg4[%c0_43, %c0_44, %c0_45], %57 {strides = array<i32>} : memref<1x1x8xf32, #tpu.memory_space<vmem>>, vector<1x1x8xf32>,
    return
  }
  func.func @transform_0(%arg0: i32) -> (i32, i32, i32, i32) {
    %c0_i32 = arith.constant 0 : i32
    %c0_i32_0 = arith.constant 0 : i32
    %c0_i32_1 = arith.constant 0 : i32
    %c0_i32_2 = arith.constant 0 : i32
    return %arg0, %c0_i32, %c0_i32_0, %c0_i32_1 : i32, i32, i32, i32
  }
  func.func @transform_1(%arg0: i32) -> (i32, i32, i32) {
    %c0_i32 = arith.constant 0 : i32
    %c0_i32_0 = arith.constant 0 : i32
    %c0_i32_1 = arith.constant 0 : i32
    %c0_i32_2 = arith.constant 0 : i32
    return %c0_i32, %c0_i32_0, %c0_i32_1 : i32, i32, i32
  }
  func.func @transform_2(%arg0: i32) -> (i32, i32, i32) {
    %c0_i32 = arith.constant 0 : i32
    %c0_i32_0 = arith.constant 0 : i32
    %c0_i32_1 = arith.constant 0 : i32
    return %arg0, %c0_i32, %c0_i32_0 : i32, i32, i32
  }
  func.func @transform_3(%arg0: i32) -> (i32, i32, i32) {
    %c0_i32 = arith.constant 0 : i32
    %c0_i32_0 = arith.constant 0 : i32
    %c0_i32_1 = arith.constant 0 : i32
    return %arg0, %c0_i32, %c0_i32_0 : i32, i32, i32
  }
}

module attributes {stable_mosaic.version = 11 : i64} {
  func.func @kernel(%arg0: i32, %arg1: memref<1x20x20x12xbf16, #tpu.memory_space<vmem>>, %arg2: memref<5x60x8xbf16, #tpu.memory_space<vmem>>, %arg3: memref<3x24x8xbf16, #tpu.memory_space<vmem>>, %arg4: memref<5x40x8xbf16, #tpu.memory_space<vmem>>, %arg5: memref<1x8xf32, #tpu.memory_space<vmem>>, %arg6: memref<1x8xf32, #tpu.memory_space<vmem>>, %arg7: memref<1x16x16x8xf32, #tpu.memory_space<vmem>>, %arg8: memref<256x8xf32, #tpu.memory_space<vmem>>) attributes {dimension_semantics = [#tpu.dimension_semantics<parallel>], iteration_bounds = array<i64: 2>, scalar_prefetch = 0 : i64, scratch_operands = 1 : i64, tpu.core_type = #tpu.core_type<tc>, window_params = [{transform_indices = @transform_0, window_bounds = array<i64: 1, 20, 20, 12>}, {pipeline_mode = #tpu.pipeline_mode<synchronous>, transform_indices = @transform_1, window_bounds = array<i64: 5, 60, 8>}, {pipeline_mode = #tpu.pipeline_mode<synchronous>, transform_indices = @transform_2, window_bounds = array<i64: 3, 24, 8>}, {pipeline_mode = #tpu.pipeline_mode<synchronous>, transform_indices = @transform_3, window_bounds = array<i64: 5, 40, 8>}, {pipeline_mode = #tpu.pipeline_mode<synchronous>, transform_indices = @transform_4, window_bounds = array<i64: 1, 8>}, {pipeline_mode = #tpu.pipeline_mode<synchronous>, transform_indices = @transform_5, window_bounds = array<i64: 1, 8>}, {transform_indices = @transform_6, window_bounds = array<i64: 1, 16, 16, 8>}]} {
    %c0 = arith.constant 0 : index
    %c0_0 = arith.constant 0 : index
    %c0_1 = arith.constant 0 : index
    %c0_2 = arith.constant 0 : index
    %0 = vector.load %arg1[%c0, %c0_0, %c0_1, %c0_2] : memref<1x20x20x12xbf16, #tpu.memory_space<vmem>>, vector<1x20x20x12xbf16>
    %1 = vector.shape_cast %0 : vector<1x20x20x12xbf16> to vector<20x20x12xbf16>
    %2 = vector.extract_strided_slice %1 {offsets = [0, 0, 0], sizes = [20, 16, 12], strides = [1, 1, 1]} : vector<20x20x12xbf16> to vector<20x16x12xbf16>
    %3 = vector.extract_strided_slice %1 {offsets = [0, 1, 0], sizes = [20, 16, 12], strides = [1, 1, 1]} : vector<20x20x12xbf16> to vector<20x16x12xbf16>
    %4 = vector.extract_strided_slice %1 {offsets = [0, 2, 0], sizes = [20, 16, 12], strides = [1, 1, 1]} : vector<20x20x12xbf16> to vector<20x16x12xbf16>
    %5 = vector.extract_strided_slice %1 {offsets = [0, 3, 0], sizes = [20, 16, 12], strides = [1, 1, 1]} : vector<20x20x12xbf16> to vector<20x16x12xbf16>
    %6 = vector.extract_strided_slice %1 {offsets = [0, 4, 0], sizes = [20, 16, 12], strides = [1, 1, 1]} : vector<20x20x12xbf16> to vector<20x16x12xbf16>
    %7 = tpu.concatenate %2, %3, %4, %5, %6 in 2 : vector<20x16x12xbf16>, vector<20x16x12xbf16>, vector<20x16x12xbf16>, vector<20x16x12xbf16>, vector<20x16x12xbf16> -> vector<20x16x60xbf16>
    %8 = vector.extract_strided_slice %7 {offsets = [0, 0, 0], sizes = [16, 16, 60], strides = [1, 1, 1]} : vector<20x16x60xbf16> to vector<16x16x60xbf16>
    %9 = vector.shape_cast %8 : vector<16x16x60xbf16> to vector<256x60xbf16>
    %c0_3 = arith.constant 0 : index
    %c0_4 = arith.constant 0 : index
    %c0_5 = arith.constant 0 : index
    %10 = vector.load %arg2[%c0_3, %c0_4, %c0_5] : memref<5x60x8xbf16, #tpu.memory_space<vmem>>, vector<1x60x8xbf16>
    %11 = vector.shape_cast %10 : vector<1x60x8xbf16> to vector<60x8xbf16>
    %cst = arith.constant dense<0.000000e+00> : vector<256x8xf32>
    %12 = tpu.matmul %9, %11, %cst {dimension_numbers = #tpu.dot_dimension_numbers<[1], [0], [0], [1], [0, 0, 1, 1], [], []>} : vector<256x60xbf16>, vector<60x8xbf16>, vector<256x8xf32> -> vector<256x8xf32>
    %c0_6 = arith.constant 0 : index
    %c0_7 = arith.constant 0 : index
    %13 = vector.load %arg8[%c0_6, %c0_7] : memref<256x8xf32, #tpu.memory_space<vmem>>, vector<256x8xf32>
    tpu.vector_store %arg8[%c0_6, %c0_7], %12 {strides = array<i32>} : memref<256x8xf32, #tpu.memory_space<vmem>>, vector<256x8xf32>,
    %14 = vector.extract_strided_slice %7 {offsets = [1, 0, 0], sizes = [16, 16, 60], strides = [1, 1, 1]} : vector<20x16x60xbf16> to vector<16x16x60xbf16>
    %15 = vector.shape_cast %14 : vector<16x16x60xbf16> to vector<256x60xbf16>
    %c1 = arith.constant 1 : index
    %c0_8 = arith.constant 0 : index
    %c0_9 = arith.constant 0 : index
    %16 = vector.load %arg2[%c1, %c0_8, %c0_9] : memref<5x60x8xbf16, #tpu.memory_space<vmem>>, vector<1x60x8xbf16>
    %17 = vector.shape_cast %16 : vector<1x60x8xbf16> to vector<60x8xbf16>
    %cst_10 = arith.constant dense<0.000000e+00> : vector<256x8xf32>
    %18 = tpu.matmul %15, %17, %cst_10 {dimension_numbers = #tpu.dot_dimension_numbers<[1], [0], [0], [1], [0, 0, 1, 1], [], []>} : vector<256x60xbf16>, vector<60x8xbf16>, vector<256x8xf32> -> vector<256x8xf32>
    %c0_11 = arith.constant 0 : index
    %c0_12 = arith.constant 0 : index
    %19 = vector.load %arg8[%c0_11, %c0_12] : memref<256x8xf32, #tpu.memory_space<vmem>>, vector<256x8xf32>
    %20 = arith.addf %19, %18 : vector<256x8xf32>
    %c0_13 = arith.constant 0 : index
    %c0_14 = arith.constant 0 : index
    %21 = vector.load %arg8[%c0_13, %c0_14] : memref<256x8xf32, #tpu.memory_space<vmem>>, vector<256x8xf32>
    tpu.vector_store %arg8[%c0_13, %c0_14], %20 {strides = array<i32>} : memref<256x8xf32, #tpu.memory_space<vmem>>, vector<256x8xf32>,
    %22 = vector.extract_strided_slice %7 {offsets = [2, 0, 0], sizes = [16, 16, 60], strides = [1, 1, 1]} : vector<20x16x60xbf16> to vector<16x16x60xbf16>
    %23 = vector.shape_cast %22 : vector<16x16x60xbf16> to vector<256x60xbf16>
    %c2 = arith.constant 2 : index
    %c0_15 = arith.constant 0 : index
    %c0_16 = arith.constant 0 : index
    %24 = vector.load %arg2[%c2, %c0_15, %c0_16] : memref<5x60x8xbf16, #tpu.memory_space<vmem>>, vector<1x60x8xbf16>
    %25 = vector.shape_cast %24 : vector<1x60x8xbf16> to vector<60x8xbf16>
    %cst_17 = arith.constant dense<0.000000e+00> : vector<256x8xf32>
    %26 = tpu.matmul %23, %25, %cst_17 {dimension_numbers = #tpu.dot_dimension_numbers<[1], [0], [0], [1], [0, 0, 1, 1], [], []>} : vector<256x60xbf16>, vector<60x8xbf16>, vector<256x8xf32> -> vector<256x8xf32>
    %c0_18 = arith.constant 0 : index
    %c0_19 = arith.constant 0 : index
    %27 = vector.load %arg8[%c0_18, %c0_19] : memref<256x8xf32, #tpu.memory_space<vmem>>, vector<256x8xf32>
    %28 = arith.addf %27, %26 : vector<256x8xf32>
    %c0_20 = arith.constant 0 : index
    %c0_21 = arith.constant 0 : index
    %29 = vector.load %arg8[%c0_20, %c0_21] : memref<256x8xf32, #tpu.memory_space<vmem>>, vector<256x8xf32>
    tpu.vector_store %arg8[%c0_20, %c0_21], %28 {strides = array<i32>} : memref<256x8xf32, #tpu.memory_space<vmem>>, vector<256x8xf32>,
    %30 = vector.extract_strided_slice %7 {offsets = [3, 0, 0], sizes = [16, 16, 60], strides = [1, 1, 1]} : vector<20x16x60xbf16> to vector<16x16x60xbf16>
    %31 = vector.shape_cast %30 : vector<16x16x60xbf16> to vector<256x60xbf16>
    %c3 = arith.constant 3 : index
    %c0_22 = arith.constant 0 : index
    %c0_23 = arith.constant 0 : index
    %32 = vector.load %arg2[%c3, %c0_22, %c0_23] : memref<5x60x8xbf16, #tpu.memory_space<vmem>>, vector<1x60x8xbf16>
    %33 = vector.shape_cast %32 : vector<1x60x8xbf16> to vector<60x8xbf16>
    %cst_24 = arith.constant dense<0.000000e+00> : vector<256x8xf32>
    %34 = tpu.matmul %31, %33, %cst_24 {dimension_numbers = #tpu.dot_dimension_numbers<[1], [0], [0], [1], [0, 0, 1, 1], [], []>} : vector<256x60xbf16>, vector<60x8xbf16>, vector<256x8xf32> -> vector<256x8xf32>
    %c0_25 = arith.constant 0 : index
    %c0_26 = arith.constant 0 : index
    %35 = vector.load %arg8[%c0_25, %c0_26] : memref<256x8xf32, #tpu.memory_space<vmem>>, vector<256x8xf32>
    %36 = arith.addf %35, %34 : vector<256x8xf32>
    %c0_27 = arith.constant 0 : index
    %c0_28 = arith.constant 0 : index
    %37 = vector.load %arg8[%c0_27, %c0_28] : memref<256x8xf32, #tpu.memory_space<vmem>>, vector<256x8xf32>
    tpu.vector_store %arg8[%c0_27, %c0_28], %36 {strides = array<i32>} : memref<256x8xf32, #tpu.memory_space<vmem>>, vector<256x8xf32>,
    %38 = vector.extract_strided_slice %7 {offsets = [4, 0, 0], sizes = [16, 16, 60], strides = [1, 1, 1]} : vector<20x16x60xbf16> to vector<16x16x60xbf16>
    %39 = vector.shape_cast %38 : vector<16x16x60xbf16> to vector<256x60xbf16>
    %c4 = arith.constant 4 : index
    %c0_29 = arith.constant 0 : index
    %c0_30 = arith.constant 0 : index
    %40 = vector.load %arg2[%c4, %c0_29, %c0_30] : memref<5x60x8xbf16, #tpu.memory_space<vmem>>, vector<1x60x8xbf16>
    %41 = vector.shape_cast %40 : vector<1x60x8xbf16> to vector<60x8xbf16>
    %cst_31 = arith.constant dense<0.000000e+00> : vector<256x8xf32>
    %42 = tpu.matmul %39, %41, %cst_31 {dimension_numbers = #tpu.dot_dimension_numbers<[1], [0], [0], [1], [0, 0, 1, 1], [], []>} : vector<256x60xbf16>, vector<60x8xbf16>, vector<256x8xf32> -> vector<256x8xf32>
    %c0_32 = arith.constant 0 : index
    %c0_33 = arith.constant 0 : index
    %43 = vector.load %arg8[%c0_32, %c0_33] : memref<256x8xf32, #tpu.memory_space<vmem>>, vector<256x8xf32>
    %44 = arith.addf %43, %42 : vector<256x8xf32>
    %c0_34 = arith.constant 0 : index
    %c0_35 = arith.constant 0 : index
    %45 = vector.load %arg8[%c0_34, %c0_35] : memref<256x8xf32, #tpu.memory_space<vmem>>, vector<256x8xf32>
    tpu.vector_store %arg8[%c0_34, %c0_35], %44 {strides = array<i32>} : memref<256x8xf32, #tpu.memory_space<vmem>>, vector<256x8xf32>,
    %c0_36 = arith.constant 0 : index
    %c0_37 = arith.constant 0 : index
    %46 = vector.load %arg8[%c0_36, %c0_37] : memref<256x8xf32, #tpu.memory_space<vmem>>, vector<256x8xf32>
    %c0_38 = arith.constant 0 : index
    %c0_39 = arith.constant 0 : index
    %47 = vector.load %arg5[%c0_38, %c0_39] : memref<1x8xf32, #tpu.memory_space<vmem>>, vector<1x8xf32>
    %48 = vector.broadcast %47 : vector<1x8xf32> to vector<256x8xf32>
    %49 = arith.mulf %46, %48 : vector<256x8xf32>
    %c0_40 = arith.constant 0 : index
    %c0_41 = arith.constant 0 : index
    %50 = vector.load %arg6[%c0_40, %c0_41] : memref<1x8xf32, #tpu.memory_space<vmem>>, vector<1x8xf32>
    %51 = vector.broadcast %50 : vector<1x8xf32> to vector<256x8xf32>
    %52 = arith.addf %49, %51 : vector<256x8xf32>
    %cst_42 = arith.constant 0.000000e+00 : f32
    %53 = vector.broadcast %cst_42 : f32 to vector<256x8xf32>
    %54 = arith.maximumf %52, %53 : vector<256x8xf32>
    %55 = vector.shape_cast %54 : vector<256x8xf32> to vector<16x16x8xf32>
    %56 = vector.extract_strided_slice %55 {offsets = [0, 0, 0], sizes = [1, 16, 8], strides = [1, 1, 1]} : vector<16x16x8xf32> to vector<1x16x8xf32>
    %57 = vector.extract_strided_slice %55 {offsets = [15, 0, 0], sizes = [1, 16, 8], strides = [1, 1, 1]} : vector<16x16x8xf32> to vector<1x16x8xf32>
    %58 = tpu.concatenate %56, %55, %57 in 0 : vector<1x16x8xf32>, vector<16x16x8xf32>, vector<1x16x8xf32> -> vector<18x16x8xf32>
    %59 = vector.extract_strided_slice %58 {offsets = [0, 0, 0], sizes = [18, 1, 8], strides = [1, 1, 1]} : vector<18x16x8xf32> to vector<18x1x8xf32>
    %60 = vector.extract_strided_slice %58 {offsets = [0, 15, 0], sizes = [18, 1, 8], strides = [1, 1, 1]} : vector<18x16x8xf32> to vector<18x1x8xf32>
    %61 = tpu.concatenate %59, %58, %60 in 1 : vector<18x1x8xf32>, vector<18x16x8xf32>, vector<18x1x8xf32> -> vector<18x18x8xf32>
    %62 = arith.truncf %61 : vector<18x18x8xf32> to vector<18x18x8xbf16>
    %63 = vector.extract_strided_slice %62 {offsets = [0, 0, 0], sizes = [18, 16, 8], strides = [1, 1, 1]} : vector<18x18x8xbf16> to vector<18x16x8xbf16>
    %64 = vector.extract_strided_slice %62 {offsets = [0, 1, 0], sizes = [18, 16, 8], strides = [1, 1, 1]} : vector<18x18x8xbf16> to vector<18x16x8xbf16>
    %65 = vector.extract_strided_slice %62 {offsets = [0, 2, 0], sizes = [18, 16, 8], strides = [1, 1, 1]} : vector<18x18x8xbf16> to vector<18x16x8xbf16>
    %66 = tpu.concatenate %63, %64, %65 in 2 : vector<18x16x8xbf16>, vector<18x16x8xbf16>, vector<18x16x8xbf16> -> vector<18x16x24xbf16>
    %67 = vector.extract_strided_slice %66 {offsets = [0, 0, 0], sizes = [16, 16, 24], strides = [1, 1, 1]} : vector<18x16x24xbf16> to vector<16x16x24xbf16>
    %68 = vector.shape_cast %67 : vector<16x16x24xbf16> to vector<256x24xbf16>
    %c0_43 = arith.constant 0 : index
    %c0_44 = arith.constant 0 : index
    %c0_45 = arith.constant 0 : index
    %69 = vector.load %arg3[%c0_43, %c0_44, %c0_45] : memref<3x24x8xbf16, #tpu.memory_space<vmem>>, vector<1x24x8xbf16>
    %70 = vector.shape_cast %69 : vector<1x24x8xbf16> to vector<24x8xbf16>
    %cst_46 = arith.constant dense<0.000000e+00> : vector<256x8xf32>
    %71 = tpu.matmul %68, %70, %cst_46 {dimension_numbers = #tpu.dot_dimension_numbers<[1], [0], [0], [1], [0, 0, 1, 1], [], []>} : vector<256x24xbf16>, vector<24x8xbf16>, vector<256x8xf32> -> vector<256x8xf32>
    %c0_47 = arith.constant 0 : index
    %c0_48 = arith.constant 0 : index
    %72 = vector.load %arg8[%c0_47, %c0_48] : memref<256x8xf32, #tpu.memory_space<vmem>>, vector<256x8xf32>
    tpu.vector_store %arg8[%c0_47, %c0_48], %71 {strides = array<i32>} : memref<256x8xf32, #tpu.memory_space<vmem>>, vector<256x8xf32>,
    %73 = vector.extract_strided_slice %66 {offsets = [1, 0, 0], sizes = [16, 16, 24], strides = [1, 1, 1]} : vector<18x16x24xbf16> to vector<16x16x24xbf16>
    %74 = vector.shape_cast %73 : vector<16x16x24xbf16> to vector<256x24xbf16>
    %c1_49 = arith.constant 1 : index
    %c0_50 = arith.constant 0 : index
    %c0_51 = arith.constant 0 : index
    %75 = vector.load %arg3[%c1_49, %c0_50, %c0_51] : memref<3x24x8xbf16, #tpu.memory_space<vmem>>, vector<1x24x8xbf16>
    %76 = vector.shape_cast %75 : vector<1x24x8xbf16> to vector<24x8xbf16>
    %cst_52 = arith.constant dense<0.000000e+00> : vector<256x8xf32>
    %77 = tpu.matmul %74, %76, %cst_52 {dimension_numbers = #tpu.dot_dimension_numbers<[1], [0], [0], [1], [0, 0, 1, 1], [], []>} : vector<256x24xbf16>, vector<24x8xbf16>, vector<256x8xf32> -> vector<256x8xf32>
    %c0_53 = arith.constant 0 : index
    %c0_54 = arith.constant 0 : index
    %78 = vector.load %arg8[%c0_53, %c0_54] : memref<256x8xf32, #tpu.memory_space<vmem>>, vector<256x8xf32>
    %79 = arith.addf %78, %77 : vector<256x8xf32>
    %c0_55 = arith.constant 0 : index
    %c0_56 = arith.constant 0 : index
    %80 = vector.load %arg8[%c0_55, %c0_56] : memref<256x8xf32, #tpu.memory_space<vmem>>, vector<256x8xf32>
    tpu.vector_store %arg8[%c0_55, %c0_56], %79 {strides = array<i32>} : memref<256x8xf32, #tpu.memory_space<vmem>>, vector<256x8xf32>,
    %81 = vector.extract_strided_slice %66 {offsets = [2, 0, 0], sizes = [16, 16, 24], strides = [1, 1, 1]} : vector<18x16x24xbf16> to vector<16x16x24xbf16>
    %82 = vector.shape_cast %81 : vector<16x16x24xbf16> to vector<256x24xbf16>
    %c2_57 = arith.constant 2 : index
    %c0_58 = arith.constant 0 : index
    %c0_59 = arith.constant 0 : index
    %83 = vector.load %arg3[%c2_57, %c0_58, %c0_59] : memref<3x24x8xbf16, #tpu.memory_space<vmem>>, vector<1x24x8xbf16>
    %84 = vector.shape_cast %83 : vector<1x24x8xbf16> to vector<24x8xbf16>
    %cst_60 = arith.constant dense<0.000000e+00> : vector<256x8xf32>
    %85 = tpu.matmul %82, %84, %cst_60 {dimension_numbers = #tpu.dot_dimension_numbers<[1], [0], [0], [1], [0, 0, 1, 1], [], []>} : vector<256x24xbf16>, vector<24x8xbf16>, vector<256x8xf32> -> vector<256x8xf32>
    %c0_61 = arith.constant 0 : index
    %c0_62 = arith.constant 0 : index
    %86 = vector.load %arg8[%c0_61, %c0_62] : memref<256x8xf32, #tpu.memory_space<vmem>>, vector<256x8xf32>
    %87 = arith.addf %86, %85 : vector<256x8xf32>
    %c0_63 = arith.constant 0 : index
    %c0_64 = arith.constant 0 : index
    %88 = vector.load %arg8[%c0_63, %c0_64] : memref<256x8xf32, #tpu.memory_space<vmem>>, vector<256x8xf32>
    tpu.vector_store %arg8[%c0_63, %c0_64], %87 {strides = array<i32>} : memref<256x8xf32, #tpu.memory_space<vmem>>, vector<256x8xf32>,
    %c0_65 = arith.constant 0 : index
    %c0_66 = arith.constant 0 : index
    %89 = vector.load %arg8[%c0_65, %c0_66] : memref<256x8xf32, #tpu.memory_space<vmem>>, vector<256x8xf32>
    %90 = vector.shape_cast %89 : vector<256x8xf32> to vector<16x16x8xf32>
    %91 = vector.extract_strided_slice %90 {offsets = [0, 0, 0], sizes = [1, 16, 8], strides = [1, 1, 1]} : vector<16x16x8xf32> to vector<1x16x8xf32>
    %92 = vector.extract_strided_slice %90 {offsets = [15, 0, 0], sizes = [1, 16, 8], strides = [1, 1, 1]} : vector<16x16x8xf32> to vector<1x16x8xf32>
    %93 = tpu.concatenate %91, %91, %90, %92, %92 in 0 : vector<1x16x8xf32>, vector<1x16x8xf32>, vector<16x16x8xf32>, vector<1x16x8xf32>, vector<1x16x8xf32> -> vector<20x16x8xf32>
    %94 = vector.extract_strided_slice %93 {offsets = [0, 0, 0], sizes = [20, 1, 8], strides = [1, 1, 1]} : vector<20x16x8xf32> to vector<20x1x8xf32>
    %95 = vector.extract_strided_slice %93 {offsets = [0, 15, 0], sizes = [20, 1, 8], strides = [1, 1, 1]} : vector<20x16x8xf32> to vector<20x1x8xf32>
    %96 = tpu.concatenate %94, %94, %93, %95, %95 in 1 : vector<20x1x8xf32>, vector<20x1x8xf32>, vector<20x16x8xf32>, vector<20x1x8xf32>, vector<20x1x8xf32> -> vector<20x20x8xf32>
    %97 = arith.truncf %96 : vector<20x20x8xf32> to vector<20x20x8xbf16>
    %98 = vector.extract_strided_slice %97 {offsets = [0, 0, 0], sizes = [20, 16, 8], strides = [1, 1, 1]} : vector<20x20x8xbf16> to vector<20x16x8xbf16>
    %99 = vector.extract_strided_slice %97 {offsets = [0, 1, 0], sizes = [20, 16, 8], strides = [1, 1, 1]} : vector<20x20x8xbf16> to vector<20x16x8xbf16>
    %100 = vector.extract_strided_slice %97 {offsets = [0, 2, 0], sizes = [20, 16, 8], strides = [1, 1, 1]} : vector<20x20x8xbf16> to vector<20x16x8xbf16>
    %101 = vector.extract_strided_slice %97 {offsets = [0, 3, 0], sizes = [20, 16, 8], strides = [1, 1, 1]} : vector<20x20x8xbf16> to vector<20x16x8xbf16>
    %102 = vector.extract_strided_slice %97 {offsets = [0, 4, 0], sizes = [20, 16, 8], strides = [1, 1, 1]} : vector<20x20x8xbf16> to vector<20x16x8xbf16>
    %103 = tpu.concatenate %98, %99, %100, %101, %102 in 2 : vector<20x16x8xbf16>, vector<20x16x8xbf16>, vector<20x16x8xbf16>, vector<20x16x8xbf16>, vector<20x16x8xbf16> -> vector<20x16x40xbf16>
    %104 = vector.extract_strided_slice %103 {offsets = [0, 0, 0], sizes = [16, 16, 40], strides = [1, 1, 1]} : vector<20x16x40xbf16> to vector<16x16x40xbf16>
    %105 = vector.shape_cast %104 : vector<16x16x40xbf16> to vector<256x40xbf16>
    %c0_67 = arith.constant 0 : index
    %c0_68 = arith.constant 0 : index
    %c0_69 = arith.constant 0 : index
    %106 = vector.load %arg4[%c0_67, %c0_68, %c0_69] : memref<5x40x8xbf16, #tpu.memory_space<vmem>>, vector<1x40x8xbf16>
    %107 = vector.shape_cast %106 : vector<1x40x8xbf16> to vector<40x8xbf16>
    %cst_70 = arith.constant dense<0.000000e+00> : vector<256x8xf32>
    %108 = tpu.matmul %105, %107, %cst_70 {dimension_numbers = #tpu.dot_dimension_numbers<[1], [0], [0], [1], [0, 0, 1, 1], [], []>} : vector<256x40xbf16>, vector<40x8xbf16>, vector<256x8xf32> -> vector<256x8xf32>
    %c0_71 = arith.constant 0 : index
    %c0_72 = arith.constant 0 : index
    %109 = vector.load %arg8[%c0_71, %c0_72] : memref<256x8xf32, #tpu.memory_space<vmem>>, vector<256x8xf32>
    tpu.vector_store %arg8[%c0_71, %c0_72], %108 {strides = array<i32>} : memref<256x8xf32, #tpu.memory_space<vmem>>, vector<256x8xf32>,
    %110 = vector.extract_strided_slice %103 {offsets = [1, 0, 0], sizes = [16, 16, 40], strides = [1, 1, 1]} : vector<20x16x40xbf16> to vector<16x16x40xbf16>
    %111 = vector.shape_cast %110 : vector<16x16x40xbf16> to vector<256x40xbf16>
    %c1_73 = arith.constant 1 : index
    %c0_74 = arith.constant 0 : index
    %c0_75 = arith.constant 0 : index
    %112 = vector.load %arg4[%c1_73, %c0_74, %c0_75] : memref<5x40x8xbf16, #tpu.memory_space<vmem>>, vector<1x40x8xbf16>
    %113 = vector.shape_cast %112 : vector<1x40x8xbf16> to vector<40x8xbf16>
    %cst_76 = arith.constant dense<0.000000e+00> : vector<256x8xf32>
    %114 = tpu.matmul %111, %113, %cst_76 {dimension_numbers = #tpu.dot_dimension_numbers<[1], [0], [0], [1], [0, 0, 1, 1], [], []>} : vector<256x40xbf16>, vector<40x8xbf16>, vector<256x8xf32> -> vector<256x8xf32>
    %c0_77 = arith.constant 0 : index
    %c0_78 = arith.constant 0 : index
    %115 = vector.load %arg8[%c0_77, %c0_78] : memref<256x8xf32, #tpu.memory_space<vmem>>, vector<256x8xf32>
    %116 = arith.addf %115, %114 : vector<256x8xf32>
    %c0_79 = arith.constant 0 : index
    %c0_80 = arith.constant 0 : index
    %117 = vector.load %arg8[%c0_79, %c0_80] : memref<256x8xf32, #tpu.memory_space<vmem>>, vector<256x8xf32>
    tpu.vector_store %arg8[%c0_79, %c0_80], %116 {strides = array<i32>} : memref<256x8xf32, #tpu.memory_space<vmem>>, vector<256x8xf32>,
    %118 = vector.extract_strided_slice %103 {offsets = [2, 0, 0], sizes = [16, 16, 40], strides = [1, 1, 1]} : vector<20x16x40xbf16> to vector<16x16x40xbf16>
    %119 = vector.shape_cast %118 : vector<16x16x40xbf16> to vector<256x40xbf16>
    %c2_81 = arith.constant 2 : index
    %c0_82 = arith.constant 0 : index
    %c0_83 = arith.constant 0 : index
    %120 = vector.load %arg4[%c2_81, %c0_82, %c0_83] : memref<5x40x8xbf16, #tpu.memory_space<vmem>>, vector<1x40x8xbf16>
    %121 = vector.shape_cast %120 : vector<1x40x8xbf16> to vector<40x8xbf16>
    %cst_84 = arith.constant dense<0.000000e+00> : vector<256x8xf32>
    %122 = tpu.matmul %119, %121, %cst_84 {dimension_numbers = #tpu.dot_dimension_numbers<[1], [0], [0], [1], [0, 0, 1, 1], [], []>} : vector<256x40xbf16>, vector<40x8xbf16>, vector<256x8xf32> -> vector<256x8xf32>
    %c0_85 = arith.constant 0 : index
    %c0_86 = arith.constant 0 : index
    %123 = vector.load %arg8[%c0_85, %c0_86] : memref<256x8xf32, #tpu.memory_space<vmem>>, vector<256x8xf32>
    %124 = arith.addf %123, %122 : vector<256x8xf32>
    %c0_87 = arith.constant 0 : index
    %c0_88 = arith.constant 0 : index
    %125 = vector.load %arg8[%c0_87, %c0_88] : memref<256x8xf32, #tpu.memory_space<vmem>>, vector<256x8xf32>
    tpu.vector_store %arg8[%c0_87, %c0_88], %124 {strides = array<i32>} : memref<256x8xf32, #tpu.memory_space<vmem>>, vector<256x8xf32>,
    %126 = vector.extract_strided_slice %103 {offsets = [3, 0, 0], sizes = [16, 16, 40], strides = [1, 1, 1]} : vector<20x16x40xbf16> to vector<16x16x40xbf16>
    %127 = vector.shape_cast %126 : vector<16x16x40xbf16> to vector<256x40xbf16>
    %c3_89 = arith.constant 3 : index
    %c0_90 = arith.constant 0 : index
    %c0_91 = arith.constant 0 : index
    %128 = vector.load %arg4[%c3_89, %c0_90, %c0_91] : memref<5x40x8xbf16, #tpu.memory_space<vmem>>, vector<1x40x8xbf16>
    %129 = vector.shape_cast %128 : vector<1x40x8xbf16> to vector<40x8xbf16>
    %cst_92 = arith.constant dense<0.000000e+00> : vector<256x8xf32>
    %130 = tpu.matmul %127, %129, %cst_92 {dimension_numbers = #tpu.dot_dimension_numbers<[1], [0], [0], [1], [0, 0, 1, 1], [], []>} : vector<256x40xbf16>, vector<40x8xbf16>, vector<256x8xf32> -> vector<256x8xf32>
    %c0_93 = arith.constant 0 : index
    %c0_94 = arith.constant 0 : index
    %131 = vector.load %arg8[%c0_93, %c0_94] : memref<256x8xf32, #tpu.memory_space<vmem>>, vector<256x8xf32>
    %132 = arith.addf %131, %130 : vector<256x8xf32>
    %c0_95 = arith.constant 0 : index
    %c0_96 = arith.constant 0 : index
    %133 = vector.load %arg8[%c0_95, %c0_96] : memref<256x8xf32, #tpu.memory_space<vmem>>, vector<256x8xf32>
    tpu.vector_store %arg8[%c0_95, %c0_96], %132 {strides = array<i32>} : memref<256x8xf32, #tpu.memory_space<vmem>>, vector<256x8xf32>,
    %134 = vector.extract_strided_slice %103 {offsets = [4, 0, 0], sizes = [16, 16, 40], strides = [1, 1, 1]} : vector<20x16x40xbf16> to vector<16x16x40xbf16>
    %135 = vector.shape_cast %134 : vector<16x16x40xbf16> to vector<256x40xbf16>
    %c4_97 = arith.constant 4 : index
    %c0_98 = arith.constant 0 : index
    %c0_99 = arith.constant 0 : index
    %136 = vector.load %arg4[%c4_97, %c0_98, %c0_99] : memref<5x40x8xbf16, #tpu.memory_space<vmem>>, vector<1x40x8xbf16>
    %137 = vector.shape_cast %136 : vector<1x40x8xbf16> to vector<40x8xbf16>
    %cst_100 = arith.constant dense<0.000000e+00> : vector<256x8xf32>
    %138 = tpu.matmul %135, %137, %cst_100 {dimension_numbers = #tpu.dot_dimension_numbers<[1], [0], [0], [1], [0, 0, 1, 1], [], []>} : vector<256x40xbf16>, vector<40x8xbf16>, vector<256x8xf32> -> vector<256x8xf32>
    %c0_101 = arith.constant 0 : index
    %c0_102 = arith.constant 0 : index
    %139 = vector.load %arg8[%c0_101, %c0_102] : memref<256x8xf32, #tpu.memory_space<vmem>>, vector<256x8xf32>
    %140 = arith.addf %139, %138 : vector<256x8xf32>
    %c0_103 = arith.constant 0 : index
    %c0_104 = arith.constant 0 : index
    %141 = vector.load %arg8[%c0_103, %c0_104] : memref<256x8xf32, #tpu.memory_space<vmem>>, vector<256x8xf32>
    tpu.vector_store %arg8[%c0_103, %c0_104], %140 {strides = array<i32>} : memref<256x8xf32, #tpu.memory_space<vmem>>, vector<256x8xf32>,
    %c0_105 = arith.constant 0 : index
    %c0_106 = arith.constant 0 : index
    %142 = vector.load %arg8[%c0_105, %c0_106] : memref<256x8xf32, #tpu.memory_space<vmem>>, vector<256x8xf32>
    %143 = vector.shape_cast %142 : vector<256x8xf32> to vector<16x16x8xf32>
    %c0_107 = arith.constant 0 : index
    %c0_108 = arith.constant 0 : index
    %c0_109 = arith.constant 0 : index
    %c0_110 = arith.constant 0 : index
    %144 = vector.load %arg7[%c0_107, %c0_108, %c0_109, %c0_110] : memref<1x16x16x8xf32, #tpu.memory_space<vmem>>, vector<1x16x16x8xf32>
    %145 = vector.shape_cast %144 : vector<1x16x16x8xf32> to vector<16x16x8xf32>
    %146 = vector.shape_cast %143 : vector<16x16x8xf32> to vector<1x16x16x8xf32>
    tpu.vector_store %arg7[%c0_107, %c0_108, %c0_109, %c0_110], %146 {strides = array<i32>} : memref<1x16x16x8xf32, #tpu.memory_space<vmem>>, vector<1x16x16x8xf32>,
    return
  }
  func.func @transform_0(%arg0: i32) -> (i32, i32, i32, i32) {
    %c0_i32 = arith.constant 0 : i32
    %c0_i32_0 = arith.constant 0 : i32
    %c0_i32_1 = arith.constant 0 : i32
    %c0_i32_2 = arith.constant 0 : i32
    return %arg0, %c0_i32, %c0_i32_0, %c0_i32_1 : i32, i32, i32, i32
  }
  func.func @transform_1(%arg0: i32) -> (i32, i32, i32) {
    %c0_i32 = arith.constant 0 : i32
    %c0_i32_0 = arith.constant 0 : i32
    %c0_i32_1 = arith.constant 0 : i32
    %c0_i32_2 = arith.constant 0 : i32
    return %c0_i32, %c0_i32_0, %c0_i32_1 : i32, i32, i32
  }
  func.func @transform_2(%arg0: i32) -> (i32, i32, i32) {
    %c0_i32 = arith.constant 0 : i32
    %c0_i32_0 = arith.constant 0 : i32
    %c0_i32_1 = arith.constant 0 : i32
    %c0_i32_2 = arith.constant 0 : i32
    return %c0_i32, %c0_i32_0, %c0_i32_1 : i32, i32, i32
  }
  func.func @transform_3(%arg0: i32) -> (i32, i32, i32) {
    %c0_i32 = arith.constant 0 : i32
    %c0_i32_0 = arith.constant 0 : i32
    %c0_i32_1 = arith.constant 0 : i32
    %c0_i32_2 = arith.constant 0 : i32
    return %c0_i32, %c0_i32_0, %c0_i32_1 : i32, i32, i32
  }
  func.func @transform_4(%arg0: i32) -> (i32, i32) {
    %c0_i32 = arith.constant 0 : i32
    %c0_i32_0 = arith.constant 0 : i32
    %c0_i32_1 = arith.constant 0 : i32
    return %c0_i32, %c0_i32_0 : i32, i32
  }
  func.func @transform_5(%arg0: i32) -> (i32, i32) {
    %c0_i32 = arith.constant 0 : i32
    %c0_i32_0 = arith.constant 0 : i32
    %c0_i32_1 = arith.constant 0 : i32
    return %c0_i32, %c0_i32_0 : i32, i32
  }
  func.func @transform_6(%arg0: i32) -> (i32, i32, i32, i32) {
    %c0_i32 = arith.constant 0 : i32
    %c0_i32_0 = arith.constant 0 : i32
    %c0_i32_1 = arith.constant 0 : i32
    %c0_i32_2 = arith.constant 0 : i32
    return %arg0, %c0_i32, %c0_i32_0, %c0_i32_1 : i32, i32, i32, i32
  }
}

</mosaic_0001>

<llo_original>
// kernel: out_module_forward.2
$region0: #{out_module_forward.2}
  #allocation0 [shape = 'u32[]', space=smem, size = 0x4, offset = 0x4, fixed_abs, tag = 'smem constant byte address 0x4 - core index']
  #allocation1 [shape = 'u32[144,128]{1,0:T(1,128)}', space=vmem, size = 0x12000, scoped, tag = 'internal scratch']
  #allocation2 [shape = 'f32[256,8]{1,0:T(8,128)}', space=vmem, size = 0x20000, scoped, tag = 'scratch operand']
  %s0 = inlined_call_operand.vmem [shape: bf16[2,20,20,12], index: 0, kind: input, shape index: {}]
  %s1 = inlined_call_operand.vmem [shape: bf16[5,60,8], index: 1, kind: input, shape index: {}]
  %s2 = inlined_call_operand.vmem [shape: f32[2,1,8], index: 2, kind: output, shape index: {0}]
  %s3 = inlined_call_operand.vmem [shape: f32[2,1,8], index: 3, kind: output, shape index: {1}]
  %4 = xla_tuple %s2, %s3
  %s5 = sld [smem:[#allocation0]]
  $region49: #{out_module_forward.2} parent=0
    _
  %s7 = ssub.s32 1, %s5
  %s8 = scalar_select 0, %s7, %s5
  loop: start=0, step=1, limit=4
  $region2: #{out_module_forward.2} parent=0 // loop_pre_header
    _
  $region3: #{out_module_forward.2} parent=0 // loop_header
    %s10 = sphi 0, %s14
    %p11 = scmp.ge.s32.totalorder %s10, 4
    %s20 = sphi 0, %s22
    %s23 = sphi 0, %s20
    %s24 = sphi 0, %s23
    %s40 = sphi 0, %s24
    %s44 = sphi 0, %s44
    %s46 = sphi 0, %s44
    %s47 = sphi 0, %s46
    %s61 = sphi 0, %s47
    %s67 = sphi 0, %s69
    %s70 = sphi 0, %s67
    %s71 = sphi 0, %s70
    %s87 = sphi 0, %s71
    %s93 = sphi 0, %s95
    %s96 = sphi 0, %s93
    %s97 = sphi 0, %s96
    %s113 = sphi 0, %s97
  $region4: #{out_module_forward.2} parent=0 // loop_header_branch
    %13 = sbr.rel (%p11) target = $region8
  $region5: #{out_module_forward.2} parent=0 // loop_body
    %s15 = ssub.s32 %s10, 1
    %s16 = ssub.s32 %s10, 2
    %s17 = sadd.s32 %s10, 1
    %s18 = ssub.s32 %s10, %s17
    %p19 = scmp.eq.s32.totalorder %s18, 0
    %s21 = sadd.s32 %s20, 1
    %s22 = scalar_select %p19, %s20, %s21
    %p25 = pneg %p19
    %p26 = scmp.eq.s32.totalorder %s10, 1
    %p27 = por %p25, %p26
    %p28 = scmp.ne.s32.totalorder %s20, %s23
    %p29 = scmp.eq.s32.totalorder %s10, 0
    %p30 = por %p28, %p29
    %p31 = scmp.ne.s32.totalorder %s20, %s23
    %p32 = scmp.eq.s32.totalorder %s15, 1
    %p33 = por %p31, %p32
    %p34 = scmp.ne.s32.totalorder %s23, %s24
    %p35 = scmp.eq.s32.totalorder %s15, 0
    %p36 = por %p34, %p35
    %p37 = scmp.ne.s32.totalorder %s23, %s24
    %p38 = scmp.eq.s32.totalorder %s16, 1
    %p39 = por %p37, %p38
    %p41 = scmp.ne.s32.totalorder %s24, %s40
    %p42 = scmp.eq.s32.totalorder %s16, 0
    %p43 = por %p41, %p42
    %s45 = sadd.s32 %s44, 1
    %p48 = scmp.eq.s32.totalorder %s10, 1
    %p49 = scmp.ne.s32.totalorder %s44, %s46
    %p50 = scmp.eq.s32.totalorder %s10, 0
    %p51 = por %p49, %p50
    %p52 = scmp.ne.s32.totalorder %s44, %s46
    %p53 = scmp.eq.s32.totalorder %s15, 1
    %p54 = por %p52, %p53
    %p55 = scmp.ne.s32.totalorder %s46, %s47
    %p56 = scmp.eq.s32.totalorder %s15, 0
    %p57 = por %p55, %p56
    %p58 = scmp.ne.s32.totalorder %s46, %s47
    %p59 = scmp.eq.s32.totalorder %s16, 1
    %p60 = por %p58, %p59
    %p62 = scmp.ne.s32.totalorder %s47, %s61
    %p63 = scmp.eq.s32.totalorder %s16, 0
    %p64 = por %p62, %p63
    %s65 = ssub.s32 %s10, %s17
    %p66 = scmp.eq.s32.totalorder %s65, 0
    %s68 = sadd.s32 %s67, 1
    %s69 = scalar_select %p66, %s67, %s68
    %p72 = pneg %p66
    %p73 = scmp.eq.s32.totalorder %s10, 1
    %p74 = por %p72, %p73
    %p75 = scmp.ne.s32.totalorder %s67, %s70
    %p76 = scmp.eq.s32.totalorder %s10, 0
    %p77 = por %p75, %p76
    %p78 = scmp.ne.s32.totalorder %s67, %s70
    %p79 = scmp.eq.s32.totalorder %s15, 1
    %p80 = por %p78, %p79
    %p81 = scmp.ne.s32.totalorder %s70, %s71
    %p82 = scmp.eq.s32.totalorder %s15, 0
    %p83 = por %p81, %p82
    %p84 = scmp.ne.s32.totalorder %s70, %s71
    %p85 = scmp.eq.s32.totalorder %s16, 1
    %p86 = por %p84, %p85
    %p88 = scmp.ne.s32.totalorder %s71, %s87
    %p89 = scmp.eq.s32.totalorder %s16, 0
    %p90 = por %p88, %p89
    %s91 = ssub.s32 %s10, %s17
    %p92 = scmp.eq.s32.totalorder %s91, 0
    %s94 = sadd.s32 %s93, 1
    %s95 = scalar_select %p92, %s93, %s94
    %p98 = pneg %p92
    %p99 = scmp.eq.s32.totalorder %s10, 1
    %p100 = por %p98, %p99
    %p101 = scmp.ne.s32.totalorder %s93, %s96
    %p102 = scmp.eq.s32.totalorder %s10, 0
    %p103 = por %p101, %p102
    %p104 = scmp.ne.s32.totalorder %s93, %s96
    %p105 = scmp.eq.s32.totalorder %s15, 1
    %p106 = por %p104, %p105
    %p107 = scmp.ne.s32.totalorder %s96, %s97
    %p108 = scmp.eq.s32.totalorder %s15, 0
    %p109 = por %p107, %p108
    %p110 = scmp.ne.s32.totalorder %s96, %s97
    %p111 = scmp.eq.s32.totalorder %s16, 1
    %p112 = por %p110, %p111
    %p114 = scmp.ne.s32.totalorder %s97, %s113
    %p115 = scmp.eq.s32.totalorder %s16, 0
    %p116 = por %p114, %p115
    %p117 = scmp.le.s32.totalorder 1, %s10
    %p118 = scmp.lt.s32.totalorder %s10, 3
    %p119 = pnand %p117, %p118
    %p120 = pneg %p119
    // Predicated region
    $region9: #{out_module_forward.2} parent=5 // pred_check
      _
    $region10: #{out_module_forward.2} parent=5 // pred_check_branch
      %122 = sbr.rel (%p119) target = $region12
    $region11: #{out_module_forward.2} parent=5 // pred_region
      %s123 = ssub.s32 %s10, 1
      // Predicated region
      $region13: #{out_module_forward.2} parent=11 // pred_check
        %p124 = pneg %p57
      $region14: #{out_module_forward.2} parent=11 // pred_check_branch
        %126 = sbr.rel (%p124) target = $region16
      $region15: #{out_module_forward.2} parent=11 // pred_region
        _
      $region16: #{out_module_forward.2} parent=11 // pred_fallthru
        _
    $region12: #{out_module_forward.2} parent=5 // pred_fallthru
      _
    %p127 = scmp.lt.s32.totalorder %s10, 2
    // Predicated region
    $region17: #{out_module_forward.2} parent=5 // pred_check
      %p128 = pneg %p127
    $region18: #{out_module_forward.2} parent=5 // pred_check_branch
      %130 = sbr.rel (%p128) target = $region20
    $region19: #{out_module_forward.2} parent=5 // pred_region
      // Predicated region
      $region21: #{out_module_forward.2} parent=19 // pred_check
        %p131 = pneg %p30
      $region22: #{out_module_forward.2} parent=19 // pred_check_branch
        %133 = sbr.rel (%p131) target = $region24
      $region23: #{out_module_forward.2} parent=19 // pred_region
        %p134 = scmp.lt.s32.totalorder %s10, 1
        %s135 = scalar_select %p134, %s10, 1
        %s136 = smul.addr %s135, 60
        %s137 = smul.addr %s136, 4
        %s138 = scalar_lea.vmem %s0, %s137
      $region24: #{out_module_forward.2} parent=19 // pred_fallthru
        _
    $region20: #{out_module_forward.2} parent=5 // pred_fallthru
      _
    %p139 = scmp.le.s32.totalorder 1, %s10
    %p140 = scmp.lt.s32.totalorder %s10, 3
    %p141 = pnand %p139, %p140
    %p142 = pneg %p141
    // Predicated region
    $region25: #{out_module_forward.2} parent=5 // pred_check
      _
    $region26: #{out_module_forward.2} parent=5 // pred_check_branch
      %144 = sbr.rel (%p141) target = $region28
    $region27: #{out_module_forward.2} parent=5 // pred_region
      %s145 = ssub.s32 %s10, 1
      %p146 = scmp.lt.s32.totalorder %s15, 1
      %s147 = scalar_select %p146, %s15, 1
      %s148 = smul.addr %s147, 60
      %s149 = smul.addr %s148, 4
      %s150 = scalar_lea.vmem %s0, %s149
      %p151 = pneg %p36
      %p152 = pneg %p33
      %p153 = pneg %p57
      %p154 = pneg %p54
      %p155 = pneg %p83
      %p156 = pneg %p80
      %p157 = scmp.lt.s32.totalorder %s15, 1
      %s158 = scalar_select %p157, %s15, 1
      %s159 = scalar_lea.vmem %s2, %s158
      %p160 = pneg %p109
      %p161 = pneg %p106
      %p162 = scmp.lt.s32.totalorder %s15, 1
      %s163 = scalar_select %p162, %s15, 1
      %s164 = scalar_lea.vmem %s3, %s163
      %p165 = scmp.lt.s32.totalorder %s15, 1
      %s166 = scalar_select %p165, %s15, 1
      %s167 = smul.addr %s166, 60
      %s168 = smul.addr %s167, 4
      %s169 = scalar_lea.vmem %s0, %s168
      %p170 = scmp.lt.s32.totalorder %s15, 1
      %s171 = scalar_select %p170, %s15, 1
      %s172 = scalar_lea.vmem %s2, %s171
      %p173 = scmp.lt.s32.totalorder %s15, 1
      %s174 = scalar_select %p173, %s15, 1
      %s175 = scalar_lea.vmem %s3, %s174
      %v177 = vld [vmem:[%s169] sm:$0xf]
      %v178 = vld [vmem:[%s169 + $0x4] sm:$0xf]
      %v179 = vld [vmem:[%s169 + $0x8] sm:$0x3]
      %v180 = vld [vmem:[%s169 + $0xc] sm:$0xf]
      %v181 = vld [vmem:[%s169 + $0x10] sm:$0xf]
      %v182 = vld [vmem:[%s169 + $0x14] sm:$0x3]
      %v183 = vld [vmem:[%s169 + $0x18] sm:$0xf]
      %v184 = vld [vmem:[%s169 + $0x1c] sm:$0xf]
      %v185 = vld [vmem:[%s169 + $0x20] sm:$0x3]
      %v186 = vld [vmem:[%s169 + $0x24] sm:$0xf]
      %v187 = vld [vmem:[%s169 + $0x28] sm:$0xf]
      %v188 = vld [vmem:[%s169 + $0x2c] sm:$0x3]
      %v189 = vld [vmem:[%s169 + $0x30] sm:$0xf]
      %v190 = vld [vmem:[%s169 + $0x34] sm:$0xf]
      %v191 = vld [vmem:[%s169 + $0x38] sm:$0x3]
      %v192 = vld [vmem:[%s169 + $0x3c] sm:$0xf]
      %v193 = vld [vmem:[%s169 + $0x40] sm:$0xf]
      %v194 = vld [vmem:[%s169 + $0x44] sm:$0x3]
      %v195 = vld [vmem:[%s169 + $0x48] sm:$0xf]
      %v196 = vld [vmem:[%s169 + $0x4c] sm:$0xf]
      %v197 = vld [vmem:[%s169 + $0x50] sm:$0x3]
      %v198 = vld [vmem:[%s169 + $0x54] sm:$0xf]
      %v199 = vld [vmem:[%s169 + $0x58] sm:$0xf]
      %v200 = vld [vmem:[%s169 + $0x5c] sm:$0x3]
      %v201 = vld [vmem:[%s169 + $0x60] sm:$0xf]
      %v202 = vld [vmem:[%s169 + $0x64] sm:$0xf]
      %v203 = vld [vmem:[%s169 + $0x68] sm:$0x3]
      %v204 = vld [vmem:[%s169 + $0x6c] sm:$0xf]
      %v205 = vld [vmem:[%s169 + $0x70] sm:$0xf]
      %v206 = vld [vmem:[%s169 + $0x74] sm:$0x3]
      %v207 = vld [vmem:[%s169 + $0x78] sm:$0xf]
      %v208 = vld [vmem:[%s169 + $0x7c] sm:$0xf]
      %v209 = vld [vmem:[%s169 + $0x80] sm:$0x3]
      %v210 = vld [vmem:[%s169 + $0x84] sm:$0xf]
      %v211 = vld [vmem:[%s169 + $0x88] sm:$0xf]
      %v212 = vld [vmem:[%s169 + $0x8c] sm:$0x3]
      %v213 = vld [vmem:[%s169 + $0x90] sm:$0xf]
      %v214 = vld [vmem:[%s169 + $0x94] sm:$0xf]
      %v215 = vld [vmem:[%s169 + $0x98] sm:$0x3]
      %v216 = vld [vmem:[%s169 + $0x9c] sm:$0xf]
      %v217 = vld [vmem:[%s169 + $0xa0] sm:$0xf]
      %v218 = vld [vmem:[%s169 + $0xa4] sm:$0x3]
      %v219 = vld [vmem:[%s169 + $0xa8] sm:$0xf]
      %v220 = vld [vmem:[%s169 + $0xac] sm:$0xf]
      %v221 = vld [vmem:[%s169 + $0xb0] sm:$0x3]
      %v222 = vld [vmem:[%s169 + $0xb4] sm:$0xf]
      %v223 = vld [vmem:[%s169 + $0xb8] sm:$0xf]
      %v224 = vld [vmem:[%s169 + $0xbc] sm:$0x3]
      %v225 = vld [vmem:[%s169 + $0xc0] sm:$0xf]
      %v226 = vld [vmem:[%s169 + $0xc4] sm:$0xf]
      %v227 = vld [vmem:[%s169 + $0xc8] sm:$0x3]
      %v228 = vld [vmem:[%s169 + $0xcc] sm:$0xf]
      %v229 = vld [vmem:[%s169 + $0xd0] sm:$0xf]
      %v230 = vld [vmem:[%s169 + $0xd4] sm:$0x3]
      %v231 = vld [vmem:[%s169 + $0xd8] sm:$0xf]
      %v232 = vld [vmem:[%s169 + $0xdc] sm:$0xf]
      %v233 = vld [vmem:[%s169 + $0xe0] sm:$0x3]
      %v234 = vld [vmem:[%s169 + $0xe4] sm:$0xf]
      %v235 = vld [vmem:[%s169 + $0xe8] sm:$0xf]
      %v236 = vld [vmem:[%s169 + $0xec] sm:$0x3]
      %v277 = vunpack.c.l.b16 %v177
      %v278 = vunpack.c.l.b16 %v178
      %v279 = vunpack.c.l.b16 %v180
      %v280 = vunpack.c.l.b16 %v181
      %v281 = vunpack.c.l.b16 %v183
      %v282 = vunpack.c.l.b16 %v184
      %v283 = vunpack.c.l.b16 %v186
      %v284 = vunpack.c.l.b16 %v187
      %v285 = vunpack.c.l.b16 %v189
      %v286 = vunpack.c.l.b16 %v190
      %v287 = vunpack.c.l.b16 %v192
      %v288 = vunpack.c.l.b16 %v193
      %v289 = vunpack.c.l.b16 %v195
      %v290 = vunpack.c.l.b16 %v196
      %v291 = vunpack.c.l.b16 %v198
      %v292 = vunpack.c.l.b16 %v199
      %v293 = vunpack.c.l.b16 %v201
      %v294 = vunpack.c.l.b16 %v202
      %v295 = vunpack.c.l.b16 %v204
      %v296 = vunpack.c.l.b16 %v205
      %v297 = vunpack.c.l.b16 %v207
      %v298 = vunpack.c.l.b16 %v208
      %v299 = vunpack.c.l.b16 %v210
      %v300 = vunpack.c.l.b16 %v211
      %v301 = vunpack.c.l.b16 %v213
      %v302 = vunpack.c.l.b16 %v214
      %v303 = vunpack.c.l.b16 %v216
      %v304 = vunpack.c.l.b16 %v217
      %v305 = vunpack.c.l.b16 %v219
      %v306 = vunpack.c.l.b16 %v220
      %v307 = vunpack.c.l.b16 %v222
      %v308 = vunpack.c.l.b16 %v223
      %v309 = vunpack.c.l.b16 %v225
      %v310 = vunpack.c.l.b16 %v226
      %v311 = vunpack.c.l.b16 %v228
      %v312 = vunpack.c.l.b16 %v229
      %v313 = vunpack.c.l.b16 %v231
      %v314 = vunpack.c.l.b16 %v232
      %v315 = vunpack.c.l.b16 %v234
      %v316 = vunpack.c.l.b16 %v235
      %v317 = vpack.c.b16 %v278, %v277
      %v318 = vpack.c.b16 %v280, %v279
      %v319 = vpack.c.b16 %v282, %v281
      %v320 = vpack.c.b16 %v284, %v283
      %v321 = vpack.c.b16 %v286, %v285
      %v322 = vpack.c.b16 %v288, %v287
      %v323 = vpack.c.b16 %v290, %v289
      %v324 = vpack.c.b16 %v292, %v291
      %v325 = vpack.c.b16 %v294, %v293
      %v326 = vpack.c.b16 %v296, %v295
      %v327 = vpack.c.b16 %v298, %v297
      %v328 = vpack.c.b16 %v300, %v299
      %v329 = vpack.c.b16 %v302, %v301
      %v330 = vpack.c.b16 %v304, %v303
      %v331 = vpack.c.b16 %v306, %v305
      %v332 = vpack.c.b16 %v308, %v307
      %v333 = vpack.c.b16 %v310, %v309
      %v334 = vpack.c.b16 %v312, %v311
      %v335 = vpack.c.b16 %v314, %v313
      %v336 = vpack.c.b16 %v316, %v315
      %v357 = vunpack.c.l.b16 %v179
      %v358 = vunpack.c.l.b16 %v182
      %v359 = vunpack.c.l.b16 %v185
      %v360 = vunpack.c.l.b16 %v188
      %v361 = vunpack.c.l.b16 %v191
      %v362 = vunpack.c.l.b16 %v194
      %v363 = vunpack.c.l.b16 %v197
      %v364 = vunpack.c.l.b16 %v200
      %v365 = vunpack.c.l.b16 %v203
      %v366 = vunpack.c.l.b16 %v206
      %v367 = vunpack.c.l.b16 %v209
      %v368 = vunpack.c.l.b16 %v212
      %v369 = vunpack.c.l.b16 %v215
      %v370 = vunpack.c.l.b16 %v218
      %v371 = vunpack.c.l.b16 %v221
      %v372 = vunpack.c.l.b16 %v224
      %v373 = vunpack.c.l.b16 %v227
      %v374 = vunpack.c.l.b16 %v230
      %v375 = vunpack.c.l.b16 %v233
      %v376 = vunpack.c.l.b16 %v236
      %v377 = vpack.c.b16 %v357, %v357
      %v378 = vpack.c.b16 %v358, %v358
      %v379 = vpack.c.b16 %v359, %v359
      %v380 = vpack.c.b16 %v360, %v360
      %v381 = vpack.c.b16 %v361, %v361
      %v382 = vpack.c.b16 %v362, %v362
      %v383 = vpack.c.b16 %v363, %v363
      %v384 = vpack.c.b16 %v364, %v364
      %v385 = vpack.c.b16 %v365, %v365
      %v386 = vpack.c.b16 %v366, %v366
      %v387 = vpack.c.b16 %v367, %v367
      %v388 = vpack.c.b16 %v368, %v368
      %v389 = vpack.c.b16 %v369, %v369
      %v390 = vpack.c.b16 %v370, %v370
      %v391 = vpack.c.b16 %v371, %v371
      %v392 = vpack.c.b16 %v372, %v372
      %v393 = vpack.c.b16 %v373, %v373
      %v394 = vpack.c.b16 %v374, %v374
      %v395 = vpack.c.b16 %v375, %v375
      %v396 = vpack.c.b16 %v376, %v376
      %vm397 = vsmask.f32 7424
      %v399 = vshrl.u32 %v317, 16
      %v401 = vshll.u32 %v317, 16
      %v403 = vrot.slane %v401, 1
      %v404 = vor.u32 %v399, %v403
      %v406 = vshll.u32 %v377, 16
      %v408 = vrot.slane %v406, 1
      %v409 = vsel %vm397, %v404, %v408
      %v411 = vshrl.u32 %v318, 16
      %v413 = vshll.u32 %v318, 16
      %v415 = vrot.slane %v413, 1
      %v416 = vor.u32 %v411, %v415
      %v418 = vshll.u32 %v378, 16
      %v420 = vrot.slane %v418, 1
      %v421 = vsel %vm397, %v416, %v420
      %v423 = vshrl.u32 %v319, 16
      %v425 = vshll.u32 %v319, 16
      %v427 = vrot.slane %v425, 1
      %v428 = vor.u32 %v423, %v427
      %v430 = vshll.u32 %v379, 16
      %v432 = vrot.slane %v430, 1
      %v433 = vsel %vm397, %v428, %v432
      %v435 = vshrl.u32 %v320, 16
      %v437 = vshll.u32 %v320, 16
      %v439 = vrot.slane %v437, 1
      %v440 = vor.u32 %v435, %v439
      %v442 = vshll.u32 %v380, 16
      %v444 = vrot.slane %v442, 1
      %v445 = vsel %vm397, %v440, %v444
      %v447 = vshrl.u32 %v321, 16
      %v449 = vshll.u32 %v321, 16
      %v451 = vrot.slane %v449, 1
      %v452 = vor.u32 %v447, %v451
      %v454 = vshll.u32 %v381, 16
      %v456 = vrot.slane %v454, 1
      %v457 = vsel %vm397, %v452, %v456
      %v459 = vshrl.u32 %v322, 16
      %v461 = vshll.u32 %v322, 16
      %v463 = vrot.slane %v461, 1
      %v464 = vor.u32 %v459, %v463
      %v466 = vshll.u32 %v382, 16
      %v468 = vrot.slane %v466, 1
      %v469 = vsel %vm397, %v464, %v468
      %v471 = vshrl.u32 %v323, 16
      %v473 = vshll.u32 %v323, 16
      %v475 = vrot.slane %v473, 1
      %v476 = vor.u32 %v471, %v475
      %v478 = vshll.u32 %v383, 16
      %v480 = vrot.slane %v478, 1
      %v481 = vsel %vm397, %v476, %v480
      %v483 = vshrl.u32 %v324, 16
      %v485 = vshll.u32 %v324, 16
      %v487 = vrot.slane %v485, 1
      %v488 = vor.u32 %v483, %v487
      %v490 = vshll.u32 %v384, 16
      %v492 = vrot.slane %v490, 1
      %v493 = vsel %vm397, %v488, %v492
      %v495 = vshrl.u32 %v325, 16
      %v497 = vshll.u32 %v325, 16
      %v499 = vrot.slane %v497, 1
      %v500 = vor.u32 %v495, %v499
      %v502 = vshll.u32 %v385, 16
      %v504 = vrot.slane %v502, 1
      %v505 = vsel %vm397, %v500, %v504
      %v507 = vshrl.u32 %v326, 16
      %v509 = vshll.u32 %v326, 16
      %v511 = vrot.slane %v509, 1
      %v512 = vor.u32 %v507, %v511
      %v514 = vshll.u32 %v386, 16
      %v516 = vrot.slane %v514, 1
      %v517 = vsel %vm397, %v512, %v516
      %v519 = vshrl.u32 %v327, 16
      %v521 = vshll.u32 %v327, 16
      %v523 = vrot.slane %v521, 1
      %v524 = vor.u32 %v519, %v523
      %v526 = vshll.u32 %v387, 16
      %v528 = vrot.slane %v526, 1
      %v529 = vsel %vm397, %v524, %v528
      %v531 = vshrl.u32 %v328, 16
      %v533 = vshll.u32 %v328, 16
      %v535 = vrot.slane %v533, 1
      %v536 = vor.u32 %v531, %v535
      %v538 = vshll.u32 %v388, 16
      %v540 = vrot.slane %v538, 1
      %v541 = vsel %vm397, %v536, %v540
      %v543 = vshrl.u32 %v329, 16
      %v545 = vshll.u32 %v329, 16
      %v547 = vrot.slane %v545, 1
      %v548 = vor.u32 %v543, %v547
      %v550 = vshll.u32 %v389, 16
      %v552 = vrot.slane %v550, 1
      %v553 = vsel %vm397, %v548, %v552
      %v555 = vshrl.u32 %v330, 16
      %v557 = vshll.u32 %v330, 16
      %v559 = vrot.slane %v557, 1
      %v560 = vor.u32 %v555, %v559
      %v562 = vshll.u32 %v390, 16
      %v564 = vrot.slane %v562, 1
      %v565 = vsel %vm397, %v560, %v564
      %v567 = vshrl.u32 %v331, 16
      %v569 = vshll.u32 %v331, 16
      %v571 = vrot.slane %v569, 1
      %v572 = vor.u32 %v567, %v571
      %v574 = vshll.u32 %v391, 16
      %v576 = vrot.slane %v574, 1
      %v577 = vsel %vm397, %v572, %v576
      %v579 = vshrl.u32 %v332, 16
      %v581 = vshll.u32 %v332, 16
      %v583 = vrot.slane %v581, 1
      %v584 = vor.u32 %v579, %v583
      %v586 = vshll.u32 %v392, 16
      %v588 = vrot.slane %v586, 1
      %v589 = vsel %vm397, %v584, %v588
      %v591 = vshrl.u32 %v333, 16
      %v593 = vshll.u32 %v333, 16
      %v595 = vrot.slane %v593, 1
      %v596 = vor.u32 %v591, %v595
      %v598 = vshll.u32 %v393, 16
      %v600 = vrot.slane %v598, 1
      %v601 = vsel %vm397, %v596, %v600
      %v603 = vshrl.u32 %v334, 16
      %v605 = vshll.u32 %v334, 16
      %v607 = vrot.slane %v605, 1
      %v608 = vor.u32 %v603, %v607
      %v610 = vshll.u32 %v394, 16
      %v612 = vrot.slane %v610, 1
      %v613 = vsel %vm397, %v608, %v612
      %v615 = vshrl.u32 %v335, 16
      %v617 = vshll.u32 %v335, 16
      %v619 = vrot.slane %v617, 1
      %v620 = vor.u32 %v615, %v619
      %v622 = vshll.u32 %v395, 16
      %v624 = vrot.slane %v622, 1
      %v625 = vsel %vm397, %v620, %v624
      %v627 = vshrl.u32 %v336, 16
      %v629 = vshll.u32 %v336, 16
      %v631 = vrot.slane %v629, 1
      %v632 = vor.u32 %v627, %v631
      %v634 = vshll.u32 %v396, 16
      %v636 = vrot.slane %v634, 1
      %v637 = vsel %vm397, %v632, %v636
      %638 = vrot.lane.b32.xlu0 %v409, 12
      %v639 = vpop.permute.xlu0 %638
      %640 = vrot.lane.b32.xlu0 %v421, 12
      %v641 = vpop.permute.xlu0 %640
      %642 = vrot.lane.b32.xlu0 %v433, 12
      %v643 = vpop.permute.xlu0 %642
      %644 = vrot.lane.b32.xlu0 %v445, 12
      %v645 = vpop.permute.xlu0 %644
      %646 = vrot.lane.b32.xlu0 %v457, 12
      %v647 = vpop.permute.xlu0 %646
      %648 = vrot.lane.b32.xlu0 %v469, 12
      %v649 = vpop.permute.xlu0 %648
      %650 = vrot.lane.b32.xlu0 %v481, 12
      %v651 = vpop.permute.xlu0 %650
      %652 = vrot.lane.b32.xlu0 %v493, 12
      %v653 = vpop.permute.xlu0 %652
      %654 = vrot.lane.b32.xlu0 %v505, 12
      %v655 = vpop.permute.xlu0 %654
      %656 = vrot.lane.b32.xlu0 %v517, 12
      %v657 = vpop.permute.xlu0 %656
      %658 = vrot.lane.b32.xlu0 %v529, 12
      %v659 = vpop.permute.xlu0 %658
      %660 = vrot.lane.b32.xlu0 %v541, 12
      %v661 = vpop.permute.xlu0 %660
      %662 = vrot.lane.b32.xlu0 %v553, 12
      %v663 = vpop.permute.xlu0 %662
      %664 = vrot.lane.b32.xlu0 %v565, 12
      %v665 = vpop.permute.xlu0 %664
      %666 = vrot.lane.b32.xlu0 %v577, 12
      %v667 = vpop.permute.xlu0 %666
      %668 = vrot.lane.b32.xlu0 %v589, 12
      %v669 = vpop.permute.xlu0 %668
      %670 = vrot.lane.b32.xlu0 %v601, 12
      %v671 = vpop.permute.xlu0 %670
      %672 = vrot.lane.b32.xlu0 %v613, 12
      %v673 = vpop.permute.xlu0 %672
      %674 = vrot.lane.b32.xlu0 %v625, 12
      %v675 = vpop.permute.xlu0 %674
      %676 = vrot.lane.b32.xlu0 %v637, 12
      %v677 = vpop.permute.xlu0 %676
      %vm678 = vcmask 1046528
      %v679 = vrot.slane %v317, 1
      %v680 = vrot.slane %v377, 1
      %v681 = vsel %vm678, %v679, %v680
      %v682 = vrot.slane %v318, 1
      %v683 = vrot.slane %v378, 1
      %v684 = vsel %vm678, %v682, %v683
      %v685 = vrot.slane %v319, 1
      %v686 = vrot.slane %v379, 1
      %v687 = vsel %vm678, %v685, %v686
      %v688 = vrot.slane %v320, 1
      %v689 = vrot.slane %v380, 1
      %v690 = vsel %vm678, %v688, %v689
      %v691 = vrot.slane %v321, 1
      %v692 = vrot.slane %v381, 1
      %v693 = vsel %vm678, %v691, %v692
      %v694 = vrot.slane %v322, 1
      %v695 = vrot.slane %v382, 1
      %v696 = vsel %vm678, %v694, %v695
      %v697 = vrot.slane %v323, 1
      %v698 = vrot.slane %v383, 1
      %v699 = vsel %vm678, %v697, %v698
      %v700 = vrot.slane %v324, 1
      %v701 = vrot.slane %v384, 1
      %v702 = vsel %vm678, %v700, %v701
      %v703 = vrot.slane %v325, 1
      %v704 = vrot.slane %v385, 1
      %v705 = vsel %vm678, %v703, %v704
      %v706 = vrot.slane %v326, 1
      %v707 = vrot.slane %v386, 1
      %v708 = vsel %vm678, %v706, %v707
      %v709 = vrot.slane %v327, 1
      %v710 = vrot.slane %v387, 1
      %v711 = vsel %vm678, %v709, %v710
      %v712 = vrot.slane %v328, 1
      %v713 = vrot.slane %v388, 1
      %v714 = vsel %vm678, %v712, %v713
      %v715 = vrot.slane %v329, 1
      %v716 = vrot.slane %v389, 1
      %v717 = vsel %vm678, %v715, %v716
      %v718 = vrot.slane %v330, 1
      %v719 = vrot.slane %v390, 1
      %v720 = vsel %vm678, %v718, %v719
      %v721 = vrot.slane %v331, 1
      %v722 = vrot.slane %v391, 1
      %v723 = vsel %vm678, %v721, %v722
      %v724 = vrot.slane %v332, 1
      %v725 = vrot.slane %v392, 1
      %v726 = vsel %vm678, %v724, %v725
      %v727 = vrot.slane %v333, 1
      %v728 = vrot.slane %v393, 1
      %v729 = vsel %vm678, %v727, %v728
      %v730 = vrot.slane %v334, 1
      %v731 = vrot.slane %v394, 1
      %v732 = vsel %vm678, %v730, %v731
      %v733 = vrot.slane %v335, 1
      %v734 = vrot.slane %v395, 1
      %v735 = vsel %vm678, %v733, %v734
      %v736 = vrot.slane %v336, 1
      %v737 = vrot.slane %v396, 1
      %v738 = vsel %vm678, %v736, %v737
      %739 = vrot.lane.b32.xlu0 %v681, 24
      %v740 = vpop.permute.xlu0 %739
      %741 = vrot.lane.b32.xlu0 %v684, 24
      %v742 = vpop.permute.xlu0 %741
      %743 = vrot.lane.b32.xlu0 %v687, 24
      %v744 = vpop.permute.xlu0 %743
      %745 = vrot.lane.b32.xlu0 %v690, 24
      %v746 = vpop.permute.xlu0 %745
      %747 = vrot.lane.b32.xlu0 %v693, 24
      %v748 = vpop.permute.xlu0 %747
      %749 = vrot.lane.b32.xlu0 %v696, 24
      %v750 = vpop.permute.xlu0 %749
      %751 = vrot.lane.b32.xlu0 %v699, 24
      %v752 = vpop.permute.xlu0 %751
      %753 = vrot.lane.b32.xlu0 %v702, 24
      %v754 = vpop.permute.xlu0 %753
      %755 = vrot.lane.b32.xlu0 %v705, 24
      %v756 = vpop.permute.xlu0 %755
      %757 = vrot.lane.b32.xlu0 %v708, 24
      %v758 = vpop.permute.xlu0 %757
      %759 = vrot.lane.b32.xlu0 %v711, 24
      %v760 = vpop.permute.xlu0 %759
      %761 = vrot.lane.b32.xlu0 %v714, 24
      %v762 = vpop.permute.xlu0 %761
      %763 = vrot.lane.b32.xlu0 %v717, 24
      %v764 = vpop.permute.xlu0 %763
      %765 = vrot.lane.b32.xlu0 %v720, 24
      %v766 = vpop.permute.xlu0 %765
      %767 = vrot.lane.b32.xlu0 %v723, 24
      %v768 = vpop.permute.xlu0 %767
      %769 = vrot.lane.b32.xlu0 %v726, 24
      %v770 = vpop.permute.xlu0 %769
      %771 = vrot.lane.b32.xlu0 %v729, 24
      %v772 = vpop.permute.xlu0 %771
      %773 = vrot.lane.b32.xlu0 %v732, 24
      %v774 = vpop.permute.xlu0 %773
      %775 = vrot.lane.b32.xlu0 %v735, 24
      %v776 = vpop.permute.xlu0 %775
      %777 = vrot.lane.b32.xlu0 %v738, 24
      %v778 = vpop.permute.xlu0 %777
      %vm779 = vsmask.f32 6400
      %v780 = vrot.slane %v399, 1
      %v781 = vrot.slane %v401, 2
      %v782 = vor.u32 %v780, %v781
      %v783 = vshrl.u32 %v377, 16
      %v785 = vrot.slane %v783, 1
      %v786 = vrot.slane %v406, 2
      %v787 = vor.u32 %v785, %v786
      %v788 = vsel %vm779, %v782, %v787
      %v789 = vrot.slane %v411, 1
      %v790 = vrot.slane %v413, 2
      %v791 = vor.u32 %v789, %v790
      %v792 = vshrl.u32 %v378, 16
      %v794 = vrot.slane %v792, 1
      %v795 = vrot.slane %v418, 2
      %v796 = vor.u32 %v794, %v795
      %v797 = vsel %vm779, %v791, %v796
      %v798 = vrot.slane %v423, 1
      %v799 = vrot.slane %v425, 2
      %v800 = vor.u32 %v798, %v799
      %v801 = vshrl.u32 %v379, 16
      %v803 = vrot.slane %v801, 1
      %v804 = vrot.slane %v430, 2
      %v805 = vor.u32 %v803, %v804
      %v806 = vsel %vm779, %v800, %v805
      %v807 = vrot.slane %v435, 1
      %v808 = vrot.slane %v437, 2
      %v809 = vor.u32 %v807, %v808
      %v810 = vshrl.u32 %v380, 16
      %v812 = vrot.slane %v810, 1
      %v813 = vrot.slane %v442, 2
      %v814 = vor.u32 %v812, %v813
      %v815 = vsel %vm779, %v809, %v814
      %v816 = vrot.slane %v447, 1
      %v817 = vrot.slane %v449, 2
      %v818 = vor.u32 %v816, %v817
      %v819 = vshrl.u32 %v381, 16
      %v821 = vrot.slane %v819, 1
      %v822 = vrot.slane %v454, 2
      %v823 = vor.u32 %v821, %v822
      %v824 = vsel %vm779, %v818, %v823
      %v825 = vrot.slane %v459, 1
      %v826 = vrot.slane %v461, 2
      %v827 = vor.u32 %v825, %v826
      %v828 = vshrl.u32 %v382, 16
      %v830 = vrot.slane %v828, 1
      %v831 = vrot.slane %v466, 2
      %v832 = vor.u32 %v830, %v831
      %v833 = vsel %vm779, %v827, %v832
      %v834 = vrot.slane %v471, 1
      %v835 = vrot.slane %v473, 2
      %v836 = vor.u32 %v834, %v835
      %v837 = vshrl.u32 %v383, 16
      %v839 = vrot.slane %v837, 1
      %v840 = vrot.slane %v478, 2
      %v841 = vor.u32 %v839, %v840
      %v842 = vsel %vm779, %v836, %v841
      %v843 = vrot.slane %v483, 1
      %v844 = vrot.slane %v485, 2
      %v845 = vor.u32 %v843, %v844
      %v846 = vshrl.u32 %v384, 16
      %v848 = vrot.slane %v846, 1
      %v849 = vrot.slane %v490, 2
      %v850 = vor.u32 %v848, %v849
      %v851 = vsel %vm779, %v845, %v850
      %v852 = vrot.slane %v495, 1
      %v853 = vrot.slane %v497, 2
      %v854 = vor.u32 %v852, %v853
      %v855 = vshrl.u32 %v385, 16
      %v857 = vrot.slane %v855, 1
      %v858 = vrot.slane %v502, 2
      %v859 = vor.u32 %v857, %v858
      %v860 = vsel %vm779, %v854, %v859
      %v861 = vrot.slane %v507, 1
      %v862 = vrot.slane %v509, 2
      %v863 = vor.u32 %v861, %v862
      %v864 = vshrl.u32 %v386, 16
      %v866 = vrot.slane %v864, 1
      %v867 = vrot.slane %v514, 2
      %v868 = vor.u32 %v866, %v867
      %v869 = vsel %vm779, %v863, %v868
      %v870 = vrot.slane %v519, 1
      %v871 = vrot.slane %v521, 2
      %v872 = vor.u32 %v870, %v871
      %v873 = vshrl.u32 %v387, 16
      %v875 = vrot.slane %v873, 1
      %v876 = vrot.slane %v526, 2
      %v877 = vor.u32 %v875, %v876
      %v878 = vsel %vm779, %v872, %v877
      %v879 = vrot.slane %v531, 1
      %v880 = vrot.slane %v533, 2
      %v881 = vor.u32 %v879, %v880
      %v882 = vshrl.u32 %v388, 16
      %v884 = vrot.slane %v882, 1
      %v885 = vrot.slane %v538, 2
      %v886 = vor.u32 %v884, %v885
      %v887 = vsel %vm779, %v881, %v886
      %v888 = vrot.slane %v543, 1
      %v889 = vrot.slane %v545, 2
      %v890 = vor.u32 %v888, %v889
      %v891 = vshrl.u32 %v389, 16
      %v893 = vrot.slane %v891, 1
      %v894 = vrot.slane %v550, 2
      %v895 = vor.u32 %v893, %v894
      %v896 = vsel %vm779, %v890, %v895
      %v897 = vrot.slane %v555, 1
      %v898 = vrot.slane %v557, 2
      %v899 = vor.u32 %v897, %v898
      %v900 = vshrl.u32 %v390, 16
      %v902 = vrot.slane %v900, 1
      %v903 = vrot.slane %v562, 2
      %v904 = vor.u32 %v902, %v903
      %v905 = vsel %vm779, %v899, %v904
      %v906 = vrot.slane %v567, 1
      %v907 = vrot.slane %v569, 2
      %v908 = vor.u32 %v906, %v907
      %v909 = vshrl.u32 %v391, 16
      %v911 = vrot.slane %v909, 1
      %v912 = vrot.slane %v574, 2
      %v913 = vor.u32 %v911, %v912
      %v914 = vsel %vm779, %v908, %v913
      %v915 = vrot.slane %v579, 1
      %v916 = vrot.slane %v581, 2
      %v917 = vor.u32 %v915, %v916
      %v918 = vshrl.u32 %v392, 16
      %v920 = vrot.slane %v918, 1
      %v921 = vrot.slane %v586, 2
      %v922 = vor.u32 %v920, %v921
      %v923 = vsel %vm779, %v917, %v922
      %v924 = vrot.slane %v591, 1
      %v925 = vrot.slane %v593, 2
      %v926 = vor.u32 %v924, %v925
      %v927 = vshrl.u32 %v393, 16
      %v929 = vrot.slane %v927, 1
      %v930 = vrot.slane %v598, 2
      %v931 = vor.u32 %v929, %v930
      %v932 = vsel %vm779, %v926, %v931
      %v933 = vrot.slane %v603, 1
      %v934 = vrot.slane %v605, 2
      %v935 = vor.u32 %v933, %v934
      %v936 = vshrl.u32 %v394, 16
      %v938 = vrot.slane %v936, 1
      %v939 = vrot.slane %v610, 2
      %v940 = vor.u32 %v938, %v939
      %v941 = vsel %vm779, %v935, %v940
      %v942 = vrot.slane %v615, 1
      %v943 = vrot.slane %v617, 2
      %v944 = vor.u32 %v942, %v943
      %v945 = vshrl.u32 %v395, 16
      %v947 = vrot.slane %v945, 1
      %v948 = vrot.slane %v622, 2
      %v949 = vor.u32 %v947, %v948
      %v950 = vsel %vm779, %v944, %v949
      %v951 = vrot.slane %v627, 1
      %v952 = vrot.slane %v629, 2
      %v953 = vor.u32 %v951, %v952
      %v954 = vshrl.u32 %v396, 16
      %v956 = vrot.slane %v954, 1
      %v957 = vrot.slane %v634, 2
      %v958 = vor.u32 %v956, %v957
      %v959 = vsel %vm779, %v953, %v958
      %960 = vrot.lane.b32.xlu0 %v788, 36
      %v961 = vpop.permute.xlu0 %960
      %962 = vrot.lane.b32.xlu0 %v797, 36
      %v963 = vpop.permute.xlu0 %962
      %964 = vrot.lane.b32.xlu0 %v806, 36
      %v965 = vpop.permute.xlu0 %964
      %966 = vrot.lane.b32.xlu0 %v815, 36
      %v967 = vpop.permute.xlu0 %966
      %968 = vrot.lane.b32.xlu0 %v824, 36
      %v969 = vpop.permute.xlu0 %968
      %970 = vrot.lane.b32.xlu0 %v833, 36
      %v971 = vpop.permute.xlu0 %970
      %972 = vrot.lane.b32.xlu0 %v842, 36
      %v973 = vpop.permute.xlu0 %972
      %974 = vrot.lane.b32.xlu0 %v851, 36
      %v975 = vpop.permute.xlu0 %974
      %976 = vrot.lane.b32.xlu0 %v860, 36
      %v977 = vpop.permute.xlu0 %976
      %978 = vrot.lane.b32.xlu0 %v869, 36
      %v979 = vpop.permute.xlu0 %978
      %980 = vrot.lane.b32.xlu0 %v878, 36
      %v981 = vpop.permute.xlu0 %980
      %982 = vrot.lane.b32.xlu0 %v887, 36
      %v983 = vpop.permute.xlu0 %982
      %984 = vrot.lane.b32.xlu0 %v896, 36
      %v985 = vpop.permute.xlu0 %984
      %986 = vrot.lane.b32.xlu0 %v905, 36
      %v987 = vpop.permute.xlu0 %986
      %988 = vrot.lane.b32.xlu0 %v914, 36
      %v989 = vpop.permute.xlu0 %988
      %990 = vrot.lane.b32.xlu0 %v923, 36
      %v991 = vpop.permute.xlu0 %990
      %992 = vrot.lane.b32.xlu0 %v932, 36
      %v993 = vpop.permute.xlu0 %992
      %994 = vrot.lane.b32.xlu0 %v941, 36
      %v995 = vpop.permute.xlu0 %994
      %996 = vrot.lane.b32.xlu0 %v950, 36
      %v997 = vpop.permute.xlu0 %996
      %998 = vrot.lane.b32.xlu0 %v959, 36
      %v999 = vpop.permute.xlu0 %998
      %vm1000 = vcmask 1045504
      %v1001 = vrot.slane %v317, 2
      %v1002 = vrot.slane %v377, 2
      %v1003 = vsel %vm1000, %v1001, %v1002
      %v1004 = vrot.slane %v318, 2
      %v1005 = vrot.slane %v378, 2
      %v1006 = vsel %vm1000, %v1004, %v1005
      %v1007 = vrot.slane %v319, 2
      %v1008 = vrot.slane %v379, 2
      %v1009 = vsel %vm1000, %v1007, %v1008
      %v1010 = vrot.slane %v320, 2
      %v1011 = vrot.slane %v380, 2
      %v1012 = vsel %vm1000, %v1010, %v1011
      %v1013 = vrot.slane %v321, 2
      %v1014 = vrot.slane %v381, 2
      %v1015 = vsel %vm1000, %v1013, %v1014
      %v1016 = vrot.slane %v322, 2
      %v1017 = vrot.slane %v382, 2
      %v1018 = vsel %vm1000, %v1016, %v1017
      %v1019 = vrot.slane %v323, 2
      %v1020 = vrot.slane %v383, 2
      %v1021 = vsel %vm1000, %v1019, %v1020
      %v1022 = vrot.slane %v324, 2
      %v1023 = vrot.slane %v384, 2
      %v1024 = vsel %vm1000, %v1022, %v1023
      %v1025 = vrot.slane %v325, 2
      %v1026 = vrot.slane %v385, 2
      %v1027 = vsel %vm1000, %v1025, %v1026
      %v1028 = vrot.slane %v326, 2
      %v1029 = vrot.slane %v386, 2
      %v1030 = vsel %vm1000, %v1028, %v1029
      %v1031 = vrot.slane %v327, 2
      %v1032 = vrot.slane %v387, 2
      %v1033 = vsel %vm1000, %v1031, %v1032
      %v1034 = vrot.slane %v328, 2
      %v1035 = vrot.slane %v388, 2
      %v1036 = vsel %vm1000, %v1034, %v1035
      %v1037 = vrot.slane %v329, 2
      %v1038 = vrot.slane %v389, 2
      %v1039 = vsel %vm1000, %v1037, %v1038
      %v1040 = vrot.slane %v330, 2
      %v1041 = vrot.slane %v390, 2
      %v1042 = vsel %vm1000, %v1040, %v1041
      %v1043 = vrot.slane %v331, 2
      %v1044 = vrot.slane %v391, 2
      %v1045 = vsel %vm1000, %v1043, %v1044
      %v1046 = vrot.slane %v332, 2
      %v1047 = vrot.slane %v392, 2
      %v1048 = vsel %vm1000, %v1046, %v1047
      %v1049 = vrot.slane %v333, 2
      %v1050 = vrot.slane %v393, 2
      %v1051 = vsel %vm1000, %v1049, %v1050
      %v1052 = vrot.slane %v334, 2
      %v1053 = vrot.slane %v394, 2
      %v1054 = vsel %vm1000, %v1052, %v1053
      %v1055 = vrot.slane %v335, 2
      %v1056 = vrot.slane %v395, 2
      %v1057 = vsel %vm1000, %v1055, %v1056
      %v1058 = vrot.slane %v336, 2
      %v1059 = vrot.slane %v396, 2
      %v1060 = vsel %vm1000, %v1058, %v1059
      %1061 = vrot.lane.b32.xlu0 %v1003, 48
      %v1062 = vpop.permute.xlu0 %1061
      %1063 = vrot.lane.b32.xlu0 %v1006, 48
      %v1064 = vpop.permute.xlu0 %1063
      %1065 = vrot.lane.b32.xlu0 %v1009, 48
      %v1066 = vpop.permute.xlu0 %1065
      %1067 = vrot.lane.b32.xlu0 %v1012, 48
      %v1068 = vpop.permute.xlu0 %1067
      %1069 = vrot.lane.b32.xlu0 %v1015, 48
      %v1070 = vpop.permute.xlu0 %1069
      %1071 = vrot.lane.b32.xlu0 %v1018, 48
      %v1072 = vpop.permute.xlu0 %1071
      %1073 = vrot.lane.b32.xlu0 %v1021, 48
      %v1074 = vpop.permute.xlu0 %1073
      %1075 = vrot.lane.b32.xlu0 %v1024, 48
      %v1076 = vpop.permute.xlu0 %1075
      %1077 = vrot.lane.b32.xlu0 %v1027, 48
      %v1078 = vpop.permute.xlu0 %1077
      %1079 = vrot.lane.b32.xlu0 %v1030, 48
      %v1080 = vpop.permute.xlu0 %1079
      %1081 = vrot.lane.b32.xlu0 %v1033, 48
      %v1082 = vpop.permute.xlu0 %1081
      %1083 = vrot.lane.b32.xlu0 %v1036, 48
      %v1084 = vpop.permute.xlu0 %1083
      %1085 = vrot.lane.b32.xlu0 %v1039, 48
      %v1086 = vpop.permute.xlu0 %1085
      %1087 = vrot.lane.b32.xlu0 %v1042, 48
      %v1088 = vpop.permute.xlu0 %1087
      %1089 = vrot.lane.b32.xlu0 %v1045, 48
      %v1090 = vpop.permute.xlu0 %1089
      %1091 = vrot.lane.b32.xlu0 %v1048, 48
      %v1092 = vpop.permute.xlu0 %1091
      %1093 = vrot.lane.b32.xlu0 %v1051, 48
      %v1094 = vpop.permute.xlu0 %1093
      %1095 = vrot.lane.b32.xlu0 %v1054, 48
      %v1096 = vpop.permute.xlu0 %1095
      %1097 = vrot.lane.b32.xlu0 %v1057, 48
      %v1098 = vpop.permute.xlu0 %1097
      %1099 = vrot.lane.b32.xlu0 %v1060, 48
      %v1100 = vpop.permute.xlu0 %1099
      %vm1101 = vcmask 97280
      %v1103 = vsel %vm1101, %v317, %v639
      %v1105 = vsel %vm1101, %v318, %v641
      %v1107 = vsel %vm1101, %v319, %v643
      %v1109 = vsel %vm1101, %v320, %v645
      %v1111 = vsel %vm1101, %v321, %v647
      %v1113 = vsel %vm1101, %v322, %v649
      %v1115 = vsel %vm1101, %v323, %v651
      %v1117 = vsel %vm1101, %v324, %v653
      %v1119 = vsel %vm1101, %v325, %v655
      %v1121 = vsel %vm1101, %v326, %v657
      %v1123 = vsel %vm1101, %v327, %v659
      %v1125 = vsel %vm1101, %v328, %v661
      %v1127 = vsel %vm1101, %v329, %v663
      %v1129 = vsel %vm1101, %v330, %v665
      %v1131 = vsel %vm1101, %v331, %v667
      %v1133 = vsel %vm1101, %v332, %v669
      %v1135 = vsel %vm1101, %v333, %v671
      %v1137 = vsel %vm1101, %v334, %v673
      %v1139 = vsel %vm1101, %v335, %v675
      %v1141 = vsel %vm1101, %v336, %v677
      %vm1142 = vcmask 195584
      %v1144 = vsel %vm1142, %v1103, %v740
      %v1146 = vsel %vm1142, %v1105, %v742
      %v1148 = vsel %vm1142, %v1107, %v744
      %v1150 = vsel %vm1142, %v1109, %v746
      %v1152 = vsel %vm1142, %v1111, %v748
      %v1154 = vsel %vm1142, %v1113, %v750
      %v1156 = vsel %vm1142, %v1115, %v752
      %v1158 = vsel %vm1142, %v1117, %v754
      %v1160 = vsel %vm1142, %v1119, %v756
      %v1162 = vsel %vm1142, %v1121, %v758
      %v1164 = vsel %vm1142, %v1123, %v760
      %v1166 = vsel %vm1142, %v1125, %v762
      %v1168 = vsel %vm1142, %v1127, %v764
      %v1170 = vsel %vm1142, %v1129, %v766
      %v1172 = vsel %vm1142, %v1131, %v768
      %v1174 = vsel %vm1142, %v1133, %v770
      %v1176 = vsel %vm1142, %v1135, %v772
      %v1178 = vsel %vm1142, %v1137, %v774
      %v1180 = vsel %vm1142, %v1139, %v776
      %v1182 = vsel %vm1142, %v1141, %v778
      %vm1183 = vcmask 293888
      %v1185 = vsel %vm1183, %v1144, %v961
      %v1187 = vsel %vm1183, %v1146, %v963
      %v1189 = vsel %vm1183, %v1148, %v965
      %v1191 = vsel %vm1183, %v1150, %v967
      %v1193 = vsel %vm1183, %v1152, %v969
      %v1195 = vsel %vm1183, %v1154, %v971
      %v1197 = vsel %vm1183, %v1156, %v973
      %v1199 = vsel %vm1183, %v1158, %v975
      %v1201 = vsel %vm1183, %v1160, %v977
      %v1203 = vsel %vm1183, %v1162, %v979
      %v1205 = vsel %vm1183, %v1164, %v981
      %v1207 = vsel %vm1183, %v1166, %v983
      %v1209 = vsel %vm1183, %v1168, %v985
      %v1211 = vsel %vm1183, %v1170, %v987
      %v1213 = vsel %vm1183, %v1172, %v989
      %v1215 = vsel %vm1183, %v1174, %v991
      %v1217 = vsel %vm1183, %v1176, %v993
      %v1219 = vsel %vm1183, %v1178, %v995
      %v1221 = vsel %vm1183, %v1180, %v997
      %v1223 = vsel %vm1183, %v1182, %v999
      %vm1224 = vcmask 392192
      %v1226 = vsel %vm1224, %v1185, %v1062
      %v1228 = vsel %vm1224, %v1187, %v1064
      %v1230 = vsel %vm1224, %v1189, %v1066
      %v1232 = vsel %vm1224, %v1191, %v1068
      %v1234 = vsel %vm1224, %v1193, %v1070
      %v1236 = vsel %vm1224, %v1195, %v1072
      %v1238 = vsel %vm1224, %v1197, %v1074
      %v1240 = vsel %vm1224, %v1199, %v1076
      %v1242 = vsel %vm1224, %v1201, %v1078
      %v1244 = vsel %vm1224, %v1203, %v1080
      %v1246 = vsel %vm1224, %v1205, %v1082
      %v1248 = vsel %vm1224, %v1207, %v1084
      %v1250 = vsel %vm1224, %v1209, %v1086
      %v1252 = vsel %vm1224, %v1211, %v1088
      %v1254 = vsel %vm1224, %v1213, %v1090
      %v1256 = vsel %vm1224, %v1215, %v1092
      %v1258 = vsel %vm1224, %v1217, %v1094
      %v1260 = vsel %vm1224, %v1219, %v1096
      %v1262 = vsel %vm1224, %v1221, %v1098
      %v1264 = vsel %vm1224, %v1223, %v1100
      %v1265 = vld [vmem:[%s1] sm:$0xf]
      %v1266 = vld [vmem:[%s1 + $0x4] sm:$0xf]
      %v1267 = vld [vmem:[%s1 + $0x8] sm:$0xf]
      %v1268 = vld [vmem:[%s1 + $0xc] sm:$0xf]
      %v1269 = vld [vmem:[%s1 + $0x10] sm:$0xf]
      %v1270 = vld [vmem:[%s1 + $0x14] sm:$0xf]
      %v1271 = vld [vmem:[%s1 + $0x18] sm:$0xf]
      %v1272 = vld [vmem:[%s1 + $0x1c] sm:$0x3]
      %v1281 = vunpack.c.l.b16 %v1265
      %v1282 = vunpack.c.l.b16 %v1266
      %v1283 = vunpack.c.l.b16 %v1267
      %v1284 = vunpack.c.l.b16 %v1268
      %v1285 = vunpack.c.l.b16 %v1269
      %v1286 = vunpack.c.l.b16 %v1270
      %v1287 = vunpack.c.l.b16 %v1271
      %v1288 = vunpack.c.l.b16 %v1272
      %v1289 = vpack.c.b16 %v1282, %v1281
      %v1290 = vpack.c.b16 %v1284, %v1283
      %v1291 = vpack.c.b16 %v1286, %v1285
      %v1292 = vpack.c.b16 %v1288, %v1287
      %vm1296 = vcmask 490496
      %v1297 = vsel %vm1296, %v1226, 0
      %v1299 = vsel %vm1296, %v1228, 0
      %v1301 = vsel %vm1296, %v1230, 0
      %v1303 = vsel %vm1296, %v1232, 0
      %v1305 = vsel %vm1296, %v1234, 0
      %v1307 = vsel %vm1296, %v1236, 0
      %v1309 = vsel %vm1296, %v1238, 0
      %v1311 = vsel %vm1296, %v1240, 0
      %v1313 = vsel %vm1296, %v1242, 0
      %v1315 = vsel %vm1296, %v1244, 0
      %v1317 = vsel %vm1296, %v1246, 0
      %v1319 = vsel %vm1296, %v1248, 0
      %v1321 = vsel %vm1296, %v1250, 0
      %v1323 = vsel %vm1296, %v1252, 0
      %v1325 = vsel %vm1296, %v1254, 0
      %v1327 = vsel %vm1296, %v1256, 0
      %vm1329 = vcmask 1045504
      %v1331 = vsel %vm1329, %v1292, 0
      %1333 = vmatprep.subr.bf16.mxu0 0
      %1334 = vmatpush1.bf16.msra.mxu0 %v1289
      %1335 = vmatprep.subr.bf16.mxu0 0
      %1336 = vmatpush1.bf16.msra.mxu0 %v1290
      %1337 = vmatprep.subr.bf16.mxu0 0
      %1338 = vmatpush1.bf16.msra.mxu0 %v1291
      %1339 = vmatprep.subr.bf16.mxu0 0
      %1340 = vmatpush1.bf16.msra.mxu0 %v1331
      %1341 = vmatprep.subr.bf16.mxu0 0
      %1342 = vmatpush1.bf16.msra.mxu0 0
      %1343 = vmatprep.subr.bf16.mxu0 0
      %1344 = vmatpush1.bf16.msra.mxu0 0
      %1345 = vmatprep.subr.bf16.mxu0 0
      %1346 = vmatpush1.bf16.msra.mxu0 0
      %1347 = vmatprep.subr.bf16.mxu0 0
      %1348 = vmatpush1.bf16.msra.mxu0 0
      %1349 = vmatprep.subr.bf16.mxu0 0
      %1350 = vmatpush1.bf16.msra.mxu0 0
      %1351 = vmatprep.subr.bf16.mxu0 0
      %1352 = vmatpush1.bf16.msra.mxu0 0
      %1353 = vmatprep.subr.bf16.mxu0 0
      %1354 = vmatpush1.bf16.msra.mxu0 0
      %1355 = vmatprep.subr.bf16.mxu0 0
      %1356 = vmatpush1.bf16.msra.mxu0 0
      %1357 = vmatprep.subr.bf16.mxu0 0
      %1358 = vmatpush1.bf16.msra.mxu0 0
      %1359 = vmatprep.subr.bf16.mxu0 0
      %1360 = vmatpush1.bf16.msra.mxu0 0
      %1361 = vmatprep.subr.bf16.mxu0 0
      %1362 = vmatpush1.bf16.msra.mxu0 0
      %1363 = vmatprep.subr.bf16.mxu0 0
      %1364 = vmatpush1.bf16.msra.mxu0 0
      %1365 = vmatprep.mubr.bf16.mxu0 0
      %1366 = vmatmul.mubr.bf16.gmra.mrb[0].mxu0 %v1297
      %v1367 = vpop.f32.mrb[0].mxu0
      %v1368 = vadd.f32 0.0, %v1367
      %v1369 = vpop.f32.mrb[0].mxu0
      %v1370 = vpop.f32.mrb[0].mxu0
      %v1371 = vadd.f32 0.0, %v1370
      %v1372 = vpop.f32.mrb[0].mxu0
      %1373 = vmatprep.mubr.bf16.mxu0 0
      %1374 = vmatmul.mubr.bf16.gmra.mrb[0].mxu0 %v1299
      %v1375 = vpop.f32.mrb[0].mxu0
      %v1376 = vadd.f32 0.0, %v1375
      %v1377 = vpop.f32.mrb[0].mxu0
      %v1378 = vpop.f32.mrb[0].mxu0
      %v1379 = vadd.f32 0.0, %v1378
      %v1380 = vpop.f32.mrb[0].mxu0
      %1381 = vmatprep.mubr.bf16.mxu0 0
      %1382 = vmatmul.mubr.bf16.gmra.mrb[0].mxu0 %v1301
      %v1383 = vpop.f32.mrb[0].mxu0
      %v1384 = vadd.f32 0.0, %v1383
      %v1385 = vpop.f32.mrb[0].mxu0
      %v1386 = vpop.f32.mrb[0].mxu0
      %v1387 = vadd.f32 0.0, %v1386
      %v1388 = vpop.f32.mrb[0].mxu0
      %1389 = vmatprep.mubr.bf16.mxu0 0
      %1390 = vmatmul.mubr.bf16.gmra.mrb[0].mxu0 %v1303
      %v1391 = vpop.f32.mrb[0].mxu0
      %v1392 = vadd.f32 0.0, %v1391
      %v1393 = vpop.f32.mrb[0].mxu0
      %v1394 = vpop.f32.mrb[0].mxu0
      %v1395 = vadd.f32 0.0, %v1394
      %v1396 = vpop.f32.mrb[0].mxu0
      %1397 = vmatprep.mubr.bf16.mxu0 0
      %1398 = vmatmul.mubr.bf16.gmra.mrb[0].mxu0 %v1305
      %v1399 = vpop.f32.mrb[0].mxu0
      %v1400 = vadd.f32 0.0, %v1399
      %v1401 = vpop.f32.mrb[0].mxu0
      %v1402 = vpop.f32.mrb[0].mxu0
      %v1403 = vadd.f32 0.0, %v1402
      %v1404 = vpop.f32.mrb[0].mxu0
      %1405 = vmatprep.mubr.bf16.mxu0 0
      %1406 = vmatmul.mubr.bf16.gmra.mrb[0].mxu0 %v1307
      %v1407 = vpop.f32.mrb[0].mxu0
      %v1408 = vadd.f32 0.0, %v1407
      %v1409 = vpop.f32.mrb[0].mxu0
      %v1410 = vpop.f32.mrb[0].mxu0
      %v1411 = vadd.f32 0.0, %v1410
      %v1412 = vpop.f32.mrb[0].mxu0
      %1413 = vmatprep.mubr.bf16.mxu0 0
      %1414 = vmatmul.mubr.bf16.gmra.mrb[0].mxu0 %v1309
      %v1415 = vpop.f32.mrb[0].mxu0
      %v1416 = vadd.f32 0.0, %v1415
      %v1417 = vpop.f32.mrb[0].mxu0
      %v1418 = vpop.f32.mrb[0].mxu0
      %v1419 = vadd.f32 0.0, %v1418
      %v1420 = vpop.f32.mrb[0].mxu0
      %1421 = vmatprep.mubr.bf16.mxu0 0
      %1422 = vmatmul.mubr.bf16.gmra.mrb[0].mxu0 %v1311
      %v1423 = vpop.f32.mrb[0].mxu0
      %v1424 = vadd.f32 0.0, %v1423
      %v1425 = vpop.f32.mrb[0].mxu0
      %v1426 = vpop.f32.mrb[0].mxu0
      %v1427 = vadd.f32 0.0, %v1426
      %v1428 = vpop.f32.mrb[0].mxu0
      %1429 = vmatprep.mubr.bf16.mxu0 0
      %1430 = vmatmul.mubr.bf16.gmra.mrb[0].mxu0 %v1313
      %v1431 = vpop.f32.mrb[0].mxu0
      %v1432 = vadd.f32 0.0, %v1431
      %v1433 = vpop.f32.mrb[0].mxu0
      %v1434 = vpop.f32.mrb[0].mxu0
      %v1435 = vadd.f32 0.0, %v1434
      %v1436 = vpop.f32.mrb[0].mxu0
      %1437 = vmatprep.mubr.bf16.mxu0 0
      %1438 = vmatmul.mubr.bf16.gmra.mrb[0].mxu0 %v1315
      %v1439 = vpop.f32.mrb[0].mxu0
      %v1440 = vadd.f32 0.0, %v1439
      %v1441 = vpop.f32.mrb[0].mxu0
      %v1442 = vpop.f32.mrb[0].mxu0
      %v1443 = vadd.f32 0.0, %v1442
      %v1444 = vpop.f32.mrb[0].mxu0
      %1445 = vmatprep.mubr.bf16.mxu0 0
      %1446 = vmatmul.mubr.bf16.gmra.mrb[0].mxu0 %v1317
      %v1447 = vpop.f32.mrb[0].mxu0
      %v1448 = vadd.f32 0.0, %v1447
      %v1449 = vpop.f32.mrb[0].mxu0
      %v1450 = vpop.f32.mrb[0].mxu0
      %v1451 = vadd.f32 0.0, %v1450
      %v1452 = vpop.f32.mrb[0].mxu0
      %1453 = vmatprep.mubr.bf16.mxu0 0
      %1454 = vmatmul.mubr.bf16.gmra.mrb[0].mxu0 %v1319
      %v1455 = vpop.f32.mrb[0].mxu0
      %v1456 = vadd.f32 0.0, %v1455
      %v1457 = vpop.f32.mrb[0].mxu0
      %v1458 = vpop.f32.mrb[0].mxu0
      %v1459 = vadd.f32 0.0, %v1458
      %v1460 = vpop.f32.mrb[0].mxu0
      %1461 = vmatprep.mubr.bf16.mxu0 0
      %1462 = vmatmul.mubr.bf16.gmra.mrb[0].mxu0 %v1321
      %v1463 = vpop.f32.mrb[0].mxu0
      %v1464 = vadd.f32 0.0, %v1463
      %v1465 = vpop.f32.mrb[0].mxu0
      %v1466 = vpop.f32.mrb[0].mxu0
      %v1467 = vadd.f32 0.0, %v1466
      %v1468 = vpop.f32.mrb[0].mxu0
      %1469 = vmatprep.mubr.bf16.mxu0 0
      %1470 = vmatmul.mubr.bf16.gmra.mrb[0].mxu0 %v1323
      %v1471 = vpop.f32.mrb[0].mxu0
      %v1472 = vadd.f32 0.0, %v1471
      %v1473 = vpop.f32.mrb[0].mxu0
      %v1474 = vpop.f32.mrb[0].mxu0
      %v1475 = vadd.f32 0.0, %v1474
      %v1476 = vpop.f32.mrb[0].mxu0
      %1477 = vmatprep.mubr.bf16.mxu0 0
      %1478 = vmatmul.mubr.bf16.gmra.mrb[0].mxu0 %v1325
      %v1479 = vpop.f32.mrb[0].mxu0
      %v1480 = vadd.f32 0.0, %v1479
      %v1481 = vpop.f32.mrb[0].mxu0
      %v1482 = vpop.f32.mrb[0].mxu0
      %v1483 = vadd.f32 0.0, %v1482
      %v1484 = vpop.f32.mrb[0].mxu0
      %1485 = vmatprep.mubr.bf16.mxu0 0
      %1486 = vmatmul.mubr.bf16.gmra.mrb[0].mxu0 %v1327
      %v1487 = vpop.f32.mrb[0].mxu0
      %v1488 = vadd.f32 0.0, %v1487
      %v1489 = vpop.f32.mrb[0].mxu0
      %v1490 = vpop.f32.mrb[0].mxu0
      %v1491 = vadd.f32 0.0, %v1490
      %v1492 = vpop.f32.mrb[0].mxu0
      %1493 = vdwg.mxu0
      %vm1494 = vcmask 64512
      %1495 = vst.msk [vmem:[#allocation2] sm:$0xff] %vm1494, %v1368
      %1496 = vst.msk [vmem:[#allocation2 + $0x8] sm:$0xff] %vm1494, %v1371
      %1497 = vst.msk [vmem:[#allocation2 + $0x10] sm:$0xff] %vm1494, %v1376
      %1498 = vst.msk [vmem:[#allocation2 + $0x18] sm:$0xff] %vm1494, %v1379
      %1499 = vst.msk [vmem:[#allocation2 + $0x20] sm:$0xff] %vm1494, %v1384
      %1500 = vst.msk [vmem:[#allocation2 + $0x28] sm:$0xff] %vm1494, %v1387
      %1501 = vst.msk [vmem:[#allocation2 + $0x30] sm:$0xff] %vm1494, %v1392
      %1502 = vst.msk [vmem:[#allocation2 + $0x38] sm:$0xff] %vm1494, %v1395
      %1503 = vst.msk [vmem:[#allocation2 + $0x40] sm:$0xff] %vm1494, %v1400
      %1504 = vst.msk [vmem:[#allocation2 + $0x48] sm:$0xff] %vm1494, %v1403
      %1505 = vst.msk [vmem:[#allocation2 + $0x50] sm:$0xff] %vm1494, %v1408
      %1506 = vst.msk [vmem:[#allocation2 + $0x58] sm:$0xff] %vm1494, %v1411
      %1507 = vst.msk [vmem:[#allocation2 + $0x60] sm:$0xff] %vm1494, %v1416
      %1508 = vst.msk [vmem:[#allocation2 + $0x68] sm:$0xff] %vm1494, %v1419
      %1509 = vst.msk [vmem:[#allocation2 + $0x70] sm:$0xff] %vm1494, %v1424
      %1510 = vst.msk [vmem:[#allocation2 + $0x78] sm:$0xff] %vm1494, %v1427
      %1511 = vst.msk [vmem:[#allocation2 + $0x80] sm:$0xff] %vm1494, %v1432
      %1512 = vst.msk [vmem:[#allocation2 + $0x88] sm:$0xff] %vm1494, %v1435
      %1513 = vst.msk [vmem:[#allocation2 + $0x90] sm:$0xff] %vm1494, %v1440
      %1514 = vst.msk [vmem:[#allocation2 + $0x98] sm:$0xff] %vm1494, %v1443
      %1515 = vst.msk [vmem:[#allocation2 + $0xa0] sm:$0xff] %vm1494, %v1448
      %1516 = vst.msk [vmem:[#allocation2 + $0xa8] sm:$0xff] %vm1494, %v1451
      %1517 = vst.msk [vmem:[#allocation2 + $0xb0] sm:$0xff] %vm1494, %v1456
      %1518 = vst.msk [vmem:[#allocation2 + $0xb8] sm:$0xff] %vm1494, %v1459
      %1519 = vst.msk [vmem:[#allocation2 + $0xc0] sm:$0xff] %vm1494, %v1464
      %1520 = vst.msk [vmem:[#allocation2 + $0xc8] sm:$0xff] %vm1494, %v1467
      %1521 = vst.msk [vmem:[#allocation2 + $0xd0] sm:$0xff] %vm1494, %v1472
      %1522 = vst.msk [vmem:[#allocation2 + $0xd8] sm:$0xff] %vm1494, %v1475
      %1523 = vst.msk [vmem:[#allocation2 + $0xe0] sm:$0xff] %vm1494, %v1480
      %1524 = vst.msk [vmem:[#allocation2 + $0xe8] sm:$0xff] %vm1494, %v1483
      %1525 = vst.msk [vmem:[#allocation2 + $0xf0] sm:$0xff] %vm1494, %v1488
      %1526 = vst.msk [vmem:[#allocation2 + $0xf8] sm:$0xff] %vm1494, %v1491
      %s1527 = scalar_lea.vmem %s1, 32
      %v1528 = vld [vmem:[%s1527] sm:$0xf]
      %v1529 = vld [vmem:[%s1527 + $0x4] sm:$0xf]
      %v1530 = vld [vmem:[%s1527 + $0x8] sm:$0xf]
      %v1531 = vld [vmem:[%s1527 + $0xc] sm:$0xf]
      %v1532 = vld [vmem:[%s1527 + $0x10] sm:$0xf]
      %v1533 = vld [vmem:[%s1527 + $0x14] sm:$0xf]
      %v1534 = vld [vmem:[%s1527 + $0x18] sm:$0xf]
      %v1535 = vld [vmem:[%s1527 + $0x1c] sm:$0x3]
      %v1544 = vunpack.c.l.b16 %v1528
      %v1545 = vunpack.c.l.b16 %v1529
      %v1546 = vunpack.c.l.b16 %v1530
      %v1547 = vunpack.c.l.b16 %v1531
      %v1548 = vunpack.c.l.b16 %v1532
      %v1549 = vunpack.c.l.b16 %v1533
      %v1550 = vunpack.c.l.b16 %v1534
      %v1551 = vunpack.c.l.b16 %v1535
      %v1552 = vpack.c.b16 %v1545, %v1544
      %v1553 = vpack.c.b16 %v1547, %v1546
      %v1554 = vpack.c.b16 %v1549, %v1548
      %v1555 = vpack.c.b16 %v1551, %v1550
      %v1559 = vsel %vm1296, %v1258, 0
      %v1562 = vsel %vm1329, %v1555, 0
      %1564 = vmatprep.subr.bf16.mxu0 0
      %1565 = vmatpush1.bf16.msra.mxu0 %v1552
      %1566 = vmatprep.subr.bf16.mxu0 0
      %1567 = vmatpush1.bf16.msra.mxu0 %v1553
      %1568 = vmatprep.subr.bf16.mxu0 0
      %1569 = vmatpush1.bf16.msra.mxu0 %v1554
      %1570 = vmatprep.subr.bf16.mxu0 0
      %1571 = vmatpush1.bf16.msra.mxu0 %v1562
      %1572 = vmatprep.subr.bf16.mxu0 0
      %1573 = vmatpush1.bf16.msra.mxu0 0
      %1574 = vmatprep.subr.bf16.mxu0 0
      %1575 = vmatpush1.bf16.msra.mxu0 0
      %1576 = vmatprep.subr.bf16.mxu0 0
      %1577 = vmatpush1.bf16.msra.mxu0 0
      %1578 = vmatprep.subr.bf16.mxu0 0
      %1579 = vmatpush1.bf16.msra.mxu0 0
      %1580 = vmatprep.subr.bf16.mxu0 0
      %1581 = vmatpush1.bf16.msra.mxu0 0
      %1582 = vmatprep.subr.bf16.mxu0 0
      %1583 = vmatpush1.bf16.msra.mxu0 0
      %1584 = vmatprep.subr.bf16.mxu0 0
      %1585 = vmatpush1.bf16.msra.mxu0 0
      %1586 = vmatprep.subr.bf16.mxu0 0
      %1587 = vmatpush1.bf16.msra.mxu0 0
      %1588 = vmatprep.subr.bf16.mxu0 0
      %1589 = vmatpush1.bf16.msra.mxu0 0
      %1590 = vmatprep.subr.bf16.mxu0 0
      %1591 = vmatpush1.bf16.msra.mxu0 0
      %1592 = vmatprep.subr.bf16.mxu0 0
      %1593 = vmatpush1.bf16.msra.mxu0 0
      %1594 = vmatprep.subr.bf16.mxu0 0
      %1595 = vmatpush1.bf16.msra.mxu0 0
      %1596 = vmatprep.mubr.bf16.mxu0 0
      %1597 = vmatmul.mubr.bf16.gmra.mrb[0].mxu0 %v1299
      %v1598 = vpop.f32.mrb[0].mxu0
      %v1599 = vadd.f32 0.0, %v1598
      %v1600 = vpop.f32.mrb[0].mxu0
      %v1601 = vpop.f32.mrb[0].mxu0
      %v1602 = vadd.f32 0.0, %v1601
      %v1603 = vpop.f32.mrb[0].mxu0
      %1604 = vmatprep.mubr.bf16.mxu0 0
      %1605 = vmatmul.mubr.bf16.gmra.mrb[0].mxu0 %v1301
      %v1606 = vpop.f32.mrb[0].mxu0
      %v1607 = vadd.f32 0.0, %v1606
      %v1608 = vpop.f32.mrb[0].mxu0
      %v1609 = vpop.f32.mrb[0].mxu0
      %v1610 = vadd.f32 0.0, %v1609
      %v1611 = vpop.f32.mrb[0].mxu0
      %1612 = vmatprep.mubr.bf16.mxu0 0
      %1613 = vmatmul.mubr.bf16.gmra.mrb[0].mxu0 %v1303
      %v1614 = vpop.f32.mrb[0].mxu0
      %v1615 = vadd.f32 0.0, %v1614
      %v1616 = vpop.f32.mrb[0].mxu0
      %v1617 = vpop.f32.mrb[0].mxu0
      %v1618 = vadd.f32 0.0, %v1617
      %v1619 = vpop.f32.mrb[0].mxu0
      %1620 = vmatprep.mubr.bf16.mxu0 0
      %1621 = vmatmul.mubr.bf16.gmra.mrb[0].mxu0 %v1305
      %v1622 = vpop.f32.mrb[0].mxu0
      %v1623 = vadd.f32 0.0, %v1622
      %v1624 = vpop.f32.mrb[0].mxu0
      %v1625 = vpop.f32.mrb[0].mxu0
      %v1626 = vadd.f32 0.0, %v1625
      %v1627 = vpop.f32.mrb[0].mxu0
      %1628 = vmatprep.mubr.bf16.mxu0 0
      %1629 = vmatmul.mubr.bf16.gmra.mrb[0].mxu0 %v1307
      %v1630 = vpop.f32.mrb[0].mxu0
      %v1631 = vadd.f32 0.0, %v1630
      %v1632 = vpop.f32.mrb[0].mxu0
      %v1633 = vpop.f32.mrb[0].mxu0
      %v1634 = vadd.f32 0.0, %v1633
      %v1635 = vpop.f32.mrb[0].mxu0
      %1636 = vmatprep.mubr.bf16.mxu0 0
      %1637 = vmatmul.mubr.bf16.gmra.mrb[0].mxu0 %v1309
      %v1638 = vpop.f32.mrb[0].mxu0
      %v1639 = vadd.f32 0.0, %v1638
      %v1640 = vpop.f32.mrb[0].mxu0
      %v1641 = vpop.f32.mrb[0].mxu0
      %v1642 = vadd.f32 0.0, %v1641
      %v1643 = vpop.f32.mrb[0].mxu0
      %1644 = vmatprep.mubr.bf16.mxu0 0
      %1645 = vmatmul.mubr.bf16.gmra.mrb[0].mxu0 %v1311
      %v1646 = vpop.f32.mrb[0].mxu0
      %v1647 = vadd.f32 0.0, %v1646
      %v1648 = vpop.f32.mrb[0].mxu0
      %v1649 = vpop.f32.mrb[0].mxu0
      %v1650 = vadd.f32 0.0, %v1649
      %v1651 = vpop.f32.mrb[0].mxu0
      %1652 = vmatprep.mubr.bf16.mxu0 0
      %1653 = vmatmul.mubr.bf16.gmra.mrb[0].mxu0 %v1313
      %v1654 = vpop.f32.mrb[0].mxu0
      %v1655 = vadd.f32 0.0, %v1654
      %v1656 = vpop.f32.mrb[0].mxu0
      %v1657 = vpop.f32.mrb[0].mxu0
      %v1658 = vadd.f32 0.0, %v1657
      %v1659 = vpop.f32.mrb[0].mxu0
      %1660 = vmatprep.mubr.bf16.mxu0 0
      %1661 = vmatmul.mubr.bf16.gmra.mrb[0].mxu0 %v1315
      %v1662 = vpop.f32.mrb[0].mxu0
      %v1663 = vadd.f32 0.0, %v1662
      %v1664 = vpop.f32.mrb[0].mxu0
      %v1665 = vpop.f32.mrb[0].mxu0
      %v1666 = vadd.f32 0.0, %v1665
      %v1667 = vpop.f32.mrb[0].mxu0
      %1668 = vmatprep.mubr.bf16.mxu0 0
      %1669 = vmatmul.mubr.bf16.gmra.mrb[0].mxu0 %v1317
      %v1670 = vpop.f32.mrb[0].mxu0
      %v1671 = vadd.f32 0.0, %v1670
      %v1672 = vpop.f32.mrb[0].mxu0
      %v1673 = vpop.f32.mrb[0].mxu0
      %v1674 = vadd.f32 0.0, %v1673
      %v1675 = vpop.f32.mrb[0].mxu0
      %1676 = vmatprep.mubr.bf16.mxu0 0
      %1677 = vmatmul.mubr.bf16.gmra.mrb[0].mxu0 %v1319
      %v1678 = vpop.f32.mrb[0].mxu0
      %v1679 = vadd.f32 0.0, %v1678
      %v1680 = vpop.f32.mrb[0].mxu0
      %v1681 = vpop.f32.mrb[0].mxu0
      %v1682 = vadd.f32 0.0, %v1681
      %v1683 = vpop.f32.mrb[0].mxu0
      %1684 = vmatprep.mubr.bf16.mxu0 0
      %1685 = vmatmul.mubr.bf16.gmra.mrb[0].mxu0 %v1321
      %v1686 = vpop.f32.mrb[0].mxu0
      %v1687 = vadd.f32 0.0, %v1686
      %v1688 = vpop.f32.mrb[0].mxu0
      %v1689 = vpop.f32.mrb[0].mxu0
      %v1690 = vadd.f32 0.0, %v1689
      %v1691 = vpop.f32.mrb[0].mxu0
      %1692 = vmatprep.mubr.bf16.mxu0 0
      %1693 = vmatmul.mubr.bf16.gmra.mrb[0].mxu0 %v1323
      %v1694 = vpop.f32.mrb[0].mxu0
      %v1695 = vadd.f32 0.0, %v1694
      %v1696 = vpop.f32.mrb[0].mxu0
      %v1697 = vpop.f32.mrb[0].mxu0
      %v1698 = vadd.f32 0.0, %v1697
      %v1699 = vpop.f32.mrb[0].mxu0
      %1700 = vmatprep.mubr.bf16.mxu0 0
      %1701 = vmatmul.mubr.bf16.gmra.mrb[0].mxu0 %v1325
      %v1702 = vpop.f32.mrb[0].mxu0
      %v1703 = vadd.f32 0.0, %v1702
      %v1704 = vpop.f32.mrb[0].mxu0
      %v1705 = vpop.f32.mrb[0].mxu0
      %v1706 = vadd.f32 0.0, %v1705
      %v1707 = vpop.f32.mrb[0].mxu0
      %1708 = vmatprep.mubr.bf16.mxu0 0
      %1709 = vmatmul.mubr.bf16.gmra.mrb[0].mxu0 %v1327
      %v1710 = vpop.f32.mrb[0].mxu0
      %v1711 = vadd.f32 0.0, %v1710
      %v1712 = vpop.f32.mrb[0].mxu0
      %v1713 = vpop.f32.mrb[0].mxu0
      %v1714 = vadd.f32 0.0, %v1713
      %v1715 = vpop.f32.mrb[0].mxu0
      %1716 = vmatprep.mubr.bf16.mxu0 0
      %1717 = vmatmul.mubr.bf16.gmra.mrb[0].mxu0 %v1559
      %v1718 = vpop.f32.mrb[0].mxu0
      %v1719 = vadd.f32 0.0, %v1718
      %v1720 = vpop.f32.mrb[0].mxu0
      %v1721 = vpop.f32.mrb[0].mxu0
      %v1722 = vadd.f32 0.0, %v1721
      %v1723 = vpop.f32.mrb[0].mxu0
      %1724 = vdwg.mxu0
      %v1725 = vld [vmem:[#allocation2] sm:$0xff]
      %v1726 = vld [vmem:[#allocation2 + $0x8] sm:$0xff]
      %v1727 = vld [vmem:[#allocation2 + $0x10] sm:$0xff]
      %v1728 = vld [vmem:[#allocation2 + $0x18] sm:$0xff]
      %v1729 = vld [vmem:[#allocation2 + $0x20] sm:$0xff]
      %v1730 = vld [vmem:[#allocation2 + $0x28] sm:$0xff]
      %v1731 = vld [vmem:[#allocation2 + $0x30] sm:$0xff]
      %v1732 = vld [vmem:[#allocation2 + $0x38] sm:$0xff]
      %v1733 = vld [vmem:[#allocation2 + $0x40] sm:$0xff]
      %v1734 = vld [vmem:[#allocation2 + $0x48] sm:$0xff]
      %v1735 = vld [vmem:[#allocation2 + $0x50] sm:$0xff]
      %v1736 = vld [vmem:[#allocation2 + $0x58] sm:$0xff]
      %v1737 = vld [vmem:[#allocation2 + $0x60] sm:$0xff]
      %v1738 = vld [vmem:[#allocation2 + $0x68] sm:$0xff]
      %v1739 = vld [vmem:[#allocation2 + $0x70] sm:$0xff]
      %v1740 = vld [vmem:[#allocation2 + $0x78] sm:$0xff]
      %v1741 = vld [vmem:[#allocation2 + $0x80] sm:$0xff]
      %v1742 = vld [vmem:[#allocation2 + $0x88] sm:$0xff]
      %v1743 = vld [vmem:[#allocation2 + $0x90] sm:$0xff]
      %v1744 = vld [vmem:[#allocation2 + $0x98] sm:$0xff]
      %v1745 = vld [vmem:[#allocation2 + $0xa0] sm:$0xff]
      %v1746 = vld [vmem:[#allocation2 + $0xa8] sm:$0xff]
      %v1747 = vld [vmem:[#allocation2 + $0xb0] sm:$0xff]
      %v1748 = vld [vmem:[#allocation2 + $0xb8] sm:$0xff]
      %v1749 = vld [vmem:[#allocation2 + $0xc0] sm:$0xff]
      %v1750 = vld [vmem:[#allocation2 + $0xc8] sm:$0xff]
      %v1751 = vld [vmem:[#allocation2 + $0xd0] sm:$0xff]
      %v1752 = vld [vmem:[#allocation2 + $0xd8] sm:$0xff]
      %v1753 = vld [vmem:[#allocation2 + $0xe0] sm:$0xff]
      %v1754 = vld [vmem:[#allocation2 + $0xe8] sm:$0xff]
      %v1755 = vld [vmem:[#allocation2 + $0xf0] sm:$0xff]
      %v1756 = vld [vmem:[#allocation2 + $0xf8] sm:$0xff]
      %v1757 = vadd.f32 %v1725, %v1599
      %v1758 = vadd.f32 %v1726, %v1602
      %v1759 = vadd.f32 %v1727, %v1607
      %v1760 = vadd.f32 %v1728, %v1610
      %v1761 = vadd.f32 %v1729, %v1615
      %v1762 = vadd.f32 %v1730, %v1618
      %v1763 = vadd.f32 %v1731, %v1623
      %v1764 = vadd.f32 %v1732, %v1626
      %v1765 = vadd.f32 %v1733, %v1631
      %v1766 = vadd.f32 %v1734, %v1634
      %v1767 = vadd.f32 %v1735, %v1639
      %v1768 = vadd.f32 %v1736, %v1642
      %v1769 = vadd.f32 %v1737, %v1647
      %v1770 = vadd.f32 %v1738, %v1650
      %v1771 = vadd.f32 %v1739, %v1655
      %v1772 = vadd.f32 %v1740, %v1658
      %v1773 = vadd.f32 %v1741, %v1663
      %v1774 = vadd.f32 %v1742, %v1666
      %v1775 = vadd.f32 %v1743, %v1671
      %v1776 = vadd.f32 %v1744, %v1674
      %v1777 = vadd.f32 %v1745, %v1679
      %v1778 = vadd.f32 %v1746, %v1682
      %v1779 = vadd.f32 %v1747, %v1687
      %v1780 = vadd.f32 %v1748, %v1690
      %v1781 = vadd.f32 %v1749, %v1695
      %v1782 = vadd.f32 %v1750, %v1698
      %v1783 = vadd.f32 %v1751, %v1703
      %v1784 = vadd.f32 %v1752, %v1706
      %v1785 = vadd.f32 %v1753, %v1711
      %v1786 = vadd.f32 %v1754, %v1714
      %v1787 = vadd.f32 %v1755, %v1719
      %v1788 = vadd.f32 %v1756, %v1722
      %1789 = vst.msk [vmem:[#allocation2] sm:$0xff] %vm1494, %v1757
      %1790 = vst.msk [vmem:[#allocation2 + $0x8] sm:$0xff] %vm1494, %v1758
      %1791 = vst.msk [vmem:[#allocation2 + $0x10] sm:$0xff] %vm1494, %v1759
      %1792 = vst.msk [vmem:[#allocation2 + $0x18] sm:$0xff] %vm1494, %v1760
      %1793 = vst.msk [vmem:[#allocation2 + $0x20] sm:$0xff] %vm1494, %v1761
      %1794 = vst.msk [vmem:[#allocation2 + $0x28] sm:$0xff] %vm1494, %v1762
      %1795 = vst.msk [vmem:[#allocation2 + $0x30] sm:$0xff] %vm1494, %v1763
      %1796 = vst.msk [vmem:[#allocation2 + $0x38] sm:$0xff] %vm1494, %v1764
      %1797 = vst.msk [vmem:[#allocation2 + $0x40] sm:$0xff] %vm1494, %v1765
      %1798 = vst.msk [vmem:[#allocation2 + $0x48] sm:$0xff] %vm1494, %v1766
      %1799 = vst.msk [vmem:[#allocation2 + $0x50] sm:$0xff] %vm1494, %v1767
      %1800 = vst.msk [vmem:[#allocation2 + $0x58] sm:$0xff] %vm1494, %v1768
      %1801 = vst.msk [vmem:[#allocation2 + $0x60] sm:$0xff] %vm1494, %v1769
      %1802 = vst.msk [vmem:[#allocation2 + $0x68] sm:$0xff] %vm1494, %v1770
      %1803 = vst.msk [vmem:[#allocation2 + $0x70] sm:$0xff] %vm1494, %v1771
      %1804 = vst.msk [vmem:[#allocation2 + $0x78] sm:$0xff] %vm1494, %v1772
      %1805 = vst.msk [vmem:[#allocation2 + $0x80] sm:$0xff] %vm1494, %v1773
      %1806 = vst.msk [vmem:[#allocation2 + $0x88] sm:$0xff] %vm1494, %v1774
      %1807 = vst.msk [vmem:[#allocation2 + $0x90] sm:$0xff] %vm1494, %v1775
      %1808 = vst.msk [vmem:[#allocation2 + $0x98] sm:$0xff] %vm1494, %v1776
      %1809 = vst.msk [vmem:[#allocation2 + $0xa0] sm:$0xff] %vm1494, %v1777
      %1810 = vst.msk [vmem:[#allocation2 + $0xa8] sm:$0xff] %vm1494, %v1778
      %1811 = vst.msk [vmem:[#allocation2 + $0xb0] sm:$0xff] %vm1494, %v1779
      %1812 = vst.msk [vmem:[#allocation2 + $0xb8] sm:$0xff] %vm1494, %v1780
      %1813 = vst.msk [vmem:[#allocation2 + $0xc0] sm:$0xff] %vm1494, %v1781
      %1814 = vst.msk [vmem:[#allocation2 + $0xc8] sm:$0xff] %vm1494, %v1782
      %1815 = vst.msk [vmem:[#allocation2 + $0xd0] sm:$0xff] %vm1494, %v1783
      %1816 = vst.msk [vmem:[#allocation2 + $0xd8] sm:$0xff] %vm1494, %v1784
      %1817 = vst.msk [vmem:[#allocation2 + $0xe0] sm:$0xff] %vm1494, %v1785
      %1818 = vst.msk [vmem:[#allocation2 + $0xe8] sm:$0xff] %vm1494, %v1786
      %1819 = vst.msk [vmem:[#allocation2 + $0xf0] sm:$0xff] %vm1494, %v1787
      %1820 = vst.msk [vmem:[#allocation2 + $0xf8] sm:$0xff] %vm1494, %v1788
      %s1821 = scalar_lea.vmem %s1, 64
      %v1822 = vld [vmem:[%s1821] sm:$0xf]
      %v1823 = vld [vmem:[%s1821 + $0x4] sm:$0xf]
      %v1824 = vld [vmem:[%s1821 + $0x8] sm:$0xf]
      %v1825 = vld [vmem:[%s1821 + $0xc] sm:$0xf]
      %v1826 = vld [vmem:[%s1821 + $0x10] sm:$0xf]
      %v1827 = vld [vmem:[%s1821 + $0x14] sm:$0xf]
      %v1828 = vld [vmem:[%s1821 + $0x18] sm:$0xf]
      %v1829 = vld [vmem:[%s1821 + $0x1c] sm:$0x3]
      %v1838 = vunpack.c.l.b16 %v1822
      %v1839 = vunpack.c.l.b16 %v1823
      %v1840 = vunpack.c.l.b16 %v1824
      %v1841 = vunpack.c.l.b16 %v1825
      %v1842 = vunpack.c.l.b16 %v1826
      %v1843 = vunpack.c.l.b16 %v1827
      %v1844 = vunpack.c.l.b16 %v1828
      %v1845 = vunpack.c.l.b16 %v1829
      %v1846 = vpack.c.b16 %v1839, %v1838
      %v1847 = vpack.c.b16 %v1841, %v1840
      %v1848 = vpack.c.b16 %v1843, %v1842
      %v1849 = vpack.c.b16 %v1845, %v1844
      %v1853 = vsel %vm1296, %v1260, 0
      %v1856 = vsel %vm1329, %v1849, 0
      %1858 = vmatprep.subr.bf16.mxu0 0
      %1859 = vmatpush1.bf16.msra.mxu0 %v1846
      %1860 = vmatprep.subr.bf16.mxu0 0
      %1861 = vmatpush1.bf16.msra.mxu0 %v1847
      %1862 = vmatprep.subr.bf16.mxu0 0
      %1863 = vmatpush1.bf16.msra.mxu0 %v1848
      %1864 = vmatprep.subr.bf16.mxu0 0
      %1865 = vmatpush1.bf16.msra.mxu0 %v1856
      %1866 = vmatprep.subr.bf16.mxu0 0
      %1867 = vmatpush1.bf16.msra.mxu0 0
      %1868 = vmatprep.subr.bf16.mxu0 0
      %1869 = vmatpush1.bf16.msra.mxu0 0
      %1870 = vmatprep.subr.bf16.mxu0 0
      %1871 = vmatpush1.bf16.msra.mxu0 0
      %1872 = vmatprep.subr.bf16.mxu0 0
      %1873 = vmatpush1.bf16.msra.mxu0 0
      %1874 = vmatprep.subr.bf16.mxu0 0
      %1875 = vmatpush1.bf16.msra.mxu0 0
      %1876 = vmatprep.subr.bf16.mxu0 0
      %1877 = vmatpush1.bf16.msra.mxu0 0
      %1878 = vmatprep.subr.bf16.mxu0 0
      %1879 = vmatpush1.bf16.msra.mxu0 0
      %1880 = vmatprep.subr.bf16.mxu0 0
      %1881 = vmatpush1.bf16.msra.mxu0 0
      %1882 = vmatprep.subr.bf16.mxu0 0
      %1883 = vmatpush1.bf16.msra.mxu0 0
      %1884 = vmatprep.subr.bf16.mxu0 0
      %1885 = vmatpush1.bf16.msra.mxu0 0
      %1886 = vmatprep.subr.bf16.mxu0 0
      %1887 = vmatpush1.bf16.msra.mxu0 0
      %1888 = vmatprep.subr.bf16.mxu0 0
      %1889 = vmatpush1.bf16.msra.mxu0 0
      %1890 = vmatprep.mubr.bf16.mxu0 0
      %1891 = vmatmul.mubr.bf16.gmra.mrb[0].mxu0 %v1301
      %v1892 = vpop.f32.mrb[0].mxu0
      %v1893 = vadd.f32 0.0, %v1892
      %v1894 = vpop.f32.mrb[0].mxu0
      %v1895 = vpop.f32.mrb[0].mxu0
      %v1896 = vadd.f32 0.0, %v1895
      %v1897 = vpop.f32.mrb[0].mxu0
      %1898 = vmatprep.mubr.bf16.mxu0 0
      %1899 = vmatmul.mubr.bf16.gmra.mrb[0].mxu0 %v1303
      %v1900 = vpop.f32.mrb[0].mxu0
      %v1901 = vadd.f32 0.0, %v1900
      %v1902 = vpop.f32.mrb[0].mxu0
      %v1903 = vpop.f32.mrb[0].mxu0
      %v1904 = vadd.f32 0.0, %v1903
      %v1905 = vpop.f32.mrb[0].mxu0
      %1906 = vmatprep.mubr.bf16.mxu0 0
      %1907 = vmatmul.mubr.bf16.gmra.mrb[0].mxu0 %v1305
      %v1908 = vpop.f32.mrb[0].mxu0
      %v1909 = vadd.f32 0.0, %v1908
      %v1910 = vpop.f32.mrb[0].mxu0
      %v1911 = vpop.f32.mrb[0].mxu0
      %v1912 = vadd.f32 0.0, %v1911
      %v1913 = vpop.f32.mrb[0].mxu0
      %1914 = vmatprep.mubr.bf16.mxu0 0
      %1915 = vmatmul.mubr.bf16.gmra.mrb[0].mxu0 %v1307
      %v1916 = vpop.f32.mrb[0].mxu0
      %v1917 = vadd.f32 0.0, %v1916
      %v1918 = vpop.f32.mrb[0].mxu0
      %v1919 = vpop.f32.mrb[0].mxu0
      %v1920 = vadd.f32 0.0, %v1919
      %v1921 = vpop.f32.mrb[0].mxu0
      %1922 = vmatprep.mubr.bf16.mxu0 0
      %1923 = vmatmul.mubr.bf16.gmra.mrb[0].mxu0 %v1309
      %v1924 = vpop.f32.mrb[0].mxu0
      %v1925 = vadd.f32 0.0, %v1924
      %v1926 = vpop.f32.mrb[0].mxu0
      %v1927 = vpop.f32.mrb[0].mxu0
      %v1928 = vadd.f32 0.0, %v1927
      %v1929 = vpop.f32.mrb[0].mxu0
      %1930 = vmatprep.mubr.bf16.mxu0 0
      %1931 = vmatmul.mubr.bf16.gmra.mrb[0].mxu0 %v1311
      %v1932 = vpop.f32.mrb[0].mxu0
      %v1933 = vadd.f32 0.0, %v1932
      %v1934 = vpop.f32.mrb[0].mxu0
      %v1935 = vpop.f32.mrb[0].mxu0
      %v1936 = vadd.f32 0.0, %v1935
      %v1937 = vpop.f32.mrb[0].mxu0
      %1938 = vmatprep.mubr.bf16.mxu0 0
      %1939 = vmatmul.mubr.bf16.gmra.mrb[0].mxu0 %v1313
      %v1940 = vpop.f32.mrb[0].mxu0
      %v1941 = vadd.f32 0.0, %v1940
      %v1942 = vpop.f32.mrb[0].mxu0
      %v1943 = vpop.f32.mrb[0].mxu0
      %v1944 = vadd.f32 0.0, %v1943
      %v1945 = vpop.f32.mrb[0].mxu0
      %1946 = vmatprep.mubr.bf16.mxu0 0
      %1947 = vmatmul.mubr.bf16.gmra.mrb[0].mxu0 %v1315
      %v1948 = vpop.f32.mrb[0].mxu0
      %v1949 = vadd.f32 0.0, %v1948
      %v1950 = vpop.f32.mrb[0].mxu0
      %v1951 = vpop.f32.mrb[0].mxu0
      %v1952 = vadd.f32 0.0, %v1951
      %v1953 = vpop.f32.mrb[0].mxu0
      %1954 = vmatprep.mubr.bf16.mxu0 0
      %1955 = vmatmul.mubr.bf16.gmra.mrb[0].mxu0 %v1317
      %v1956 = vpop.f32.mrb[0].mxu0
      %v1957 = vadd.f32 0.0, %v1956
      %v1958 = vpop.f32.mrb[0].mxu0
      %v1959 = vpop.f32.mrb[0].mxu0
      %v1960 = vadd.f32 0.0, %v1959
      %v1961 = vpop.f32.mrb[0].mxu0
      %1962 = vmatprep.mubr.bf16.mxu0 0
      %1963 = vmatmul.mubr.bf16.gmra.mrb[0].mxu0 %v1319
      %v1964 = vpop.f32.mrb[0].mxu0
      %v1965 = vadd.f32 0.0, %v1964
      %v1966 = vpop.f32.mrb[0].mxu0
      %v1967 = vpop.f32.mrb[0].mxu0
      %v1968 = vadd.f32 0.0, %v1967
      %v1969 = vpop.f32.mrb[0].mxu0
      %1970 = vmatprep.mubr.bf16.mxu0 0
      %1971 = vmatmul.mubr.bf16.gmra.mrb[0].mxu0 %v1321
      %v1972 = vpop.f32.mrb[0].mxu0
      %v1973 = vadd.f32 0.0, %v1972
      %v1974 = vpop.f32.mrb[0].mxu0
      %v1975 = vpop.f32.mrb[0].mxu0
      %v1976 = vadd.f32 0.0, %v1975
      %v1977 = vpop.f32.mrb[0].mxu0
      %1978 = vmatprep.mubr.bf16.mxu0 0
      %1979 = vmatmul.mubr.bf16.gmra.mrb[0].mxu0 %v1323
      %v1980 = vpop.f32.mrb[0].mxu0
      %v1981 = vadd.f32 0.0, %v1980
      %v1982 = vpop.f32.mrb[0].mxu0
      %v1983 = vpop.f32.mrb[0].mxu0
      %v1984 = vadd.f32 0.0, %v1983
      %v1985 = vpop.f32.mrb[0].mxu0
      %1986 = vmatprep.mubr.bf16.mxu0 0
      %1987 = vmatmul.mubr.bf16.gmra.mrb[0].mxu0 %v1325
      %v1988 = vpop.f32.mrb[0].mxu0
      %v1989 = vadd.f32 0.0, %v1988
      %v1990 = vpop.f32.mrb[0].mxu0
      %v1991 = vpop.f32.mrb[0].mxu0
      %v1992 = vadd.f32 0.0, %v1991
      %v1993 = vpop.f32.mrb[0].mxu0
      %1994 = vmatprep.mubr.bf16.mxu0 0
      %1995 = vmatmul.mubr.bf16.gmra.mrb[0].mxu0 %v1327
      %v1996 = vpop.f32.mrb[0].mxu0
      %v1997 = vadd.f32 0.0, %v1996
      %v1998 = vpop.f32.mrb[0].mxu0
      %v1999 = vpop.f32.mrb[0].mxu0
      %v2000 = vadd.f32 0.0, %v1999
      %v2001 = vpop.f32.mrb[0].mxu0
      %2002 = vmatprep.mubr.bf16.mxu0 0
      %2003 = vmatmul.mubr.bf16.gmra.mrb[0].mxu0 %v1559
      %v2004 = vpop.f32.mrb[0].mxu0
      %v2005 = vadd.f32 0.0, %v2004
      %v2006 = vpop.f32.mrb[0].mxu0
      %v2007 = vpop.f32.mrb[0].mxu0
      %v2008 = vadd.f32 0.0, %v2007
      %v2009 = vpop.f32.mrb[0].mxu0
      %2010 = vmatprep.mubr.bf16.mxu0 0
      %2011 = vmatmul.mubr.bf16.gmra.mrb[0].mxu0 %v1853
      %v2012 = vpop.f32.mrb[0].mxu0
      %v2013 = vadd.f32 0.0, %v2012
      %v2014 = vpop.f32.mrb[0].mxu0
      %v2015 = vpop.f32.mrb[0].mxu0
      %v2016 = vadd.f32 0.0, %v2015
      %v2017 = vpop.f32.mrb[0].mxu0
      %2018 = vdwg.mxu0
      %v2019 = vld [vmem:[#allocation2] sm:$0xff]
      %v2020 = vld [vmem:[#allocation2 + $0x8] sm:$0xff]
      %v2021 = vld [vmem:[#allocation2 + $0x10] sm:$0xff]
      %v2022 = vld [vmem:[#allocation2 + $0x18] sm:$0xff]
      %v2023 = vld [vmem:[#allocation2 + $0x20] sm:$0xff]
      %v2024 = vld [vmem:[#allocation2 + $0x28] sm:$0xff]
      %v2025 = vld [vmem:[#allocation2 + $0x30] sm:$0xff]
      %v2026 = vld [vmem:[#allocation2 + $0x38] sm:$0xff]
      %v2027 = vld [vmem:[#allocation2 + $0x40] sm:$0xff]
      %v2028 = vld [vmem:[#allocation2 + $0x48] sm:$0xff]
      %v2029 = vld [vmem:[#allocation2 + $0x50] sm:$0xff]
      %v2030 = vld [vmem:[#allocation2 + $0x58] sm:$0xff]
      %v2031 = vld [vmem:[#allocation2 + $0x60] sm:$0xff]
      %v2032 = vld [vmem:[#allocation2 + $0x68] sm:$0xff]
      %v2033 = vld [vmem:[#allocation2 + $0x70] sm:$0xff]
      %v2034 = vld [vmem:[#allocation2 + $0x78] sm:$0xff]
      %v2035 = vld [vmem:[#allocation2 + $0x80] sm:$0xff]
      %v2036 = vld [vmem:[#allocation2 + $0x88] sm:$0xff]
      %v2037 = vld [vmem:[#allocation2 + $0x90] sm:$0xff]
      %v2038 = vld [vmem:[#allocation2 + $0x98] sm:$0xff]
      %v2039 = vld [vmem:[#allocation2 + $0xa0] sm:$0xff]
      %v2040 = vld [vmem:[#allocation2 + $0xa8] sm:$0xff]
      %v2041 = vld [vmem:[#allocation2 + $0xb0] sm:$0xff]
      %v2042 = vld [vmem:[#allocation2 + $0xb8] sm:$0xff]
      %v2043 = vld [vmem:[#allocation2 + $0xc0] sm:$0xff]
      %v2044 = vld [vmem:[#allocation2 + $0xc8] sm:$0xff]
      %v2045 = vld [vmem:[#allocation2 + $0xd0] sm:$0xff]
      %v2046 = vld [vmem:[#allocation2 + $0xd8] sm:$0xff]
      %v2047 = vld [vmem:[#allocation2 + $0xe0] sm:$0xff]
      %v2048 = vld [vmem:[#allocation2 + $0xe8] sm:$0xff]
      %v2049 = vld [vmem:[#allocation2 + $0xf0] sm:$0xff]
      %v2050 = vld [vmem:[#allocation2 + $0xf8] sm:$0xff]
      %v2051 = vadd.f32 %v2019, %v1893
      %v2052 = vadd.f32 %v2020, %v1896
      %v2053 = vadd.f32 %v2021, %v1901
      %v2054 = vadd.f32 %v2022, %v1904
      %v2055 = vadd.f32 %v2023, %v1909
      %v2056 = vadd.f32 %v2024, %v1912
      %v2057 = vadd.f32 %v2025, %v1917
      %v2058 = vadd.f32 %v2026, %v1920
      %v2059 = vadd.f32 %v2027, %v1925
      %v2060 = vadd.f32 %v2028, %v1928
      %v2061 = vadd.f32 %v2029, %v1933
      %v2062 = vadd.f32 %v2030, %v1936
      %v2063 = vadd.f32 %v2031, %v1941
      %v2064 = vadd.f32 %v2032, %v1944
      %v2065 = vadd.f32 %v2033, %v1949
      %v2066 = vadd.f32 %v2034, %v1952
      %v2067 = vadd.f32 %v2035, %v1957
      %v2068 = vadd.f32 %v2036, %v1960
      %v2069 = vadd.f32 %v2037, %v1965
      %v2070 = vadd.f32 %v2038, %v1968
      %v2071 = vadd.f32 %v2039, %v1973
      %v2072 = vadd.f32 %v2040, %v1976
      %v2073 = vadd.f32 %v2041, %v1981
      %v2074 = vadd.f32 %v2042, %v1984
      %v2075 = vadd.f32 %v2043, %v1989
      %v2076 = vadd.f32 %v2044, %v1992
      %v2077 = vadd.f32 %v2045, %v1997
      %v2078 = vadd.f32 %v2046, %v2000
      %v2079 = vadd.f32 %v2047, %v2005
      %v2080 = vadd.f32 %v2048, %v2008
      %v2081 = vadd.f32 %v2049, %v2013
      %v2082 = vadd.f32 %v2050, %v2016
      %2083 = vst.msk [vmem:[#allocation2] sm:$0xff] %vm1494, %v2051
      %2084 = vst.msk [vmem:[#allocation2 + $0x8] sm:$0xff] %vm1494, %v2052
      %2085 = vst.msk [vmem:[#allocation2 + $0x10] sm:$0xff] %vm1494, %v2053
      %2086 = vst.msk [vmem:[#allocation2 + $0x18] sm:$0xff] %vm1494, %v2054
      %2087 = vst.msk [vmem:[#allocation2 + $0x20] sm:$0xff] %vm1494, %v2055
      %2088 = vst.msk [vmem:[#allocation2 + $0x28] sm:$0xff] %vm1494, %v2056
      %2089 = vst.msk [vmem:[#allocation2 + $0x30] sm:$0xff] %vm1494, %v2057
      %2090 = vst.msk [vmem:[#allocation2 + $0x38] sm:$0xff] %vm1494, %v2058
      %2091 = vst.msk [vmem:[#allocation2 + $0x40] sm:$0xff] %vm1494, %v2059
      %2092 = vst.msk [vmem:[#allocation2 + $0x48] sm:$0xff] %vm1494, %v2060
      %2093 = vst.msk [vmem:[#allocation2 + $0x50] sm:$0xff] %vm1494, %v2061
      %2094 = vst.msk [vmem:[#allocation2 + $0x58] sm:$0xff] %vm1494, %v2062
      %2095 = vst.msk [vmem:[#allocation2 + $0x60] sm:$0xff] %vm1494, %v2063
      %2096 = vst.msk [vmem:[#allocation2 + $0x68] sm:$0xff] %vm1494, %v2064
      %2097 = vst.msk [vmem:[#allocation2 + $0x70] sm:$0xff] %vm1494, %v2065
      %2098 = vst.msk [vmem:[#allocation2 + $0x78] sm:$0xff] %vm1494, %v2066
      %2099 = vst.msk [vmem:[#allocation2 + $0x80] sm:$0xff] %vm1494, %v2067
      %2100 = vst.msk [vmem:[#allocation2 + $0x88] sm:$0xff] %vm1494, %v2068
      %2101 = vst.msk [vmem:[#allocation2 + $0x90] sm:$0xff] %vm1494, %v2069
      %2102 = vst.msk [vmem:[#allocation2 + $0x98] sm:$0xff] %vm1494, %v2070
      %2103 = vst.msk [vmem:[#allocation2 + $0xa0] sm:$0xff] %vm1494, %v2071
      %2104 = vst.msk [vmem:[#allocation2 + $0xa8] sm:$0xff] %vm1494, %v2072
      %2105 = vst.msk [vmem:[#allocation2 + $0xb0] sm:$0xff] %vm1494, %v2073
      %2106 = vst.msk [vmem:[#allocation2 + $0xb8] sm:$0xff] %vm1494, %v2074
      %2107 = vst.msk [vmem:[#allocation2 + $0xc0] sm:$0xff] %vm1494, %v2075
      %2108 = vst.msk [vmem:[#allocation2 + $0xc8] sm:$0xff] %vm1494, %v2076
      %2109 = vst.msk [vmem:[#allocation2 + $0xd0] sm:$0xff] %vm1494, %v2077
      %2110 = vst.msk [vmem:[#allocation2 + $0xd8] sm:$0xff] %vm1494, %v2078
      %2111 = vst.msk [vmem:[#allocation2 + $0xe0] sm:$0xff] %vm1494, %v2079
      %2112 = vst.msk [vmem:[#allocation2 + $0xe8] sm:$0xff] %vm1494, %v2080
      %2113 = vst.msk [vmem:[#allocation2 + $0xf0] sm:$0xff] %vm1494, %v2081
      %2114 = vst.msk [vmem:[#allocation2 + $0xf8] sm:$0xff] %vm1494, %v2082
      %s2115 = scalar_lea.vmem %s1, 96
      %v2116 = vld [vmem:[%s2115] sm:$0xf]
      %v2117 = vld [vmem:[%s2115 + $0x4] sm:$0xf]
      %v2118 = vld [vmem:[%s2115 + $0x8] sm:$0xf]
      %v2119 = vld [vmem:[%s2115 + $0xc] sm:$0xf]
      %v2120 = vld [vmem:[%s2115 + $0x10] sm:$0xf]
      %v2121 = vld [vmem:[%s2115 + $0x14] sm:$0xf]
      %v2122 = vld [vmem:[%s2115 + $0x18] sm:$0xf]
      %v2123 = vld [vmem:[%s2115 + $0x1c] sm:$0x3]
      %v2132 = vunpack.c.l.b16 %v2116
      %v2133 = vunpack.c.l.b16 %v2117
      %v2134 = vunpack.c.l.b16 %v2118
      %v2135 = vunpack.c.l.b16 %v2119
      %v2136 = vunpack.c.l.b16 %v2120
      %v2137 = vunpack.c.l.b16 %v2121
      %v2138 = vunpack.c.l.b16 %v2122
      %v2139 = vunpack.c.l.b16 %v2123
      %v2140 = vpack.c.b16 %v2133, %v2132
      %v2141 = vpack.c.b16 %v2135, %v2134
      %v2142 = vpack.c.b16 %v2137, %v2136
      %v2143 = vpack.c.b16 %v2139, %v2138
      %v2147 = vsel %vm1296, %v1262, 0
      %v2150 = vsel %vm1329, %v2143, 0
      %2152 = vmatprep.subr.bf16.mxu0 0
      %2153 = vmatpush1.bf16.msra.mxu0 %v2140
      %2154 = vmatprep.subr.bf16.mxu0 0
      %2155 = vmatpush1.bf16.msra.mxu0 %v2141
      %2156 = vmatprep.subr.bf16.mxu0 0
      %2157 = vmatpush1.bf16.msra.mxu0 %v2142
      %2158 = vmatprep.subr.bf16.mxu0 0
      %2159 = vmatpush1.bf16.msra.mxu0 %v2150
      %2160 = vmatprep.subr.bf16.mxu0 0
      %2161 = vmatpush1.bf16.msra.mxu0 0
      %2162 = vmatprep.subr.bf16.mxu0 0
      %2163 = vmatpush1.bf16.msra.mxu0 0
      %2164 = vmatprep.subr.bf16.mxu0 0
      %2165 = vmatpush1.bf16.msra.mxu0 0
      %2166 = vmatprep.subr.bf16.mxu0 0
      %2167 = vmatpush1.bf16.msra.mxu0 0
      %2168 = vmatprep.subr.bf16.mxu0 0
      %2169 = vmatpush1.bf16.msra.mxu0 0
      %2170 = vmatprep.subr.bf16.mxu0 0
      %2171 = vmatpush1.bf16.msra.mxu0 0
      %2172 = vmatprep.subr.bf16.mxu0 0
      %2173 = vmatpush1.bf16.msra.mxu0 0
      %2174 = vmatprep.subr.bf16.mxu0 0
      %2175 = vmatpush1.bf16.msra.mxu0 0
      %2176 = vmatprep.subr.bf16.mxu0 0
      %2177 = vmatpush1.bf16.msra.mxu0 0
      %2178 = vmatprep.subr.bf16.mxu0 0
      %2179 = vmatpush1.bf16.msra.mxu0 0
      %2180 = vmatprep.subr.bf16.mxu0 0
      %2181 = vmatpush1.bf16.msra.mxu0 0
      %2182 = vmatprep.subr.bf16.mxu0 0
      %2183 = vmatpush1.bf16.msra.mxu0 0
      %2184 = vmatprep.mubr.bf16.mxu0 0
      %2185 = vmatmul.mubr.bf16.gmra.mrb[0].mxu0 %v1303
      %v2186 = vpop.f32.mrb[0].mxu0
      %v2187 = vadd.f32 0.0, %v2186
      %v2188 = vpop.f32.mrb[0].mxu0
      %v2189 = vpop.f32.mrb[0].mxu0
      %v2190 = vadd.f32 0.0, %v2189
      %v2191 = vpop.f32.mrb[0].mxu0
      %2192 = vmatprep.mubr.bf16.mxu0 0
      %2193 = vmatmul.mubr.bf16.gmra.mrb[0].mxu0 %v1305
      %v2194 = vpop.f32.mrb[0].mxu0
      %v2195 = vadd.f32 0.0, %v2194
      %v2196 = vpop.f32.mrb[0].mxu0
      %v2197 = vpop.f32.mrb[0].mxu0
      %v2198 = vadd.f32 0.0, %v2197
      %v2199 = vpop.f32.mrb[0].mxu0
      %2200 = vmatprep.mubr.bf16.mxu0 0
      %2201 = vmatmul.mubr.bf16.gmra.mrb[0].mxu0 %v1307
      %v2202 = vpop.f32.mrb[0].mxu0
      %v2203 = vadd.f32 0.0, %v2202
      %v2204 = vpop.f32.mrb[0].mxu0
      %v2205 = vpop.f32.mrb[0].mxu0
      %v2206 = vadd.f32 0.0, %v2205
      %v2207 = vpop.f32.mrb[0].mxu0
      %2208 = vmatprep.mubr.bf16.mxu0 0
      %2209 = vmatmul.mubr.bf16.gmra.mrb[0].mxu0 %v1309
      %v2210 = vpop.f32.mrb[0].mxu0
      %v2211 = vadd.f32 0.0, %v2210
      %v2212 = vpop.f32.mrb[0].mxu0
      %v2213 = vpop.f32.mrb[0].mxu0
      %v2214 = vadd.f32 0.0, %v2213
      %v2215 = vpop.f32.mrb[0].mxu0
      %2216 = vmatprep.mubr.bf16.mxu0 0
      %2217 = vmatmul.mubr.bf16.gmra.mrb[0].mxu0 %v1311
      %v2218 = vpop.f32.mrb[0].mxu0
      %v2219 = vadd.f32 0.0, %v2218
      %v2220 = vpop.f32.mrb[0].mxu0
      %v2221 = vpop.f32.mrb[0].mxu0
      %v2222 = vadd.f32 0.0, %v2221
      %v2223 = vpop.f32.mrb[0].mxu0
      %2224 = vmatprep.mubr.bf16.mxu0 0
      %2225 = vmatmul.mubr.bf16.gmra.mrb[0].mxu0 %v1313
      %v2226 = vpop.f32.mrb[0].mxu0
      %v2227 = vadd.f32 0.0, %v2226
      %v2228 = vpop.f32.mrb[0].mxu0
      %v2229 = vpop.f32.mrb[0].mxu0
      %v2230 = vadd.f32 0.0, %v2229
      %v2231 = vpop.f32.mrb[0].mxu0
      %2232 = vmatprep.mubr.bf16.mxu0 0
      %2233 = vmatmul.mubr.bf16.gmra.mrb[0].mxu0 %v1315
      %v2234 = vpop.f32.mrb[0].mxu0
      %v2235 = vadd.f32 0.0, %v2234
      %v2236 = vpop.f32.mrb[0].mxu0
      %v2237 = vpop.f32.mrb[0].mxu0
      %v2238 = vadd.f32 0.0, %v2237
      %v2239 = vpop.f32.mrb[0].mxu0
      %2240 = vmatprep.mubr.bf16.mxu0 0
      %2241 = vmatmul.mubr.bf16.gmra.mrb[0].mxu0 %v1317
      %v2242 = vpop.f32.mrb[0].mxu0
      %v2243 = vadd.f32 0.0, %v2242
      %v2244 = vpop.f32.mrb[0].mxu0
      %v2245 = vpop.f32.mrb[0].mxu0
      %v2246 = vadd.f32 0.0, %v2245
      %v2247 = vpop.f32.mrb[0].mxu0
      %2248 = vmatprep.mubr.bf16.mxu0 0
      %2249 = vmatmul.mubr.bf16.gmra.mrb[0].mxu0 %v1319
      %v2250 = vpop.f32.mrb[0].mxu0
      %v2251 = vadd.f32 0.0, %v2250
      %v2252 = vpop.f32.mrb[0].mxu0
      %v2253 = vpop.f32.mrb[0].mxu0
      %v2254 = vadd.f32 0.0, %v2253
      %v2255 = vpop.f32.mrb[0].mxu0
      %2256 = vmatprep.mubr.bf16.mxu0 0
      %2257 = vmatmul.mubr.bf16.gmra.mrb[0].mxu0 %v1321
      %v2258 = vpop.f32.mrb[0].mxu0
      %v2259 = vadd.f32 0.0, %v2258
      %v2260 = vpop.f32.mrb[0].mxu0
      %v2261 = vpop.f32.mrb[0].mxu0
      %v2262 = vadd.f32 0.0, %v2261
      %v2263 = vpop.f32.mrb[0].mxu0
      %2264 = vmatprep.mubr.bf16.mxu0 0
      %2265 = vmatmul.mubr.bf16.gmra.mrb[0].mxu0 %v1323
      %v2266 = vpop.f32.mrb[0].mxu0
      %v2267 = vadd.f32 0.0, %v2266
      %v2268 = vpop.f32.mrb[0].mxu0
      %v2269 = vpop.f32.mrb[0].mxu0
      %v2270 = vadd.f32 0.0, %v2269
      %v2271 = vpop.f32.mrb[0].mxu0
      %2272 = vmatprep.mubr.bf16.mxu0 0
      %2273 = vmatmul.mubr.bf16.gmra.mrb[0].mxu0 %v1325
      %v2274 = vpop.f32.mrb[0].mxu0
      %v2275 = vadd.f32 0.0, %v2274
      %v2276 = vpop.f32.mrb[0].mxu0
      %v2277 = vpop.f32.mrb[0].mxu0
      %v2278 = vadd.f32 0.0, %v2277
      %v2279 = vpop.f32.mrb[0].mxu0
      %2280 = vmatprep.mubr.bf16.mxu0 0
      %2281 = vmatmul.mubr.bf16.gmra.mrb[0].mxu0 %v1327
      %v2282 = vpop.f32.mrb[0].mxu0
      %v2283 = vadd.f32 0.0, %v2282
      %v2284 = vpop.f32.mrb[0].mxu0
      %v2285 = vpop.f32.mrb[0].mxu0
      %v2286 = vadd.f32 0.0, %v2285
      %v2287 = vpop.f32.mrb[0].mxu0
      %2288 = vmatprep.mubr.bf16.mxu0 0
      %2289 = vmatmul.mubr.bf16.gmra.mrb[0].mxu0 %v1559
      %v2290 = vpop.f32.mrb[0].mxu0
      %v2291 = vadd.f32 0.0, %v2290
      %v2292 = vpop.f32.mrb[0].mxu0
      %v2293 = vpop.f32.mrb[0].mxu0
      %v2294 = vadd.f32 0.0, %v2293
      %v2295 = vpop.f32.mrb[0].mxu0
      %2296 = vmatprep.mubr.bf16.mxu0 0
      %2297 = vmatmul.mubr.bf16.gmra.mrb[0].mxu0 %v1853
      %v2298 = vpop.f32.mrb[0].mxu0
      %v2299 = vadd.f32 0.0, %v2298
      %v2300 = vpop.f32.mrb[0].mxu0
      %v2301 = vpop.f32.mrb[0].mxu0
      %v2302 = vadd.f32 0.0, %v2301
      %v2303 = vpop.f32.mrb[0].mxu0
      %2304 = vmatprep.mubr.bf16.mxu0 0
      %2305 = vmatmul.mubr.bf16.gmra.mrb[0].mxu0 %v2147
      %v2306 = vpop.f32.mrb[0].mxu0
      %v2307 = vadd.f32 0.0, %v2306
      %v2308 = vpop.f32.mrb[0].mxu0
      %v2309 = vpop.f32.mrb[0].mxu0
      %v2310 = vadd.f32 0.0, %v2309
      %v2311 = vpop.f32.mrb[0].mxu0
      %2312 = vdwg.mxu0
      %v2313 = vld [vmem:[#allocation2] sm:$0xff]
      %v2314 = vld [vmem:[#allocation2 + $0x8] sm:$0xff]
      %v2315 = vld [vmem:[#allocation2 + $0x10] sm:$0xff]
      %v2316 = vld [vmem:[#allocation2 + $0x18] sm:$0xff]
      %v2317 = vld [vmem:[#allocation2 + $0x20] sm:$0xff]
      %v2318 = vld [vmem:[#allocation2 + $0x28] sm:$0xff]
      %v2319 = vld [vmem:[#allocation2 + $0x30] sm:$0xff]
      %v2320 = vld [vmem:[#allocation2 + $0x38] sm:$0xff]
      %v2321 = vld [vmem:[#allocation2 + $0x40] sm:$0xff]
      %v2322 = vld [vmem:[#allocation2 + $0x48] sm:$0xff]
      %v2323 = vld [vmem:[#allocation2 + $0x50] sm:$0xff]
      %v2324 = vld [vmem:[#allocation2 + $0x58] sm:$0xff]
      %v2325 = vld [vmem:[#allocation2 + $0x60] sm:$0xff]
      %v2326 = vld [vmem:[#allocation2 + $0x68] sm:$0xff]
      %v2327 = vld [vmem:[#allocation2 + $0x70] sm:$0xff]
      %v2328 = vld [vmem:[#allocation2 + $0x78] sm:$0xff]
      %v2329 = vld [vmem:[#allocation2 + $0x80] sm:$0xff]
      %v2330 = vld [vmem:[#allocation2 + $0x88] sm:$0xff]
      %v2331 = vld [vmem:[#allocation2 + $0x90] sm:$0xff]
      %v2332 = vld [vmem:[#allocation2 + $0x98] sm:$0xff]
      %v2333 = vld [vmem:[#allocation2 + $0xa0] sm:$0xff]
      %v2334 = vld [vmem:[#allocation2 + $0xa8] sm:$0xff]
      %v2335 = vld [vmem:[#allocation2 + $0xb0] sm:$0xff]
      %v2336 = vld [vmem:[#allocation2 + $0xb8] sm:$0xff]
      %v2337 = vld [vmem:[#allocation2 + $0xc0] sm:$0xff]
      %v2338 = vld [vmem:[#allocation2 + $0xc8] sm:$0xff]
      %v2339 = vld [vmem:[#allocation2 + $0xd0] sm:$0xff]
      %v2340 = vld [vmem:[#allocation2 + $0xd8] sm:$0xff]
      %v2341 = vld [vmem:[#allocation2 + $0xe0] sm:$0xff]
      %v2342 = vld [vmem:[#allocation2 + $0xe8] sm:$0xff]
      %v2343 = vld [vmem:[#allocation2 + $0xf0] sm:$0xff]
      %v2344 = vld [vmem:[#allocation2 + $0xf8] sm:$0xff]
      %v2345 = vadd.f32 %v2313, %v2187
      %v2346 = vadd.f32 %v2314, %v2190
      %v2347 = vadd.f32 %v2315, %v2195
      %v2348 = vadd.f32 %v2316, %v2198
      %v2349 = vadd.f32 %v2317, %v2203
      %v2350 = vadd.f32 %v2318, %v2206
      %v2351 = vadd.f32 %v2319, %v2211
      %v2352 = vadd.f32 %v2320, %v2214
      %v2353 = vadd.f32 %v2321, %v2219
      %v2354 = vadd.f32 %v2322, %v2222
      %v2355 = vadd.f32 %v2323, %v2227
      %v2356 = vadd.f32 %v2324, %v2230
      %v2357 = vadd.f32 %v2325, %v2235
      %v2358 = vadd.f32 %v2326, %v2238
      %v2359 = vadd.f32 %v2327, %v2243
      %v2360 = vadd.f32 %v2328, %v2246
      %v2361 = vadd.f32 %v2329, %v2251
      %v2362 = vadd.f32 %v2330, %v2254
      %v2363 = vadd.f32 %v2331, %v2259
      %v2364 = vadd.f32 %v2332, %v2262
      %v2365 = vadd.f32 %v2333, %v2267
      %v2366 = vadd.f32 %v2334, %v2270
      %v2367 = vadd.f32 %v2335, %v2275
      %v2368 = vadd.f32 %v2336, %v2278
      %v2369 = vadd.f32 %v2337, %v2283
      %v2370 = vadd.f32 %v2338, %v2286
      %v2371 = vadd.f32 %v2339, %v2291
      %v2372 = vadd.f32 %v2340, %v2294
      %v2373 = vadd.f32 %v2341, %v2299
      %v2374 = vadd.f32 %v2342, %v2302
      %v2375 = vadd.f32 %v2343, %v2307
      %v2376 = vadd.f32 %v2344, %v2310
      %2377 = vst.msk [vmem:[#allocation2] sm:$0xff] %vm1494, %v2345
      %2378 = vst.msk [vmem:[#allocation2 + $0x8] sm:$0xff] %vm1494, %v2346
      %2379 = vst.msk [vmem:[#allocation2 + $0x10] sm:$0xff] %vm1494, %v2347
      %2380 = vst.msk [vmem:[#allocation2 + $0x18] sm:$0xff] %vm1494, %v2348
      %2381 = vst.msk [vmem:[#allocation2 + $0x20] sm:$0xff] %vm1494, %v2349
      %2382 = vst.msk [vmem:[#allocation2 + $0x28] sm:$0xff] %vm1494, %v2350
      %2383 = vst.msk [vmem:[#allocation2 + $0x30] sm:$0xff] %vm1494, %v2351
      %2384 = vst.msk [vmem:[#allocation2 + $0x38] sm:$0xff] %vm1494, %v2352
      %2385 = vst.msk [vmem:[#allocation2 + $0x40] sm:$0xff] %vm1494, %v2353
      %2386 = vst.msk [vmem:[#allocation2 + $0x48] sm:$0xff] %vm1494, %v2354
      %2387 = vst.msk [vmem:[#allocation2 + $0x50] sm:$0xff] %vm1494, %v2355
      %2388 = vst.msk [vmem:[#allocation2 + $0x58] sm:$0xff] %vm1494, %v2356
      %2389 = vst.msk [vmem:[#allocation2 + $0x60] sm:$0xff] %vm1494, %v2357
      %2390 = vst.msk [vmem:[#allocation2 + $0x68] sm:$0xff] %vm1494, %v2358
      %2391 = vst.msk [vmem:[#allocation2 + $0x70] sm:$0xff] %vm1494, %v2359
      %2392 = vst.msk [vmem:[#allocation2 + $0x78] sm:$0xff] %vm1494, %v2360
      %2393 = vst.msk [vmem:[#allocation2 + $0x80] sm:$0xff] %vm1494, %v2361
      %2394 = vst.msk [vmem:[#allocation2 + $0x88] sm:$0xff] %vm1494, %v2362
      %2395 = vst.msk [vmem:[#allocation2 + $0x90] sm:$0xff] %vm1494, %v2363
      %2396 = vst.msk [vmem:[#allocation2 + $0x98] sm:$0xff] %vm1494, %v2364
      %2397 = vst.msk [vmem:[#allocation2 + $0xa0] sm:$0xff] %vm1494, %v2365
      %2398 = vst.msk [vmem:[#allocation2 + $0xa8] sm:$0xff] %vm1494, %v2366
      %2399 = vst.msk [vmem:[#allocation2 + $0xb0] sm:$0xff] %vm1494, %v2367
      %2400 = vst.msk [vmem:[#allocation2 + $0xb8] sm:$0xff] %vm1494, %v2368
      %2401 = vst.msk [vmem:[#allocation2 + $0xc0] sm:$0xff] %vm1494, %v2369
      %2402 = vst.msk [vmem:[#allocation2 + $0xc8] sm:$0xff] %vm1494, %v2370
      %2403 = vst.msk [vmem:[#allocation2 + $0xd0] sm:$0xff] %vm1494, %v2371
      %2404 = vst.msk [vmem:[#allocation2 + $0xd8] sm:$0xff] %vm1494, %v2372
      %2405 = vst.msk [vmem:[#allocation2 + $0xe0] sm:$0xff] %vm1494, %v2373
      %2406 = vst.msk [vmem:[#allocation2 + $0xe8] sm:$0xff] %vm1494, %v2374
      %2407 = vst.msk [vmem:[#allocation2 + $0xf0] sm:$0xff] %vm1494, %v2375
      %2408 = vst.msk [vmem:[#allocation2 + $0xf8] sm:$0xff] %vm1494, %v2376
      %s2409 = scalar_lea.vmem %s1, 128
      %v2410 = vld [vmem:[%s2409] sm:$0xf]
      %v2411 = vld [vmem:[%s2409 + $0x4] sm:$0xf]
      %v2412 = vld [vmem:[%s2409 + $0x8] sm:$0xf]
      %v2413 = vld [vmem:[%s2409 + $0xc] sm:$0xf]
      %v2414 = vld [vmem:[%s2409 + $0x10] sm:$0xf]
      %v2415 = vld [vmem:[%s2409 + $0x14] sm:$0xf]
      %v2416 = vld [vmem:[%s2409 + $0x18] sm:$0xf]
      %v2417 = vld [vmem:[%s2409 + $0x1c] sm:$0x3]
      %v2426 = vunpack.c.l.b16 %v2410
      %v2427 = vunpack.c.l.b16 %v2411
      %v2428 = vunpack.c.l.b16 %v2412
      %v2429 = vunpack.c.l.b16 %v2413
      %v2430 = vunpack.c.l.b16 %v2414
      %v2431 = vunpack.c.l.b16 %v2415
      %v2432 = vunpack.c.l.b16 %v2416
      %v2433 = vunpack.c.l.b16 %v2417
      %v2434 = vpack.c.b16 %v2427, %v2426
      %v2435 = vpack.c.b16 %v2429, %v2428
      %v2436 = vpack.c.b16 %v2431, %v2430
      %v2437 = vpack.c.b16 %v2433, %v2432
      %v2441 = vsel %vm1296, %v1264, 0
      %v2444 = vsel %vm1329, %v2437, 0
      %2446 = vmatprep.subr.bf16.mxu0 0
      %2447 = vmatpush1.bf16.msra.mxu0 %v2434
      %2448 = vmatprep.subr.bf16.mxu0 0
      %2449 = vmatpush1.bf16.msra.mxu0 %v2435
      %2450 = vmatprep.subr.bf16.mxu0 0
      %2451 = vmatpush1.bf16.msra.mxu0 %v2436
      %2452 = vmatprep.subr.bf16.mxu0 0
      %2453 = vmatpush1.bf16.msra.mxu0 %v2444
      %2454 = vmatprep.subr.bf16.mxu0 0
      %2455 = vmatpush1.bf16.msra.mxu0 0
      %2456 = vmatprep.subr.bf16.mxu0 0
      %2457 = vmatpush1.bf16.msra.mxu0 0
      %2458 = vmatprep.subr.bf16.mxu0 0
      %2459 = vmatpush1.bf16.msra.mxu0 0
      %2460 = vmatprep.subr.bf16.mxu0 0
      %2461 = vmatpush1.bf16.msra.mxu0 0
      %2462 = vmatprep.subr.bf16.mxu0 0
      %2463 = vmatpush1.bf16.msra.mxu0 0
      %2464 = vmatprep.subr.bf16.mxu0 0
      %2465 = vmatpush1.bf16.msra.mxu0 0
      %2466 = vmatprep.subr.bf16.mxu0 0
      %2467 = vmatpush1.bf16.msra.mxu0 0
      %2468 = vmatprep.subr.bf16.mxu0 0
      %2469 = vmatpush1.bf16.msra.mxu0 0
      %2470 = vmatprep.subr.bf16.mxu0 0
      %2471 = vmatpush1.bf16.msra.mxu0 0
      %2472 = vmatprep.subr.bf16.mxu0 0
      %2473 = vmatpush1.bf16.msra.mxu0 0
      %2474 = vmatprep.subr.bf16.mxu0 0
      %2475 = vmatpush1.bf16.msra.mxu0 0
      %2476 = vmatprep.subr.bf16.mxu0 0
      %2477 = vmatpush1.bf16.msra.mxu0 0
      %2478 = vmatprep.mubr.bf16.mxu0 0
      %2479 = vmatmul.mubr.bf16.gmra.mrb[0].mxu0 %v1305
      %v2480 = vpop.f32.mrb[0].mxu0
      %v2481 = vadd.f32 0.0, %v2480
      %v2482 = vpop.f32.mrb[0].mxu0
      %v2483 = vpop.f32.mrb[0].mxu0
      %v2484 = vadd.f32 0.0, %v2483
      %v2485 = vpop.f32.mrb[0].mxu0
      %2486 = vmatprep.mubr.bf16.mxu0 0
      %2487 = vmatmul.mubr.bf16.gmra.mrb[0].mxu0 %v1307
      %v2488 = vpop.f32.mrb[0].mxu0
      %v2489 = vadd.f32 0.0, %v2488
      %v2490 = vpop.f32.mrb[0].mxu0
      %v2491 = vpop.f32.mrb[0].mxu0
      %v2492 = vadd.f32 0.0, %v2491
      %v2493 = vpop.f32.mrb[0].mxu0
      %2494 = vmatprep.mubr.bf16.mxu0 0
      %2495 = vmatmul.mubr.bf16.gmra.mrb[0].mxu0 %v1309
      %v2496 = vpop.f32.mrb[0].mxu0
      %v2497 = vadd.f32 0.0, %v2496
      %v2498 = vpop.f32.mrb[0].mxu0
      %v2499 = vpop.f32.mrb[0].mxu0
      %v2500 = vadd.f32 0.0, %v2499
      %v2501 = vpop.f32.mrb[0].mxu0
      %2502 = vmatprep.mubr.bf16.mxu0 0
      %2503 = vmatmul.mubr.bf16.gmra.mrb[0].mxu0 %v1311
      %v2504 = vpop.f32.mrb[0].mxu0
      %v2505 = vadd.f32 0.0, %v2504
      %v2506 = vpop.f32.mrb[0].mxu0
      %v2507 = vpop.f32.mrb[0].mxu0
      %v2508 = vadd.f32 0.0, %v2507
      %v2509 = vpop.f32.mrb[0].mxu0
      %2510 = vmatprep.mubr.bf16.mxu0 0
      %2511 = vmatmul.mubr.bf16.gmra.mrb[0].mxu0 %v1313
      %v2512 = vpop.f32.mrb[0].mxu0
      %v2513 = vadd.f32 0.0, %v2512
      %v2514 = vpop.f32.mrb[0].mxu0
      %v2515 = vpop.f32.mrb[0].mxu0
      %v2516 = vadd.f32 0.0, %v2515
      %v2517 = vpop.f32.mrb[0].mxu0
      %2518 = vmatprep.mubr.bf16.mxu0 0
      %2519 = vmatmul.mubr.bf16.gmra.mrb[0].mxu0 %v1315
      %v2520 = vpop.f32.mrb[0].mxu0
      %v2521 = vadd.f32 0.0, %v2520
      %v2522 = vpop.f32.mrb[0].mxu0
      %v2523 = vpop.f32.mrb[0].mxu0
      %v2524 = vadd.f32 0.0, %v2523
      %v2525 = vpop.f32.mrb[0].mxu0
      %2526 = vmatprep.mubr.bf16.mxu0 0
      %2527 = vmatmul.mubr.bf16.gmra.mrb[0].mxu0 %v1317
      %v2528 = vpop.f32.mrb[0].mxu0
      %v2529 = vadd.f32 0.0, %v2528
      %v2530 = vpop.f32.mrb[0].mxu0
      %v2531 = vpop.f32.mrb[0].mxu0
      %v2532 = vadd.f32 0.0, %v2531
      %v2533 = vpop.f32.mrb[0].mxu0
      %2534 = vmatprep.mubr.bf16.mxu0 0
      %2535 = vmatmul.mubr.bf16.gmra.mrb[0].mxu0 %v1319
      %v2536 = vpop.f32.mrb[0].mxu0
      %v2537 = vadd.f32 0.0, %v2536
      %v2538 = vpop.f32.mrb[0].mxu0
      %v2539 = vpop.f32.mrb[0].mxu0
      %v2540 = vadd.f32 0.0, %v2539
      %v2541 = vpop.f32.mrb[0].mxu0
      %2542 = vmatprep.mubr.bf16.mxu0 0
      %2543 = vmatmul.mubr.bf16.gmra.mrb[0].mxu0 %v1321
      %v2544 = vpop.f32.mrb[0].mxu0
      %v2545 = vadd.f32 0.0, %v2544
      %v2546 = vpop.f32.mrb[0].mxu0
      %v2547 = vpop.f32.mrb[0].mxu0
      %v2548 = vadd.f32 0.0, %v2547
      %v2549 = vpop.f32.mrb[0].mxu0
      %2550 = vmatprep.mubr.bf16.mxu0 0
      %2551 = vmatmul.mubr.bf16.gmra.mrb[0].mxu0 %v1323
      %v2552 = vpop.f32.mrb[0].mxu0
      %v2553 = vadd.f32 0.0, %v2552
      %v2554 = vpop.f32.mrb[0].mxu0
      %v2555 = vpop.f32.mrb[0].mxu0
      %v2556 = vadd.f32 0.0, %v2555
      %v2557 = vpop.f32.mrb[0].mxu0
      %2558 = vmatprep.mubr.bf16.mxu0 0
      %2559 = vmatmul.mubr.bf16.gmra.mrb[0].mxu0 %v1325
      %v2560 = vpop.f32.mrb[0].mxu0
      %v2561 = vadd.f32 0.0, %v2560
      %v2562 = vpop.f32.mrb[0].mxu0
      %v2563 = vpop.f32.mrb[0].mxu0
      %v2564 = vadd.f32 0.0, %v2563
      %v2565 = vpop.f32.mrb[0].mxu0
      %2566 = vmatprep.mubr.bf16.mxu0 0
      %2567 = vmatmul.mubr.bf16.gmra.mrb[0].mxu0 %v1327
      %v2568 = vpop.f32.mrb[0].mxu0
      %v2569 = vadd.f32 0.0, %v2568
      %v2570 = vpop.f32.mrb[0].mxu0
      %v2571 = vpop.f32.mrb[0].mxu0
      %v2572 = vadd.f32 0.0, %v2571
      %v2573 = vpop.f32.mrb[0].mxu0
      %2574 = vmatprep.mubr.bf16.mxu0 0
      %2575 = vmatmul.mubr.bf16.gmra.mrb[0].mxu0 %v1559
      %v2576 = vpop.f32.mrb[0].mxu0
      %v2577 = vadd.f32 0.0, %v2576
      %v2578 = vpop.f32.mrb[0].mxu0
      %v2579 = vpop.f32.mrb[0].mxu0
      %v2580 = vadd.f32 0.0, %v2579
      %v2581 = vpop.f32.mrb[0].mxu0
      %2582 = vmatprep.mubr.bf16.mxu0 0
      %2583 = vmatmul.mubr.bf16.gmra.mrb[0].mxu0 %v1853
      %v2584 = vpop.f32.mrb[0].mxu0
      %v2585 = vadd.f32 0.0, %v2584
      %v2586 = vpop.f32.mrb[0].mxu0
      %v2587 = vpop.f32.mrb[0].mxu0
      %v2588 = vadd.f32 0.0, %v2587
      %v2589 = vpop.f32.mrb[0].mxu0
      %2590 = vmatprep.mubr.bf16.mxu0 0
      %2591 = vmatmul.mubr.bf16.gmra.mrb[0].mxu0 %v2147
      %v2592 = vpop.f32.mrb[0].mxu0
      %v2593 = vadd.f32 0.0, %v2592
      %v2594 = vpop.f32.mrb[0].mxu0
      %v2595 = vpop.f32.mrb[0].mxu0
      %v2596 = vadd.f32 0.0, %v2595
      %v2597 = vpop.f32.mrb[0].mxu0
      %2598 = vmatprep.mubr.bf16.mxu0 0
      %2599 = vmatmul.mubr.bf16.gmra.mrb[0].mxu0 %v2441
      %v2600 = vpop.f32.mrb[0].mxu0
      %v2601 = vadd.f32 0.0, %v2600
      %v2602 = vpop.f32.mrb[0].mxu0
      %v2603 = vpop.f32.mrb[0].mxu0
      %v2604 = vadd.f32 0.0, %v2603
      %v2605 = vpop.f32.mrb[0].mxu0
      %2606 = vdwg.mxu0
      %v2607 = vld [vmem:[#allocation2] sm:$0xff]
      %v2608 = vld [vmem:[#allocation2 + $0x8] sm:$0xff]
      %v2609 = vld [vmem:[#allocation2 + $0x10] sm:$0xff]
      %v2610 = vld [vmem:[#allocation2 + $0x18] sm:$0xff]
      %v2611 = vld [vmem:[#allocation2 + $0x20] sm:$0xff]
      %v2612 = vld [vmem:[#allocation2 + $0x28] sm:$0xff]
      %v2613 = vld [vmem:[#allocation2 + $0x30] sm:$0xff]
      %v2614 = vld [vmem:[#allocation2 + $0x38] sm:$0xff]
      %v2615 = vld [vmem:[#allocation2 + $0x40] sm:$0xff]
      %v2616 = vld [vmem:[#allocation2 + $0x48] sm:$0xff]
      %v2617 = vld [vmem:[#allocation2 + $0x50] sm:$0xff]
      %v2618 = vld [vmem:[#allocation2 + $0x58] sm:$0xff]
      %v2619 = vld [vmem:[#allocation2 + $0x60] sm:$0xff]
      %v2620 = vld [vmem:[#allocation2 + $0x68] sm:$0xff]
      %v2621 = vld [vmem:[#allocation2 + $0x70] sm:$0xff]
      %v2622 = vld [vmem:[#allocation2 + $0x78] sm:$0xff]
      %v2623 = vld [vmem:[#allocation2 + $0x80] sm:$0xff]
      %v2624 = vld [vmem:[#allocation2 + $0x88] sm:$0xff]
      %v2625 = vld [vmem:[#allocation2 + $0x90] sm:$0xff]
      %v2626 = vld [vmem:[#allocation2 + $0x98] sm:$0xff]
      %v2627 = vld [vmem:[#allocation2 + $0xa0] sm:$0xff]
      %v2628 = vld [vmem:[#allocation2 + $0xa8] sm:$0xff]
      %v2629 = vld [vmem:[#allocation2 + $0xb0] sm:$0xff]
      %v2630 = vld [vmem:[#allocation2 + $0xb8] sm:$0xff]
      %v2631 = vld [vmem:[#allocation2 + $0xc0] sm:$0xff]
      %v2632 = vld [vmem:[#allocation2 + $0xc8] sm:$0xff]
      %v2633 = vld [vmem:[#allocation2 + $0xd0] sm:$0xff]
      %v2634 = vld [vmem:[#allocation2 + $0xd8] sm:$0xff]
      %v2635 = vld [vmem:[#allocation2 + $0xe0] sm:$0xff]
      %v2636 = vld [vmem:[#allocation2 + $0xe8] sm:$0xff]
      %v2637 = vld [vmem:[#allocation2 + $0xf0] sm:$0xff]
      %v2638 = vld [vmem:[#allocation2 + $0xf8] sm:$0xff]
      %v2639 = vadd.f32 %v2607, %v2481
      %v2640 = vadd.f32 %v2608, %v2484
      %v2641 = vadd.f32 %v2609, %v2489
      %v2642 = vadd.f32 %v2610, %v2492
      %v2643 = vadd.f32 %v2611, %v2497
      %v2644 = vadd.f32 %v2612, %v2500
      %v2645 = vadd.f32 %v2613, %v2505
      %v2646 = vadd.f32 %v2614, %v2508
      %v2647 = vadd.f32 %v2615, %v2513
      %v2648 = vadd.f32 %v2616, %v2516
      %v2649 = vadd.f32 %v2617, %v2521
      %v2650 = vadd.f32 %v2618, %v2524
      %v2651 = vadd.f32 %v2619, %v2529
      %v2652 = vadd.f32 %v2620, %v2532
      %v2653 = vadd.f32 %v2621, %v2537
      %v2654 = vadd.f32 %v2622, %v2540
      %v2655 = vadd.f32 %v2623, %v2545
      %v2656 = vadd.f32 %v2624, %v2548
      %v2657 = vadd.f32 %v2625, %v2553
      %v2658 = vadd.f32 %v2626, %v2556
      %v2659 = vadd.f32 %v2627, %v2561
      %v2660 = vadd.f32 %v2628, %v2564
      %v2661 = vadd.f32 %v2629, %v2569
      %v2662 = vadd.f32 %v2630, %v2572
      %v2663 = vadd.f32 %v2631, %v2577
      %v2664 = vadd.f32 %v2632, %v2580
      %v2665 = vadd.f32 %v2633, %v2585
      %v2666 = vadd.f32 %v2634, %v2588
      %v2667 = vadd.f32 %v2635, %v2593
      %v2668 = vadd.f32 %v2636, %v2596
      %v2669 = vadd.f32 %v2637, %v2601
      %v2670 = vadd.f32 %v2638, %v2604
      %2671 = vst.msk [vmem:[#allocation2] sm:$0xff] %vm1494, %v2639
      %2672 = vst.msk [vmem:[#allocation2 + $0x8] sm:$0xff] %vm1494, %v2640
      %2673 = vst.msk [vmem:[#allocation2 + $0x10] sm:$0xff] %vm1494, %v2641
      %2674 = vst.msk [vmem:[#allocation2 + $0x18] sm:$0xff] %vm1494, %v2642
      %2675 = vst.msk [vmem:[#allocation2 + $0x20] sm:$0xff] %vm1494, %v2643
      %2676 = vst.msk [vmem:[#allocation2 + $0x28] sm:$0xff] %vm1494, %v2644
      %2677 = vst.msk [vmem:[#allocation2 + $0x30] sm:$0xff] %vm1494, %v2645
      %2678 = vst.msk [vmem:[#allocation2 + $0x38] sm:$0xff] %vm1494, %v2646
      %2679 = vst.msk [vmem:[#allocation2 + $0x40] sm:$0xff] %vm1494, %v2647
      %2680 = vst.msk [vmem:[#allocation2 + $0x48] sm:$0xff] %vm1494, %v2648
      %2681 = vst.msk [vmem:[#allocation2 + $0x50] sm:$0xff] %vm1494, %v2649
      %2682 = vst.msk [vmem:[#allocation2 + $0x58] sm:$0xff] %vm1494, %v2650
      %2683 = vst.msk [vmem:[#allocation2 + $0x60] sm:$0xff] %vm1494, %v2651
      %2684 = vst.msk [vmem:[#allocation2 + $0x68] sm:$0xff] %vm1494, %v2652
      %2685 = vst.msk [vmem:[#allocation2 + $0x70] sm:$0xff] %vm1494, %v2653
      %2686 = vst.msk [vmem:[#allocation2 + $0x78] sm:$0xff] %vm1494, %v2654
      %2687 = vst.msk [vmem:[#allocation2 + $0x80] sm:$0xff] %vm1494, %v2655
      %2688 = vst.msk [vmem:[#allocation2 + $0x88] sm:$0xff] %vm1494, %v2656
      %2689 = vst.msk [vmem:[#allocation2 + $0x90] sm:$0xff] %vm1494, %v2657
      %2690 = vst.msk [vmem:[#allocation2 + $0x98] sm:$0xff] %vm1494, %v2658
      %2691 = vst.msk [vmem:[#allocation2 + $0xa0] sm:$0xff] %vm1494, %v2659
      %2692 = vst.msk [vmem:[#allocation2 + $0xa8] sm:$0xff] %vm1494, %v2660
      %2693 = vst.msk [vmem:[#allocation2 + $0xb0] sm:$0xff] %vm1494, %v2661
      %2694 = vst.msk [vmem:[#allocation2 + $0xb8] sm:$0xff] %vm1494, %v2662
      %2695 = vst.msk [vmem:[#allocation2 + $0xc0] sm:$0xff] %vm1494, %v2663
      %2696 = vst.msk [vmem:[#allocation2 + $0xc8] sm:$0xff] %vm1494, %v2664
      %2697 = vst.msk [vmem:[#allocation2 + $0xd0] sm:$0xff] %vm1494, %v2665
      %2698 = vst.msk [vmem:[#allocation2 + $0xd8] sm:$0xff] %vm1494, %v2666
      %2699 = vst.msk [vmem:[#allocation2 + $0xe0] sm:$0xff] %vm1494, %v2667
      %2700 = vst.msk [vmem:[#allocation2 + $0xe8] sm:$0xff] %vm1494, %v2668
      %2701 = vst.msk [vmem:[#allocation2 + $0xf0] sm:$0xff] %vm1494, %v2669
      %2702 = vst.msk [vmem:[#allocation2 + $0xf8] sm:$0xff] %vm1494, %v2670
      %v2703 = vld [vmem:[#allocation2] sm:$0xff]
      %v2704 = vld [vmem:[#allocation2 + $0x8] sm:$0xff]
      %v2705 = vld [vmem:[#allocation2 + $0x10] sm:$0xff]
      %v2706 = vld [vmem:[#allocation2 + $0x18] sm:$0xff]
      %v2707 = vld [vmem:[#allocation2 + $0x20] sm:$0xff]
      %v2708 = vld [vmem:[#allocation2 + $0x28] sm:$0xff]
      %v2709 = vld [vmem:[#allocation2 + $0x30] sm:$0xff]
      %v2710 = vld [vmem:[#allocation2 + $0x38] sm:$0xff]
      %v2711 = vld [vmem:[#allocation2 + $0x40] sm:$0xff]
      %v2712 = vld [vmem:[#allocation2 + $0x48] sm:$0xff]
      %v2713 = vld [vmem:[#allocation2 + $0x50] sm:$0xff]
      %v2714 = vld [vmem:[#allocation2 + $0x58] sm:$0xff]
      %v2715 = vld [vmem:[#allocation2 + $0x60] sm:$0xff]
      %v2716 = vld [vmem:[#allocation2 + $0x68] sm:$0xff]
      %v2717 = vld [vmem:[#allocation2 + $0x70] sm:$0xff]
      %v2718 = vld [vmem:[#allocation2 + $0x78] sm:$0xff]
      %v2719 = vld [vmem:[#allocation2 + $0x80] sm:$0xff]
      %v2720 = vld [vmem:[#allocation2 + $0x88] sm:$0xff]
      %v2721 = vld [vmem:[#allocation2 + $0x90] sm:$0xff]
      %v2722 = vld [vmem:[#allocation2 + $0x98] sm:$0xff]
      %v2723 = vld [vmem:[#allocation2 + $0xa0] sm:$0xff]
      %v2724 = vld [vmem:[#allocation2 + $0xa8] sm:$0xff]
      %v2725 = vld [vmem:[#allocation2 + $0xb0] sm:$0xff]
      %v2726 = vld [vmem:[#allocation2 + $0xb8] sm:$0xff]
      %v2727 = vld [vmem:[#allocation2 + $0xc0] sm:$0xff]
      %v2728 = vld [vmem:[#allocation2 + $0xc8] sm:$0xff]
      %v2729 = vld [vmem:[#allocation2 + $0xd0] sm:$0xff]
      %v2730 = vld [vmem:[#allocation2 + $0xd8] sm:$0xff]
      %v2731 = vld [vmem:[#allocation2 + $0xe0] sm:$0xff]
      %v2732 = vld [vmem:[#allocation2 + $0xe8] sm:$0xff]
      %v2733 = vld [vmem:[#allocation2 + $0xf0] sm:$0xff]
      %v2734 = vld [vmem:[#allocation2 + $0xf8] sm:$0xff]
      %v2735 = vsel %vm1494, %v2703, 0.0
      %v2736 = vsel %vm1494, %v2704, 0.0
      %v2737 = vadd.f32 %v2735, %v2736
      %v2738 = vsel %vm1494, %v2705, 0.0
      %v2739 = vadd.f32 %v2737, %v2738
      %v2740 = vsel %vm1494, %v2706, 0.0
      %v2741 = vadd.f32 %v2739, %v2740
      %v2742 = vsel %vm1494, %v2707, 0.0
      %v2743 = vadd.f32 %v2741, %v2742
      %v2744 = vsel %vm1494, %v2708, 0.0
      %v2745 = vadd.f32 %v2743, %v2744
      %v2746 = vsel %vm1494, %v2709, 0.0
      %v2747 = vadd.f32 %v2745, %v2746
      %v2748 = vsel %vm1494, %v2710, 0.0
      %v2749 = vadd.f32 %v2747, %v2748
      %v2750 = vsel %vm1494, %v2711, 0.0
      %v2751 = vadd.f32 %v2749, %v2750
      %v2752 = vsel %vm1494, %v2712, 0.0
      %v2753 = vadd.f32 %v2751, %v2752
      %v2754 = vsel %vm1494, %v2713, 0.0
      %v2755 = vadd.f32 %v2753, %v2754
      %v2756 = vsel %vm1494, %v2714, 0.0
      %v2757 = vadd.f32 %v2755, %v2756
      %v2758 = vsel %vm1494, %v2715, 0.0
      %v2759 = vadd.f32 %v2757, %v2758
      %v2760 = vsel %vm1494, %v2716, 0.0
      %v2761 = vadd.f32 %v2759, %v2760
      %v2762 = vsel %vm1494, %v2717, 0.0
      %v2763 = vadd.f32 %v2761, %v2762
      %v2764 = vsel %vm1494, %v2718, 0.0
      %v2765 = vadd.f32 %v2763, %v2764
      %v2766 = vsel %vm1494, %v2719, 0.0
      %v2767 = vadd.f32 %v2765, %v2766
      %v2768 = vsel %vm1494, %v2720, 0.0
      %v2769 = vadd.f32 %v2767, %v2768
      %v2770 = vsel %vm1494, %v2721, 0.0
      %v2771 = vadd.f32 %v2769, %v2770
      %v2772 = vsel %vm1494, %v2722, 0.0
      %v2773 = vadd.f32 %v2771, %v2772
      %v2774 = vsel %vm1494, %v2723, 0.0
      %v2775 = vadd.f32 %v2773, %v2774
      %v2776 = vsel %vm1494, %v2724, 0.0
      %v2777 = vadd.f32 %v2775, %v2776
      %v2778 = vsel %vm1494, %v2725, 0.0
      %v2779 = vadd.f32 %v2777, %v2778
      %v2780 = vsel %vm1494, %v2726, 0.0
      %v2781 = vadd.f32 %v2779, %v2780
      %v2782 = vsel %vm1494, %v2727, 0.0
      %v2783 = vadd.f32 %v2781, %v2782
      %v2784 = vsel %vm1494, %v2728, 0.0
      %v2785 = vadd.f32 %v2783, %v2784
      %v2786 = vsel %vm1494, %v2729, 0.0
      %v2787 = vadd.f32 %v2785, %v2786
      %v2788 = vsel %vm1494, %v2730, 0.0
      %v2789 = vadd.f32 %v2787, %v2788
      %v2790 = vsel %vm1494, %v2731, 0.0
      %v2791 = vadd.f32 %v2789, %v2790
      %v2792 = vsel %vm1494, %v2732, 0.0
      %v2793 = vadd.f32 %v2791, %v2792
      %v2794 = vsel %vm1494, %v2733, 0.0
      %v2795 = vadd.f32 %v2793, %v2794
      %v2796 = vsel %vm1494, %v2734, 0.0
      %v2797 = vadd.f32 %v2795, %v2796
      %v2798 = vrot.slane %v2797, 4
      %v2799 = vadd.f32 %v2797, %v2798
      %v2800 = vrot.slane %v2799, 2
      %v2801 = vadd.f32 %v2799, %v2800
      %v2802 = vrot.slane %v2801, 1
      %v2803 = vadd.f32 %v2801, %v2802
      %vm2804 = vcmask 57344
      %2805 = vst.msk [vmem:[%s172] sm:$0x1] %vm2804, %v2803
      %v2806 = vmul.f32 %v2703, %v2703
      %v2807 = vmul.f32 %v2704, %v2704
      %v2808 = vmul.f32 %v2705, %v2705
      %v2809 = vmul.f32 %v2706, %v2706
      %v2810 = vmul.f32 %v2707, %v2707
      %v2811 = vmul.f32 %v2708, %v2708
      %v2812 = vmul.f32 %v2709, %v2709
      %v2813 = vmul.f32 %v2710, %v2710
      %v2814 = vmul.f32 %v2711, %v2711
      %v2815 = vmul.f32 %v2712, %v2712
      %v2816 = vmul.f32 %v2713, %v2713
      %v2817 = vmul.f32 %v2714, %v2714
      %v2818 = vmul.f32 %v2715, %v2715
      %v2819 = vmul.f32 %v2716, %v2716
      %v2820 = vmul.f32 %v2717, %v2717
      %v2821 = vmul.f32 %v2718, %v2718
      %v2822 = vmul.f32 %v2719, %v2719
      %v2823 = vmul.f32 %v2720, %v2720
      %v2824 = vmul.f32 %v2721, %v2721
      %v2825 = vmul.f32 %v2722, %v2722
      %v2826 = vmul.f32 %v2723, %v2723
      %v2827 = vmul.f32 %v2724, %v2724
      %v2828 = vmul.f32 %v2725, %v2725
      %v2829 = vmul.f32 %v2726, %v2726
      %v2830 = vmul.f32 %v2727, %v2727
      %v2831 = vmul.f32 %v2728, %v2728
      %v2832 = vmul.f32 %v2729, %v2729
      %v2833 = vmul.f32 %v2730, %v2730
      %v2834 = vmul.f32 %v2731, %v2731
      %v2835 = vmul.f32 %v2732, %v2732
      %v2836 = vmul.f32 %v2733, %v2733
      %v2837 = vmul.f32 %v2734, %v2734
      %v2838 = vsel %vm1494, %v2806, 0.0
      %v2839 = vsel %vm1494, %v2807, 0.0
      %v2840 = vadd.f32 %v2838, %v2839
      %v2841 = vsel %vm1494, %v2808, 0.0
      %v2842 = vadd.f32 %v2840, %v2841
      %v2843 = vsel %vm1494, %v2809, 0.0
      %v2844 = vadd.f32 %v2842, %v2843
      %v2845 = vsel %vm1494, %v2810, 0.0
      %v2846 = vadd.f32 %v2844, %v2845
      %v2847 = vsel %vm1494, %v2811, 0.0
      %v2848 = vadd.f32 %v2846, %v2847
      %v2849 = vsel %vm1494, %v2812, 0.0
      %v2850 = vadd.f32 %v2848, %v2849
      %v2851 = vsel %vm1494, %v2813, 0.0
      %v2852 = vadd.f32 %v2850, %v2851
      %v2853 = vsel %vm1494, %v2814, 0.0
      %v2854 = vadd.f32 %v2852, %v2853
      %v2855 = vsel %vm1494, %v2815, 0.0
      %v2856 = vadd.f32 %v2854, %v2855
      %v2857 = vsel %vm1494, %v2816, 0.0
      %v2858 = vadd.f32 %v2856, %v2857
      %v2859 = vsel %vm1494, %v2817, 0.0
      %v2860 = vadd.f32 %v2858, %v2859
      %v2861 = vsel %vm1494, %v2818, 0.0
      %v2862 = vadd.f32 %v2860, %v2861
      %v2863 = vsel %vm1494, %v2819, 0.0
      %v2864 = vadd.f32 %v2862, %v2863
      %v2865 = vsel %vm1494, %v2820, 0.0
      %v2866 = vadd.f32 %v2864, %v2865
      %v2867 = vsel %vm1494, %v2821, 0.0
      %v2868 = vadd.f32 %v2866, %v2867
      %v2869 = vsel %vm1494, %v2822, 0.0
      %v2870 = vadd.f32 %v2868, %v2869
      %v2871 = vsel %vm1494, %v2823, 0.0
      %v2872 = vadd.f32 %v2870, %v2871
      %v2873 = vsel %vm1494, %v2824, 0.0
      %v2874 = vadd.f32 %v2872, %v2873
      %v2875 = vsel %vm1494, %v2825, 0.0
      %v2876 = vadd.f32 %v2874, %v2875
      %v2877 = vsel %vm1494, %v2826, 0.0
      %v2878 = vadd.f32 %v2876, %v2877
      %v2879 = vsel %vm1494, %v2827, 0.0
      %v2880 = vadd.f32 %v2878, %v2879
      %v2881 = vsel %vm1494, %v2828, 0.0
      %v2882 = vadd.f32 %v2880, %v2881
      %v2883 = vsel %vm1494, %v2829, 0.0
      %v2884 = vadd.f32 %v2882, %v2883
      %v2885 = vsel %vm1494, %v2830, 0.0
      %v2886 = vadd.f32 %v2884, %v2885
      %v2887 = vsel %vm1494, %v2831, 0.0
      %v2888 = vadd.f32 %v2886, %v2887
      %v2889 = vsel %vm1494, %v2832, 0.0
      %v2890 = vadd.f32 %v2888, %v2889
      %v2891 = vsel %vm1494, %v2833, 0.0
      %v2892 = vadd.f32 %v2890, %v2891
      %v2893 = vsel %vm1494, %v2834, 0.0
      %v2894 = vadd.f32 %v2892, %v2893
      %v2895 = vsel %vm1494, %v2835, 0.0
      %v2896 = vadd.f32 %v2894, %v2895
      %v2897 = vsel %vm1494, %v2836, 0.0
      %v2898 = vadd.f32 %v2896, %v2897
      %v2899 = vsel %vm1494, %v2837, 0.0
      %v2900 = vadd.f32 %v2898, %v2899
      %v2901 = vrot.slane %v2900, 4
      %v2902 = vadd.f32 %v2900, %v2901
      %v2903 = vrot.slane %v2902, 2
      %v2904 = vadd.f32 %v2902, %v2903
      %v2905 = vrot.slane %v2904, 1
      %v2906 = vadd.f32 %v2904, %v2905
      %2907 = vst.msk [vmem:[%s175] sm:$0x1] %vm2804, %v2906
      %p2908 = scmp.lt.s32.totalorder %s15, 1
      %s2909 = scalar_select %p2908, %s15, 1
      %s2910 = scalar_lea.vmem %s2, %s2909
      %p2911 = scmp.lt.s32.totalorder %s15, 1
      %s2912 = scalar_select %p2911, %s15, 1
      %s2913 = scalar_lea.vmem %s3, %s2912
      // Predicated region
      $region29: #{out_module_forward.2} parent=27 // pred_check
        %p2914 = pneg %p80
      $region30: #{out_module_forward.2} parent=27 // pred_check_branch
        %2916 = sbr.rel (%p2914) target = $region32
      $region31: #{out_module_forward.2} parent=27 // pred_region
        _
      $region32: #{out_module_forward.2} parent=27 // pred_fallthru
        _
      // Predicated region
      $region33: #{out_module_forward.2} parent=27 // pred_check
        %p2917 = pneg %p106
      $region34: #{out_module_forward.2} parent=27 // pred_check_branch
        %2919 = sbr.rel (%p2917) target = $region36
      $region35: #{out_module_forward.2} parent=27 // pred_region
        _
      $region36: #{out_module_forward.2} parent=27 // pred_fallthru
        _
    $region28: #{out_module_forward.2} parent=5 // pred_fallthru
      _
    %p2920 = scmp.le.s32.totalorder 2, %s10
    // Predicated region
    $region37: #{out_module_forward.2} parent=5 // pred_check
      %p2921 = pneg %p2920
    $region38: #{out_module_forward.2} parent=5 // pred_check_branch
      %2923 = sbr.rel (%p2921) target = $region40
    $region39: #{out_module_forward.2} parent=5 // pred_region
      %s2924 = ssub.s32 %s10, 2
      // Predicated region
      $region41: #{out_module_forward.2} parent=39 // pred_check
        %p2925 = pneg %p86
      $region42: #{out_module_forward.2} parent=39 // pred_check_branch
        %2927 = sbr.rel (%p2925) target = $region44
      $region43: #{out_module_forward.2} parent=39 // pred_region
        %p2928 = scmp.lt.s32.totalorder %s16, 1
        %s2929 = scalar_select %p2928, %s16, 1
        %s2930 = scalar_lea.vmem %s2, %s2929
      $region44: #{out_module_forward.2} parent=39 // pred_fallthru
        _
      // Predicated region
      $region45: #{out_module_forward.2} parent=39 // pred_check
        %p2931 = pneg %p112
      $region46: #{out_module_forward.2} parent=39 // pred_check_branch
        %2933 = sbr.rel (%p2931) target = $region48
      $region47: #{out_module_forward.2} parent=39 // pred_region
        %p2934 = scmp.lt.s32.totalorder %s16, 1
        %s2935 = scalar_select %p2934, %s16, 1
        %s2936 = scalar_lea.vmem %s3, %s2935
      $region48: #{out_module_forward.2} parent=39 // pred_fallthru
        _
    $region40: #{out_module_forward.2} parent=5 // pred_fallthru
      _
  $region6: #{out_module_forward.2} parent=0 // loop_footer
    %s14 = sadd.s32 1, %s10
  $region7: #{out_module_forward.2} parent=0 // loop_footer_branch
    %9 = sbr.rel target = $region3
  $region8: #{out_module_forward.2} parent=0 // loop_exit
    _

// kernel: out_module_forward.3
$region0: #{out_module_forward.3}
  #allocation0 [shape = 'u32[]', space=smem, size = 0x4, offset = 0x4, fixed_abs, tag = 'smem constant byte address 0x4 - core index']
  #allocation1 [shape = 'u32[144,128]{1,0:T(1,128)}', space=vmem, size = 0x12000, scoped, tag = 'internal scratch']
  #allocation2 [shape = 'f32[256,8]{1,0:T(8,128)}', space=vmem, size = 0x20000, scoped, tag = 'scratch operand']
  %s0 = inlined_call_operand.vmem [shape: bf16[2,20,20,12], index: 0, kind: input, shape index: {}]
  %s1 = inlined_call_operand.vmem [shape: bf16[5,60,8], index: 1, kind: input, shape index: {}]
  %s2 = inlined_call_operand.vmem [shape: bf16[3,24,8], index: 2, kind: input, shape index: {}]
  %s3 = inlined_call_operand.vmem [shape: bf16[5,40,8], index: 3, kind: input, shape index: {}]
  %s4 = inlined_call_operand.vmem [shape: f32[1,8], index: 4, kind: input, shape index: {}]
  %s5 = inlined_call_operand.vmem [shape: f32[1,8], index: 5, kind: input, shape index: {}]
  %s6 = inlined_call_operand.vmem [shape: f32[2,16,16,8], index: 6, kind: output, shape index: {}]
  %s7 = sld [smem:[#allocation0]]
  $region57: #{out_module_forward.3} parent=0
    _
  %s9 = ssub.s32 1, %s7
  %s10 = scalar_select 0, %s9, %s7
  loop: start=0, step=1, limit=4
  $region2: #{out_module_forward.3} parent=0 // loop_pre_header
    _
  $region3: #{out_module_forward.3} parent=0 // loop_header
    %s12 = sphi 0, %s16
    %p13 = scmp.ge.s32.totalorder %s12, 4
    %s22 = sphi 0, %s24
    %s25 = sphi 0, %s22
    %s26 = sphi 0, %s25
    %s42 = sphi 0, %s26
    %s46 = sphi 0, %s46
    %s48 = sphi 0, %s46
    %s49 = sphi 0, %s48
    %s63 = sphi 0, %s49
    %s67 = sphi 0, %s67
    %s69 = sphi 0, %s67
    %s70 = sphi 0, %s69
    %s84 = sphi 0, %s70
    %s88 = sphi 0, %s88
    %s90 = sphi 0, %s88
    %s91 = sphi 0, %s90
    %s105 = sphi 0, %s91
    %s109 = sphi 0, %s109
    %s111 = sphi 0, %s109
    %s112 = sphi 0, %s111
    %s126 = sphi 0, %s112
    %s130 = sphi 0, %s130
    %s132 = sphi 0, %s130
    %s133 = sphi 0, %s132
    %s147 = sphi 0, %s133
    %s153 = sphi 0, %s155
    %s156 = sphi 0, %s153
    %s157 = sphi 0, %s156
    %s173 = sphi 0, %s157
  $region4: #{out_module_forward.3} parent=0 // loop_header_branch
    %15 = sbr.rel (%p13) target = $region8
  $region5: #{out_module_forward.3} parent=0 // loop_body
    %s17 = ssub.s32 %s12, 1
    %s18 = ssub.s32 %s12, 2
    %s19 = sadd.s32 %s12, 1
    %s20 = ssub.s32 %s12, %s19
    %p21 = scmp.eq.s32.totalorder %s20, 0
    %s23 = sadd.s32 %s22, 1
    %s24 = scalar_select %p21, %s22, %s23
    %p27 = pneg %p21
    %p28 = scmp.eq.s32.totalorder %s12, 1
    %p29 = por %p27, %p28
    %p30 = scmp.ne.s32.totalorder %s22, %s25
    %p31 = scmp.eq.s32.totalorder %s12, 0
    %p32 = por %p30, %p31
    %p33 = scmp.ne.s32.totalorder %s22, %s25
    %p34 = scmp.eq.s32.totalorder %s17, 1
    %p35 = por %p33, %p34
    %p36 = scmp.ne.s32.totalorder %s25, %s26
    %p37 = scmp.eq.s32.totalorder %s17, 0
    %p38 = por %p36, %p37
    %p39 = scmp.ne.s32.totalorder %s25, %s26
    %p40 = scmp.eq.s32.totalorder %s18, 1
    %p41 = por %p39, %p40
    %p43 = scmp.ne.s32.totalorder %s26, %s42
    %p44 = scmp.eq.s32.totalorder %s18, 0
    %p45 = por %p43, %p44
    %s47 = sadd.s32 %s46, 1
    %p50 = scmp.eq.s32.totalorder %s12, 1
    %p51 = scmp.ne.s32.totalorder %s46, %s48
    %p52 = scmp.eq.s32.totalorder %s12, 0
    %p53 = por %p51, %p52
    %p54 = scmp.ne.s32.totalorder %s46, %s48
    %p55 = scmp.eq.s32.totalorder %s17, 1
    %p56 = por %p54, %p55
    %p57 = scmp.ne.s32.totalorder %s48, %s49
    %p58 = scmp.eq.s32.totalorder %s17, 0
    %p59 = por %p57, %p58
    %p60 = scmp.ne.s32.totalorder %s48, %s49
    %p61 = scmp.eq.s32.totalorder %s18, 1
    %p62 = por %p60, %p61
    %p64 = scmp.ne.s32.totalorder %s49, %s63
    %p65 = scmp.eq.s32.totalorder %s18, 0
    %p66 = por %p64, %p65
    %s68 = sadd.s32 %s67, 1
    %p71 = scmp.eq.s32.totalorder %s12, 1
    %p72 = scmp.ne.s32.totalorder %s67, %s69
    %p73 = scmp.eq.s32.totalorder %s12, 0
    %p74 = por %p72, %p73
    %p75 = scmp.ne.s32.totalorder %s67, %s69
    %p76 = scmp.eq.s32.totalorder %s17, 1
    %p77 = por %p75, %p76
    %p78 = scmp.ne.s32.totalorder %s69, %s70
    %p79 = scmp.eq.s32.totalorder %s17, 0
    %p80 = por %p78, %p79
    %p81 = scmp.ne.s32.totalorder %s69, %s70
    %p82 = scmp.eq.s32.totalorder %s18, 1
    %p83 = por %p81, %p82
    %p85 = scmp.ne.s32.totalorder %s70, %s84
    %p86 = scmp.eq.s32.totalorder %s18, 0
    %p87 = por %p85, %p86
    %s89 = sadd.s32 %s88, 1
    %p92 = scmp.eq.s32.totalorder %s12, 1
    %p93 = scmp.ne.s32.totalorder %s88, %s90
    %p94 = scmp.eq.s32.totalorder %s12, 0
    %p95 = por %p93, %p94
    %p96 = scmp.ne.s32.totalorder %s88, %s90
    %p97 = scmp.eq.s32.totalorder %s17, 1
    %p98 = por %p96, %p97
    %p99 = scmp.ne.s32.totalorder %s90, %s91
    %p100 = scmp.eq.s32.totalorder %s17, 0
    %p101 = por %p99, %p100
    %p102 = scmp.ne.s32.totalorder %s90, %s91
    %p103 = scmp.eq.s32.totalorder %s18, 1
    %p104 = por %p102, %p103
    %p106 = scmp.ne.s32.totalorder %s91, %s105
    %p107 = scmp.eq.s32.totalorder %s18, 0
    %p108 = por %p106, %p107
    %s110 = sadd.s32 %s109, 1
    %p113 = scmp.eq.s32.totalorder %s12, 1
    %p114 = scmp.ne.s32.totalorder %s109, %s111
    %p115 = scmp.eq.s32.totalorder %s12, 0
    %p116 = por %p114, %p115
    %p117 = scmp.ne.s32.totalorder %s109, %s111
    %p118 = scmp.eq.s32.totalorder %s17, 1
    %p119 = por %p117, %p118
    %p120 = scmp.ne.s32.totalorder %s111, %s112
    %p121 = scmp.eq.s32.totalorder %s17, 0
    %p122 = por %p120, %p121
    %p123 = scmp.ne.s32.totalorder %s111, %s112
    %p124 = scmp.eq.s32.totalorder %s18, 1
    %p125 = por %p123, %p124
    %p127 = scmp.ne.s32.totalorder %s112, %s126
    %p128 = scmp.eq.s32.totalorder %s18, 0
    %p129 = por %p127, %p128
    %s131 = sadd.s32 %s130, 1
    %p134 = scmp.eq.s32.totalorder %s12, 1
    %p135 = scmp.ne.s32.totalorder %s130, %s132
    %p136 = scmp.eq.s32.totalorder %s12, 0
    %p137 = por %p135, %p136
    %p138 = scmp.ne.s32.totalorder %s130, %s132
    %p139 = scmp.eq.s32.totalorder %s17, 1
    %p140 = por %p138, %p139
    %p141 = scmp.ne.s32.totalorder %s132, %s133
    %p142 = scmp.eq.s32.totalorder %s17, 0
    %p143 = por %p141, %p142
    %p144 = scmp.ne.s32.totalorder %s132, %s133
    %p145 = scmp.eq.s32.totalorder %s18, 1
    %p146 = por %p144, %p145
    %p148 = scmp.ne.s32.totalorder %s133, %s147
    %p149 = scmp.eq.s32.totalorder %s18, 0
    %p150 = por %p148, %p149
    %s151 = ssub.s32 %s12, %s19
    %p152 = scmp.eq.s32.totalorder %s151, 0
    %s154 = sadd.s32 %s153, 1
    %s155 = scalar_select %p152, %s153, %s154
    %p158 = pneg %p152
    %p159 = scmp.eq.s32.totalorder %s12, 1
    %p160 = por %p158, %p159
    %p161 = scmp.ne.s32.totalorder %s153, %s156
    %p162 = scmp.eq.s32.totalorder %s12, 0
    %p163 = por %p161, %p162
    %p164 = scmp.ne.s32.totalorder %s153, %s156
    %p165 = scmp.eq.s32.totalorder %s17, 1
    %p166 = por %p164, %p165
    %p167 = scmp.ne.s32.totalorder %s156, %s157
    %p168 = scmp.eq.s32.totalorder %s17, 0
    %p169 = por %p167, %p168
    %p170 = scmp.ne.s32.totalorder %s156, %s157
    %p171 = scmp.eq.s32.totalorder %s18, 1
    %p172 = por %p170, %p171
    %p174 = scmp.ne.s32.totalorder %s157, %s173
    %p175 = scmp.eq.s32.totalorder %s18, 0
    %p176 = por %p174, %p175
    %p177 = scmp.le.s32.totalorder 1, %s12
    %p178 = scmp.lt.s32.totalorder %s12, 3
    %p179 = pnand %p177, %p178
    %p180 = pneg %p179
    // Predicated region
    $region9: #{out_module_forward.3} parent=5 // pred_check
      _
    $region10: #{out_module_forward.3} parent=5 // pred_check_branch
      %182 = sbr.rel (%p179) target = $region12
    $region11: #{out_module_forward.3} parent=5 // pred_region
      %s183 = ssub.s32 %s12, 1
      // Predicated region
      $region13: #{out_module_forward.3} parent=11 // pred_check
        %p184 = pneg %p59
      $region14: #{out_module_forward.3} parent=11 // pred_check_branch
        %186 = sbr.rel (%p184) target = $region16
      $region15: #{out_module_forward.3} parent=11 // pred_region
        _
      $region16: #{out_module_forward.3} parent=11 // pred_fallthru
        _
      // Predicated region
      $region17: #{out_module_forward.3} parent=11 // pred_check
        %p187 = pneg %p80
      $region18: #{out_module_forward.3} parent=11 // pred_check_branch
        %189 = sbr.rel (%p187) target = $region20
      $region19: #{out_module_forward.3} parent=11 // pred_region
        _
      $region20: #{out_module_forward.3} parent=11 // pred_fallthru
        _
      // Predicated region
      $region21: #{out_module_forward.3} parent=11 // pred_check
        %p190 = pneg %p101
      $region22: #{out_module_forward.3} parent=11 // pred_check_branch
        %192 = sbr.rel (%p190) target = $region24
      $region23: #{out_module_forward.3} parent=11 // pred_region
        _
      $region24: #{out_module_forward.3} parent=11 // pred_fallthru
        _
      // Predicated region
      $region25: #{out_module_forward.3} parent=11 // pred_check
        %p193 = pneg %p122
      $region26: #{out_module_forward.3} parent=11 // pred_check_branch
        %195 = sbr.rel (%p193) target = $region28
      $region27: #{out_module_forward.3} parent=11 // pred_region
        _
      $region28: #{out_module_forward.3} parent=11 // pred_fallthru
        _
      // Predicated region
      $region29: #{out_module_forward.3} parent=11 // pred_check
        %p196 = pneg %p143
      $region30: #{out_module_forward.3} parent=11 // pred_check_branch
        %198 = sbr.rel (%p196) target = $region32
      $region31: #{out_module_forward.3} parent=11 // pred_region
        _
      $region32: #{out_module_forward.3} parent=11 // pred_fallthru
        _
    $region12: #{out_module_forward.3} parent=5 // pred_fallthru
      _
    %p199 = scmp.lt.s32.totalorder %s12, 2
    // Predicated region
    $region33: #{out_module_forward.3} parent=5 // pred_check
      %p200 = pneg %p199
    $region34: #{out_module_forward.3} parent=5 // pred_check_branch
      %202 = sbr.rel (%p200) target = $region36
    $region35: #{out_module_forward.3} parent=5 // pred_region
      // Predicated region
      $region37: #{out_module_forward.3} parent=35 // pred_check
        %p203 = pneg %p32
      $region38: #{out_module_forward.3} parent=35 // pred_check_branch
        %205 = sbr.rel (%p203) target = $region40
      $region39: #{out_module_forward.3} parent=35 // pred_region
        %p206 = scmp.lt.s32.totalorder %s12, 1
        %s207 = scalar_select %p206, %s12, 1
        %s208 = smul.addr %s207, 60
        %s209 = smul.addr %s208, 4
        %s210 = scalar_lea.vmem %s0, %s209
      $region40: #{out_module_forward.3} parent=35 // pred_fallthru
        _
    $region36: #{out_module_forward.3} parent=5 // pred_fallthru
      _
    %p211 = scmp.le.s32.totalorder 1, %s12
    %p212 = scmp.lt.s32.totalorder %s12, 3
    %p213 = pnand %p211, %p212
    %p214 = pneg %p213
    // Predicated region
    $region41: #{out_module_forward.3} parent=5 // pred_check
      _
    $region42: #{out_module_forward.3} parent=5 // pred_check_branch
      %216 = sbr.rel (%p213) target = $region44
    $region43: #{out_module_forward.3} parent=5 // pred_region
      %s217 = ssub.s32 %s12, 1
      %p218 = scmp.lt.s32.totalorder %s17, 1
      %s219 = scalar_select %p218, %s17, 1
      %s220 = smul.addr %s219, 60
      %s221 = smul.addr %s220, 4
      %s222 = scalar_lea.vmem %s0, %s221
      %p223 = pneg %p38
      %p224 = pneg %p35
      %p225 = pneg %p59
      %p226 = pneg %p56
      %p227 = pneg %p80
      %p228 = pneg %p77
      %p229 = pneg %p101
      %p230 = pneg %p98
      %p231 = pneg %p122
      %p232 = pneg %p119
      %p233 = pneg %p143
      %p234 = pneg %p140
      %p235 = pneg %p169
      %p236 = pneg %p166
      %p237 = scmp.lt.s32.totalorder %s17, 1
      %s238 = scalar_select %p237, %s17, 1
      %s239 = smul.addr %s238, 32
      %s240 = smul.addr %s239, 8
      %s241 = scalar_lea.vmem %s6, %s240
      %p242 = scmp.lt.s32.totalorder %s17, 1
      %s243 = scalar_select %p242, %s17, 1
      %s244 = smul.addr %s243, 60
      %s245 = smul.addr %s244, 4
      %s246 = scalar_lea.vmem %s0, %s245
      %p247 = scmp.lt.s32.totalorder %s17, 1
      %s248 = scalar_select %p247, %s17, 1
      %s249 = smul.addr %s248, 32
      %s250 = smul.addr %s249, 8
      %s251 = scalar_lea.vmem %s6, %s250
      %v253 = vld [vmem:[%s246] sm:$0xf]
      %v254 = vld [vmem:[%s246 + $0x4] sm:$0xf]
      %v255 = vld [vmem:[%s246 + $0x8] sm:$0x3]
      %v256 = vld [vmem:[%s246 + $0xc] sm:$0xf]
      %v257 = vld [vmem:[%s246 + $0x10] sm:$0xf]
      %v258 = vld [vmem:[%s246 + $0x14] sm:$0x3]
      %v259 = vld [vmem:[%s246 + $0x18] sm:$0xf]
      %v260 = vld [vmem:[%s246 + $0x1c] sm:$0xf]
      %v261 = vld [vmem:[%s246 + $0x20] sm:$0x3]
      %v262 = vld [vmem:[%s246 + $0x24] sm:$0xf]
      %v263 = vld [vmem:[%s246 + $0x28] sm:$0xf]
      %v264 = vld [vmem:[%s246 + $0x2c] sm:$0x3]
      %v265 = vld [vmem:[%s246 + $0x30] sm:$0xf]
      %v266 = vld [vmem:[%s246 + $0x34] sm:$0xf]
      %v267 = vld [vmem:[%s246 + $0x38] sm:$0x3]
      %v268 = vld [vmem:[%s246 + $0x3c] sm:$0xf]
      %v269 = vld [vmem:[%s246 + $0x40] sm:$0xf]
      %v270 = vld [vmem:[%s246 + $0x44] sm:$0x3]
      %v271 = vld [vmem:[%s246 + $0x48] sm:$0xf]
      %v272 = vld [vmem:[%s246 + $0x4c] sm:$0xf]
      %v273 = vld [vmem:[%s246 + $0x50] sm:$0x3]
      %v274 = vld [vmem:[%s246 + $0x54] sm:$0xf]
      %v275 = vld [vmem:[%s246 + $0x58] sm:$0xf]
      %v276 = vld [vmem:[%s246 + $0x5c] sm:$0x3]
      %v277 = vld [vmem:[%s246 + $0x60] sm:$0xf]
      %v278 = vld [vmem:[%s246 + $0x64] sm:$0xf]
      %v279 = vld [vmem:[%s246 + $0x68] sm:$0x3]
      %v280 = vld [vmem:[%s246 + $0x6c] sm:$0xf]
      %v281 = vld [vmem:[%s246 + $0x70] sm:$0xf]
      %v282 = vld [vmem:[%s246 + $0x74] sm:$0x3]
      %v283 = vld [vmem:[%s246 + $0x78] sm:$0xf]
      %v284 = vld [vmem:[%s246 + $0x7c] sm:$0xf]
      %v285 = vld [vmem:[%s246 + $0x80] sm:$0x3]
      %v286 = vld [vmem:[%s246 + $0x84] sm:$0xf]
      %v287 = vld [vmem:[%s246 + $0x88] sm:$0xf]
      %v288 = vld [vmem:[%s246 + $0x8c] sm:$0x3]
      %v289 = vld [vmem:[%s246 + $0x90] sm:$0xf]
      %v290 = vld [vmem:[%s246 + $0x94] sm:$0xf]
      %v291 = vld [vmem:[%s246 + $0x98] sm:$0x3]
      %v292 = vld [vmem:[%s246 + $0x9c] sm:$0xf]
      %v293 = vld [vmem:[%s246 + $0xa0] sm:$0xf]
      %v294 = vld [vmem:[%s246 + $0xa4] sm:$0x3]
      %v295 = vld [vmem:[%s246 + $0xa8] sm:$0xf]
      %v296 = vld [vmem:[%s246 + $0xac] sm:$0xf]
      %v297 = vld [vmem:[%s246 + $0xb0] sm:$0x3]
      %v298 = vld [vmem:[%s246 + $0xb4] sm:$0xf]
      %v299 = vld [vmem:[%s246 + $0xb8] sm:$0xf]
      %v300 = vld [vmem:[%s246 + $0xbc] sm:$0x3]
      %v301 = vld [vmem:[%s246 + $0xc0] sm:$0xf]
      %v302 = vld [vmem:[%s246 + $0xc4] sm:$0xf]
      %v303 = vld [vmem:[%s246 + $0xc8] sm:$0x3]
      %v304 = vld [vmem:[%s246 + $0xcc] sm:$0xf]
      %v305 = vld [vmem:[%s246 + $0xd0] sm:$0xf]
      %v306 = vld [vmem:[%s246 + $0xd4] sm:$0x3]
      %v307 = vld [vmem:[%s246 + $0xd8] sm:$0xf]
      %v308 = vld [vmem:[%s246 + $0xdc] sm:$0xf]
      %v309 = vld [vmem:[%s246 + $0xe0] sm:$0x3]
      %v310 = vld [vmem:[%s246 + $0xe4] sm:$0xf]
      %v311 = vld [vmem:[%s246 + $0xe8] sm:$0xf]
      %v312 = vld [vmem:[%s246 + $0xec] sm:$0x3]
      %v353 = vunpack.c.l.b16 %v253
      %v354 = vunpack.c.l.b16 %v254
      %v355 = vunpack.c.l.b16 %v256
      %v356 = vunpack.c.l.b16 %v257
      %v357 = vunpack.c.l.b16 %v259
      %v358 = vunpack.c.l.b16 %v260
      %v359 = vunpack.c.l.b16 %v262
      %v360 = vunpack.c.l.b16 %v263
      %v361 = vunpack.c.l.b16 %v265
      %v362 = vunpack.c.l.b16 %v266
      %v363 = vunpack.c.l.b16 %v268
      %v364 = vunpack.c.l.b16 %v269
      %v365 = vunpack.c.l.b16 %v271
      %v366 = vunpack.c.l.b16 %v272
      %v367 = vunpack.c.l.b16 %v274
      %v368 = vunpack.c.l.b16 %v275
      %v369 = vunpack.c.l.b16 %v277
      %v370 = vunpack.c.l.b16 %v278
      %v371 = vunpack.c.l.b16 %v280
      %v372 = vunpack.c.l.b16 %v281
      %v373 = vunpack.c.l.b16 %v283
      %v374 = vunpack.c.l.b16 %v284
      %v375 = vunpack.c.l.b16 %v286
      %v376 = vunpack.c.l.b16 %v287
      %v377 = vunpack.c.l.b16 %v289
      %v378 = vunpack.c.l.b16 %v290
      %v379 = vunpack.c.l.b16 %v292
      %v380 = vunpack.c.l.b16 %v293
      %v381 = vunpack.c.l.b16 %v295
      %v382 = vunpack.c.l.b16 %v296
      %v383 = vunpack.c.l.b16 %v298
      %v384 = vunpack.c.l.b16 %v299
      %v385 = vunpack.c.l.b16 %v301
      %v386 = vunpack.c.l.b16 %v302
      %v387 = vunpack.c.l.b16 %v304
      %v388 = vunpack.c.l.b16 %v305
      %v389 = vunpack.c.l.b16 %v307
      %v390 = vunpack.c.l.b16 %v308
      %v391 = vunpack.c.l.b16 %v310
      %v392 = vunpack.c.l.b16 %v311
      %v393 = vpack.c.b16 %v354, %v353
      %v394 = vpack.c.b16 %v356, %v355
      %v395 = vpack.c.b16 %v358, %v357
      %v396 = vpack.c.b16 %v360, %v359
      %v397 = vpack.c.b16 %v362, %v361
      %v398 = vpack.c.b16 %v364, %v363
      %v399 = vpack.c.b16 %v366, %v365
      %v400 = vpack.c.b16 %v368, %v367
      %v401 = vpack.c.b16 %v370, %v369
      %v402 = vpack.c.b16 %v372, %v371
      %v403 = vpack.c.b16 %v374, %v373
      %v404 = vpack.c.b16 %v376, %v375
      %v405 = vpack.c.b16 %v378, %v377
      %v406 = vpack.c.b16 %v380, %v379
      %v407 = vpack.c.b16 %v382, %v381
      %v408 = vpack.c.b16 %v384, %v383
      %v409 = vpack.c.b16 %v386, %v385
      %v410 = vpack.c.b16 %v388, %v387
      %v411 = vpack.c.b16 %v390, %v389
      %v412 = vpack.c.b16 %v392, %v391
      %v433 = vunpack.c.l.b16 %v255
      %v434 = vunpack.c.l.b16 %v258
      %v435 = vunpack.c.l.b16 %v261
      %v436 = vunpack.c.l.b16 %v264
      %v437 = vunpack.c.l.b16 %v267
      %v438 = vunpack.c.l.b16 %v270
      %v439 = vunpack.c.l.b16 %v273
      %v440 = vunpack.c.l.b16 %v276
      %v441 = vunpack.c.l.b16 %v279
      %v442 = vunpack.c.l.b16 %v282
      %v443 = vunpack.c.l.b16 %v285
      %v444 = vunpack.c.l.b16 %v288
      %v445 = vunpack.c.l.b16 %v291
      %v446 = vunpack.c.l.b16 %v294
      %v447 = vunpack.c.l.b16 %v297
      %v448 = vunpack.c.l.b16 %v300
      %v449 = vunpack.c.l.b16 %v303
      %v450 = vunpack.c.l.b16 %v306
      %v451 = vunpack.c.l.b16 %v309
      %v452 = vunpack.c.l.b16 %v312
      %v453 = vpack.c.b16 %v433, %v433
      %v454 = vpack.c.b16 %v434, %v434
      %v455 = vpack.c.b16 %v435, %v435
      %v456 = vpack.c.b16 %v436, %v436
      %v457 = vpack.c.b16 %v437, %v437
      %v458 = vpack.c.b16 %v438, %v438
      %v459 = vpack.c.b16 %v439, %v439
      %v460 = vpack.c.b16 %v440, %v440
      %v461 = vpack.c.b16 %v441, %v441
      %v462 = vpack.c.b16 %v442, %v442
      %v463 = vpack.c.b16 %v443, %v443
      %v464 = vpack.c.b16 %v444, %v444
      %v465 = vpack.c.b16 %v445, %v445
      %v466 = vpack.c.b16 %v446, %v446
      %v467 = vpack.c.b16 %v447, %v447
      %v468 = vpack.c.b16 %v448, %v448
      %v469 = vpack.c.b16 %v449, %v449
      %v470 = vpack.c.b16 %v450, %v450
      %v471 = vpack.c.b16 %v451, %v451
      %v472 = vpack.c.b16 %v452, %v452
      %vm473 = vsmask.f32 7424
      %v475 = vshrl.u32 %v393, 16
      %v477 = vshll.u32 %v393, 16
      %v479 = vrot.slane %v477, 1
      %v480 = vor.u32 %v475, %v479
      %v482 = vshll.u32 %v453, 16
      %v484 = vrot.slane %v482, 1
      %v485 = vsel %vm473, %v480, %v484
      %v487 = vshrl.u32 %v394, 16
      %v489 = vshll.u32 %v394, 16
      %v491 = vrot.slane %v489, 1
      %v492 = vor.u32 %v487, %v491
      %v494 = vshll.u32 %v454, 16
      %v496 = vrot.slane %v494, 1
      %v497 = vsel %vm473, %v492, %v496
      %v499 = vshrl.u32 %v395, 16
      %v501 = vshll.u32 %v395, 16
      %v503 = vrot.slane %v501, 1
      %v504 = vor.u32 %v499, %v503
      %v506 = vshll.u32 %v455, 16
      %v508 = vrot.slane %v506, 1
      %v509 = vsel %vm473, %v504, %v508
      %v511 = vshrl.u32 %v396, 16
      %v513 = vshll.u32 %v396, 16
      %v515 = vrot.slane %v513, 1
      %v516 = vor.u32 %v511, %v515
      %v518 = vshll.u32 %v456, 16
      %v520 = vrot.slane %v518, 1
      %v521 = vsel %vm473, %v516, %v520
      %v523 = vshrl.u32 %v397, 16
      %v525 = vshll.u32 %v397, 16
      %v527 = vrot.slane %v525, 1
      %v528 = vor.u32 %v523, %v527
      %v530 = vshll.u32 %v457, 16
      %v532 = vrot.slane %v530, 1
      %v533 = vsel %vm473, %v528, %v532
      %v535 = vshrl.u32 %v398, 16
      %v537 = vshll.u32 %v398, 16
      %v539 = vrot.slane %v537, 1
      %v540 = vor.u32 %v535, %v539
      %v542 = vshll.u32 %v458, 16
      %v544 = vrot.slane %v542, 1
      %v545 = vsel %vm473, %v540, %v544
      %v547 = vshrl.u32 %v399, 16
      %v549 = vshll.u32 %v399, 16
      %v551 = vrot.slane %v549, 1
      %v552 = vor.u32 %v547, %v551
      %v554 = vshll.u32 %v459, 16
      %v556 = vrot.slane %v554, 1
      %v557 = vsel %vm473, %v552, %v556
      %v559 = vshrl.u32 %v400, 16
      %v561 = vshll.u32 %v400, 16
      %v563 = vrot.slane %v561, 1
      %v564 = vor.u32 %v559, %v563
      %v566 = vshll.u32 %v460, 16
      %v568 = vrot.slane %v566, 1
      %v569 = vsel %vm473, %v564, %v568
      %v571 = vshrl.u32 %v401, 16
      %v573 = vshll.u32 %v401, 16
      %v575 = vrot.slane %v573, 1
      %v576 = vor.u32 %v571, %v575
      %v578 = vshll.u32 %v461, 16
      %v580 = vrot.slane %v578, 1
      %v581 = vsel %vm473, %v576, %v580
      %v583 = vshrl.u32 %v402, 16
      %v585 = vshll.u32 %v402, 16
      %v587 = vrot.slane %v585, 1
      %v588 = vor.u32 %v583, %v587
      %v590 = vshll.u32 %v462, 16
      %v592 = vrot.slane %v590, 1
      %v593 = vsel %vm473, %v588, %v592
      %v595 = vshrl.u32 %v403, 16
      %v597 = vshll.u32 %v403, 16
      %v599 = vrot.slane %v597, 1
      %v600 = vor.u32 %v595, %v599
      %v602 = vshll.u32 %v463, 16
      %v604 = vrot.slane %v602, 1
      %v605 = vsel %vm473, %v600, %v604
      %v607 = vshrl.u32 %v404, 16
      %v609 = vshll.u32 %v404, 16
      %v611 = vrot.slane %v609, 1
      %v612 = vor.u32 %v607, %v611
      %v614 = vshll.u32 %v464, 16
      %v616 = vrot.slane %v614, 1
      %v617 = vsel %vm473, %v612, %v616
      %v619 = vshrl.u32 %v405, 16
      %v621 = vshll.u32 %v405, 16
      %v623 = vrot.slane %v621, 1
      %v624 = vor.u32 %v619, %v623
      %v626 = vshll.u32 %v465, 16
      %v628 = vrot.slane %v626, 1
      %v629 = vsel %vm473, %v624, %v628
      %v631 = vshrl.u32 %v406, 16
      %v633 = vshll.u32 %v406, 16
      %v635 = vrot.slane %v633, 1
      %v636 = vor.u32 %v631, %v635
      %v638 = vshll.u32 %v466, 16
      %v640 = vrot.slane %v638, 1
      %v641 = vsel %vm473, %v636, %v640
      %v643 = vshrl.u32 %v407, 16
      %v645 = vshll.u32 %v407, 16
      %v647 = vrot.slane %v645, 1
      %v648 = vor.u32 %v643, %v647
      %v650 = vshll.u32 %v467, 16
      %v652 = vrot.slane %v650, 1
      %v653 = vsel %vm473, %v648, %v652
      %v655 = vshrl.u32 %v408, 16
      %v657 = vshll.u32 %v408, 16
      %v659 = vrot.slane %v657, 1
      %v660 = vor.u32 %v655, %v659
      %v662 = vshll.u32 %v468, 16
      %v664 = vrot.slane %v662, 1
      %v665 = vsel %vm473, %v660, %v664
      %v667 = vshrl.u32 %v409, 16
      %v669 = vshll.u32 %v409, 16
      %v671 = vrot.slane %v669, 1
      %v672 = vor.u32 %v667, %v671
      %v674 = vshll.u32 %v469, 16
      %v676 = vrot.slane %v674, 1
      %v677 = vsel %vm473, %v672, %v676
      %v679 = vshrl.u32 %v410, 16
      %v681 = vshll.u32 %v410, 16
      %v683 = vrot.slane %v681, 1
      %v684 = vor.u32 %v679, %v683
      %v686 = vshll.u32 %v470, 16
      %v688 = vrot.slane %v686, 1
      %v689 = vsel %vm473, %v684, %v688
      %v691 = vshrl.u32 %v411, 16
      %v693 = vshll.u32 %v411, 16
      %v695 = vrot.slane %v693, 1
      %v696 = vor.u32 %v691, %v695
      %v698 = vshll.u32 %v471, 16
      %v700 = vrot.slane %v698, 1
      %v701 = vsel %vm473, %v696, %v700
      %v703 = vshrl.u32 %v412, 16
      %v705 = vshll.u32 %v412, 16
      %v707 = vrot.slane %v705, 1
      %v708 = vor.u32 %v703, %v707
      %v710 = vshll.u32 %v472, 16
      %v712 = vrot.slane %v710, 1
      %v713 = vsel %vm473, %v708, %v712
      %714 = vrot.lane.b32.xlu0 %v485, 12
      %v715 = vpop.permute.xlu0 %714
      %716 = vrot.lane.b32.xlu0 %v497, 12
      %v717 = vpop.permute.xlu0 %716
      %718 = vrot.lane.b32.xlu0 %v509, 12
      %v719 = vpop.permute.xlu0 %718
      %720 = vrot.lane.b32.xlu0 %v521, 12
      %v721 = vpop.permute.xlu0 %720
      %722 = vrot.lane.b32.xlu0 %v533, 12
      %v723 = vpop.permute.xlu0 %722
      %724 = vrot.lane.b32.xlu0 %v545, 12
      %v725 = vpop.permute.xlu0 %724
      %726 = vrot.lane.b32.xlu0 %v557, 12
      %v727 = vpop.permute.xlu0 %726
      %728 = vrot.lane.b32.xlu0 %v569, 12
      %v729 = vpop.permute.xlu0 %728
      %730 = vrot.lane.b32.xlu0 %v581, 12
      %v731 = vpop.permute.xlu0 %730
      %732 = vrot.lane.b32.xlu0 %v593, 12
      %v733 = vpop.permute.xlu0 %732
      %734 = vrot.lane.b32.xlu0 %v605, 12
      %v735 = vpop.permute.xlu0 %734
      %736 = vrot.lane.b32.xlu0 %v617, 12
      %v737 = vpop.permute.xlu0 %736
      %738 = vrot.lane.b32.xlu0 %v629, 12
      %v739 = vpop.permute.xlu0 %738
      %740 = vrot.lane.b32.xlu0 %v641, 12
      %v741 = vpop.permute.xlu0 %740
      %742 = vrot.lane.b32.xlu0 %v653, 12
      %v743 = vpop.permute.xlu0 %742
      %744 = vrot.lane.b32.xlu0 %v665, 12
      %v745 = vpop.permute.xlu0 %744
      %746 = vrot.lane.b32.xlu0 %v677, 12
      %v747 = vpop.permute.xlu0 %746
      %748 = vrot.lane.b32.xlu0 %v689, 12
      %v749 = vpop.permute.xlu0 %748
      %750 = vrot.lane.b32.xlu0 %v701, 12
      %v751 = vpop.permute.xlu0 %750
      %752 = vrot.lane.b32.xlu0 %v713, 12
      %v753 = vpop.permute.xlu0 %752
      %vm754 = vcmask 1046528
      %v755 = vrot.slane %v393, 1
      %v756 = vrot.slane %v453, 1
      %v757 = vsel %vm754, %v755, %v756
      %v758 = vrot.slane %v394, 1
      %v759 = vrot.slane %v454, 1
      %v760 = vsel %vm754, %v758, %v759
      %v761 = vrot.slane %v395, 1
      %v762 = vrot.slane %v455, 1
      %v763 = vsel %vm754, %v761, %v762
      %v764 = vrot.slane %v396, 1
      %v765 = vrot.slane %v456, 1
      %v766 = vsel %vm754, %v764, %v765
      %v767 = vrot.slane %v397, 1
      %v768 = vrot.slane %v457, 1
      %v769 = vsel %vm754, %v767, %v768
      %v770 = vrot.slane %v398, 1
      %v771 = vrot.slane %v458, 1
      %v772 = vsel %vm754, %v770, %v771
      %v773 = vrot.slane %v399, 1
      %v774 = vrot.slane %v459, 1
      %v775 = vsel %vm754, %v773, %v774
      %v776 = vrot.slane %v400, 1
      %v777 = vrot.slane %v460, 1
      %v778 = vsel %vm754, %v776, %v777
      %v779 = vrot.slane %v401, 1
      %v780 = vrot.slane %v461, 1
      %v781 = vsel %vm754, %v779, %v780
      %v782 = vrot.slane %v402, 1
      %v783 = vrot.slane %v462, 1
      %v784 = vsel %vm754, %v782, %v783
      %v785 = vrot.slane %v403, 1
      %v786 = vrot.slane %v463, 1
      %v787 = vsel %vm754, %v785, %v786
      %v788 = vrot.slane %v404, 1
      %v789 = vrot.slane %v464, 1
      %v790 = vsel %vm754, %v788, %v789
      %v791 = vrot.slane %v405, 1
      %v792 = vrot.slane %v465, 1
      %v793 = vsel %vm754, %v791, %v792
      %v794 = vrot.slane %v406, 1
      %v795 = vrot.slane %v466, 1
      %v796 = vsel %vm754, %v794, %v795
      %v797 = vrot.slane %v407, 1
      %v798 = vrot.slane %v467, 1
      %v799 = vsel %vm754, %v797, %v798
      %v800 = vrot.slane %v408, 1
      %v801 = vrot.slane %v468, 1
      %v802 = vsel %vm754, %v800, %v801
      %v803 = vrot.slane %v409, 1
      %v804 = vrot.slane %v469, 1
      %v805 = vsel %vm754, %v803, %v804
      %v806 = vrot.slane %v410, 1
      %v807 = vrot.slane %v470, 1
      %v808 = vsel %vm754, %v806, %v807
      %v809 = vrot.slane %v411, 1
      %v810 = vrot.slane %v471, 1
      %v811 = vsel %vm754, %v809, %v810
      %v812 = vrot.slane %v412, 1
      %v813 = vrot.slane %v472, 1
      %v814 = vsel %vm754, %v812, %v813
      %815 = vrot.lane.b32.xlu0 %v757, 24
      %v816 = vpop.permute.xlu0 %815
      %817 = vrot.lane.b32.xlu0 %v760, 24
      %v818 = vpop.permute.xlu0 %817
      %819 = vrot.lane.b32.xlu0 %v763, 24
      %v820 = vpop.permute.xlu0 %819
      %821 = vrot.lane.b32.xlu0 %v766, 24
      %v822 = vpop.permute.xlu0 %821
      %823 = vrot.lane.b32.xlu0 %v769, 24
      %v824 = vpop.permute.xlu0 %823
      %825 = vrot.lane.b32.xlu0 %v772, 24
      %v826 = vpop.permute.xlu0 %825
      %827 = vrot.lane.b32.xlu0 %v775, 24
      %v828 = vpop.permute.xlu0 %827
      %829 = vrot.lane.b32.xlu0 %v778, 24
      %v830 = vpop.permute.xlu0 %829
      %831 = vrot.lane.b32.xlu0 %v781, 24
      %v832 = vpop.permute.xlu0 %831
      %833 = vrot.lane.b32.xlu0 %v784, 24
      %v834 = vpop.permute.xlu0 %833
      %835 = vrot.lane.b32.xlu0 %v787, 24
      %v836 = vpop.permute.xlu0 %835
      %837 = vrot.lane.b32.xlu0 %v790, 24
      %v838 = vpop.permute.xlu0 %837
      %839 = vrot.lane.b32.xlu0 %v793, 24
      %v840 = vpop.permute.xlu0 %839
      %841 = vrot.lane.b32.xlu0 %v796, 24
      %v842 = vpop.permute.xlu0 %841
      %843 = vrot.lane.b32.xlu0 %v799, 24
      %v844 = vpop.permute.xlu0 %843
      %845 = vrot.lane.b32.xlu0 %v802, 24
      %v846 = vpop.permute.xlu0 %845
      %847 = vrot.lane.b32.xlu0 %v805, 24
      %v848 = vpop.permute.xlu0 %847
      %849 = vrot.lane.b32.xlu0 %v808, 24
      %v850 = vpop.permute.xlu0 %849
      %851 = vrot.lane.b32.xlu0 %v811, 24
      %v852 = vpop.permute.xlu0 %851
      %853 = vrot.lane.b32.xlu0 %v814, 24
      %v854 = vpop.permute.xlu0 %853
      %vm855 = vsmask.f32 6400
      %v856 = vrot.slane %v475, 1
      %v857 = vrot.slane %v477, 2
      %v858 = vor.u32 %v856, %v857
      %v859 = vshrl.u32 %v453, 16
      %v861 = vrot.slane %v859, 1
      %v862 = vrot.slane %v482, 2
      %v863 = vor.u32 %v861, %v862
      %v864 = vsel %vm855, %v858, %v863
      %v865 = vrot.slane %v487, 1
      %v866 = vrot.slane %v489, 2
      %v867 = vor.u32 %v865, %v866
      %v868 = vshrl.u32 %v454, 16
      %v870 = vrot.slane %v868, 1
      %v871 = vrot.slane %v494, 2
      %v872 = vor.u32 %v870, %v871
      %v873 = vsel %vm855, %v867, %v872
      %v874 = vrot.slane %v499, 1
      %v875 = vrot.slane %v501, 2
      %v876 = vor.u32 %v874, %v875
      %v877 = vshrl.u32 %v455, 16
      %v879 = vrot.slane %v877, 1
      %v880 = vrot.slane %v506, 2
      %v881 = vor.u32 %v879, %v880
      %v882 = vsel %vm855, %v876, %v881
      %v883 = vrot.slane %v511, 1
      %v884 = vrot.slane %v513, 2
      %v885 = vor.u32 %v883, %v884
      %v886 = vshrl.u32 %v456, 16
      %v888 = vrot.slane %v886, 1
      %v889 = vrot.slane %v518, 2
      %v890 = vor.u32 %v888, %v889
      %v891 = vsel %vm855, %v885, %v890
      %v892 = vrot.slane %v523, 1
      %v893 = vrot.slane %v525, 2
      %v894 = vor.u32 %v892, %v893
      %v895 = vshrl.u32 %v457, 16
      %v897 = vrot.slane %v895, 1
      %v898 = vrot.slane %v530, 2
      %v899 = vor.u32 %v897, %v898
      %v900 = vsel %vm855, %v894, %v899
      %v901 = vrot.slane %v535, 1
      %v902 = vrot.slane %v537, 2
      %v903 = vor.u32 %v901, %v902
      %v904 = vshrl.u32 %v458, 16
      %v906 = vrot.slane %v904, 1
      %v907 = vrot.slane %v542, 2
      %v908 = vor.u32 %v906, %v907
      %v909 = vsel %vm855, %v903, %v908
      %v910 = vrot.slane %v547, 1
      %v911 = vrot.slane %v549, 2
      %v912 = vor.u32 %v910, %v911
      %v913 = vshrl.u32 %v459, 16
      %v915 = vrot.slane %v913, 1
      %v916 = vrot.slane %v554, 2
      %v917 = vor.u32 %v915, %v916
      %v918 = vsel %vm855, %v912, %v917
      %v919 = vrot.slane %v559, 1
      %v920 = vrot.slane %v561, 2
      %v921 = vor.u32 %v919, %v920
      %v922 = vshrl.u32 %v460, 16
      %v924 = vrot.slane %v922, 1
      %v925 = vrot.slane %v566, 2
      %v926 = vor.u32 %v924, %v925
      %v927 = vsel %vm855, %v921, %v926
      %v928 = vrot.slane %v571, 1
      %v929 = vrot.slane %v573, 2
      %v930 = vor.u32 %v928, %v929
      %v931 = vshrl.u32 %v461, 16
      %v933 = vrot.slane %v931, 1
      %v934 = vrot.slane %v578, 2
      %v935 = vor.u32 %v933, %v934
      %v936 = vsel %vm855, %v930, %v935
      %v937 = vrot.slane %v583, 1
      %v938 = vrot.slane %v585, 2
      %v939 = vor.u32 %v937, %v938
      %v940 = vshrl.u32 %v462, 16
      %v942 = vrot.slane %v940, 1
      %v943 = vrot.slane %v590, 2
      %v944 = vor.u32 %v942, %v943
      %v945 = vsel %vm855, %v939, %v944
      %v946 = vrot.slane %v595, 1
      %v947 = vrot.slane %v597, 2
      %v948 = vor.u32 %v946, %v947
      %v949 = vshrl.u32 %v463, 16
      %v951 = vrot.slane %v949, 1
      %v952 = vrot.slane %v602, 2
      %v953 = vor.u32 %v951, %v952
      %v954 = vsel %vm855, %v948, %v953
      %v955 = vrot.slane %v607, 1
      %v956 = vrot.slane %v609, 2
      %v957 = vor.u32 %v955, %v956
      %v958 = vshrl.u32 %v464, 16
      %v960 = vrot.slane %v958, 1
      %v961 = vrot.slane %v614, 2
      %v962 = vor.u32 %v960, %v961
      %v963 = vsel %vm855, %v957, %v962
      %v964 = vrot.slane %v619, 1
      %v965 = vrot.slane %v621, 2
      %v966 = vor.u32 %v964, %v965
      %v967 = vshrl.u32 %v465, 16
      %v969 = vrot.slane %v967, 1
      %v970 = vrot.slane %v626, 2
      %v971 = vor.u32 %v969, %v970
      %v972 = vsel %vm855, %v966, %v971
      %v973 = vrot.slane %v631, 1
      %v974 = vrot.slane %v633, 2
      %v975 = vor.u32 %v973, %v974
      %v976 = vshrl.u32 %v466, 16
      %v978 = vrot.slane %v976, 1
      %v979 = vrot.slane %v638, 2
      %v980 = vor.u32 %v978, %v979
      %v981 = vsel %vm855, %v975, %v980
      %v982 = vrot.slane %v643, 1
      %v983 = vrot.slane %v645, 2
      %v984 = vor.u32 %v982, %v983
      %v985 = vshrl.u32 %v467, 16
      %v987 = vrot.slane %v985, 1
      %v988 = vrot.slane %v650, 2
      %v989 = vor.u32 %v987, %v988
      %v990 = vsel %vm855, %v984, %v989
      %v991 = vrot.slane %v655, 1
      %v992 = vrot.slane %v657, 2
      %v993 = vor.u32 %v991, %v992
      %v994 = vshrl.u32 %v468, 16
      %v996 = vrot.slane %v994, 1
      %v997 = vrot.slane %v662, 2
      %v998 = vor.u32 %v996, %v997
      %v999 = vsel %vm855, %v993, %v998
      %v1000 = vrot.slane %v667, 1
      %v1001 = vrot.slane %v669, 2
      %v1002 = vor.u32 %v1000, %v1001
      %v1003 = vshrl.u32 %v469, 16
      %v1005 = vrot.slane %v1003, 1
      %v1006 = vrot.slane %v674, 2
      %v1007 = vor.u32 %v1005, %v1006
      %v1008 = vsel %vm855, %v1002, %v1007
      %v1009 = vrot.slane %v679, 1
      %v1010 = vrot.slane %v681, 2
      %v1011 = vor.u32 %v1009, %v1010
      %v1012 = vshrl.u32 %v470, 16
      %v1014 = vrot.slane %v1012, 1
      %v1015 = vrot.slane %v686, 2
      %v1016 = vor.u32 %v1014, %v1015
      %v1017 = vsel %vm855, %v1011, %v1016
      %v1018 = vrot.slane %v691, 1
      %v1019 = vrot.slane %v693, 2
      %v1020 = vor.u32 %v1018, %v1019
      %v1021 = vshrl.u32 %v471, 16
      %v1023 = vrot.slane %v1021, 1
      %v1024 = vrot.slane %v698, 2
      %v1025 = vor.u32 %v1023, %v1024
      %v1026 = vsel %vm855, %v1020, %v1025
      %v1027 = vrot.slane %v703, 1
      %v1028 = vrot.slane %v705, 2
      %v1029 = vor.u32 %v1027, %v1028
      %v1030 = vshrl.u32 %v472, 16
      %v1032 = vrot.slane %v1030, 1
      %v1033 = vrot.slane %v710, 2
      %v1034 = vor.u32 %v1032, %v1033
      %v1035 = vsel %vm855, %v1029, %v1034
      %1036 = vrot.lane.b32.xlu0 %v864, 36
      %v1037 = vpop.permute.xlu0 %1036
      %1038 = vrot.lane.b32.xlu0 %v873, 36
      %v1039 = vpop.permute.xlu0 %1038
      %1040 = vrot.lane.b32.xlu0 %v882, 36
      %v1041 = vpop.permute.xlu0 %1040
      %1042 = vrot.lane.b32.xlu0 %v891, 36
      %v1043 = vpop.permute.xlu0 %1042
      %1044 = vrot.lane.b32.xlu0 %v900, 36
      %v1045 = vpop.permute.xlu0 %1044
      %1046 = vrot.lane.b32.xlu0 %v909, 36
      %v1047 = vpop.permute.xlu0 %1046
      %1048 = vrot.lane.b32.xlu0 %v918, 36
      %v1049 = vpop.permute.xlu0 %1048
      %1050 = vrot.lane.b32.xlu0 %v927, 36
      %v1051 = vpop.permute.xlu0 %1050
      %1052 = vrot.lane.b32.xlu0 %v936, 36
      %v1053 = vpop.permute.xlu0 %1052
      %1054 = vrot.lane.b32.xlu0 %v945, 36
      %v1055 = vpop.permute.xlu0 %1054
      %1056 = vrot.lane.b32.xlu0 %v954, 36
      %v1057 = vpop.permute.xlu0 %1056
      %1058 = vrot.lane.b32.xlu0 %v963, 36
      %v1059 = vpop.permute.xlu0 %1058
      %1060 = vrot.lane.b32.xlu0 %v972, 36
      %v1061 = vpop.permute.xlu0 %1060
      %1062 = vrot.lane.b32.xlu0 %v981, 36
      %v1063 = vpop.permute.xlu0 %1062
      %1064 = vrot.lane.b32.xlu0 %v990, 36
      %v1065 = vpop.permute.xlu0 %1064
      %1066 = vrot.lane.b32.xlu0 %v999, 36
      %v1067 = vpop.permute.xlu0 %1066
      %1068 = vrot.lane.b32.xlu0 %v1008, 36
      %v1069 = vpop.permute.xlu0 %1068
      %1070 = vrot.lane.b32.xlu0 %v1017, 36
      %v1071 = vpop.permute.xlu0 %1070
      %1072 = vrot.lane.b32.xlu0 %v1026, 36
      %v1073 = vpop.permute.xlu0 %1072
      %1074 = vrot.lane.b32.xlu0 %v1035, 36
      %v1075 = vpop.permute.xlu0 %1074
      %vm1076 = vcmask 1045504
      %v1077 = vrot.slane %v393, 2
      %v1078 = vrot.slane %v453, 2
      %v1079 = vsel %vm1076, %v1077, %v1078
      %v1080 = vrot.slane %v394, 2
      %v1081 = vrot.slane %v454, 2
      %v1082 = vsel %vm1076, %v1080, %v1081
      %v1083 = vrot.slane %v395, 2
      %v1084 = vrot.slane %v455, 2
      %v1085 = vsel %vm1076, %v1083, %v1084
      %v1086 = vrot.slane %v396, 2
      %v1087 = vrot.slane %v456, 2
      %v1088 = vsel %vm1076, %v1086, %v1087
      %v1089 = vrot.slane %v397, 2
      %v1090 = vrot.slane %v457, 2
      %v1091 = vsel %vm1076, %v1089, %v1090
      %v1092 = vrot.slane %v398, 2
      %v1093 = vrot.slane %v458, 2
      %v1094 = vsel %vm1076, %v1092, %v1093
      %v1095 = vrot.slane %v399, 2
      %v1096 = vrot.slane %v459, 2
      %v1097 = vsel %vm1076, %v1095, %v1096
      %v1098 = vrot.slane %v400, 2
      %v1099 = vrot.slane %v460, 2
      %v1100 = vsel %vm1076, %v1098, %v1099
      %v1101 = vrot.slane %v401, 2
      %v1102 = vrot.slane %v461, 2
      %v1103 = vsel %vm1076, %v1101, %v1102
      %v1104 = vrot.slane %v402, 2
      %v1105 = vrot.slane %v462, 2
      %v1106 = vsel %vm1076, %v1104, %v1105
      %v1107 = vrot.slane %v403, 2
      %v1108 = vrot.slane %v463, 2
      %v1109 = vsel %vm1076, %v1107, %v1108
      %v1110 = vrot.slane %v404, 2
      %v1111 = vrot.slane %v464, 2
      %v1112 = vsel %vm1076, %v1110, %v1111
      %v1113 = vrot.slane %v405, 2
      %v1114 = vrot.slane %v465, 2
      %v1115 = vsel %vm1076, %v1113, %v1114
      %v1116 = vrot.slane %v406, 2
      %v1117 = vrot.slane %v466, 2
      %v1118 = vsel %vm1076, %v1116, %v1117
      %v1119 = vrot.slane %v407, 2
      %v1120 = vrot.slane %v467, 2
      %v1121 = vsel %vm1076, %v1119, %v1120
      %v1122 = vrot.slane %v408, 2
      %v1123 = vrot.slane %v468, 2
      %v1124 = vsel %vm1076, %v1122, %v1123
      %v1125 = vrot.slane %v409, 2
      %v1126 = vrot.slane %v469, 2
      %v1127 = vsel %vm1076, %v1125, %v1126
      %v1128 = vrot.slane %v410, 2
      %v1129 = vrot.slane %v470, 2
      %v1130 = vsel %vm1076, %v1128, %v1129
      %v1131 = vrot.slane %v411, 2
      %v1132 = vrot.slane %v471, 2
      %v1133 = vsel %vm1076, %v1131, %v1132
      %v1134 = vrot.slane %v412, 2
      %v1135 = vrot.slane %v472, 2
      %v1136 = vsel %vm1076, %v1134, %v1135
      %1137 = vrot.lane.b32.xlu0 %v1079, 48
      %v1138 = vpop.permute.xlu0 %1137
      %1139 = vrot.lane.b32.xlu0 %v1082, 48
      %v1140 = vpop.permute.xlu0 %1139
      %1141 = vrot.lane.b32.xlu0 %v1085, 48
      %v1142 = vpop.permute.xlu0 %1141
      %1143 = vrot.lane.b32.xlu0 %v1088, 48
      %v1144 = vpop.permute.xlu0 %1143
      %1145 = vrot.lane.b32.xlu0 %v1091, 48
      %v1146 = vpop.permute.xlu0 %1145
      %1147 = vrot.lane.b32.xlu0 %v1094, 48
      %v1148 = vpop.permute.xlu0 %1147
      %1149 = vrot.lane.b32.xlu0 %v1097, 48
      %v1150 = vpop.permute.xlu0 %1149
      %1151 = vrot.lane.b32.xlu0 %v1100, 48
      %v1152 = vpop.permute.xlu0 %1151
      %1153 = vrot.lane.b32.xlu0 %v1103, 48
      %v1154 = vpop.permute.xlu0 %1153
      %1155 = vrot.lane.b32.xlu0 %v1106, 48
      %v1156 = vpop.permute.xlu0 %1155
      %1157 = vrot.lane.b32.xlu0 %v1109, 48
      %v1158 = vpop.permute.xlu0 %1157
      %1159 = vrot.lane.b32.xlu0 %v1112, 48
      %v1160 = vpop.permute.xlu0 %1159
      %1161 = vrot.lane.b32.xlu0 %v1115, 48
      %v1162 = vpop.permute.xlu0 %1161
      %1163 = vrot.lane.b32.xlu0 %v1118, 48
      %v1164 = vpop.permute.xlu0 %1163
      %1165 = vrot.lane.b32.xlu0 %v1121, 48
      %v1166 = vpop.permute.xlu0 %1165
      %1167 = vrot.lane.b32.xlu0 %v1124, 48
      %v1168 = vpop.permute.xlu0 %1167
      %1169 = vrot.lane.b32.xlu0 %v1127, 48
      %v1170 = vpop.permute.xlu0 %1169
      %1171 = vrot.lane.b32.xlu0 %v1130, 48
      %v1172 = vpop.permute.xlu0 %1171
      %1173 = vrot.lane.b32.xlu0 %v1133, 48
      %v1174 = vpop.permute.xlu0 %1173
      %1175 = vrot.lane.b32.xlu0 %v1136, 48
      %v1176 = vpop.permute.xlu0 %1175
      %vm1177 = vcmask 97280
      %v1179 = vsel %vm1177, %v393, %v715
      %v1181 = vsel %vm1177, %v394, %v717
      %v1183 = vsel %vm1177, %v395, %v719
      %v1185 = vsel %vm1177, %v396, %v721
      %v1187 = vsel %vm1177, %v397, %v723
      %v1189 = vsel %vm1177, %v398, %v725
      %v1191 = vsel %vm1177, %v399, %v727
      %v1193 = vsel %vm1177, %v400, %v729
      %v1195 = vsel %vm1177, %v401, %v731
      %v1197 = vsel %vm1177, %v402, %v733
      %v1199 = vsel %vm1177, %v403, %v735
      %v1201 = vsel %vm1177, %v404, %v737
      %v1203 = vsel %vm1177, %v405, %v739
      %v1205 = vsel %vm1177, %v406, %v741
      %v1207 = vsel %vm1177, %v407, %v743
      %v1209 = vsel %vm1177, %v408, %v745
      %v1211 = vsel %vm1177, %v409, %v747
      %v1213 = vsel %vm1177, %v410, %v749
      %v1215 = vsel %vm1177, %v411, %v751
      %v1217 = vsel %vm1177, %v412, %v753
      %vm1218 = vcmask 195584
      %v1220 = vsel %vm1218, %v1179, %v816
      %v1222 = vsel %vm1218, %v1181, %v818
      %v1224 = vsel %vm1218, %v1183, %v820
      %v1226 = vsel %vm1218, %v1185, %v822
      %v1228 = vsel %vm1218, %v1187, %v824
      %v1230 = vsel %vm1218, %v1189, %v826
      %v1232 = vsel %vm1218, %v1191, %v828
      %v1234 = vsel %vm1218, %v1193, %v830
      %v1236 = vsel %vm1218, %v1195, %v832
      %v1238 = vsel %vm1218, %v1197, %v834
      %v1240 = vsel %vm1218, %v1199, %v836
      %v1242 = vsel %vm1218, %v1201, %v838
      %v1244 = vsel %vm1218, %v1203, %v840
      %v1246 = vsel %vm1218, %v1205, %v842
      %v1248 = vsel %vm1218, %v1207, %v844
      %v1250 = vsel %vm1218, %v1209, %v846
      %v1252 = vsel %vm1218, %v1211, %v848
      %v1254 = vsel %vm1218, %v1213, %v850
      %v1256 = vsel %vm1218, %v1215, %v852
      %v1258 = vsel %vm1218, %v1217, %v854
      %vm1259 = vcmask 293888
      %v1261 = vsel %vm1259, %v1220, %v1037
      %v1263 = vsel %vm1259, %v1222, %v1039
      %v1265 = vsel %vm1259, %v1224, %v1041
      %v1267 = vsel %vm1259, %v1226, %v1043
      %v1269 = vsel %vm1259, %v1228, %v1045
      %v1271 = vsel %vm1259, %v1230, %v1047
      %v1273 = vsel %vm1259, %v1232, %v1049
      %v1275 = vsel %vm1259, %v1234, %v1051
      %v1277 = vsel %vm1259, %v1236, %v1053
      %v1279 = vsel %vm1259, %v1238, %v1055
      %v1281 = vsel %vm1259, %v1240, %v1057
      %v1283 = vsel %vm1259, %v1242, %v1059
      %v1285 = vsel %vm1259, %v1244, %v1061
      %v1287 = vsel %vm1259, %v1246, %v1063
      %v1289 = vsel %vm1259, %v1248, %v1065
      %v1291 = vsel %vm1259, %v1250, %v1067
      %v1293 = vsel %vm1259, %v1252, %v1069
      %v1295 = vsel %vm1259, %v1254, %v1071
      %v1297 = vsel %vm1259, %v1256, %v1073
      %v1299 = vsel %vm1259, %v1258, %v1075
      %vm1300 = vcmask 392192
      %v1302 = vsel %vm1300, %v1261, %v1138
      %v1304 = vsel %vm1300, %v1263, %v1140
      %v1306 = vsel %vm1300, %v1265, %v1142
      %v1308 = vsel %vm1300, %v1267, %v1144
      %v1310 = vsel %vm1300, %v1269, %v1146
      %v1312 = vsel %vm1300, %v1271, %v1148
      %v1314 = vsel %vm1300, %v1273, %v1150
      %v1316 = vsel %vm1300, %v1275, %v1152
      %v1318 = vsel %vm1300, %v1277, %v1154
      %v1320 = vsel %vm1300, %v1279, %v1156
      %v1322 = vsel %vm1300, %v1281, %v1158
      %v1324 = vsel %vm1300, %v1283, %v1160
      %v1326 = vsel %vm1300, %v1285, %v1162
      %v1328 = vsel %vm1300, %v1287, %v1164
      %v1330 = vsel %vm1300, %v1289, %v1166
      %v1332 = vsel %vm1300, %v1291, %v1168
      %v1334 = vsel %vm1300, %v1293, %v1170
      %v1336 = vsel %vm1300, %v1295, %v1172
      %v1338 = vsel %vm1300, %v1297, %v1174
      %v1340 = vsel %vm1300, %v1299, %v1176
      %v1341 = vld [vmem:[%s1] sm:$0xf]
      %v1342 = vld [vmem:[%s1 + $0x4] sm:$0xf]
      %v1343 = vld [vmem:[%s1 + $0x8] sm:$0xf]
      %v1344 = vld [vmem:[%s1 + $0xc] sm:$0xf]
      %v1345 = vld [vmem:[%s1 + $0x10] sm:$0xf]
      %v1346 = vld [vmem:[%s1 + $0x14] sm:$0xf]
      %v1347 = vld [vmem:[%s1 + $0x18] sm:$0xf]
      %v1348 = vld [vmem:[%s1 + $0x1c] sm:$0x3]
      %v1357 = vunpack.c.l.b16 %v1341
      %v1358 = vunpack.c.l.b16 %v1342
      %v1359 = vunpack.c.l.b16 %v1343
      %v1360 = vunpack.c.l.b16 %v1344
      %v1361 = vunpack.c.l.b16 %v1345
      %v1362 = vunpack.c.l.b16 %v1346
      %v1363 = vunpack.c.l.b16 %v1347
      %v1364 = vunpack.c.l.b16 %v1348
      %v1365 = vpack.c.b16 %v1358, %v1357
      %v1366 = vpack.c.b16 %v1360, %v1359
      %v1367 = vpack.c.b16 %v1362, %v1361
      %v1368 = vpack.c.b16 %v1364, %v1363
      %vm1372 = vcmask 490496
      %v1373 = vsel %vm1372, %v1302, 0
      %v1375 = vsel %vm1372, %v1304, 0
      %v1377 = vsel %vm1372, %v1306, 0
      %v1379 = vsel %vm1372, %v1308, 0
      %v1381 = vsel %vm1372, %v1310, 0
      %v1383 = vsel %vm1372, %v1312, 0
      %v1385 = vsel %vm1372, %v1314, 0
      %v1387 = vsel %vm1372, %v1316, 0
      %v1389 = vsel %vm1372, %v1318, 0
      %v1391 = vsel %vm1372, %v1320, 0
      %v1393 = vsel %vm1372, %v1322, 0
      %v1395 = vsel %vm1372, %v1324, 0
      %v1397 = vsel %vm1372, %v1326, 0
      %v1399 = vsel %vm1372, %v1328, 0
      %v1401 = vsel %vm1372, %v1330, 0
      %v1403 = vsel %vm1372, %v1332, 0
      %vm1405 = vcmask 1045504
      %v1407 = vsel %vm1405, %v1368, 0
      %1409 = vmatprep.subr.bf16.mxu0 0
      %1410 = vmatpush1.bf16.msra.mxu0 %v1365
      %1411 = vmatprep.subr.bf16.mxu0 0
      %1412 = vmatpush1.bf16.msra.mxu0 %v1366
      %1413 = vmatprep.subr.bf16.mxu0 0
      %1414 = vmatpush1.bf16.msra.mxu0 %v1367
      %1415 = vmatprep.subr.bf16.mxu0 0
      %1416 = vmatpush1.bf16.msra.mxu0 %v1407
      %1417 = vmatprep.subr.bf16.mxu0 0
      %1418 = vmatpush1.bf16.msra.mxu0 0
      %1419 = vmatprep.subr.bf16.mxu0 0
      %1420 = vmatpush1.bf16.msra.mxu0 0
      %1421 = vmatprep.subr.bf16.mxu0 0
      %1422 = vmatpush1.bf16.msra.mxu0 0
      %1423 = vmatprep.subr.bf16.mxu0 0
      %1424 = vmatpush1.bf16.msra.mxu0 0
      %1425 = vmatprep.subr.bf16.mxu0 0
      %1426 = vmatpush1.bf16.msra.mxu0 0
      %1427 = vmatprep.subr.bf16.mxu0 0
      %1428 = vmatpush1.bf16.msra.mxu0 0
      %1429 = vmatprep.subr.bf16.mxu0 0
      %1430 = vmatpush1.bf16.msra.mxu0 0
      %1431 = vmatprep.subr.bf16.mxu0 0
      %1432 = vmatpush1.bf16.msra.mxu0 0
      %1433 = vmatprep.subr.bf16.mxu0 0
      %1434 = vmatpush1.bf16.msra.mxu0 0
      %1435 = vmatprep.subr.bf16.mxu0 0
      %1436 = vmatpush1.bf16.msra.mxu0 0
      %1437 = vmatprep.subr.bf16.mxu0 0
      %1438 = vmatpush1.bf16.msra.mxu0 0
      %1439 = vmatprep.subr.bf16.mxu0 0
      %1440 = vmatpush1.bf16.msra.mxu0 0
      %1441 = vmatprep.mubr.bf16.mxu0 0
      %1442 = vmatmul.mubr.bf16.gmra.mrb[0].mxu0 %v1373
      %v1443 = vpop.f32.mrb[0].mxu0
      %v1444 = vadd.f32 0.0, %v1443
      %v1445 = vpop.f32.mrb[0].mxu0
      %v1446 = vpop.f32.mrb[0].mxu0
      %v1447 = vadd.f32 0.0, %v1446
      %v1448 = vpop.f32.mrb[0].mxu0
      %1449 = vmatprep.mubr.bf16.mxu0 0
      %1450 = vmatmul.mubr.bf16.gmra.mrb[0].mxu0 %v1375
      %v1451 = vpop.f32.mrb[0].mxu0
      %v1452 = vadd.f32 0.0, %v1451
      %v1453 = vpop.f32.mrb[0].mxu0
      %v1454 = vpop.f32.mrb[0].mxu0
      %v1455 = vadd.f32 0.0, %v1454
      %v1456 = vpop.f32.mrb[0].mxu0
      %1457 = vmatprep.mubr.bf16.mxu0 0
      %1458 = vmatmul.mubr.bf16.gmra.mrb[0].mxu0 %v1377
      %v1459 = vpop.f32.mrb[0].mxu0
      %v1460 = vadd.f32 0.0, %v1459
      %v1461 = vpop.f32.mrb[0].mxu0
      %v1462 = vpop.f32.mrb[0].mxu0
      %v1463 = vadd.f32 0.0, %v1462
      %v1464 = vpop.f32.mrb[0].mxu0
      %1465 = vmatprep.mubr.bf16.mxu0 0
      %1466 = vmatmul.mubr.bf16.gmra.mrb[0].mxu0 %v1379
      %v1467 = vpop.f32.mrb[0].mxu0
      %v1468 = vadd.f32 0.0, %v1467
      %v1469 = vpop.f32.mrb[0].mxu0
      %v1470 = vpop.f32.mrb[0].mxu0
      %v1471 = vadd.f32 0.0, %v1470
      %v1472 = vpop.f32.mrb[0].mxu0
      %1473 = vmatprep.mubr.bf16.mxu0 0
      %1474 = vmatmul.mubr.bf16.gmra.mrb[0].mxu0 %v1381
      %v1475 = vpop.f32.mrb[0].mxu0
      %v1476 = vadd.f32 0.0, %v1475
      %v1477 = vpop.f32.mrb[0].mxu0
      %v1478 = vpop.f32.mrb[0].mxu0
      %v1479 = vadd.f32 0.0, %v1478
      %v1480 = vpop.f32.mrb[0].mxu0
      %1481 = vmatprep.mubr.bf16.mxu0 0
      %1482 = vmatmul.mubr.bf16.gmra.mrb[0].mxu0 %v1383
      %v1483 = vpop.f32.mrb[0].mxu0
      %v1484 = vadd.f32 0.0, %v1483
      %v1485 = vpop.f32.mrb[0].mxu0
      %v1486 = vpop.f32.mrb[0].mxu0
      %v1487 = vadd.f32 0.0, %v1486
      %v1488 = vpop.f32.mrb[0].mxu0
      %1489 = vmatprep.mubr.bf16.mxu0 0
      %1490 = vmatmul.mubr.bf16.gmra.mrb[0].mxu0 %v1385
      %v1491 = vpop.f32.mrb[0].mxu0
      %v1492 = vadd.f32 0.0, %v1491
      %v1493 = vpop.f32.mrb[0].mxu0
      %v1494 = vpop.f32.mrb[0].mxu0
      %v1495 = vadd.f32 0.0, %v1494
      %v1496 = vpop.f32.mrb[0].mxu0
      %1497 = vmatprep.mubr.bf16.mxu0 0
      %1498 = vmatmul.mubr.bf16.gmra.mrb[0].mxu0 %v1387
      %v1499 = vpop.f32.mrb[0].mxu0
      %v1500 = vadd.f32 0.0, %v1499
      %v1501 = vpop.f32.mrb[0].mxu0
      %v1502 = vpop.f32.mrb[0].mxu0
      %v1503 = vadd.f32 0.0, %v1502
      %v1504 = vpop.f32.mrb[0].mxu0
      %1505 = vmatprep.mubr.bf16.mxu0 0
      %1506 = vmatmul.mubr.bf16.gmra.mrb[0].mxu0 %v1389
      %v1507 = vpop.f32.mrb[0].mxu0
      %v1508 = vadd.f32 0.0, %v1507
      %v1509 = vpop.f32.mrb[0].mxu0
      %v1510 = vpop.f32.mrb[0].mxu0
      %v1511 = vadd.f32 0.0, %v1510
      %v1512 = vpop.f32.mrb[0].mxu0
      %1513 = vmatprep.mubr.bf16.mxu0 0
      %1514 = vmatmul.mubr.bf16.gmra.mrb[0].mxu0 %v1391
      %v1515 = vpop.f32.mrb[0].mxu0
      %v1516 = vadd.f32 0.0, %v1515
      %v1517 = vpop.f32.mrb[0].mxu0
      %v1518 = vpop.f32.mrb[0].mxu0
      %v1519 = vadd.f32 0.0, %v1518
      %v1520 = vpop.f32.mrb[0].mxu0
      %1521 = vmatprep.mubr.bf16.mxu0 0
      %1522 = vmatmul.mubr.bf16.gmra.mrb[0].mxu0 %v1393
      %v1523 = vpop.f32.mrb[0].mxu0
      %v1524 = vadd.f32 0.0, %v1523
      %v1525 = vpop.f32.mrb[0].mxu0
      %v1526 = vpop.f32.mrb[0].mxu0
      %v1527 = vadd.f32 0.0, %v1526
      %v1528 = vpop.f32.mrb[0].mxu0
      %1529 = vmatprep.mubr.bf16.mxu0 0
      %1530 = vmatmul.mubr.bf16.gmra.mrb[0].mxu0 %v1395
      %v1531 = vpop.f32.mrb[0].mxu0
      %v1532 = vadd.f32 0.0, %v1531
      %v1533 = vpop.f32.mrb[0].mxu0
      %v1534 = vpop.f32.mrb[0].mxu0
      %v1535 = vadd.f32 0.0, %v1534
      %v1536 = vpop.f32.mrb[0].mxu0
      %1537 = vmatprep.mubr.bf16.mxu0 0
      %1538 = vmatmul.mubr.bf16.gmra.mrb[0].mxu0 %v1397
      %v1539 = vpop.f32.mrb[0].mxu0
      %v1540 = vadd.f32 0.0, %v1539
      %v1541 = vpop.f32.mrb[0].mxu0
      %v1542 = vpop.f32.mrb[0].mxu0
      %v1543 = vadd.f32 0.0, %v1542
      %v1544 = vpop.f32.mrb[0].mxu0
      %1545 = vmatprep.mubr.bf16.mxu0 0
      %1546 = vmatmul.mubr.bf16.gmra.mrb[0].mxu0 %v1399
      %v1547 = vpop.f32.mrb[0].mxu0
      %v1548 = vadd.f32 0.0, %v1547
      %v1549 = vpop.f32.mrb[0].mxu0
      %v1550 = vpop.f32.mrb[0].mxu0
      %v1551 = vadd.f32 0.0, %v1550
      %v1552 = vpop.f32.mrb[0].mxu0
      %1553 = vmatprep.mubr.bf16.mxu0 0
      %1554 = vmatmul.mubr.bf16.gmra.mrb[0].mxu0 %v1401
      %v1555 = vpop.f32.mrb[0].mxu0
      %v1556 = vadd.f32 0.0, %v1555
      %v1557 = vpop.f32.mrb[0].mxu0
      %v1558 = vpop.f32.mrb[0].mxu0
      %v1559 = vadd.f32 0.0, %v1558
      %v1560 = vpop.f32.mrb[0].mxu0
      %1561 = vmatprep.mubr.bf16.mxu0 0
      %1562 = vmatmul.mubr.bf16.gmra.mrb[0].mxu0 %v1403
      %v1563 = vpop.f32.mrb[0].mxu0
      %v1564 = vadd.f32 0.0, %v1563
      %v1565 = vpop.f32.mrb[0].mxu0
      %v1566 = vpop.f32.mrb[0].mxu0
      %v1567 = vadd.f32 0.0, %v1566
      %v1568 = vpop.f32.mrb[0].mxu0
      %1569 = vdwg.mxu0
      %vm1570 = vcmask 64512
      %1571 = vst.msk [vmem:[#allocation2] sm:$0xff] %vm1570, %v1444
      %1572 = vst.msk [vmem:[#allocation2 + $0x8] sm:$0xff] %vm1570, %v1447
      %1573 = vst.msk [vmem:[#allocation2 + $0x10] sm:$0xff] %vm1570, %v1452
      %1574 = vst.msk [vmem:[#allocation2 + $0x18] sm:$0xff] %vm1570, %v1455
      %1575 = vst.msk [vmem:[#allocation2 + $0x20] sm:$0xff] %vm1570, %v1460
      %1576 = vst.msk [vmem:[#allocation2 + $0x28] sm:$0xff] %vm1570, %v1463
      %1577 = vst.msk [vmem:[#allocation2 + $0x30] sm:$0xff] %vm1570, %v1468
      %1578 = vst.msk [vmem:[#allocation2 + $0x38] sm:$0xff] %vm1570, %v1471
      %1579 = vst.msk [vmem:[#allocation2 + $0x40] sm:$0xff] %vm1570, %v1476
      %1580 = vst.msk [vmem:[#allocation2 + $0x48] sm:$0xff] %vm1570, %v1479
      %1581 = vst.msk [vmem:[#allocation2 + $0x50] sm:$0xff] %vm1570, %v1484
      %1582 = vst.msk [vmem:[#allocation2 + $0x58] sm:$0xff] %vm1570, %v1487
      %1583 = vst.msk [vmem:[#allocation2 + $0x60] sm:$0xff] %vm1570, %v1492
      %1584 = vst.msk [vmem:[#allocation2 + $0x68] sm:$0xff] %vm1570, %v1495
      %1585 = vst.msk [vmem:[#allocation2 + $0x70] sm:$0xff] %vm1570, %v1500
      %1586 = vst.msk [vmem:[#allocation2 + $0x78] sm:$0xff] %vm1570, %v1503
      %1587 = vst.msk [vmem:[#allocation2 + $0x80] sm:$0xff] %vm1570, %v1508
      %1588 = vst.msk [vmem:[#allocation2 + $0x88] sm:$0xff] %vm1570, %v1511
      %1589 = vst.msk [vmem:[#allocation2 + $0x90] sm:$0xff] %vm1570, %v1516
      %1590 = vst.msk [vmem:[#allocation2 + $0x98] sm:$0xff] %vm1570, %v1519
      %1591 = vst.msk [vmem:[#allocation2 + $0xa0] sm:$0xff] %vm1570, %v1524
      %1592 = vst.msk [vmem:[#allocation2 + $0xa8] sm:$0xff] %vm1570, %v1527
      %1593 = vst.msk [vmem:[#allocation2 + $0xb0] sm:$0xff] %vm1570, %v1532
      %1594 = vst.msk [vmem:[#allocation2 + $0xb8] sm:$0xff] %vm1570, %v1535
      %1595 = vst.msk [vmem:[#allocation2 + $0xc0] sm:$0xff] %vm1570, %v1540
      %1596 = vst.msk [vmem:[#allocation2 + $0xc8] sm:$0xff] %vm1570, %v1543
      %1597 = vst.msk [vmem:[#allocation2 + $0xd0] sm:$0xff] %vm1570, %v1548
      %1598 = vst.msk [vmem:[#allocation2 + $0xd8] sm:$0xff] %vm1570, %v1551
      %1599 = vst.msk [vmem:[#allocation2 + $0xe0] sm:$0xff] %vm1570, %v1556
      %1600 = vst.msk [vmem:[#allocation2 + $0xe8] sm:$0xff] %vm1570, %v1559
      %1601 = vst.msk [vmem:[#allocation2 + $0xf0] sm:$0xff] %vm1570, %v1564
      %1602 = vst.msk [vmem:[#allocation2 + $0xf8] sm:$0xff] %vm1570, %v1567
      %s1603 = scalar_lea.vmem %s1, 32
      %v1604 = vld [vmem:[%s1603] sm:$0xf]
      %v1605 = vld [vmem:[%s1603 + $0x4] sm:$0xf]
      %v1606 = vld [vmem:[%s1603 + $0x8] sm:$0xf]
      %v1607 = vld [vmem:[%s1603 + $0xc] sm:$0xf]
      %v1608 = vld [vmem:[%s1603 + $0x10] sm:$0xf]
      %v1609 = vld [vmem:[%s1603 + $0x14] sm:$0xf]
      %v1610 = vld [vmem:[%s1603 + $0x18] sm:$0xf]
      %v1611 = vld [vmem:[%s1603 + $0x1c] sm:$0x3]
      %v1620 = vunpack.c.l.b16 %v1604
      %v1621 = vunpack.c.l.b16 %v1605
      %v1622 = vunpack.c.l.b16 %v1606
      %v1623 = vunpack.c.l.b16 %v1607
      %v1624 = vunpack.c.l.b16 %v1608
      %v1625 = vunpack.c.l.b16 %v1609
      %v1626 = vunpack.c.l.b16 %v1610
      %v1627 = vunpack.c.l.b16 %v1611
      %v1628 = vpack.c.b16 %v1621, %v1620
      %v1629 = vpack.c.b16 %v1623, %v1622
      %v1630 = vpack.c.b16 %v1625, %v1624
      %v1631 = vpack.c.b16 %v1627, %v1626
      %v1635 = vsel %vm1372, %v1334, 0
      %v1638 = vsel %vm1405, %v1631, 0
      %1640 = vmatprep.subr.bf16.mxu0 0
      %1641 = vmatpush1.bf16.msra.mxu0 %v1628
      %1642 = vmatprep.subr.bf16.mxu0 0
      %1643 = vmatpush1.bf16.msra.mxu0 %v1629
      %1644 = vmatprep.subr.bf16.mxu0 0
      %1645 = vmatpush1.bf16.msra.mxu0 %v1630
      %1646 = vmatprep.subr.bf16.mxu0 0
      %1647 = vmatpush1.bf16.msra.mxu0 %v1638
      %1648 = vmatprep.subr.bf16.mxu0 0
      %1649 = vmatpush1.bf16.msra.mxu0 0
      %1650 = vmatprep.subr.bf16.mxu0 0
      %1651 = vmatpush1.bf16.msra.mxu0 0
      %1652 = vmatprep.subr.bf16.mxu0 0
      %1653 = vmatpush1.bf16.msra.mxu0 0
      %1654 = vmatprep.subr.bf16.mxu0 0
      %1655 = vmatpush1.bf16.msra.mxu0 0
      %1656 = vmatprep.subr.bf16.mxu0 0
      %1657 = vmatpush1.bf16.msra.mxu0 0
      %1658 = vmatprep.subr.bf16.mxu0 0
      %1659 = vmatpush1.bf16.msra.mxu0 0
      %1660 = vmatprep.subr.bf16.mxu0 0
      %1661 = vmatpush1.bf16.msra.mxu0 0
      %1662 = vmatprep.subr.bf16.mxu0 0
      %1663 = vmatpush1.bf16.msra.mxu0 0
      %1664 = vmatprep.subr.bf16.mxu0 0
      %1665 = vmatpush1.bf16.msra.mxu0 0
      %1666 = vmatprep.subr.bf16.mxu0 0
      %1667 = vmatpush1.bf16.msra.mxu0 0
      %1668 = vmatprep.subr.bf16.mxu0 0
      %1669 = vmatpush1.bf16.msra.mxu0 0
      %1670 = vmatprep.subr.bf16.mxu0 0
      %1671 = vmatpush1.bf16.msra.mxu0 0
      %1672 = vmatprep.mubr.bf16.mxu0 0
      %1673 = vmatmul.mubr.bf16.gmra.mrb[0].mxu0 %v1375
      %v1674 = vpop.f32.mrb[0].mxu0
      %v1675 = vadd.f32 0.0, %v1674
      %v1676 = vpop.f32.mrb[0].mxu0
      %v1677 = vpop.f32.mrb[0].mxu0
      %v1678 = vadd.f32 0.0, %v1677
      %v1679 = vpop.f32.mrb[0].mxu0
      %1680 = vmatprep.mubr.bf16.mxu0 0
      %1681 = vmatmul.mubr.bf16.gmra.mrb[0].mxu0 %v1377
      %v1682 = vpop.f32.mrb[0].mxu0
      %v1683 = vadd.f32 0.0, %v1682
      %v1684 = vpop.f32.mrb[0].mxu0
      %v1685 = vpop.f32.mrb[0].mxu0
      %v1686 = vadd.f32 0.0, %v1685
      %v1687 = vpop.f32.mrb[0].mxu0
      %1688 = vmatprep.mubr.bf16.mxu0 0
      %1689 = vmatmul.mubr.bf16.gmra.mrb[0].mxu0 %v1379
      %v1690 = vpop.f32.mrb[0].mxu0
      %v1691 = vadd.f32 0.0, %v1690
      %v1692 = vpop.f32.mrb[0].mxu0
      %v1693 = vpop.f32.mrb[0].mxu0
      %v1694 = vadd.f32 0.0, %v1693
      %v1695 = vpop.f32.mrb[0].mxu0
      %1696 = vmatprep.mubr.bf16.mxu0 0
      %1697 = vmatmul.mubr.bf16.gmra.mrb[0].mxu0 %v1381
      %v1698 = vpop.f32.mrb[0].mxu0
      %v1699 = vadd.f32 0.0, %v1698
      %v1700 = vpop.f32.mrb[0].mxu0
      %v1701 = vpop.f32.mrb[0].mxu0
      %v1702 = vadd.f32 0.0, %v1701
      %v1703 = vpop.f32.mrb[0].mxu0
      %1704 = vmatprep.mubr.bf16.mxu0 0
      %1705 = vmatmul.mubr.bf16.gmra.mrb[0].mxu0 %v1383
      %v1706 = vpop.f32.mrb[0].mxu0
      %v1707 = vadd.f32 0.0, %v1706
      %v1708 = vpop.f32.mrb[0].mxu0
      %v1709 = vpop.f32.mrb[0].mxu0
      %v1710 = vadd.f32 0.0, %v1709
      %v1711 = vpop.f32.mrb[0].mxu0
      %1712 = vmatprep.mubr.bf16.mxu0 0
      %1713 = vmatmul.mubr.bf16.gmra.mrb[0].mxu0 %v1385
      %v1714 = vpop.f32.mrb[0].mxu0
      %v1715 = vadd.f32 0.0, %v1714
      %v1716 = vpop.f32.mrb[0].mxu0
      %v1717 = vpop.f32.mrb[0].mxu0
      %v1718 = vadd.f32 0.0, %v1717
      %v1719 = vpop.f32.mrb[0].mxu0
      %1720 = vmatprep.mubr.bf16.mxu0 0
      %1721 = vmatmul.mubr.bf16.gmra.mrb[0].mxu0 %v1387
      %v1722 = vpop.f32.mrb[0].mxu0
      %v1723 = vadd.f32 0.0, %v1722
      %v1724 = vpop.f32.mrb[0].mxu0
      %v1725 = vpop.f32.mrb[0].mxu0
      %v1726 = vadd.f32 0.0, %v1725
      %v1727 = vpop.f32.mrb[0].mxu0
      %1728 = vmatprep.mubr.bf16.mxu0 0
      %1729 = vmatmul.mubr.bf16.gmra.mrb[0].mxu0 %v1389
      %v1730 = vpop.f32.mrb[0].mxu0
      %v1731 = vadd.f32 0.0, %v1730
      %v1732 = vpop.f32.mrb[0].mxu0
      %v1733 = vpop.f32.mrb[0].mxu0
      %v1734 = vadd.f32 0.0, %v1733
      %v1735 = vpop.f32.mrb[0].mxu0
      %1736 = vmatprep.mubr.bf16.mxu0 0
      %1737 = vmatmul.mubr.bf16.gmra.mrb[0].mxu0 %v1391
      %v1738 = vpop.f32.mrb[0].mxu0
      %v1739 = vadd.f32 0.0, %v1738
      %v1740 = vpop.f32.mrb[0].mxu0
      %v1741 = vpop.f32.mrb[0].mxu0
      %v1742 = vadd.f32 0.0, %v1741
      %v1743 = vpop.f32.mrb[0].mxu0
      %1744 = vmatprep.mubr.bf16.mxu0 0
      %1745 = vmatmul.mubr.bf16.gmra.mrb[0].mxu0 %v1393
      %v1746 = vpop.f32.mrb[0].mxu0
      %v1747 = vadd.f32 0.0, %v1746
      %v1748 = vpop.f32.mrb[0].mxu0
      %v1749 = vpop.f32.mrb[0].mxu0
      %v1750 = vadd.f32 0.0, %v1749
      %v1751 = vpop.f32.mrb[0].mxu0
      %1752 = vmatprep.mubr.bf16.mxu0 0
      %1753 = vmatmul.mubr.bf16.gmra.mrb[0].mxu0 %v1395
      %v1754 = vpop.f32.mrb[0].mxu0
      %v1755 = vadd.f32 0.0, %v1754
      %v1756 = vpop.f32.mrb[0].mxu0
      %v1757 = vpop.f32.mrb[0].mxu0
      %v1758 = vadd.f32 0.0, %v1757
      %v1759 = vpop.f32.mrb[0].mxu0
      %1760 = vmatprep.mubr.bf16.mxu0 0
      %1761 = vmatmul.mubr.bf16.gmra.mrb[0].mxu0 %v1397
      %v1762 = vpop.f32.mrb[0].mxu0
      %v1763 = vadd.f32 0.0, %v1762
      %v1764 = vpop.f32.mrb[0].mxu0
      %v1765 = vpop.f32.mrb[0].mxu0
      %v1766 = vadd.f32 0.0, %v1765
      %v1767 = vpop.f32.mrb[0].mxu0
      %1768 = vmatprep.mubr.bf16.mxu0 0
      %1769 = vmatmul.mubr.bf16.gmra.mrb[0].mxu0 %v1399
      %v1770 = vpop.f32.mrb[0].mxu0
      %v1771 = vadd.f32 0.0, %v1770
      %v1772 = vpop.f32.mrb[0].mxu0
      %v1773 = vpop.f32.mrb[0].mxu0
      %v1774 = vadd.f32 0.0, %v1773
      %v1775 = vpop.f32.mrb[0].mxu0
      %1776 = vmatprep.mubr.bf16.mxu0 0
      %1777 = vmatmul.mubr.bf16.gmra.mrb[0].mxu0 %v1401
      %v1778 = vpop.f32.mrb[0].mxu0
      %v1779 = vadd.f32 0.0, %v1778
      %v1780 = vpop.f32.mrb[0].mxu0
      %v1781 = vpop.f32.mrb[0].mxu0
      %v1782 = vadd.f32 0.0, %v1781
      %v1783 = vpop.f32.mrb[0].mxu0
      %1784 = vmatprep.mubr.bf16.mxu0 0
      %1785 = vmatmul.mubr.bf16.gmra.mrb[0].mxu0 %v1403
      %v1786 = vpop.f32.mrb[0].mxu0
      %v1787 = vadd.f32 0.0, %v1786
      %v1788 = vpop.f32.mrb[0].mxu0
      %v1789 = vpop.f32.mrb[0].mxu0
      %v1790 = vadd.f32 0.0, %v1789
      %v1791 = vpop.f32.mrb[0].mxu0
      %1792 = vmatprep.mubr.bf16.mxu0 0
      %1793 = vmatmul.mubr.bf16.gmra.mrb[0].mxu0 %v1635
      %v1794 = vpop.f32.mrb[0].mxu0
      %v1795 = vadd.f32 0.0, %v1794
      %v1796 = vpop.f32.mrb[0].mxu0
      %v1797 = vpop.f32.mrb[0].mxu0
      %v1798 = vadd.f32 0.0, %v1797
      %v1799 = vpop.f32.mrb[0].mxu0
      %1800 = vdwg.mxu0
      %v1801 = vld [vmem:[#allocation2] sm:$0xff]
      %v1802 = vld [vmem:[#allocation2 + $0x8] sm:$0xff]
      %v1803 = vld [vmem:[#allocation2 + $0x10] sm:$0xff]
      %v1804 = vld [vmem:[#allocation2 + $0x18] sm:$0xff]
      %v1805 = vld [vmem:[#allocation2 + $0x20] sm:$0xff]
      %v1806 = vld [vmem:[#allocation2 + $0x28] sm:$0xff]
      %v1807 = vld [vmem:[#allocation2 + $0x30] sm:$0xff]
      %v1808 = vld [vmem:[#allocation2 + $0x38] sm:$0xff]
      %v1809 = vld [vmem:[#allocation2 + $0x40] sm:$0xff]
      %v1810 = vld [vmem:[#allocation2 + $0x48] sm:$0xff]
      %v1811 = vld [vmem:[#allocation2 + $0x50] sm:$0xff]
      %v1812 = vld [vmem:[#allocation2 + $0x58] sm:$0xff]
      %v1813 = vld [vmem:[#allocation2 + $0x60] sm:$0xff]
      %v1814 = vld [vmem:[#allocation2 + $0x68] sm:$0xff]
      %v1815 = vld [vmem:[#allocation2 + $0x70] sm:$0xff]
      %v1816 = vld [vmem:[#allocation2 + $0x78] sm:$0xff]
      %v1817 = vld [vmem:[#allocation2 + $0x80] sm:$0xff]
      %v1818 = vld [vmem:[#allocation2 + $0x88] sm:$0xff]
      %v1819 = vld [vmem:[#allocation2 + $0x90] sm:$0xff]
      %v1820 = vld [vmem:[#allocation2 + $0x98] sm:$0xff]
      %v1821 = vld [vmem:[#allocation2 + $0xa0] sm:$0xff]
      %v1822 = vld [vmem:[#allocation2 + $0xa8] sm:$0xff]
      %v1823 = vld [vmem:[#allocation2 + $0xb0] sm:$0xff]
      %v1824 = vld [vmem:[#allocation2 + $0xb8] sm:$0xff]
      %v1825 = vld [vmem:[#allocation2 + $0xc0] sm:$0xff]
      %v1826 = vld [vmem:[#allocation2 + $0xc8] sm:$0xff]
      %v1827 = vld [vmem:[#allocation2 + $0xd0] sm:$0xff]
      %v1828 = vld [vmem:[#allocation2 + $0xd8] sm:$0xff]
      %v1829 = vld [vmem:[#allocation2 + $0xe0] sm:$0xff]
      %v1830 = vld [vmem:[#allocation2 + $0xe8] sm:$0xff]
      %v1831 = vld [vmem:[#allocation2 + $0xf0] sm:$0xff]
      %v1832 = vld [vmem:[#allocation2 + $0xf8] sm:$0xff]
      %v1833 = vadd.f32 %v1801, %v1675
      %v1834 = vadd.f32 %v1802, %v1678
      %v1835 = vadd.f32 %v1803, %v1683
      %v1836 = vadd.f32 %v1804, %v1686
      %v1837 = vadd.f32 %v1805, %v1691
      %v1838 = vadd.f32 %v1806, %v1694
      %v1839 = vadd.f32 %v1807, %v1699
      %v1840 = vadd.f32 %v1808, %v1702
      %v1841 = vadd.f32 %v1809, %v1707
      %v1842 = vadd.f32 %v1810, %v1710
      %v1843 = vadd.f32 %v1811, %v1715
      %v1844 = vadd.f32 %v1812, %v1718
      %v1845 = vadd.f32 %v1813, %v1723
      %v1846 = vadd.f32 %v1814, %v1726
      %v1847 = vadd.f32 %v1815, %v1731
      %v1848 = vadd.f32 %v1816, %v1734
      %v1849 = vadd.f32 %v1817, %v1739
      %v1850 = vadd.f32 %v1818, %v1742
      %v1851 = vadd.f32 %v1819, %v1747
      %v1852 = vadd.f32 %v1820, %v1750
      %v1853 = vadd.f32 %v1821, %v1755
      %v1854 = vadd.f32 %v1822, %v1758
      %v1855 = vadd.f32 %v1823, %v1763
      %v1856 = vadd.f32 %v1824, %v1766
      %v1857 = vadd.f32 %v1825, %v1771
      %v1858 = vadd.f32 %v1826, %v1774
      %v1859 = vadd.f32 %v1827, %v1779
      %v1860 = vadd.f32 %v1828, %v1782
      %v1861 = vadd.f32 %v1829, %v1787
      %v1862 = vadd.f32 %v1830, %v1790
      %v1863 = vadd.f32 %v1831, %v1795
      %v1864 = vadd.f32 %v1832, %v1798
      %1865 = vst.msk [vmem:[#allocation2] sm:$0xff] %vm1570, %v1833
      %1866 = vst.msk [vmem:[#allocation2 + $0x8] sm:$0xff] %vm1570, %v1834
      %1867 = vst.msk [vmem:[#allocation2 + $0x10] sm:$0xff] %vm1570, %v1835
      %1868 = vst.msk [vmem:[#allocation2 + $0x18] sm:$0xff] %vm1570, %v1836
      %1869 = vst.msk [vmem:[#allocation2 + $0x20] sm:$0xff] %vm1570, %v1837
      %1870 = vst.msk [vmem:[#allocation2 + $0x28] sm:$0xff] %vm1570, %v1838
      %1871 = vst.msk [vmem:[#allocation2 + $0x30] sm:$0xff] %vm1570, %v1839
      %1872 = vst.msk [vmem:[#allocation2 + $0x38] sm:$0xff] %vm1570, %v1840
      %1873 = vst.msk [vmem:[#allocation2 + $0x40] sm:$0xff] %vm1570, %v1841
      %1874 = vst.msk [vmem:[#allocation2 + $0x48] sm:$0xff] %vm1570, %v1842
      %1875 = vst.msk [vmem:[#allocation2 + $0x50] sm:$0xff] %vm1570, %v1843
      %1876 = vst.msk [vmem:[#allocation2 + $0x58] sm:$0xff] %vm1570, %v1844
      %1877 = vst.msk [vmem:[#allocation2 + $0x60] sm:$0xff] %vm1570, %v1845
      %1878 = vst.msk [vmem:[#allocation2 + $0x68] sm:$0xff] %vm1570, %v1846
      %1879 = vst.msk [vmem:[#allocation2 + $0x70] sm:$0xff] %vm1570, %v1847
      %1880 = vst.msk [vmem:[#allocation2 + $0x78] sm:$0xff] %vm1570, %v1848
      %1881 = vst.msk [vmem:[#allocation2 + $0x80] sm:$0xff] %vm1570, %v1849
      %1882 = vst.msk [vmem:[#allocation2 + $0x88] sm:$0xff] %vm1570, %v1850
      %1883 = vst.msk [vmem:[#allocation2 + $0x90] sm:$0xff] %vm1570, %v1851
      %1884 = vst.msk [vmem:[#allocation2 + $0x98] sm:$0xff] %vm1570, %v1852
      %1885 = vst.msk [vmem:[#allocation2 + $0xa0] sm:$0xff] %vm1570, %v1853
      %1886 = vst.msk [vmem:[#allocation2 + $0xa8] sm:$0xff] %vm1570, %v1854
      %1887 = vst.msk [vmem:[#allocation2 + $0xb0] sm:$0xff] %vm1570, %v1855
      %1888 = vst.msk [vmem:[#allocation2 + $0xb8] sm:$0xff] %vm1570, %v1856
      %1889 = vst.msk [vmem:[#allocation2 + $0xc0] sm:$0xff] %vm1570, %v1857
      %1890 = vst.msk [vmem:[#allocation2 + $0xc8] sm:$0xff] %vm1570, %v1858
      %1891 = vst.msk [vmem:[#allocation2 + $0xd0] sm:$0xff] %vm1570, %v1859
      %1892 = vst.msk [vmem:[#allocation2 + $0xd8] sm:$0xff] %vm1570, %v1860
      %1893 = vst.msk [vmem:[#allocation2 + $0xe0] sm:$0xff] %vm1570, %v1861
      %1894 = vst.msk [vmem:[#allocation2 + $0xe8] sm:$0xff] %vm1570, %v1862
      %1895 = vst.msk [vmem:[#allocation2 + $0xf0] sm:$0xff] %vm1570, %v1863
      %1896 = vst.msk [vmem:[#allocation2 + $0xf8] sm:$0xff] %vm1570, %v1864
      %s1897 = scalar_lea.vmem %s1, 64
      %v1898 = vld [vmem:[%s1897] sm:$0xf]
      %v1899 = vld [vmem:[%s1897 + $0x4] sm:$0xf]
      %v1900 = vld [vmem:[%s1897 + $0x8] sm:$0xf]
      %v1901 = vld [vmem:[%s1897 + $0xc] sm:$0xf]
      %v1902 = vld [vmem:[%s1897 + $0x10] sm:$0xf]
      %v1903 = vld [vmem:[%s1897 + $0x14] sm:$0xf]
      %v1904 = vld [vmem:[%s1897 + $0x18] sm:$0xf]
      %v1905 = vld [vmem:[%s1897 + $0x1c] sm:$0x3]
      %v1914 = vunpack.c.l.b16 %v1898
      %v1915 = vunpack.c.l.b16 %v1899
      %v1916 = vunpack.c.l.b16 %v1900
      %v1917 = vunpack.c.l.b16 %v1901
      %v1918 = vunpack.c.l.b16 %v1902
      %v1919 = vunpack.c.l.b16 %v1903
      %v1920 = vunpack.c.l.b16 %v1904
      %v1921 = vunpack.c.l.b16 %v1905
      %v1922 = vpack.c.b16 %v1915, %v1914
      %v1923 = vpack.c.b16 %v1917, %v1916
      %v1924 = vpack.c.b16 %v1919, %v1918
      %v1925 = vpack.c.b16 %v1921, %v1920
      %v1929 = vsel %vm1372, %v1336, 0
      %v1932 = vsel %vm1405, %v1925, 0
      %1934 = vmatprep.subr.bf16.mxu0 0
      %1935 = vmatpush1.bf16.msra.mxu0 %v1922
      %1936 = vmatprep.subr.bf16.mxu0 0
      %1937 = vmatpush1.bf16.msra.mxu0 %v1923
      %1938 = vmatprep.subr.bf16.mxu0 0
      %1939 = vmatpush1.bf16.msra.mxu0 %v1924
      %1940 = vmatprep.subr.bf16.mxu0 0
      %1941 = vmatpush1.bf16.msra.mxu0 %v1932
      %1942 = vmatprep.subr.bf16.mxu0 0
      %1943 = vmatpush1.bf16.msra.mxu0 0
      %1944 = vmatprep.subr.bf16.mxu0 0
      %1945 = vmatpush1.bf16.msra.mxu0 0
      %1946 = vmatprep.subr.bf16.mxu0 0
      %1947 = vmatpush1.bf16.msra.mxu0 0
      %1948 = vmatprep.subr.bf16.mxu0 0
      %1949 = vmatpush1.bf16.msra.mxu0 0
      %1950 = vmatprep.subr.bf16.mxu0 0
      %1951 = vmatpush1.bf16.msra.mxu0 0
      %1952 = vmatprep.subr.bf16.mxu0 0
      %1953 = vmatpush1.bf16.msra.mxu0 0
      %1954 = vmatprep.subr.bf16.mxu0 0
      %1955 = vmatpush1.bf16.msra.mxu0 0
      %1956 = vmatprep.subr.bf16.mxu0 0
      %1957 = vmatpush1.bf16.msra.mxu0 0
      %1958 = vmatprep.subr.bf16.mxu0 0
      %1959 = vmatpush1.bf16.msra.mxu0 0
      %1960 = vmatprep.subr.bf16.mxu0 0
      %1961 = vmatpush1.bf16.msra.mxu0 0
      %1962 = vmatprep.subr.bf16.mxu0 0
      %1963 = vmatpush1.bf16.msra.mxu0 0
      %1964 = vmatprep.subr.bf16.mxu0 0
      %1965 = vmatpush1.bf16.msra.mxu0 0
      %1966 = vmatprep.mubr.bf16.mxu0 0
      %1967 = vmatmul.mubr.bf16.gmra.mrb[0].mxu0 %v1377
      %v1968 = vpop.f32.mrb[0].mxu0
      %v1969 = vadd.f32 0.0, %v1968
      %v1970 = vpop.f32.mrb[0].mxu0
      %v1971 = vpop.f32.mrb[0].mxu0
      %v1972 = vadd.f32 0.0, %v1971
      %v1973 = vpop.f32.mrb[0].mxu0
      %1974 = vmatprep.mubr.bf16.mxu0 0
      %1975 = vmatmul.mubr.bf16.gmra.mrb[0].mxu0 %v1379
      %v1976 = vpop.f32.mrb[0].mxu0
      %v1977 = vadd.f32 0.0, %v1976
      %v1978 = vpop.f32.mrb[0].mxu0
      %v1979 = vpop.f32.mrb[0].mxu0
      %v1980 = vadd.f32 0.0, %v1979
      %v1981 = vpop.f32.mrb[0].mxu0
      %1982 = vmatprep.mubr.bf16.mxu0 0
      %1983 = vmatmul.mubr.bf16.gmra.mrb[0].mxu0 %v1381
      %v1984 = vpop.f32.mrb[0].mxu0
      %v1985 = vadd.f32 0.0, %v1984
      %v1986 = vpop.f32.mrb[0].mxu0
      %v1987 = vpop.f32.mrb[0].mxu0
      %v1988 = vadd.f32 0.0, %v1987
      %v1989 = vpop.f32.mrb[0].mxu0
      %1990 = vmatprep.mubr.bf16.mxu0 0
      %1991 = vmatmul.mubr.bf16.gmra.mrb[0].mxu0 %v1383
      %v1992 = vpop.f32.mrb[0].mxu0
      %v1993 = vadd.f32 0.0, %v1992
      %v1994 = vpop.f32.mrb[0].mxu0
      %v1995 = vpop.f32.mrb[0].mxu0
      %v1996 = vadd.f32 0.0, %v1995
      %v1997 = vpop.f32.mrb[0].mxu0
      %1998 = vmatprep.mubr.bf16.mxu0 0
      %1999 = vmatmul.mubr.bf16.gmra.mrb[0].mxu0 %v1385
      %v2000 = vpop.f32.mrb[0].mxu0
      %v2001 = vadd.f32 0.0, %v2000
      %v2002 = vpop.f32.mrb[0].mxu0
      %v2003 = vpop.f32.mrb[0].mxu0
      %v2004 = vadd.f32 0.0, %v2003
      %v2005 = vpop.f32.mrb[0].mxu0
      %2006 = vmatprep.mubr.bf16.mxu0 0
      %2007 = vmatmul.mubr.bf16.gmra.mrb[0].mxu0 %v1387
      %v2008 = vpop.f32.mrb[0].mxu0
      %v2009 = vadd.f32 0.0, %v2008
      %v2010 = vpop.f32.mrb[0].mxu0
      %v2011 = vpop.f32.mrb[0].mxu0
      %v2012 = vadd.f32 0.0, %v2011
      %v2013 = vpop.f32.mrb[0].mxu0
      %2014 = vmatprep.mubr.bf16.mxu0 0
      %2015 = vmatmul.mubr.bf16.gmra.mrb[0].mxu0 %v1389
      %v2016 = vpop.f32.mrb[0].mxu0
      %v2017 = vadd.f32 0.0, %v2016
      %v2018 = vpop.f32.mrb[0].mxu0
      %v2019 = vpop.f32.mrb[0].mxu0
      %v2020 = vadd.f32 0.0, %v2019
      %v2021 = vpop.f32.mrb[0].mxu0
      %2022 = vmatprep.mubr.bf16.mxu0 0
      %2023 = vmatmul.mubr.bf16.gmra.mrb[0].mxu0 %v1391
      %v2024 = vpop.f32.mrb[0].mxu0
      %v2025 = vadd.f32 0.0, %v2024
      %v2026 = vpop.f32.mrb[0].mxu0
      %v2027 = vpop.f32.mrb[0].mxu0
      %v2028 = vadd.f32 0.0, %v2027
      %v2029 = vpop.f32.mrb[0].mxu0
      %2030 = vmatprep.mubr.bf16.mxu0 0
      %2031 = vmatmul.mubr.bf16.gmra.mrb[0].mxu0 %v1393
      %v2032 = vpop.f32.mrb[0].mxu0
      %v2033 = vadd.f32 0.0, %v2032
      %v2034 = vpop.f32.mrb[0].mxu0
      %v2035 = vpop.f32.mrb[0].mxu0
      %v2036 = vadd.f32 0.0, %v2035
      %v2037 = vpop.f32.mrb[0].mxu0
      %2038 = vmatprep.mubr.bf16.mxu0 0
      %2039 = vmatmul.mubr.bf16.gmra.mrb[0].mxu0 %v1395
      %v2040 = vpop.f32.mrb[0].mxu0
      %v2041 = vadd.f32 0.0, %v2040
      %v2042 = vpop.f32.mrb[0].mxu0
      %v2043 = vpop.f32.mrb[0].mxu0
      %v2044 = vadd.f32 0.0, %v2043
      %v2045 = vpop.f32.mrb[0].mxu0
      %2046 = vmatprep.mubr.bf16.mxu0 0
      %2047 = vmatmul.mubr.bf16.gmra.mrb[0].mxu0 %v1397
      %v2048 = vpop.f32.mrb[0].mxu0
      %v2049 = vadd.f32 0.0, %v2048
      %v2050 = vpop.f32.mrb[0].mxu0
      %v2051 = vpop.f32.mrb[0].mxu0
      %v2052 = vadd.f32 0.0, %v2051
      %v2053 = vpop.f32.mrb[0].mxu0
      %2054 = vmatprep.mubr.bf16.mxu0 0
      %2055 = vmatmul.mubr.bf16.gmra.mrb[0].mxu0 %v1399
      %v2056 = vpop.f32.mrb[0].mxu0
      %v2057 = vadd.f32 0.0, %v2056
      %v2058 = vpop.f32.mrb[0].mxu0
      %v2059 = vpop.f32.mrb[0].mxu0
      %v2060 = vadd.f32 0.0, %v2059
      %v2061 = vpop.f32.mrb[0].mxu0
      %2062 = vmatprep.mubr.bf16.mxu0 0
      %2063 = vmatmul.mubr.bf16.gmra.mrb[0].mxu0 %v1401
      %v2064 = vpop.f32.mrb[0].mxu0
      %v2065 = vadd.f32 0.0, %v2064
      %v2066 = vpop.f32.mrb[0].mxu0
      %v2067 = vpop.f32.mrb[0].mxu0
      %v2068 = vadd.f32 0.0, %v2067
      %v2069 = vpop.f32.mrb[0].mxu0
      %2070 = vmatprep.mubr.bf16.mxu0 0
      %2071 = vmatmul.mubr.bf16.gmra.mrb[0].mxu0 %v1403
      %v2072 = vpop.f32.mrb[0].mxu0
      %v2073 = vadd.f32 0.0, %v2072
      %v2074 = vpop.f32.mrb[0].mxu0
      %v2075 = vpop.f32.mrb[0].mxu0
      %v2076 = vadd.f32 0.0, %v2075
      %v2077 = vpop.f32.mrb[0].mxu0
      %2078 = vmatprep.mubr.bf16.mxu0 0
      %2079 = vmatmul.mubr.bf16.gmra.mrb[0].mxu0 %v1635
      %v2080 = vpop.f32.mrb[0].mxu0
      %v2081 = vadd.f32 0.0, %v2080
      %v2082 = vpop.f32.mrb[0].mxu0
      %v2083 = vpop.f32.mrb[0].mxu0
      %v2084 = vadd.f32 0.0, %v2083
      %v2085 = vpop.f32.mrb[0].mxu0
      %2086 = vmatprep.mubr.bf16.mxu0 0
      %2087 = vmatmul.mubr.bf16.gmra.mrb[0].mxu0 %v1929
      %v2088 = vpop.f32.mrb[0].mxu0
      %v2089 = vadd.f32 0.0, %v2088
      %v2090 = vpop.f32.mrb[0].mxu0
      %v2091 = vpop.f32.mrb[0].mxu0
      %v2092 = vadd.f32 0.0, %v2091
      %v2093 = vpop.f32.mrb[0].mxu0
      %2094 = vdwg.mxu0
      %v2095 = vld [vmem:[#allocation2] sm:$0xff]
      %v2096 = vld [vmem:[#allocation2 + $0x8] sm:$0xff]
      %v2097 = vld [vmem:[#allocation2 + $0x10] sm:$0xff]
      %v2098 = vld [vmem:[#allocation2 + $0x18] sm:$0xff]
      %v2099 = vld [vmem:[#allocation2 + $0x20] sm:$0xff]
      %v2100 = vld [vmem:[#allocation2 + $0x28] sm:$0xff]
      %v2101 = vld [vmem:[#allocation2 + $0x30] sm:$0xff]
      %v2102 = vld [vmem:[#allocation2 + $0x38] sm:$0xff]
      %v2103 = vld [vmem:[#allocation2 + $0x40] sm:$0xff]
      %v2104 = vld [vmem:[#allocation2 + $0x48] sm:$0xff]
      %v2105 = vld [vmem:[#allocation2 + $0x50] sm:$0xff]
      %v2106 = vld [vmem:[#allocation2 + $0x58] sm:$0xff]
      %v2107 = vld [vmem:[#allocation2 + $0x60] sm:$0xff]
      %v2108 = vld [vmem:[#allocation2 + $0x68] sm:$0xff]
      %v2109 = vld [vmem:[#allocation2 + $0x70] sm:$0xff]
      %v2110 = vld [vmem:[#allocation2 + $0x78] sm:$0xff]
      %v2111 = vld [vmem:[#allocation2 + $0x80] sm:$0xff]
      %v2112 = vld [vmem:[#allocation2 + $0x88] sm:$0xff]
      %v2113 = vld [vmem:[#allocation2 + $0x90] sm:$0xff]
      %v2114 = vld [vmem:[#allocation2 + $0x98] sm:$0xff]
      %v2115 = vld [vmem:[#allocation2 + $0xa0] sm:$0xff]
      %v2116 = vld [vmem:[#allocation2 + $0xa8] sm:$0xff]
      %v2117 = vld [vmem:[#allocation2 + $0xb0] sm:$0xff]
      %v2118 = vld [vmem:[#allocation2 + $0xb8] sm:$0xff]
      %v2119 = vld [vmem:[#allocation2 + $0xc0] sm:$0xff]
      %v2120 = vld [vmem:[#allocation2 + $0xc8] sm:$0xff]
      %v2121 = vld [vmem:[#allocation2 + $0xd0] sm:$0xff]
      %v2122 = vld [vmem:[#allocation2 + $0xd8] sm:$0xff]
      %v2123 = vld [vmem:[#allocation2 + $0xe0] sm:$0xff]
      %v2124 = vld [vmem:[#allocation2 + $0xe8] sm:$0xff]
      %v2125 = vld [vmem:[#allocation2 + $0xf0] sm:$0xff]
      %v2126 = vld [vmem:[#allocation2 + $0xf8] sm:$0xff]
      %v2127 = vadd.f32 %v2095, %v1969
      %v2128 = vadd.f32 %v2096, %v1972
      %v2129 = vadd.f32 %v2097, %v1977
      %v2130 = vadd.f32 %v2098, %v1980
      %v2131 = vadd.f32 %v2099, %v1985
      %v2132 = vadd.f32 %v2100, %v1988
      %v2133 = vadd.f32 %v2101, %v1993
      %v2134 = vadd.f32 %v2102, %v1996
      %v2135 = vadd.f32 %v2103, %v2001
      %v2136 = vadd.f32 %v2104, %v2004
      %v2137 = vadd.f32 %v2105, %v2009
      %v2138 = vadd.f32 %v2106, %v2012
      %v2139 = vadd.f32 %v2107, %v2017
      %v2140 = vadd.f32 %v2108, %v2020
      %v2141 = vadd.f32 %v2109, %v2025
      %v2142 = vadd.f32 %v2110, %v2028
      %v2143 = vadd.f32 %v2111, %v2033
      %v2144 = vadd.f32 %v2112, %v2036
      %v2145 = vadd.f32 %v2113, %v2041
      %v2146 = vadd.f32 %v2114, %v2044
      %v2147 = vadd.f32 %v2115, %v2049
      %v2148 = vadd.f32 %v2116, %v2052
      %v2149 = vadd.f32 %v2117, %v2057
      %v2150 = vadd.f32 %v2118, %v2060
      %v2151 = vadd.f32 %v2119, %v2065
      %v2152 = vadd.f32 %v2120, %v2068
      %v2153 = vadd.f32 %v2121, %v2073
      %v2154 = vadd.f32 %v2122, %v2076
      %v2155 = vadd.f32 %v2123, %v2081
      %v2156 = vadd.f32 %v2124, %v2084
      %v2157 = vadd.f32 %v2125, %v2089
      %v2158 = vadd.f32 %v2126, %v2092
      %2159 = vst.msk [vmem:[#allocation2] sm:$0xff] %vm1570, %v2127
      %2160 = vst.msk [vmem:[#allocation2 + $0x8] sm:$0xff] %vm1570, %v2128
      %2161 = vst.msk [vmem:[#allocation2 + $0x10] sm:$0xff] %vm1570, %v2129
      %2162 = vst.msk [vmem:[#allocation2 + $0x18] sm:$0xff] %vm1570, %v2130
      %2163 = vst.msk [vmem:[#allocation2 + $0x20] sm:$0xff] %vm1570, %v2131
      %2164 = vst.msk [vmem:[#allocation2 + $0x28] sm:$0xff] %vm1570, %v2132
      %2165 = vst.msk [vmem:[#allocation2 + $0x30] sm:$0xff] %vm1570, %v2133
      %2166 = vst.msk [vmem:[#allocation2 + $0x38] sm:$0xff] %vm1570, %v2134
      %2167 = vst.msk [vmem:[#allocation2 + $0x40] sm:$0xff] %vm1570, %v2135
      %2168 = vst.msk [vmem:[#allocation2 + $0x48] sm:$0xff] %vm1570, %v2136
      %2169 = vst.msk [vmem:[#allocation2 + $0x50] sm:$0xff] %vm1570, %v2137
      %2170 = vst.msk [vmem:[#allocation2 + $0x58] sm:$0xff] %vm1570, %v2138
      %2171 = vst.msk [vmem:[#allocation2 + $0x60] sm:$0xff] %vm1570, %v2139
      %2172 = vst.msk [vmem:[#allocation2 + $0x68] sm:$0xff] %vm1570, %v2140
      %2173 = vst.msk [vmem:[#allocation2 + $0x70] sm:$0xff] %vm1570, %v2141
      %2174 = vst.msk [vmem:[#allocation2 + $0x78] sm:$0xff] %vm1570, %v2142
      %2175 = vst.msk [vmem:[#allocation2 + $0x80] sm:$0xff] %vm1570, %v2143
      %2176 = vst.msk [vmem:[#allocation2 + $0x88] sm:$0xff] %vm1570, %v2144
      %2177 = vst.msk [vmem:[#allocation2 + $0x90] sm:$0xff] %vm1570, %v2145
      %2178 = vst.msk [vmem:[#allocation2 + $0x98] sm:$0xff] %vm1570, %v2146
      %2179 = vst.msk [vmem:[#allocation2 + $0xa0] sm:$0xff] %vm1570, %v2147
      %2180 = vst.msk [vmem:[#allocation2 + $0xa8] sm:$0xff] %vm1570, %v2148
      %2181 = vst.msk [vmem:[#allocation2 + $0xb0] sm:$0xff] %vm1570, %v2149
      %2182 = vst.msk [vmem:[#allocation2 + $0xb8] sm:$0xff] %vm1570, %v2150
      %2183 = vst.msk [vmem:[#allocation2 + $0xc0] sm:$0xff] %vm1570, %v2151
      %2184 = vst.msk [vmem:[#allocation2 + $0xc8] sm:$0xff] %vm1570, %v2152
      %2185 = vst.msk [vmem:[#allocation2 + $0xd0] sm:$0xff] %vm1570, %v2153
      %2186 = vst.msk [vmem:[#allocation2 + $0xd8] sm:$0xff] %vm1570, %v2154
      %2187 = vst.msk [vmem:[#allocation2 + $0xe0] sm:$0xff] %vm1570, %v2155
      %2188 = vst.msk [vmem:[#allocation2 + $0xe8] sm:$0xff] %vm1570, %v2156
      %2189 = vst.msk [vmem:[#allocation2 + $0xf0] sm:$0xff] %vm1570, %v2157
      %2190 = vst.msk [vmem:[#allocation2 + $0xf8] sm:$0xff] %vm1570, %v2158
      %s2191 = scalar_lea.vmem %s1, 96
      %v2192 = vld [vmem:[%s2191] sm:$0xf]
      %v2193 = vld [vmem:[%s2191 + $0x4] sm:$0xf]
      %v2194 = vld [vmem:[%s2191 + $0x8] sm:$0xf]
      %v2195 = vld [vmem:[%s2191 + $0xc] sm:$0xf]
      %v2196 = vld [vmem:[%s2191 + $0x10] sm:$0xf]
      %v2197 = vld [vmem:[%s2191 + $0x14] sm:$0xf]
      %v2198 = vld [vmem:[%s2191 + $0x18] sm:$0xf]
      %v2199 = vld [vmem:[%s2191 + $0x1c] sm:$0x3]
      %v2208 = vunpack.c.l.b16 %v2192
      %v2209 = vunpack.c.l.b16 %v2193
      %v2210 = vunpack.c.l.b16 %v2194
      %v2211 = vunpack.c.l.b16 %v2195
      %v2212 = vunpack.c.l.b16 %v2196
      %v2213 = vunpack.c.l.b16 %v2197
      %v2214 = vunpack.c.l.b16 %v2198
      %v2215 = vunpack.c.l.b16 %v2199
      %v2216 = vpack.c.b16 %v2209, %v2208
      %v2217 = vpack.c.b16 %v2211, %v2210
      %v2218 = vpack.c.b16 %v2213, %v2212
      %v2219 = vpack.c.b16 %v2215, %v2214
      %v2223 = vsel %vm1372, %v1338, 0
      %v2226 = vsel %vm1405, %v2219, 0
      %2228 = vmatprep.subr.bf16.mxu0 0
      %2229 = vmatpush1.bf16.msra.mxu0 %v2216
      %2230 = vmatprep.subr.bf16.mxu0 0
      %2231 = vmatpush1.bf16.msra.mxu0 %v2217
      %2232 = vmatprep.subr.bf16.mxu0 0
      %2233 = vmatpush1.bf16.msra.mxu0 %v2218
      %2234 = vmatprep.subr.bf16.mxu0 0
      %2235 = vmatpush1.bf16.msra.mxu0 %v2226
      %2236 = vmatprep.subr.bf16.mxu0 0
      %2237 = vmatpush1.bf16.msra.mxu0 0
      %2238 = vmatprep.subr.bf16.mxu0 0
      %2239 = vmatpush1.bf16.msra.mxu0 0
      %2240 = vmatprep.subr.bf16.mxu0 0
      %2241 = vmatpush1.bf16.msra.mxu0 0
      %2242 = vmatprep.subr.bf16.mxu0 0
      %2243 = vmatpush1.bf16.msra.mxu0 0
      %2244 = vmatprep.subr.bf16.mxu0 0
      %2245 = vmatpush1.bf16.msra.mxu0 0
      %2246 = vmatprep.subr.bf16.mxu0 0
      %2247 = vmatpush1.bf16.msra.mxu0 0
      %2248 = vmatprep.subr.bf16.mxu0 0
      %2249 = vmatpush1.bf16.msra.mxu0 0
      %2250 = vmatprep.subr.bf16.mxu0 0
      %2251 = vmatpush1.bf16.msra.mxu0 0
      %2252 = vmatprep.subr.bf16.mxu0 0
      %2253 = vmatpush1.bf16.msra.mxu0 0
      %2254 = vmatprep.subr.bf16.mxu0 0
      %2255 = vmatpush1.bf16.msra.mxu0 0
      %2256 = vmatprep.subr.bf16.mxu0 0
      %2257 = vmatpush1.bf16.msra.mxu0 0
      %2258 = vmatprep.subr.bf16.mxu0 0
      %2259 = vmatpush1.bf16.msra.mxu0 0
      %2260 = vmatprep.mubr.bf16.mxu0 0
      %2261 = vmatmul.mubr.bf16.gmra.mrb[0].mxu0 %v1379
      %v2262 = vpop.f32.mrb[0].mxu0
      %v2263 = vadd.f32 0.0, %v2262
      %v2264 = vpop.f32.mrb[0].mxu0
      %v2265 = vpop.f32.mrb[0].mxu0
      %v2266 = vadd.f32 0.0, %v2265
      %v2267 = vpop.f32.mrb[0].mxu0
      %2268 = vmatprep.mubr.bf16.mxu0 0
      %2269 = vmatmul.mubr.bf16.gmra.mrb[0].mxu0 %v1381
      %v2270 = vpop.f32.mrb[0].mxu0
      %v2271 = vadd.f32 0.0, %v2270
      %v2272 = vpop.f32.mrb[0].mxu0
      %v2273 = vpop.f32.mrb[0].mxu0
      %v2274 = vadd.f32 0.0, %v2273
      %v2275 = vpop.f32.mrb[0].mxu0
      %2276 = vmatprep.mubr.bf16.mxu0 0
      %2277 = vmatmul.mubr.bf16.gmra.mrb[0].mxu0 %v1383
      %v2278 = vpop.f32.mrb[0].mxu0
      %v2279 = vadd.f32 0.0, %v2278
      %v2280 = vpop.f32.mrb[0].mxu0
      %v2281 = vpop.f32.mrb[0].mxu0
      %v2282 = vadd.f32 0.0, %v2281
      %v2283 = vpop.f32.mrb[0].mxu0
      %2284 = vmatprep.mubr.bf16.mxu0 0
      %2285 = vmatmul.mubr.bf16.gmra.mrb[0].mxu0 %v1385
      %v2286 = vpop.f32.mrb[0].mxu0
      %v2287 = vadd.f32 0.0, %v2286
      %v2288 = vpop.f32.mrb[0].mxu0
      %v2289 = vpop.f32.mrb[0].mxu0
      %v2290 = vadd.f32 0.0, %v2289
      %v2291 = vpop.f32.mrb[0].mxu0
      %2292 = vmatprep.mubr.bf16.mxu0 0
      %2293 = vmatmul.mubr.bf16.gmra.mrb[0].mxu0 %v1387
      %v2294 = vpop.f32.mrb[0].mxu0
      %v2295 = vadd.f32 0.0, %v2294
      %v2296 = vpop.f32.mrb[0].mxu0
      %v2297 = vpop.f32.mrb[0].mxu0
      %v2298 = vadd.f32 0.0, %v2297
      %v2299 = vpop.f32.mrb[0].mxu0
      %2300 = vmatprep.mubr.bf16.mxu0 0
      %2301 = vmatmul.mubr.bf16.gmra.mrb[0].mxu0 %v1389
      %v2302 = vpop.f32.mrb[0].mxu0
      %v2303 = vadd.f32 0.0, %v2302
      %v2304 = vpop.f32.mrb[0].mxu0
      %v2305 = vpop.f32.mrb[0].mxu0
      %v2306 = vadd.f32 0.0, %v2305
      %v2307 = vpop.f32.mrb[0].mxu0
      %2308 = vmatprep.mubr.bf16.mxu0 0
      %2309 = vmatmul.mubr.bf16.gmra.mrb[0].mxu0 %v1391
      %v2310 = vpop.f32.mrb[0].mxu0
      %v2311 = vadd.f32 0.0, %v2310
      %v2312 = vpop.f32.mrb[0].mxu0
      %v2313 = vpop.f32.mrb[0].mxu0
      %v2314 = vadd.f32 0.0, %v2313
      %v2315 = vpop.f32.mrb[0].mxu0
      %2316 = vmatprep.mubr.bf16.mxu0 0
      %2317 = vmatmul.mubr.bf16.gmra.mrb[0].mxu0 %v1393
      %v2318 = vpop.f32.mrb[0].mxu0
      %v2319 = vadd.f32 0.0, %v2318
      %v2320 = vpop.f32.mrb[0].mxu0
      %v2321 = vpop.f32.mrb[0].mxu0
      %v2322 = vadd.f32 0.0, %v2321
      %v2323 = vpop.f32.mrb[0].mxu0
      %2324 = vmatprep.mubr.bf16.mxu0 0
      %2325 = vmatmul.mubr.bf16.gmra.mrb[0].mxu0 %v1395
      %v2326 = vpop.f32.mrb[0].mxu0
      %v2327 = vadd.f32 0.0, %v2326
      %v2328 = vpop.f32.mrb[0].mxu0
      %v2329 = vpop.f32.mrb[0].mxu0
      %v2330 = vadd.f32 0.0, %v2329
      %v2331 = vpop.f32.mrb[0].mxu0
      %2332 = vmatprep.mubr.bf16.mxu0 0
      %2333 = vmatmul.mubr.bf16.gmra.mrb[0].mxu0 %v1397
      %v2334 = vpop.f32.mrb[0].mxu0
      %v2335 = vadd.f32 0.0, %v2334
      %v2336 = vpop.f32.mrb[0].mxu0
      %v2337 = vpop.f32.mrb[0].mxu0
      %v2338 = vadd.f32 0.0, %v2337
      %v2339 = vpop.f32.mrb[0].mxu0
      %2340 = vmatprep.mubr.bf16.mxu0 0
      %2341 = vmatmul.mubr.bf16.gmra.mrb[0].mxu0 %v1399
      %v2342 = vpop.f32.mrb[0].mxu0
      %v2343 = vadd.f32 0.0, %v2342
      %v2344 = vpop.f32.mrb[0].mxu0
      %v2345 = vpop.f32.mrb[0].mxu0
      %v2346 = vadd.f32 0.0, %v2345
      %v2347 = vpop.f32.mrb[0].mxu0
      %2348 = vmatprep.mubr.bf16.mxu0 0
      %2349 = vmatmul.mubr.bf16.gmra.mrb[0].mxu0 %v1401
      %v2350 = vpop.f32.mrb[0].mxu0
      %v2351 = vadd.f32 0.0, %v2350
      %v2352 = vpop.f32.mrb[0].mxu0
      %v2353 = vpop.f32.mrb[0].mxu0
      %v2354 = vadd.f32 0.0, %v2353
      %v2355 = vpop.f32.mrb[0].mxu0
      %2356 = vmatprep.mubr.bf16.mxu0 0
      %2357 = vmatmul.mubr.bf16.gmra.mrb[0].mxu0 %v1403
      %v2358 = vpop.f32.mrb[0].mxu0
      %v2359 = vadd.f32 0.0, %v2358
      %v2360 = vpop.f32.mrb[0].mxu0
      %v2361 = vpop.f32.mrb[0].mxu0
      %v2362 = vadd.f32 0.0, %v2361
      %v2363 = vpop.f32.mrb[0].mxu0
      %2364 = vmatprep.mubr.bf16.mxu0 0
      %2365 = vmatmul.mubr.bf16.gmra.mrb[0].mxu0 %v1635
      %v2366 = vpop.f32.mrb[0].mxu0
      %v2367 = vadd.f32 0.0, %v2366
      %v2368 = vpop.f32.mrb[0].mxu0
      %v2369 = vpop.f32.mrb[0].mxu0
      %v2370 = vadd.f32 0.0, %v2369
      %v2371 = vpop.f32.mrb[0].mxu0
      %2372 = vmatprep.mubr.bf16.mxu0 0
      %2373 = vmatmul.mubr.bf16.gmra.mrb[0].mxu0 %v1929
      %v2374 = vpop.f32.mrb[0].mxu0
      %v2375 = vadd.f32 0.0, %v2374
      %v2376 = vpop.f32.mrb[0].mxu0
      %v2377 = vpop.f32.mrb[0].mxu0
      %v2378 = vadd.f32 0.0, %v2377
      %v2379 = vpop.f32.mrb[0].mxu0
      %2380 = vmatprep.mubr.bf16.mxu0 0
      %2381 = vmatmul.mubr.bf16.gmra.mrb[0].mxu0 %v2223
      %v2382 = vpop.f32.mrb[0].mxu0
      %v2383 = vadd.f32 0.0, %v2382
      %v2384 = vpop.f32.mrb[0].mxu0
      %v2385 = vpop.f32.mrb[0].mxu0
      %v2386 = vadd.f32 0.0, %v2385
      %v2387 = vpop.f32.mrb[0].mxu0
      %2388 = vdwg.mxu0
      %v2389 = vld [vmem:[#allocation2] sm:$0xff]
      %v2390 = vld [vmem:[#allocation2 + $0x8] sm:$0xff]
      %v2391 = vld [vmem:[#allocation2 + $0x10] sm:$0xff]
      %v2392 = vld [vmem:[#allocation2 + $0x18] sm:$0xff]
      %v2393 = vld [vmem:[#allocation2 + $0x20] sm:$0xff]
      %v2394 = vld [vmem:[#allocation2 + $0x28] sm:$0xff]
      %v2395 = vld [vmem:[#allocation2 + $0x30] sm:$0xff]
      %v2396 = vld [vmem:[#allocation2 + $0x38] sm:$0xff]
      %v2397 = vld [vmem:[#allocation2 + $0x40] sm:$0xff]
      %v2398 = vld [vmem:[#allocation2 + $0x48] sm:$0xff]
      %v2399 = vld [vmem:[#allocation2 + $0x50] sm:$0xff]
      %v2400 = vld [vmem:[#allocation2 + $0x58] sm:$0xff]
      %v2401 = vld [vmem:[#allocation2 + $0x60] sm:$0xff]
      %v2402 = vld [vmem:[#allocation2 + $0x68] sm:$0xff]
      %v2403 = vld [vmem:[#allocation2 + $0x70] sm:$0xff]
      %v2404 = vld [vmem:[#allocation2 + $0x78] sm:$0xff]
      %v2405 = vld [vmem:[#allocation2 + $0x80] sm:$0xff]
      %v2406 = vld [vmem:[#allocation2 + $0x88] sm:$0xff]
      %v2407 = vld [vmem:[#allocation2 + $0x90] sm:$0xff]
      %v2408 = vld [vmem:[#allocation2 + $0x98] sm:$0xff]
      %v2409 = vld [vmem:[#allocation2 + $0xa0] sm:$0xff]
      %v2410 = vld [vmem:[#allocation2 + $0xa8] sm:$0xff]
      %v2411 = vld [vmem:[#allocation2 + $0xb0] sm:$0xff]
      %v2412 = vld [vmem:[#allocation2 + $0xb8] sm:$0xff]
      %v2413 = vld [vmem:[#allocation2 + $0xc0] sm:$0xff]
      %v2414 = vld [vmem:[#allocation2 + $0xc8] sm:$0xff]
      %v2415 = vld [vmem:[#allocation2 + $0xd0] sm:$0xff]
      %v2416 = vld [vmem:[#allocation2 + $0xd8] sm:$0xff]
      %v2417 = vld [vmem:[#allocation2 + $0xe0] sm:$0xff]
      %v2418 = vld [vmem:[#allocation2 + $0xe8] sm:$0xff]
      %v2419 = vld [vmem:[#allocation2 + $0xf0] sm:$0xff]
      %v2420 = vld [vmem:[#allocation2 + $0xf8] sm:$0xff]
      %v2421 = vadd.f32 %v2389, %v2263
      %v2422 = vadd.f32 %v2390, %v2266
      %v2423 = vadd.f32 %v2391, %v2271
      %v2424 = vadd.f32 %v2392, %v2274
      %v2425 = vadd.f32 %v2393, %v2279
      %v2426 = vadd.f32 %v2394, %v2282
      %v2427 = vadd.f32 %v2395, %v2287
      %v2428 = vadd.f32 %v2396, %v2290
      %v2429 = vadd.f32 %v2397, %v2295
      %v2430 = vadd.f32 %v2398, %v2298
      %v2431 = vadd.f32 %v2399, %v2303
      %v2432 = vadd.f32 %v2400, %v2306
      %v2433 = vadd.f32 %v2401, %v2311
      %v2434 = vadd.f32 %v2402, %v2314
      %v2435 = vadd.f32 %v2403, %v2319
      %v2436 = vadd.f32 %v2404, %v2322
      %v2437 = vadd.f32 %v2405, %v2327
      %v2438 = vadd.f32 %v2406, %v2330
      %v2439 = vadd.f32 %v2407, %v2335
      %v2440 = vadd.f32 %v2408, %v2338
      %v2441 = vadd.f32 %v2409, %v2343
      %v2442 = vadd.f32 %v2410, %v2346
      %v2443 = vadd.f32 %v2411, %v2351
      %v2444 = vadd.f32 %v2412, %v2354
      %v2445 = vadd.f32 %v2413, %v2359
      %v2446 = vadd.f32 %v2414, %v2362
      %v2447 = vadd.f32 %v2415, %v2367
      %v2448 = vadd.f32 %v2416, %v2370
      %v2449 = vadd.f32 %v2417, %v2375
      %v2450 = vadd.f32 %v2418, %v2378
      %v2451 = vadd.f32 %v2419, %v2383
      %v2452 = vadd.f32 %v2420, %v2386
      %2453 = vst.msk [vmem:[#allocation2] sm:$0xff] %vm1570, %v2421
      %2454 = vst.msk [vmem:[#allocation2 + $0x8] sm:$0xff] %vm1570, %v2422
      %2455 = vst.msk [vmem:[#allocation2 + $0x10] sm:$0xff] %vm1570, %v2423
      %2456 = vst.msk [vmem:[#allocation2 + $0x18] sm:$0xff] %vm1570, %v2424
      %2457 = vst.msk [vmem:[#allocation2 + $0x20] sm:$0xff] %vm1570, %v2425
      %2458 = vst.msk [vmem:[#allocation2 + $0x28] sm:$0xff] %vm1570, %v2426
      %2459 = vst.msk [vmem:[#allocation2 + $0x30] sm:$0xff] %vm1570, %v2427
      %2460 = vst.msk [vmem:[#allocation2 + $0x38] sm:$0xff] %vm1570, %v2428
      %2461 = vst.msk [vmem:[#allocation2 + $0x40] sm:$0xff] %vm1570, %v2429
      %2462 = vst.msk [vmem:[#allocation2 + $0x48] sm:$0xff] %vm1570, %v2430
      %2463 = vst.msk [vmem:[#allocation2 + $0x50] sm:$0xff] %vm1570, %v2431
      %2464 = vst.msk [vmem:[#allocation2 + $0x58] sm:$0xff] %vm1570, %v2432
      %2465 = vst.msk [vmem:[#allocation2 + $0x60] sm:$0xff] %vm1570, %v2433
      %2466 = vst.msk [vmem:[#allocation2 + $0x68] sm:$0xff] %vm1570, %v2434
      %2467 = vst.msk [vmem:[#allocation2 + $0x70] sm:$0xff] %vm1570, %v2435
      %2468 = vst.msk [vmem:[#allocation2 + $0x78] sm:$0xff] %vm1570, %v2436
      %2469 = vst.msk [vmem:[#allocation2 + $0x80] sm:$0xff] %vm1570, %v2437
      %2470 = vst.msk [vmem:[#allocation2 + $0x88] sm:$0xff] %vm1570, %v2438
      %2471 = vst.msk [vmem:[#allocation2 + $0x90] sm:$0xff] %vm1570, %v2439
      %2472 = vst.msk [vmem:[#allocation2 + $0x98] sm:$0xff] %vm1570, %v2440
      %2473 = vst.msk [vmem:[#allocation2 + $0xa0] sm:$0xff] %vm1570, %v2441
      %2474 = vst.msk [vmem:[#allocation2 + $0xa8] sm:$0xff] %vm1570, %v2442
      %2475 = vst.msk [vmem:[#allocation2 + $0xb0] sm:$0xff] %vm1570, %v2443
      %2476 = vst.msk [vmem:[#allocation2 + $0xb8] sm:$0xff] %vm1570, %v2444
      %2477 = vst.msk [vmem:[#allocation2 + $0xc0] sm:$0xff] %vm1570, %v2445
      %2478 = vst.msk [vmem:[#allocation2 + $0xc8] sm:$0xff] %vm1570, %v2446
      %2479 = vst.msk [vmem:[#allocation2 + $0xd0] sm:$0xff] %vm1570, %v2447
      %2480 = vst.msk [vmem:[#allocation2 + $0xd8] sm:$0xff] %vm1570, %v2448
      %2481 = vst.msk [vmem:[#allocation2 + $0xe0] sm:$0xff] %vm1570, %v2449
      %2482 = vst.msk [vmem:[#allocation2 + $0xe8] sm:$0xff] %vm1570, %v2450
      %2483 = vst.msk [vmem:[#allocation2 + $0xf0] sm:$0xff] %vm1570, %v2451
      %2484 = vst.msk [vmem:[#allocation2 + $0xf8] sm:$0xff] %vm1570, %v2452
      %s2485 = scalar_lea.vmem %s1, 128
      %v2486 = vld [vmem:[%s2485] sm:$0xf]
      %v2487 = vld [vmem:[%s2485 + $0x4] sm:$0xf]
      %v2488 = vld [vmem:[%s2485 + $0x8] sm:$0xf]
      %v2489 = vld [vmem:[%s2485 + $0xc] sm:$0xf]
      %v2490 = vld [vmem:[%s2485 + $0x10] sm:$0xf]
      %v2491 = vld [vmem:[%s2485 + $0x14] sm:$0xf]
      %v2492 = vld [vmem:[%s2485 + $0x18] sm:$0xf]
      %v2493 = vld [vmem:[%s2485 + $0x1c] sm:$0x3]
      %v2502 = vunpack.c.l.b16 %v2486
      %v2503 = vunpack.c.l.b16 %v2487
      %v2504 = vunpack.c.l.b16 %v2488
      %v2505 = vunpack.c.l.b16 %v2489
      %v2506 = vunpack.c.l.b16 %v2490
      %v2507 = vunpack.c.l.b16 %v2491
      %v2508 = vunpack.c.l.b16 %v2492
      %v2509 = vunpack.c.l.b16 %v2493
      %v2510 = vpack.c.b16 %v2503, %v2502
      %v2511 = vpack.c.b16 %v2505, %v2504
      %v2512 = vpack.c.b16 %v2507, %v2506
      %v2513 = vpack.c.b16 %v2509, %v2508
      %v2517 = vsel %vm1372, %v1340, 0
      %v2520 = vsel %vm1405, %v2513, 0
      %2522 = vmatprep.subr.bf16.mxu0 0
      %2523 = vmatpush1.bf16.msra.mxu0 %v2510
      %2524 = vmatprep.subr.bf16.mxu0 0
      %2525 = vmatpush1.bf16.msra.mxu0 %v2511
      %2526 = vmatprep.subr.bf16.mxu0 0
      %2527 = vmatpush1.bf16.msra.mxu0 %v2512
      %2528 = vmatprep.subr.bf16.mxu0 0
      %2529 = vmatpush1.bf16.msra.mxu0 %v2520
      %2530 = vmatprep.subr.bf16.mxu0 0
      %2531 = vmatpush1.bf16.msra.mxu0 0
      %2532 = vmatprep.subr.bf16.mxu0 0
      %2533 = vmatpush1.bf16.msra.mxu0 0
      %2534 = vmatprep.subr.bf16.mxu0 0
      %2535 = vmatpush1.bf16.msra.mxu0 0
      %2536 = vmatprep.subr.bf16.mxu0 0
      %2537 = vmatpush1.bf16.msra.mxu0 0
      %2538 = vmatprep.subr.bf16.mxu0 0
      %2539 = vmatpush1.bf16.msra.mxu0 0
      %2540 = vmatprep.subr.bf16.mxu0 0
      %2541 = vmatpush1.bf16.msra.mxu0 0
      %2542 = vmatprep.subr.bf16.mxu0 0
      %2543 = vmatpush1.bf16.msra.mxu0 0
      %2544 = vmatprep.subr.bf16.mxu0 0
      %2545 = vmatpush1.bf16.msra.mxu0 0
      %2546 = vmatprep.subr.bf16.mxu0 0
      %2547 = vmatpush1.bf16.msra.mxu0 0
      %2548 = vmatprep.subr.bf16.mxu0 0
      %2549 = vmatpush1.bf16.msra.mxu0 0
      %2550 = vmatprep.subr.bf16.mxu0 0
      %2551 = vmatpush1.bf16.msra.mxu0 0
      %2552 = vmatprep.subr.bf16.mxu0 0
      %2553 = vmatpush1.bf16.msra.mxu0 0
      %2554 = vmatprep.mubr.bf16.mxu0 0
      %2555 = vmatmul.mubr.bf16.gmra.mrb[0].mxu0 %v1381
      %v2556 = vpop.f32.mrb[0].mxu0
      %v2557 = vadd.f32 0.0, %v2556
      %v2558 = vpop.f32.mrb[0].mxu0
      %v2559 = vpop.f32.mrb[0].mxu0
      %v2560 = vadd.f32 0.0, %v2559
      %v2561 = vpop.f32.mrb[0].mxu0
      %2562 = vmatprep.mubr.bf16.mxu0 0
      %2563 = vmatmul.mubr.bf16.gmra.mrb[0].mxu0 %v1383
      %v2564 = vpop.f32.mrb[0].mxu0
      %v2565 = vadd.f32 0.0, %v2564
      %v2566 = vpop.f32.mrb[0].mxu0
      %v2567 = vpop.f32.mrb[0].mxu0
      %v2568 = vadd.f32 0.0, %v2567
      %v2569 = vpop.f32.mrb[0].mxu0
      %2570 = vmatprep.mubr.bf16.mxu0 0
      %2571 = vmatmul.mubr.bf16.gmra.mrb[0].mxu0 %v1385
      %v2572 = vpop.f32.mrb[0].mxu0
      %v2573 = vadd.f32 0.0, %v2572
      %v2574 = vpop.f32.mrb[0].mxu0
      %v2575 = vpop.f32.mrb[0].mxu0
      %v2576 = vadd.f32 0.0, %v2575
      %v2577 = vpop.f32.mrb[0].mxu0
      %2578 = vmatprep.mubr.bf16.mxu0 0
      %2579 = vmatmul.mubr.bf16.gmra.mrb[0].mxu0 %v1387
      %v2580 = vpop.f32.mrb[0].mxu0
      %v2581 = vadd.f32 0.0, %v2580
      %v2582 = vpop.f32.mrb[0].mxu0
      %v2583 = vpop.f32.mrb[0].mxu0
      %v2584 = vadd.f32 0.0, %v2583
      %v2585 = vpop.f32.mrb[0].mxu0
      %2586 = vmatprep.mubr.bf16.mxu0 0
      %2587 = vmatmul.mubr.bf16.gmra.mrb[0].mxu0 %v1389
      %v2588 = vpop.f32.mrb[0].mxu0
      %v2589 = vadd.f32 0.0, %v2588
      %v2590 = vpop.f32.mrb[0].mxu0
      %v2591 = vpop.f32.mrb[0].mxu0
      %v2592 = vadd.f32 0.0, %v2591
      %v2593 = vpop.f32.mrb[0].mxu0
      %2594 = vmatprep.mubr.bf16.mxu0 0
      %2595 = vmatmul.mubr.bf16.gmra.mrb[0].mxu0 %v1391
      %v2596 = vpop.f32.mrb[0].mxu0
      %v2597 = vadd.f32 0.0, %v2596
      %v2598 = vpop.f32.mrb[0].mxu0
      %v2599 = vpop.f32.mrb[0].mxu0
      %v2600 = vadd.f32 0.0, %v2599
      %v2601 = vpop.f32.mrb[0].mxu0
      %2602 = vmatprep.mubr.bf16.mxu0 0
      %2603 = vmatmul.mubr.bf16.gmra.mrb[0].mxu0 %v1393
      %v2604 = vpop.f32.mrb[0].mxu0
      %v2605 = vadd.f32 0.0, %v2604
      %v2606 = vpop.f32.mrb[0].mxu0
      %v2607 = vpop.f32.mrb[0].mxu0
      %v2608 = vadd.f32 0.0, %v2607
      %v2609 = vpop.f32.mrb[0].mxu0
      %2610 = vmatprep.mubr.bf16.mxu0 0
      %2611 = vmatmul.mubr.bf16.gmra.mrb[0].mxu0 %v1395
      %v2612 = vpop.f32.mrb[0].mxu0
      %v2613 = vadd.f32 0.0, %v2612
      %v2614 = vpop.f32.mrb[0].mxu0
      %v2615 = vpop.f32.mrb[0].mxu0
      %v2616 = vadd.f32 0.0, %v2615
      %v2617 = vpop.f32.mrb[0].mxu0
      %2618 = vmatprep.mubr.bf16.mxu0 0
      %2619 = vmatmul.mubr.bf16.gmra.mrb[0].mxu0 %v1397
      %v2620 = vpop.f32.mrb[0].mxu0
      %v2621 = vadd.f32 0.0, %v2620
      %v2622 = vpop.f32.mrb[0].mxu0
      %v2623 = vpop.f32.mrb[0].mxu0
      %v2624 = vadd.f32 0.0, %v2623
      %v2625 = vpop.f32.mrb[0].mxu0
      %2626 = vmatprep.mubr.bf16.mxu0 0
      %2627 = vmatmul.mubr.bf16.gmra.mrb[0].mxu0 %v1399
      %v2628 = vpop.f32.mrb[0].mxu0
      %v2629 = vadd.f32 0.0, %v2628
      %v2630 = vpop.f32.mrb[0].mxu0
      %v2631 = vpop.f32.mrb[0].mxu0
      %v2632 = vadd.f32 0.0, %v2631
      %v2633 = vpop.f32.mrb[0].mxu0
      %2634 = vmatprep.mubr.bf16.mxu0 0
      %2635 = vmatmul.mubr.bf16.gmra.mrb[0].mxu0 %v1401
      %v2636 = vpop.f32.mrb[0].mxu0
      %v2637 = vadd.f32 0.0, %v2636
      %v2638 = vpop.f32.mrb[0].mxu0
      %v2639 = vpop.f32.mrb[0].mxu0
      %v2640 = vadd.f32 0.0, %v2639
      %v2641 = vpop.f32.mrb[0].mxu0
      %2642 = vmatprep.mubr.bf16.mxu0 0
      %2643 = vmatmul.mubr.bf16.gmra.mrb[0].mxu0 %v1403
      %v2644 = vpop.f32.mrb[0].mxu0
      %v2645 = vadd.f32 0.0, %v2644
      %v2646 = vpop.f32.mrb[0].mxu0
      %v2647 = vpop.f32.mrb[0].mxu0
      %v2648 = vadd.f32 0.0, %v2647
      %v2649 = vpop.f32.mrb[0].mxu0
      %2650 = vmatprep.mubr.bf16.mxu0 0
      %2651 = vmatmul.mubr.bf16.gmra.mrb[0].mxu0 %v1635
      %v2652 = vpop.f32.mrb[0].mxu0
      %v2653 = vadd.f32 0.0, %v2652
      %v2654 = vpop.f32.mrb[0].mxu0
      %v2655 = vpop.f32.mrb[0].mxu0
      %v2656 = vadd.f32 0.0, %v2655
      %v2657 = vpop.f32.mrb[0].mxu0
      %2658 = vmatprep.mubr.bf16.mxu0 0
      %2659 = vmatmul.mubr.bf16.gmra.mrb[0].mxu0 %v1929
      %v2660 = vpop.f32.mrb[0].mxu0
      %v2661 = vadd.f32 0.0, %v2660
      %v2662 = vpop.f32.mrb[0].mxu0
      %v2663 = vpop.f32.mrb[0].mxu0
      %v2664 = vadd.f32 0.0, %v2663
      %v2665 = vpop.f32.mrb[0].mxu0
      %2666 = vmatprep.mubr.bf16.mxu0 0
      %2667 = vmatmul.mubr.bf16.gmra.mrb[0].mxu0 %v2223
      %v2668 = vpop.f32.mrb[0].mxu0
      %v2669 = vadd.f32 0.0, %v2668
      %v2670 = vpop.f32.mrb[0].mxu0
      %v2671 = vpop.f32.mrb[0].mxu0
      %v2672 = vadd.f32 0.0, %v2671
      %v2673 = vpop.f32.mrb[0].mxu0
      %2674 = vmatprep.mubr.bf16.mxu0 0
      %2675 = vmatmul.mubr.bf16.gmra.mrb[0].mxu0 %v2517
      %v2676 = vpop.f32.mrb[0].mxu0
      %v2677 = vadd.f32 0.0, %v2676
      %v2678 = vpop.f32.mrb[0].mxu0
      %v2679 = vpop.f32.mrb[0].mxu0
      %v2680 = vadd.f32 0.0, %v2679
      %v2681 = vpop.f32.mrb[0].mxu0
      %2682 = vdwg.mxu0
      %v2683 = vld [vmem:[#allocation2] sm:$0xff]
      %v2684 = vld [vmem:[#allocation2 + $0x8] sm:$0xff]
      %v2685 = vld [vmem:[#allocation2 + $0x10] sm:$0xff]
      %v2686 = vld [vmem:[#allocation2 + $0x18] sm:$0xff]
      %v2687 = vld [vmem:[#allocation2 + $0x20] sm:$0xff]
      %v2688 = vld [vmem:[#allocation2 + $0x28] sm:$0xff]
      %v2689 = vld [vmem:[#allocation2 + $0x30] sm:$0xff]
      %v2690 = vld [vmem:[#allocation2 + $0x38] sm:$0xff]
      %v2691 = vld [vmem:[#allocation2 + $0x40] sm:$0xff]
      %v2692 = vld [vmem:[#allocation2 + $0x48] sm:$0xff]
      %v2693 = vld [vmem:[#allocation2 + $0x50] sm:$0xff]
      %v2694 = vld [vmem:[#allocation2 + $0x58] sm:$0xff]
      %v2695 = vld [vmem:[#allocation2 + $0x60] sm:$0xff]
      %v2696 = vld [vmem:[#allocation2 + $0x68] sm:$0xff]
      %v2697 = vld [vmem:[#allocation2 + $0x70] sm:$0xff]
      %v2698 = vld [vmem:[#allocation2 + $0x78] sm:$0xff]
      %v2699 = vld [vmem:[#allocation2 + $0x80] sm:$0xff]
      %v2700 = vld [vmem:[#allocation2 + $0x88] sm:$0xff]
      %v2701 = vld [vmem:[#allocation2 + $0x90] sm:$0xff]
      %v2702 = vld [vmem:[#allocation2 + $0x98] sm:$0xff]
      %v2703 = vld [vmem:[#allocation2 + $0xa0] sm:$0xff]
      %v2704 = vld [vmem:[#allocation2 + $0xa8] sm:$0xff]
      %v2705 = vld [vmem:[#allocation2 + $0xb0] sm:$0xff]
      %v2706 = vld [vmem:[#allocation2 + $0xb8] sm:$0xff]
      %v2707 = vld [vmem:[#allocation2 + $0xc0] sm:$0xff]
      %v2708 = vld [vmem:[#allocation2 + $0xc8] sm:$0xff]
      %v2709 = vld [vmem:[#allocation2 + $0xd0] sm:$0xff]
      %v2710 = vld [vmem:[#allocation2 + $0xd8] sm:$0xff]
      %v2711 = vld [vmem:[#allocation2 + $0xe0] sm:$0xff]
      %v2712 = vld [vmem:[#allocation2 + $0xe8] sm:$0xff]
      %v2713 = vld [vmem:[#allocation2 + $0xf0] sm:$0xff]
      %v2714 = vld [vmem:[#allocation2 + $0xf8] sm:$0xff]
      %v2715 = vadd.f32 %v2683, %v2557
      %v2716 = vadd.f32 %v2684, %v2560
      %v2717 = vadd.f32 %v2685, %v2565
      %v2718 = vadd.f32 %v2686, %v2568
      %v2719 = vadd.f32 %v2687, %v2573
      %v2720 = vadd.f32 %v2688, %v2576
      %v2721 = vadd.f32 %v2689, %v2581
      %v2722 = vadd.f32 %v2690, %v2584
      %v2723 = vadd.f32 %v2691, %v2589
      %v2724 = vadd.f32 %v2692, %v2592
      %v2725 = vadd.f32 %v2693, %v2597
      %v2726 = vadd.f32 %v2694, %v2600
      %v2727 = vadd.f32 %v2695, %v2605
      %v2728 = vadd.f32 %v2696, %v2608
      %v2729 = vadd.f32 %v2697, %v2613
      %v2730 = vadd.f32 %v2698, %v2616
      %v2731 = vadd.f32 %v2699, %v2621
      %v2732 = vadd.f32 %v2700, %v2624
      %v2733 = vadd.f32 %v2701, %v2629
      %v2734 = vadd.f32 %v2702, %v2632
      %v2735 = vadd.f32 %v2703, %v2637
      %v2736 = vadd.f32 %v2704, %v2640
      %v2737 = vadd.f32 %v2705, %v2645
      %v2738 = vadd.f32 %v2706, %v2648
      %v2739 = vadd.f32 %v2707, %v2653
      %v2740 = vadd.f32 %v2708, %v2656
      %v2741 = vadd.f32 %v2709, %v2661
      %v2742 = vadd.f32 %v2710, %v2664
      %v2743 = vadd.f32 %v2711, %v2669
      %v2744 = vadd.f32 %v2712, %v2672
      %v2745 = vadd.f32 %v2713, %v2677
      %v2746 = vadd.f32 %v2714, %v2680
      %2747 = vst.msk [vmem:[#allocation2] sm:$0xff] %vm1570, %v2715
      %2748 = vst.msk [vmem:[#allocation2 + $0x8] sm:$0xff] %vm1570, %v2716
      %2749 = vst.msk [vmem:[#allocation2 + $0x10] sm:$0xff] %vm1570, %v2717
      %2750 = vst.msk [vmem:[#allocation2 + $0x18] sm:$0xff] %vm1570, %v2718
      %2751 = vst.msk [vmem:[#allocation2 + $0x20] sm:$0xff] %vm1570, %v2719
      %2752 = vst.msk [vmem:[#allocation2 + $0x28] sm:$0xff] %vm1570, %v2720
      %2753 = vst.msk [vmem:[#allocation2 + $0x30] sm:$0xff] %vm1570, %v2721
      %2754 = vst.msk [vmem:[#allocation2 + $0x38] sm:$0xff] %vm1570, %v2722
      %2755 = vst.msk [vmem:[#allocation2 + $0x40] sm:$0xff] %vm1570, %v2723
      %2756 = vst.msk [vmem:[#allocation2 + $0x48] sm:$0xff] %vm1570, %v2724
      %2757 = vst.msk [vmem:[#allocation2 + $0x50] sm:$0xff] %vm1570, %v2725
      %2758 = vst.msk [vmem:[#allocation2 + $0x58] sm:$0xff] %vm1570, %v2726
      %2759 = vst.msk [vmem:[#allocation2 + $0x60] sm:$0xff] %vm1570, %v2727
      %2760 = vst.msk [vmem:[#allocation2 + $0x68] sm:$0xff] %vm1570, %v2728
      %2761 = vst.msk [vmem:[#allocation2 + $0x70] sm:$0xff] %vm1570, %v2729
      %2762 = vst.msk [vmem:[#allocation2 + $0x78] sm:$0xff] %vm1570, %v2730
      %2763 = vst.msk [vmem:[#allocation2 + $0x80] sm:$0xff] %vm1570, %v2731
      %2764 = vst.msk [vmem:[#allocation2 + $0x88] sm:$0xff] %vm1570, %v2732
      %2765 = vst.msk [vmem:[#allocation2 + $0x90] sm:$0xff] %vm1570, %v2733
      %2766 = vst.msk [vmem:[#allocation2 + $0x98] sm:$0xff] %vm1570, %v2734
      %2767 = vst.msk [vmem:[#allocation2 + $0xa0] sm:$0xff] %vm1570, %v2735
      %2768 = vst.msk [vmem:[#allocation2 + $0xa8] sm:$0xff] %vm1570, %v2736
      %2769 = vst.msk [vmem:[#allocation2 + $0xb0] sm:$0xff] %vm1570, %v2737
      %2770 = vst.msk [vmem:[#allocation2 + $0xb8] sm:$0xff] %vm1570, %v2738
      %2771 = vst.msk [vmem:[#allocation2 + $0xc0] sm:$0xff] %vm1570, %v2739
      %2772 = vst.msk [vmem:[#allocation2 + $0xc8] sm:$0xff] %vm1570, %v2740
      %2773 = vst.msk [vmem:[#allocation2 + $0xd0] sm:$0xff] %vm1570, %v2741
      %2774 = vst.msk [vmem:[#allocation2 + $0xd8] sm:$0xff] %vm1570, %v2742
      %2775 = vst.msk [vmem:[#allocation2 + $0xe0] sm:$0xff] %vm1570, %v2743
      %2776 = vst.msk [vmem:[#allocation2 + $0xe8] sm:$0xff] %vm1570, %v2744
      %2777 = vst.msk [vmem:[#allocation2 + $0xf0] sm:$0xff] %vm1570, %v2745
      %2778 = vst.msk [vmem:[#allocation2 + $0xf8] sm:$0xff] %vm1570, %v2746
      %v2779 = vld [vmem:[#allocation2] sm:$0xff]
      %v2780 = vld [vmem:[#allocation2 + $0x8] sm:$0xff]
      %v2781 = vld [vmem:[#allocation2 + $0x10] sm:$0xff]
      %v2782 = vld [vmem:[#allocation2 + $0x18] sm:$0xff]
      %v2783 = vld [vmem:[#allocation2 + $0x20] sm:$0xff]
      %v2784 = vld [vmem:[#allocation2 + $0x28] sm:$0xff]
      %v2785 = vld [vmem:[#allocation2 + $0x30] sm:$0xff]
      %v2786 = vld [vmem:[#allocation2 + $0x38] sm:$0xff]
      %v2787 = vld [vmem:[#allocation2 + $0x40] sm:$0xff]
      %v2788 = vld [vmem:[#allocation2 + $0x48] sm:$0xff]
      %v2789 = vld [vmem:[#allocation2 + $0x50] sm:$0xff]
      %v2790 = vld [vmem:[#allocation2 + $0x58] sm:$0xff]
      %v2791 = vld [vmem:[#allocation2 + $0x60] sm:$0xff]
      %v2792 = vld [vmem:[#allocation2 + $0x68] sm:$0xff]
      %v2793 = vld [vmem:[#allocation2 + $0x70] sm:$0xff]
      %v2794 = vld [vmem:[#allocation2 + $0x78] sm:$0xff]
      %v2795 = vld [vmem:[#allocation2 + $0x80] sm:$0xff]
      %v2796 = vld [vmem:[#allocation2 + $0x88] sm:$0xff]
      %v2797 = vld [vmem:[#allocation2 + $0x90] sm:$0xff]
      %v2798 = vld [vmem:[#allocation2 + $0x98] sm:$0xff]
      %v2799 = vld [vmem:[#allocation2 + $0xa0] sm:$0xff]
      %v2800 = vld [vmem:[#allocation2 + $0xa8] sm:$0xff]
      %v2801 = vld [vmem:[#allocation2 + $0xb0] sm:$0xff]
      %v2802 = vld [vmem:[#allocation2 + $0xb8] sm:$0xff]
      %v2803 = vld [vmem:[#allocation2 + $0xc0] sm:$0xff]
      %v2804 = vld [vmem:[#allocation2 + $0xc8] sm:$0xff]
      %v2805 = vld [vmem:[#allocation2 + $0xd0] sm:$0xff]
      %v2806 = vld [vmem:[#allocation2 + $0xd8] sm:$0xff]
      %v2807 = vld [vmem:[#allocation2 + $0xe0] sm:$0xff]
      %v2808 = vld [vmem:[#allocation2 + $0xe8] sm:$0xff]
      %v2809 = vld [vmem:[#allocation2 + $0xf0] sm:$0xff]
      %v2810 = vld [vmem:[#allocation2 + $0xf8] sm:$0xff]
      %v2811 = vld [vmem:[%s4] sm:$0x1]
      %v2813 = vlaneseq
      %v2814 = vshrl.u32 %v2813, 7
      %v2815 = vsub.s32 0, %v2814
      %v2816 = vrot.slane %v2811, %v2815
      %v2818 = vmul.f32 %v2779, %v2816
      %v2819 = vmul.f32 %v2780, %v2816
      %v2820 = vmul.f32 %v2781, %v2816
      %v2821 = vmul.f32 %v2782, %v2816
      %v2822 = vmul.f32 %v2783, %v2816
      %v2823 = vmul.f32 %v2784, %v2816
      %v2824 = vmul.f32 %v2785, %v2816
      %v2825 = vmul.f32 %v2786, %v2816
      %v2826 = vmul.f32 %v2787, %v2816
      %v2827 = vmul.f32 %v2788, %v2816
      %v2828 = vmul.f32 %v2789, %v2816
      %v2829 = vmul.f32 %v2790, %v2816
      %v2830 = vmul.f32 %v2791, %v2816
      %v2831 = vmul.f32 %v2792, %v2816
      %v2832 = vmul.f32 %v2793, %v2816
      %v2833 = vmul.f32 %v2794, %v2816
      %v2834 = vmul.f32 %v2795, %v2816
      %v2835 = vmul.f32 %v2796, %v2816
      %v2836 = vmul.f32 %v2797, %v2816
      %v2837 = vmul.f32 %v2798, %v2816
      %v2838 = vmul.f32 %v2799, %v2816
      %v2839 = vmul.f32 %v2800, %v2816
      %v2840 = vmul.f32 %v2801, %v2816
      %v2841 = vmul.f32 %v2802, %v2816
      %v2842 = vmul.f32 %v2803, %v2816
      %v2843 = vmul.f32 %v2804, %v2816
      %v2844 = vmul.f32 %v2805, %v2816
      %v2845 = vmul.f32 %v2806, %v2816
      %v2846 = vmul.f32 %v2807, %v2816
      %v2847 = vmul.f32 %v2808, %v2816
      %v2848 = vmul.f32 %v2809, %v2816
      %v2849 = vmul.f32 %v2810, %v2816
      %v2850 = vld [vmem:[%s5] sm:$0x1]
      %v2852 = vlaneseq
      %v2853 = vshrl.u32 %v2852, 7
      %v2854 = vsub.s32 0, %v2853
      %v2855 = vrot.slane %v2850, %v2854
      %v2857 = vadd.f32 %v2818, %v2855
      %v2858 = vadd.f32 %v2819, %v2855
      %v2859 = vadd.f32 %v2820, %v2855
      %v2860 = vadd.f32 %v2821, %v2855
      %v2861 = vadd.f32 %v2822, %v2855
      %v2862 = vadd.f32 %v2823, %v2855
      %v2863 = vadd.f32 %v2824, %v2855
      %v2864 = vadd.f32 %v2825, %v2855
      %v2865 = vadd.f32 %v2826, %v2855
      %v2866 = vadd.f32 %v2827, %v2855
      %v2867 = vadd.f32 %v2828, %v2855
      %v2868 = vadd.f32 %v2829, %v2855
      %v2869 = vadd.f32 %v2830, %v2855
      %v2870 = vadd.f32 %v2831, %v2855
      %v2871 = vadd.f32 %v2832, %v2855
      %v2872 = vadd.f32 %v2833, %v2855
      %v2873 = vadd.f32 %v2834, %v2855
      %v2874 = vadd.f32 %v2835, %v2855
      %v2875 = vadd.f32 %v2836, %v2855
      %v2876 = vadd.f32 %v2837, %v2855
      %v2877 = vadd.f32 %v2838, %v2855
      %v2878 = vadd.f32 %v2839, %v2855
      %v2879 = vadd.f32 %v2840, %v2855
      %v2880 = vadd.f32 %v2841, %v2855
      %v2881 = vadd.f32 %v2842, %v2855
      %v2882 = vadd.f32 %v2843, %v2855
      %v2883 = vadd.f32 %v2844, %v2855
      %v2884 = vadd.f32 %v2845, %v2855
      %v2885 = vadd.f32 %v2846, %v2855
      %v2886 = vadd.f32 %v2847, %v2855
      %v2887 = vadd.f32 %v2848, %v2855
      %v2888 = vadd.f32 %v2849, %v2855
      %v2889 = vmax.f32 %v2857, 0.0
      %v2890 = vmax.f32 %v2858, 0.0
      %v2891 = vmax.f32 %v2859, 0.0
      %v2892 = vmax.f32 %v2860, 0.0
      %v2893 = vmax.f32 %v2861, 0.0
      %v2894 = vmax.f32 %v2862, 0.0
      %v2895 = vmax.f32 %v2863, 0.0
      %v2896 = vmax.f32 %v2864, 0.0
      %v2897 = vmax.f32 %v2865, 0.0
      %v2898 = vmax.f32 %v2866, 0.0
      %v2899 = vmax.f32 %v2867, 0.0
      %v2900 = vmax.f32 %v2868, 0.0
      %v2901 = vmax.f32 %v2869, 0.0
      %v2902 = vmax.f32 %v2870, 0.0
      %v2903 = vmax.f32 %v2871, 0.0
      %v2904 = vmax.f32 %v2872, 0.0
      %v2905 = vmax.f32 %v2873, 0.0
      %v2906 = vmax.f32 %v2874, 0.0
      %v2907 = vmax.f32 %v2875, 0.0
      %v2908 = vmax.f32 %v2876, 0.0
      %v2909 = vmax.f32 %v2877, 0.0
      %v2910 = vmax.f32 %v2878, 0.0
      %v2911 = vmax.f32 %v2879, 0.0
      %v2912 = vmax.f32 %v2880, 0.0
      %v2913 = vmax.f32 %v2881, 0.0
      %v2914 = vmax.f32 %v2882, 0.0
      %v2915 = vmax.f32 %v2883, 0.0
      %v2916 = vmax.f32 %v2884, 0.0
      %v2917 = vmax.f32 %v2885, 0.0
      %v2918 = vmax.f32 %v2886, 0.0
      %v2919 = vmax.f32 %v2887, 0.0
      %v2920 = vmax.f32 %v2888, 0.0
      %vm2953 = vcmask 1040384
      %v2954 = vrot.slane %v2889, 7
      %v2955 = vrot.slane %v2890, 7
      %v2956 = vsel %vm2953, %v2954, %v2955
      %v2957 = vrot.slane %v2891, 7
      %v2958 = vrot.slane %v2892, 7
      %v2959 = vsel %vm2953, %v2957, %v2958
      %v2960 = vrot.slane %v2893, 7
      %v2961 = vrot.slane %v2894, 7
      %v2962 = vsel %vm2953, %v2960, %v2961
      %v2963 = vrot.slane %v2895, 7
      %v2964 = vrot.slane %v2896, 7
      %v2965 = vsel %vm2953, %v2963, %v2964
      %v2966 = vrot.slane %v2897, 7
      %v2967 = vrot.slane %v2898, 7
      %v2968 = vsel %vm2953, %v2966, %v2967
      %v2969 = vrot.slane %v2899, 7
      %v2970 = vrot.slane %v2900, 7
      %v2971 = vsel %vm2953, %v2969, %v2970
      %v2972 = vrot.slane %v2901, 7
      %v2973 = vrot.slane %v2902, 7
      %v2974 = vsel %vm2953, %v2972, %v2973
      %v2975 = vrot.slane %v2903, 7
      %v2976 = vrot.slane %v2904, 7
      %v2977 = vsel %vm2953, %v2975, %v2976
      %v2978 = vrot.slane %v2905, 7
      %v2979 = vrot.slane %v2906, 7
      %v2980 = vsel %vm2953, %v2978, %v2979
      %v2981 = vrot.slane %v2907, 7
      %v2982 = vrot.slane %v2908, 7
      %v2983 = vsel %vm2953, %v2981, %v2982
      %v2984 = vrot.slane %v2909, 7
      %v2985 = vrot.slane %v2910, 7
      %v2986 = vsel %vm2953, %v2984, %v2985
      %v2987 = vrot.slane %v2911, 7
      %v2988 = vrot.slane %v2912, 7
      %v2989 = vsel %vm2953, %v2987, %v2988
      %v2990 = vrot.slane %v2913, 7
      %v2991 = vrot.slane %v2914, 7
      %v2992 = vsel %vm2953, %v2990, %v2991
      %v2993 = vrot.slane %v2915, 7
      %v2994 = vrot.slane %v2916, 7
      %v2995 = vsel %vm2953, %v2993, %v2994
      %v2996 = vrot.slane %v2917, 7
      %v2997 = vrot.slane %v2918, 7
      %v2998 = vsel %vm2953, %v2996, %v2997
      %v2999 = vrot.slane %v2919, 7
      %v3000 = vrot.slane %v2920, 7
      %v3001 = vsel %vm2953, %v2999, %v3000
      %v3050 = vrot.slane %v2890, 6
      %v3051 = vrot.slane %v2892, 6
      %v3052 = vrot.slane %v2894, 6
      %v3053 = vrot.slane %v2896, 6
      %v3054 = vrot.slane %v2898, 6
      %v3055 = vrot.slane %v2900, 6
      %v3056 = vrot.slane %v2902, 6
      %v3057 = vrot.slane %v2904, 6
      %v3058 = vrot.slane %v2906, 6
      %v3059 = vrot.slane %v2908, 6
      %v3060 = vrot.slane %v2910, 6
      %v3061 = vrot.slane %v2912, 6
      %v3062 = vrot.slane %v2914, 6
      %v3063 = vrot.slane %v2916, 6
      %v3064 = vrot.slane %v2918, 6
      %v3065 = vrot.slane %v2920, 6
      %v3082 = vsel %vm2953, %v2889, %v2954
      %v3083 = vsel %vm2953, %v2891, %v2957
      %v3084 = vsel %vm2953, %v2893, %v2960
      %v3085 = vsel %vm2953, %v2895, %v2963
      %v3086 = vsel %vm2953, %v2897, %v2966
      %v3087 = vsel %vm2953, %v2899, %v2969
      %v3088 = vsel %vm2953, %v2901, %v2972
      %v3089 = vsel %vm2953, %v2903, %v2975
      %v3090 = vsel %vm2953, %v2905, %v2978
      %v3091 = vsel %vm2953, %v2907, %v2981
      %v3092 = vsel %vm2953, %v2909, %v2984
      %v3093 = vsel %vm2953, %v2911, %v2987
      %v3094 = vsel %vm2953, %v2913, %v2990
      %v3095 = vsel %vm2953, %v2915, %v2993
      %v3096 = vsel %vm2953, %v2917, %v2996
      %v3097 = vsel %vm2953, %v2919, %v2999
      %v3098 = vsel %vm2953, %v2955, %v3050
      %v3099 = vsel %vm2953, %v2958, %v3051
      %v3100 = vsel %vm2953, %v2961, %v3052
      %v3101 = vsel %vm2953, %v2964, %v3053
      %v3102 = vsel %vm2953, %v2967, %v3054
      %v3103 = vsel %vm2953, %v2970, %v3055
      %v3104 = vsel %vm2953, %v2973, %v3056
      %v3105 = vsel %vm2953, %v2976, %v3057
      %v3106 = vsel %vm2953, %v2979, %v3058
      %v3107 = vsel %vm2953, %v2982, %v3059
      %v3108 = vsel %vm2953, %v2985, %v3060
      %v3109 = vsel %vm2953, %v2988, %v3061
      %v3110 = vsel %vm2953, %v2991, %v3062
      %v3111 = vsel %vm2953, %v2994, %v3063
      %v3112 = vsel %vm2953, %v2997, %v3064
      %v3113 = vsel %vm2953, %v3000, %v3065
      %v3114 = vpack.c.bf16 %v2956, %v3082
      %v3115 = vpack.c.bf16 %v3098, %v3098
      %v3116 = vpack.c.bf16 %v2959, %v3083
      %v3117 = vpack.c.bf16 %v3099, %v3099
      %v3118 = vpack.c.bf16 %v2962, %v3084
      %v3119 = vpack.c.bf16 %v3100, %v3100
      %v3120 = vpack.c.bf16 %v2965, %v3085
      %v3121 = vpack.c.bf16 %v3101, %v3101
      %v3122 = vpack.c.bf16 %v2968, %v3086
      %v3123 = vpack.c.bf16 %v3102, %v3102
      %v3124 = vpack.c.bf16 %v2971, %v3087
      %v3125 = vpack.c.bf16 %v3103, %v3103
      %v3126 = vpack.c.bf16 %v2974, %v3088
      %v3127 = vpack.c.bf16 %v3104, %v3104
      %v3128 = vpack.c.bf16 %v2977, %v3089
      %v3129 = vpack.c.bf16 %v3105, %v3105
      %v3130 = vpack.c.bf16 %v2980, %v3090
      %v3131 = vpack.c.bf16 %v3106, %v3106
      %v3132 = vpack.c.bf16 %v2983, %v3091
      %v3133 = vpack.c.bf16 %v3107, %v3107
      %v3134 = vpack.c.bf16 %v2986, %v3092
      %v3135 = vpack.c.bf16 %v3108, %v3108
      %v3136 = vpack.c.bf16 %v2989, %v3093
      %v3137 = vpack.c.bf16 %v3109, %v3109
      %v3138 = vpack.c.bf16 %v2992, %v3094
      %v3139 = vpack.c.bf16 %v3110, %v3110
      %v3140 = vpack.c.bf16 %v2995, %v3095
      %v3141 = vpack.c.bf16 %v3111, %v3111
      %v3142 = vpack.c.bf16 %v2998, %v3096
      %v3143 = vpack.c.bf16 %v3112, %v3112
      %v3144 = vpack.c.bf16 %v3001, %v3097
      %v3145 = vpack.c.bf16 %v3113, %v3113
      %v3147 = vshrl.u32 %v3114, 16
      %v3149 = vshll.u32 %v3114, 16
      %v3151 = vrot.slane %v3149, 1
      %v3152 = vor.u32 %v3147, %v3151
      %v3154 = vshll.u32 %v3115, 16
      %v3156 = vrot.slane %v3154, 1
      %v3157 = vsel %vm473, %v3152, %v3156
      %v3159 = vshrl.u32 %v3116, 16
      %v3161 = vshll.u32 %v3116, 16
      %v3163 = vrot.slane %v3161, 1
      %v3164 = vor.u32 %v3159, %v3163
      %v3166 = vshll.u32 %v3117, 16
      %v3168 = vrot.slane %v3166, 1
      %v3169 = vsel %vm473, %v3164, %v3168
      %v3171 = vshrl.u32 %v3118, 16
      %v3173 = vshll.u32 %v3118, 16
      %v3175 = vrot.slane %v3173, 1
      %v3176 = vor.u32 %v3171, %v3175
      %v3178 = vshll.u32 %v3119, 16
      %v3180 = vrot.slane %v3178, 1
      %v3181 = vsel %vm473, %v3176, %v3180
      %v3183 = vshrl.u32 %v3120, 16
      %v3185 = vshll.u32 %v3120, 16
      %v3187 = vrot.slane %v3185, 1
      %v3188 = vor.u32 %v3183, %v3187
      %v3190 = vshll.u32 %v3121, 16
      %v3192 = vrot.slane %v3190, 1
      %v3193 = vsel %vm473, %v3188, %v3192
      %v3195 = vshrl.u32 %v3122, 16
      %v3197 = vshll.u32 %v3122, 16
      %v3199 = vrot.slane %v3197, 1
      %v3200 = vor.u32 %v3195, %v3199
      %v3202 = vshll.u32 %v3123, 16
      %v3204 = vrot.slane %v3202, 1
      %v3205 = vsel %vm473, %v3200, %v3204
      %v3207 = vshrl.u32 %v3124, 16
      %v3209 = vshll.u32 %v3124, 16
      %v3211 = vrot.slane %v3209, 1
      %v3212 = vor.u32 %v3207, %v3211
      %v3214 = vshll.u32 %v3125, 16
      %v3216 = vrot.slane %v3214, 1
      %v3217 = vsel %vm473, %v3212, %v3216
      %v3219 = vshrl.u32 %v3126, 16
      %v3221 = vshll.u32 %v3126, 16
      %v3223 = vrot.slane %v3221, 1
      %v3224 = vor.u32 %v3219, %v3223
      %v3226 = vshll.u32 %v3127, 16
      %v3228 = vrot.slane %v3226, 1
      %v3229 = vsel %vm473, %v3224, %v3228
      %v3231 = vshrl.u32 %v3128, 16
      %v3233 = vshll.u32 %v3128, 16
      %v3235 = vrot.slane %v3233, 1
      %v3236 = vor.u32 %v3231, %v3235
      %v3238 = vshll.u32 %v3129, 16
      %v3240 = vrot.slane %v3238, 1
      %v3241 = vsel %vm473, %v3236, %v3240
      %v3243 = vshrl.u32 %v3130, 16
      %v3245 = vshll.u32 %v3130, 16
      %v3247 = vrot.slane %v3245, 1
      %v3248 = vor.u32 %v3243, %v3247
      %v3250 = vshll.u32 %v3131, 16
      %v3252 = vrot.slane %v3250, 1
      %v3253 = vsel %vm473, %v3248, %v3252
      %v3255 = vshrl.u32 %v3132, 16
      %v3257 = vshll.u32 %v3132, 16
      %v3259 = vrot.slane %v3257, 1
      %v3260 = vor.u32 %v3255, %v3259
      %v3262 = vshll.u32 %v3133, 16
      %v3264 = vrot.slane %v3262, 1
      %v3265 = vsel %vm473, %v3260, %v3264
      %v3267 = vshrl.u32 %v3134, 16
      %v3269 = vshll.u32 %v3134, 16
      %v3271 = vrot.slane %v3269, 1
      %v3272 = vor.u32 %v3267, %v3271
      %v3274 = vshll.u32 %v3135, 16
      %v3276 = vrot.slane %v3274, 1
      %v3277 = vsel %vm473, %v3272, %v3276
      %v3279 = vshrl.u32 %v3136, 16
      %v3281 = vshll.u32 %v3136, 16
      %v3283 = vrot.slane %v3281, 1
      %v3284 = vor.u32 %v3279, %v3283
      %v3286 = vshll.u32 %v3137, 16
      %v3288 = vrot.slane %v3286, 1
      %v3289 = vsel %vm473, %v3284, %v3288
      %v3291 = vshrl.u32 %v3138, 16
      %v3293 = vshll.u32 %v3138, 16
      %v3295 = vrot.slane %v3293, 1
      %v3296 = vor.u32 %v3291, %v3295
      %v3298 = vshll.u32 %v3139, 16
      %v3300 = vrot.slane %v3298, 1
      %v3301 = vsel %vm473, %v3296, %v3300
      %v3303 = vshrl.u32 %v3140, 16
      %v3305 = vshll.u32 %v3140, 16
      %v3307 = vrot.slane %v3305, 1
      %v3308 = vor.u32 %v3303, %v3307
      %v3310 = vshll.u32 %v3141, 16
      %v3312 = vrot.slane %v3310, 1
      %v3313 = vsel %vm473, %v3308, %v3312
      %v3315 = vshrl.u32 %v3142, 16
      %v3317 = vshll.u32 %v3142, 16
      %v3319 = vrot.slane %v3317, 1
      %v3320 = vor.u32 %v3315, %v3319
      %v3322 = vshll.u32 %v3143, 16
      %v3324 = vrot.slane %v3322, 1
      %v3325 = vsel %vm473, %v3320, %v3324
      %v3327 = vshrl.u32 %v3144, 16
      %v3329 = vshll.u32 %v3144, 16
      %v3331 = vrot.slane %v3329, 1
      %v3332 = vor.u32 %v3327, %v3331
      %v3334 = vshll.u32 %v3145, 16
      %v3336 = vrot.slane %v3334, 1
      %v3337 = vsel %vm473, %v3332, %v3336
      %3338 = vrot.lane.b32.xlu0 %v3157, 8
      %v3339 = vpop.permute.xlu0 %3338
      %3340 = vrot.lane.b32.xlu0 %v3169, 8
      %v3341 = vpop.permute.xlu0 %3340
      %3342 = vrot.lane.b32.xlu0 %v3181, 8
      %v3343 = vpop.permute.xlu0 %3342
      %3344 = vrot.lane.b32.xlu0 %v3193, 8
      %v3345 = vpop.permute.xlu0 %3344
      %3346 = vrot.lane.b32.xlu0 %v3205, 8
      %v3347 = vpop.permute.xlu0 %3346
      %3348 = vrot.lane.b32.xlu0 %v3217, 8
      %v3349 = vpop.permute.xlu0 %3348
      %3350 = vrot.lane.b32.xlu0 %v3229, 8
      %v3351 = vpop.permute.xlu0 %3350
      %3352 = vrot.lane.b32.xlu0 %v3241, 8
      %v3353 = vpop.permute.xlu0 %3352
      %3354 = vrot.lane.b32.xlu0 %v3253, 8
      %v3355 = vpop.permute.xlu0 %3354
      %3356 = vrot.lane.b32.xlu0 %v3265, 8
      %v3357 = vpop.permute.xlu0 %3356
      %3358 = vrot.lane.b32.xlu0 %v3277, 8
      %v3359 = vpop.permute.xlu0 %3358
      %3360 = vrot.lane.b32.xlu0 %v3289, 8
      %v3361 = vpop.permute.xlu0 %3360
      %3362 = vrot.lane.b32.xlu0 %v3301, 8
      %v3363 = vpop.permute.xlu0 %3362
      %3364 = vrot.lane.b32.xlu0 %v3313, 8
      %v3365 = vpop.permute.xlu0 %3364
      %3366 = vrot.lane.b32.xlu0 %v3325, 8
      %v3367 = vpop.permute.xlu0 %3366
      %3368 = vrot.lane.b32.xlu0 %v3337, 8
      %v3369 = vpop.permute.xlu0 %3368
      %v3402 = vrot.slane %v3114, 1
      %v3403 = vrot.slane %v3115, 1
      %v3404 = vsel %vm754, %v3402, %v3403
      %v3405 = vrot.slane %v3116, 1
      %v3406 = vrot.slane %v3117, 1
      %v3407 = vsel %vm754, %v3405, %v3406
      %v3408 = vrot.slane %v3118, 1
      %v3409 = vrot.slane %v3119, 1
      %v3410 = vsel %vm754, %v3408, %v3409
      %v3411 = vrot.slane %v3120, 1
      %v3412 = vrot.slane %v3121, 1
      %v3413 = vsel %vm754, %v3411, %v3412
      %v3414 = vrot.slane %v3122, 1
      %v3415 = vrot.slane %v3123, 1
      %v3416 = vsel %vm754, %v3414, %v3415
      %v3417 = vrot.slane %v3124, 1
      %v3418 = vrot.slane %v3125, 1
      %v3419 = vsel %vm754, %v3417, %v3418
      %v3420 = vrot.slane %v3126, 1
      %v3421 = vrot.slane %v3127, 1
      %v3422 = vsel %vm754, %v3420, %v3421
      %v3423 = vrot.slane %v3128, 1
      %v3424 = vrot.slane %v3129, 1
      %v3425 = vsel %vm754, %v3423, %v3424
      %v3426 = vrot.slane %v3130, 1
      %v3427 = vrot.slane %v3131, 1
      %v3428 = vsel %vm754, %v3426, %v3427
      %v3429 = vrot.slane %v3132, 1
      %v3430 = vrot.slane %v3133, 1
      %v3431 = vsel %vm754, %v3429, %v3430
      %v3432 = vrot.slane %v3134, 1
      %v3433 = vrot.slane %v3135, 1
      %v3434 = vsel %vm754, %v3432, %v3433
      %v3435 = vrot.slane %v3136, 1
      %v3436 = vrot.slane %v3137, 1
      %v3437 = vsel %vm754, %v3435, %v3436
      %v3438 = vrot.slane %v3138, 1
      %v3439 = vrot.slane %v3139, 1
      %v3440 = vsel %vm754, %v3438, %v3439
      %v3441 = vrot.slane %v3140, 1
      %v3442 = vrot.slane %v3141, 1
      %v3443 = vsel %vm754, %v3441, %v3442
      %v3444 = vrot.slane %v3142, 1
      %v3445 = vrot.slane %v3143, 1
      %v3446 = vsel %vm754, %v3444, %v3445
      %v3447 = vrot.slane %v3144, 1
      %v3448 = vrot.slane %v3145, 1
      %v3449 = vsel %vm754, %v3447, %v3448
      %3450 = vrot.lane.b32.xlu0 %v3404, 16
      %v3451 = vpop.permute.xlu0 %3450
      %3452 = vrot.lane.b32.xlu0 %v3407, 16
      %v3453 = vpop.permute.xlu0 %3452
      %3454 = vrot.lane.b32.xlu0 %v3410, 16
      %v3455 = vpop.permute.xlu0 %3454
      %3456 = vrot.lane.b32.xlu0 %v3413, 16
      %v3457 = vpop.permute.xlu0 %3456
      %3458 = vrot.lane.b32.xlu0 %v3416, 16
      %v3459 = vpop.permute.xlu0 %3458
      %3460 = vrot.lane.b32.xlu0 %v3419, 16
      %v3461 = vpop.permute.xlu0 %3460
      %3462 = vrot.lane.b32.xlu0 %v3422, 16
      %v3463 = vpop.permute.xlu0 %3462
      %3464 = vrot.lane.b32.xlu0 %v3425, 16
      %v3465 = vpop.permute.xlu0 %3464
      %3466 = vrot.lane.b32.xlu0 %v3428, 16
      %v3467 = vpop.permute.xlu0 %3466
      %3468 = vrot.lane.b32.xlu0 %v3431, 16
      %v3469 = vpop.permute.xlu0 %3468
      %3470 = vrot.lane.b32.xlu0 %v3434, 16
      %v3471 = vpop.permute.xlu0 %3470
      %3472 = vrot.lane.b32.xlu0 %v3437, 16
      %v3473 = vpop.permute.xlu0 %3472
      %3474 = vrot.lane.b32.xlu0 %v3440, 16
      %v3475 = vpop.permute.xlu0 %3474
      %3476 = vrot.lane.b32.xlu0 %v3443, 16
      %v3477 = vpop.permute.xlu0 %3476
      %3478 = vrot.lane.b32.xlu0 %v3446, 16
      %v3479 = vpop.permute.xlu0 %3478
      %3480 = vrot.lane.b32.xlu0 %v3449, 16
      %v3481 = vpop.permute.xlu0 %3480
      %v3483 = vsel %vm1570, %v3114, %v3339
      %v3485 = vsel %vm1570, %v3116, %v3341
      %v3487 = vsel %vm1570, %v3118, %v3343
      %v3489 = vsel %vm1570, %v3120, %v3345
      %v3491 = vsel %vm1570, %v3122, %v3347
      %v3493 = vsel %vm1570, %v3124, %v3349
      %v3495 = vsel %vm1570, %v3126, %v3351
      %v3497 = vsel %vm1570, %v3128, %v3353
      %v3499 = vsel %vm1570, %v3130, %v3355
      %v3501 = vsel %vm1570, %v3132, %v3357
      %v3503 = vsel %vm1570, %v3134, %v3359
      %v3505 = vsel %vm1570, %v3136, %v3361
      %v3507 = vsel %vm1570, %v3138, %v3363
      %v3509 = vsel %vm1570, %v3140, %v3365
      %v3511 = vsel %vm1570, %v3142, %v3367
      %v3513 = vsel %vm1570, %v3144, %v3369
      %vm3514 = vcmask 130048
      %v3516 = vsel %vm3514, %v3483, %v3451
      %v3518 = vsel %vm3514, %v3485, %v3453
      %v3520 = vsel %vm3514, %v3487, %v3455
      %v3522 = vsel %vm3514, %v3489, %v3457
      %v3524 = vsel %vm3514, %v3491, %v3459
      %v3526 = vsel %vm3514, %v3493, %v3461
      %v3528 = vsel %vm3514, %v3495, %v3463
      %v3530 = vsel %vm3514, %v3497, %v3465
      %v3532 = vsel %vm3514, %v3499, %v3467
      %v3534 = vsel %vm3514, %v3501, %v3469
      %v3536 = vsel %vm3514, %v3503, %v3471
      %v3538 = vsel %vm3514, %v3505, %v3473
      %v3540 = vsel %vm3514, %v3507, %v3475
      %v3542 = vsel %vm3514, %v3509, %v3477
      %v3544 = vsel %vm3514, %v3511, %v3479
      %v3546 = vsel %vm3514, %v3513, %v3481
      %v3547 = vld [vmem:[%s2] sm:$0xf]
      %v3548 = vld [vmem:[%s2 + $0x4] sm:$0xf]
      %v3549 = vld [vmem:[%s2 + $0x8] sm:$0xf]
      %v3553 = vunpack.c.l.b16 %v3547
      %v3554 = vunpack.c.l.b16 %v3548
      %v3555 = vunpack.c.l.b16 %v3549
      %v3556 = vpack.c.b16 %v3554, %v3553
      %v3557 = vpack.c.b16 %v3555, %v3555
      %v3559 = vsel %vm1218, %v3516, 0
      %v3561 = vsel %vm1218, %v3518, 0
      %v3563 = vsel %vm1218, %v3520, 0
      %v3565 = vsel %vm1218, %v3522, 0
      %v3567 = vsel %vm1218, %v3524, 0
      %v3569 = vsel %vm1218, %v3526, 0
      %v3571 = vsel %vm1218, %v3528, 0
      %v3573 = vsel %vm1218, %v3530, 0
      %v3575 = vsel %vm1218, %v3532, 0
      %v3577 = vsel %vm1218, %v3534, 0
      %v3579 = vsel %vm1218, %v3536, 0
      %v3581 = vsel %vm1218, %v3538, 0
      %v3583 = vsel %vm1218, %v3540, 0
      %v3585 = vsel %vm1218, %v3542, 0
      %v3587 = vsel %vm1218, %v3544, 0
      %vm3589 = vcmask 1043456
      %v3591 = vsel %vm3589, %v3557, 0
      %3593 = vmatprep.subr.bf16.mxu0 0
      %3594 = vmatpush1.bf16.msra.mxu0 %v3556
      %3595 = vmatprep.subr.bf16.mxu0 0
      %3596 = vmatpush1.bf16.msra.mxu0 %v3591
      %3597 = vmatprep.subr.bf16.mxu0 0
      %3598 = vmatpush1.bf16.msra.mxu0 0
      %3599 = vmatprep.subr.bf16.mxu0 0
      %3600 = vmatpush1.bf16.msra.mxu0 0
      %3601 = vmatprep.subr.bf16.mxu0 0
      %3602 = vmatpush1.bf16.msra.mxu0 0
      %3603 = vmatprep.subr.bf16.mxu0 0
      %3604 = vmatpush1.bf16.msra.mxu0 0
      %3605 = vmatprep.subr.bf16.mxu0 0
      %3606 = vmatpush1.bf16.msra.mxu0 0
      %3607 = vmatprep.subr.bf16.mxu0 0
      %3608 = vmatpush1.bf16.msra.mxu0 0
      %3609 = vmatprep.subr.bf16.mxu0 0
      %3610 = vmatpush1.bf16.msra.mxu0 0
      %3611 = vmatprep.subr.bf16.mxu0 0
      %3612 = vmatpush1.bf16.msra.mxu0 0
      %3613 = vmatprep.subr.bf16.mxu0 0
      %3614 = vmatpush1.bf16.msra.mxu0 0
      %3615 = vmatprep.subr.bf16.mxu0 0
      %3616 = vmatpush1.bf16.msra.mxu0 0
      %3617 = vmatprep.subr.bf16.mxu0 0
      %3618 = vmatpush1.bf16.msra.mxu0 0
      %3619 = vmatprep.subr.bf16.mxu0 0
      %3620 = vmatpush1.bf16.msra.mxu0 0
      %3621 = vmatprep.subr.bf16.mxu0 0
      %3622 = vmatpush1.bf16.msra.mxu0 0
      %3623 = vmatprep.subr.bf16.mxu0 0
      %3624 = vmatpush1.bf16.msra.mxu0 0
      %3625 = vmatprep.mubr.bf16.mxu0 0
      %3626 = vmatmul.mubr.bf16.gmra.mrb[0].mxu0 %v3559
      %v3627 = vpop.f32.mrb[0].mxu0
      %v3628 = vadd.f32 0.0, %v3627
      %v3629 = vpop.f32.mrb[0].mxu0
      %v3630 = vpop.f32.mrb[0].mxu0
      %v3631 = vadd.f32 0.0, %v3630
      %v3632 = vpop.f32.mrb[0].mxu0
      %3633 = vmatprep.mubr.bf16.mxu0 0
      %3634 = vmatmul.mubr.bf16.gmra.mrb[0].mxu0 %v3559
      %v3635 = vpop.f32.mrb[0].mxu0
      %v3636 = vadd.f32 0.0, %v3635
      %v3637 = vpop.f32.mrb[0].mxu0
      %v3638 = vpop.f32.mrb[0].mxu0
      %v3639 = vadd.f32 0.0, %v3638
      %v3640 = vpop.f32.mrb[0].mxu0
      %3641 = vmatprep.mubr.bf16.mxu0 0
      %3642 = vmatmul.mubr.bf16.gmra.mrb[0].mxu0 %v3561
      %v3643 = vpop.f32.mrb[0].mxu0
      %v3644 = vadd.f32 0.0, %v3643
      %v3645 = vpop.f32.mrb[0].mxu0
      %v3646 = vpop.f32.mrb[0].mxu0
      %v3647 = vadd.f32 0.0, %v3646
      %v3648 = vpop.f32.mrb[0].mxu0
      %3649 = vmatprep.mubr.bf16.mxu0 0
      %3650 = vmatmul.mubr.bf16.gmra.mrb[0].mxu0 %v3563
      %v3651 = vpop.f32.mrb[0].mxu0
      %v3652 = vadd.f32 0.0, %v3651
      %v3653 = vpop.f32.mrb[0].mxu0
      %v3654 = vpop.f32.mrb[0].mxu0
      %v3655 = vadd.f32 0.0, %v3654
      %v3656 = vpop.f32.mrb[0].mxu0
      %3657 = vmatprep.mubr.bf16.mxu0 0
      %3658 = vmatmul.mubr.bf16.gmra.mrb[0].mxu0 %v3565
      %v3659 = vpop.f32.mrb[0].mxu0
      %v3660 = vadd.f32 0.0, %v3659
      %v3661 = vpop.f32.mrb[0].mxu0
      %v3662 = vpop.f32.mrb[0].mxu0
      %v3663 = vadd.f32 0.0, %v3662
      %v3664 = vpop.f32.mrb[0].mxu0
      %3665 = vmatprep.mubr.bf16.mxu0 0
      %3666 = vmatmul.mubr.bf16.gmra.mrb[0].mxu0 %v3567
      %v3667 = vpop.f32.mrb[0].mxu0
      %v3668 = vadd.f32 0.0, %v3667
      %v3669 = vpop.f32.mrb[0].mxu0
      %v3670 = vpop.f32.mrb[0].mxu0
      %v3671 = vadd.f32 0.0, %v3670
      %v3672 = vpop.f32.mrb[0].mxu0
      %3673 = vmatprep.mubr.bf16.mxu0 0
      %3674 = vmatmul.mubr.bf16.gmra.mrb[0].mxu0 %v3569
      %v3675 = vpop.f32.mrb[0].mxu0
      %v3676 = vadd.f32 0.0, %v3675
      %v3677 = vpop.f32.mrb[0].mxu0
      %v3678 = vpop.f32.mrb[0].mxu0
      %v3679 = vadd.f32 0.0, %v3678
      %v3680 = vpop.f32.mrb[0].mxu0
      %3681 = vmatprep.mubr.bf16.mxu0 0
      %3682 = vmatmul.mubr.bf16.gmra.mrb[0].mxu0 %v3571
      %v3683 = vpop.f32.mrb[0].mxu0
      %v3684 = vadd.f32 0.0, %v3683
      %v3685 = vpop.f32.mrb[0].mxu0
      %v3686 = vpop.f32.mrb[0].mxu0
      %v3687 = vadd.f32 0.0, %v3686
      %v3688 = vpop.f32.mrb[0].mxu0
      %3689 = vmatprep.mubr.bf16.mxu0 0
      %3690 = vmatmul.mubr.bf16.gmra.mrb[0].mxu0 %v3573
      %v3691 = vpop.f32.mrb[0].mxu0
      %v3692 = vadd.f32 0.0, %v3691
      %v3693 = vpop.f32.mrb[0].mxu0
      %v3694 = vpop.f32.mrb[0].mxu0
      %v3695 = vadd.f32 0.0, %v3694
      %v3696 = vpop.f32.mrb[0].mxu0
      %3697 = vmatprep.mubr.bf16.mxu0 0
      %3698 = vmatmul.mubr.bf16.gmra.mrb[0].mxu0 %v3575
      %v3699 = vpop.f32.mrb[0].mxu0
      %v3700 = vadd.f32 0.0, %v3699
      %v3701 = vpop.f32.mrb[0].mxu0
      %v3702 = vpop.f32.mrb[0].mxu0
      %v3703 = vadd.f32 0.0, %v3702
      %v3704 = vpop.f32.mrb[0].mxu0
      %3705 = vmatprep.mubr.bf16.mxu0 0
      %3706 = vmatmul.mubr.bf16.gmra.mrb[0].mxu0 %v3577
      %v3707 = vpop.f32.mrb[0].mxu0
      %v3708 = vadd.f32 0.0, %v3707
      %v3709 = vpop.f32.mrb[0].mxu0
      %v3710 = vpop.f32.mrb[0].mxu0
      %v3711 = vadd.f32 0.0, %v3710
      %v3712 = vpop.f32.mrb[0].mxu0
      %3713 = vmatprep.mubr.bf16.mxu0 0
      %3714 = vmatmul.mubr.bf16.gmra.mrb[0].mxu0 %v3579
      %v3715 = vpop.f32.mrb[0].mxu0
      %v3716 = vadd.f32 0.0, %v3715
      %v3717 = vpop.f32.mrb[0].mxu0
      %v3718 = vpop.f32.mrb[0].mxu0
      %v3719 = vadd.f32 0.0, %v3718
      %v3720 = vpop.f32.mrb[0].mxu0
      %3721 = vmatprep.mubr.bf16.mxu0 0
      %3722 = vmatmul.mubr.bf16.gmra.mrb[0].mxu0 %v3581
      %v3723 = vpop.f32.mrb[0].mxu0
      %v3724 = vadd.f32 0.0, %v3723
      %v3725 = vpop.f32.mrb[0].mxu0
      %v3726 = vpop.f32.mrb[0].mxu0
      %v3727 = vadd.f32 0.0, %v3726
      %v3728 = vpop.f32.mrb[0].mxu0
      %3729 = vmatprep.mubr.bf16.mxu0 0
      %3730 = vmatmul.mubr.bf16.gmra.mrb[0].mxu0 %v3583
      %v3731 = vpop.f32.mrb[0].mxu0
      %v3732 = vadd.f32 0.0, %v3731
      %v3733 = vpop.f32.mrb[0].mxu0
      %v3734 = vpop.f32.mrb[0].mxu0
      %v3735 = vadd.f32 0.0, %v3734
      %v3736 = vpop.f32.mrb[0].mxu0
      %3737 = vmatprep.mubr.bf16.mxu0 0
      %3738 = vmatmul.mubr.bf16.gmra.mrb[0].mxu0 %v3585
      %v3739 = vpop.f32.mrb[0].mxu0
      %v3740 = vadd.f32 0.0, %v3739
      %v3741 = vpop.f32.mrb[0].mxu0
      %v3742 = vpop.f32.mrb[0].mxu0
      %v3743 = vadd.f32 0.0, %v3742
      %v3744 = vpop.f32.mrb[0].mxu0
      %3745 = vmatprep.mubr.bf16.mxu0 0
      %3746 = vmatmul.mubr.bf16.gmra.mrb[0].mxu0 %v3587
      %v3747 = vpop.f32.mrb[0].mxu0
      %v3748 = vadd.f32 0.0, %v3747
      %v3749 = vpop.f32.mrb[0].mxu0
      %v3750 = vpop.f32.mrb[0].mxu0
      %v3751 = vadd.f32 0.0, %v3750
      %v3752 = vpop.f32.mrb[0].mxu0
      %3753 = vdwg.mxu0
      %3754 = vst.msk [vmem:[#allocation2] sm:$0xff] %vm1570, %v3628
      %3755 = vst.msk [vmem:[#allocation2 + $0x8] sm:$0xff] %vm1570, %v3631
      %3756 = vst.msk [vmem:[#allocation2 + $0x10] sm:$0xff] %vm1570, %v3636
      %3757 = vst.msk [vmem:[#allocation2 + $0x18] sm:$0xff] %vm1570, %v3639
      %3758 = vst.msk [vmem:[#allocation2 + $0x20] sm:$0xff] %vm1570, %v3644
      %3759 = vst.msk [vmem:[#allocation2 + $0x28] sm:$0xff] %vm1570, %v3647
      %3760 = vst.msk [vmem:[#allocation2 + $0x30] sm:$0xff] %vm1570, %v3652
      %3761 = vst.msk [vmem:[#allocation2 + $0x38] sm:$0xff] %vm1570, %v3655
      %3762 = vst.msk [vmem:[#allocation2 + $0x40] sm:$0xff] %vm1570, %v3660
      %3763 = vst.msk [vmem:[#allocation2 + $0x48] sm:$0xff] %vm1570, %v3663
      %3764 = vst.msk [vmem:[#allocation2 + $0x50] sm:$0xff] %vm1570, %v3668
      %3765 = vst.msk [vmem:[#allocation2 + $0x58] sm:$0xff] %vm1570, %v3671
      %3766 = vst.msk [vmem:[#allocation2 + $0x60] sm:$0xff] %vm1570, %v3676
      %3767 = vst.msk [vmem:[#allocation2 + $0x68] sm:$0xff] %vm1570, %v3679
      %3768 = vst.msk [vmem:[#allocation2 + $0x70] sm:$0xff] %vm1570, %v3684
      %3769 = vst.msk [vmem:[#allocation2 + $0x78] sm:$0xff] %vm1570, %v3687
      %3770 = vst.msk [vmem:[#allocation2 + $0x80] sm:$0xff] %vm1570, %v3692
      %3771 = vst.msk [vmem:[#allocation2 + $0x88] sm:$0xff] %vm1570, %v3695
      %3772 = vst.msk [vmem:[#allocation2 + $0x90] sm:$0xff] %vm1570, %v3700
      %3773 = vst.msk [vmem:[#allocation2 + $0x98] sm:$0xff] %vm1570, %v3703
      %3774 = vst.msk [vmem:[#allocation2 + $0xa0] sm:$0xff] %vm1570, %v3708
      %3775 = vst.msk [vmem:[#allocation2 + $0xa8] sm:$0xff] %vm1570, %v3711
      %3776 = vst.msk [vmem:[#allocation2 + $0xb0] sm:$0xff] %vm1570, %v3716
      %3777 = vst.msk [vmem:[#allocation2 + $0xb8] sm:$0xff] %vm1570, %v3719
      %3778 = vst.msk [vmem:[#allocation2 + $0xc0] sm:$0xff] %vm1570, %v3724
      %3779 = vst.msk [vmem:[#allocation2 + $0xc8] sm:$0xff] %vm1570, %v3727
      %3780 = vst.msk [vmem:[#allocation2 + $0xd0] sm:$0xff] %vm1570, %v3732
      %3781 = vst.msk [vmem:[#allocation2 + $0xd8] sm:$0xff] %vm1570, %v3735
      %3782 = vst.msk [vmem:[#allocation2 + $0xe0] sm:$0xff] %vm1570, %v3740
      %3783 = vst.msk [vmem:[#allocation2 + $0xe8] sm:$0xff] %vm1570, %v3743
      %3784 = vst.msk [vmem:[#allocation2 + $0xf0] sm:$0xff] %vm1570, %v3748
      %3785 = vst.msk [vmem:[#allocation2 + $0xf8] sm:$0xff] %vm1570, %v3751
      %s3786 = scalar_lea.vmem %s2, 12
      %v3787 = vld [vmem:[%s3786] sm:$0xf]
      %v3788 = vld [vmem:[%s3786 + $0x4] sm:$0xf]
      %v3789 = vld [vmem:[%s3786 + $0x8] sm:$0xf]
      %v3793 = vunpack.c.l.b16 %v3787
      %v3794 = vunpack.c.l.b16 %v3788
      %v3795 = vunpack.c.l.b16 %v3789
      %v3796 = vpack.c.b16 %v3794, %v3793
      %v3797 = vpack.c.b16 %v3795, %v3795
      %v3799 = vsel %vm1218, %v3546, 0
      %v3802 = vsel %vm3589, %v3797, 0
      %3804 = vmatprep.subr.bf16.mxu0 0
      %3805 = vmatpush1.bf16.msra.mxu0 %v3796
      %3806 = vmatprep.subr.bf16.mxu0 0
      %3807 = vmatpush1.bf16.msra.mxu0 %v3802
      %3808 = vmatprep.subr.bf16.mxu0 0
      %3809 = vmatpush1.bf16.msra.mxu0 0
      %3810 = vmatprep.subr.bf16.mxu0 0
      %3811 = vmatpush1.bf16.msra.mxu0 0
      %3812 = vmatprep.subr.bf16.mxu0 0
      %3813 = vmatpush1.bf16.msra.mxu0 0
      %3814 = vmatprep.subr.bf16.mxu0 0
      %3815 = vmatpush1.bf16.msra.mxu0 0
      %3816 = vmatprep.subr.bf16.mxu0 0
      %3817 = vmatpush1.bf16.msra.mxu0 0
      %3818 = vmatprep.subr.bf16.mxu0 0
      %3819 = vmatpush1.bf16.msra.mxu0 0
      %3820 = vmatprep.subr.bf16.mxu0 0
      %3821 = vmatpush1.bf16.msra.mxu0 0
      %3822 = vmatprep.subr.bf16.mxu0 0
      %3823 = vmatpush1.bf16.msra.mxu0 0
      %3824 = vmatprep.subr.bf16.mxu0 0
      %3825 = vmatpush1.bf16.msra.mxu0 0
      %3826 = vmatprep.subr.bf16.mxu0 0
      %3827 = vmatpush1.bf16.msra.mxu0 0
      %3828 = vmatprep.subr.bf16.mxu0 0
      %3829 = vmatpush1.bf16.msra.mxu0 0
      %3830 = vmatprep.subr.bf16.mxu0 0
      %3831 = vmatpush1.bf16.msra.mxu0 0
      %3832 = vmatprep.subr.bf16.mxu0 0
      %3833 = vmatpush1.bf16.msra.mxu0 0
      %3834 = vmatprep.subr.bf16.mxu0 0
      %3835 = vmatpush1.bf16.msra.mxu0 0
      %3836 = vmatprep.mubr.bf16.mxu0 0
      %3837 = vmatmul.mubr.bf16.gmra.mrb[0].mxu0 %v3559
      %v3838 = vpop.f32.mrb[0].mxu0
      %v3839 = vadd.f32 0.0, %v3838
      %v3840 = vpop.f32.mrb[0].mxu0
      %v3841 = vpop.f32.mrb[0].mxu0
      %v3842 = vadd.f32 0.0, %v3841
      %v3843 = vpop.f32.mrb[0].mxu0
      %3844 = vmatprep.mubr.bf16.mxu0 0
      %3845 = vmatmul.mubr.bf16.gmra.mrb[0].mxu0 %v3561
      %v3846 = vpop.f32.mrb[0].mxu0
      %v3847 = vadd.f32 0.0, %v3846
      %v3848 = vpop.f32.mrb[0].mxu0
      %v3849 = vpop.f32.mrb[0].mxu0
      %v3850 = vadd.f32 0.0, %v3849
      %v3851 = vpop.f32.mrb[0].mxu0
      %3852 = vmatprep.mubr.bf16.mxu0 0
      %3853 = vmatmul.mubr.bf16.gmra.mrb[0].mxu0 %v3563
      %v3854 = vpop.f32.mrb[0].mxu0
      %v3855 = vadd.f32 0.0, %v3854
      %v3856 = vpop.f32.mrb[0].mxu0
      %v3857 = vpop.f32.mrb[0].mxu0
      %v3858 = vadd.f32 0.0, %v3857
      %v3859 = vpop.f32.mrb[0].mxu0
      %3860 = vmatprep.mubr.bf16.mxu0 0
      %3861 = vmatmul.mubr.bf16.gmra.mrb[0].mxu0 %v3565
      %v3862 = vpop.f32.mrb[0].mxu0
      %v3863 = vadd.f32 0.0, %v3862
      %v3864 = vpop.f32.mrb[0].mxu0
      %v3865 = vpop.f32.mrb[0].mxu0
      %v3866 = vadd.f32 0.0, %v3865
      %v3867 = vpop.f32.mrb[0].mxu0
      %3868 = vmatprep.mubr.bf16.mxu0 0
      %3869 = vmatmul.mubr.bf16.gmra.mrb[0].mxu0 %v3567
      %v3870 = vpop.f32.mrb[0].mxu0
      %v3871 = vadd.f32 0.0, %v3870
      %v3872 = vpop.f32.mrb[0].mxu0
      %v3873 = vpop.f32.mrb[0].mxu0
      %v3874 = vadd.f32 0.0, %v3873
      %v3875 = vpop.f32.mrb[0].mxu0
      %3876 = vmatprep.mubr.bf16.mxu0 0
      %3877 = vmatmul.mubr.bf16.gmra.mrb[0].mxu0 %v3569
      %v3878 = vpop.f32.mrb[0].mxu0
      %v3879 = vadd.f32 0.0, %v3878
      %v3880 = vpop.f32.mrb[0].mxu0
      %v3881 = vpop.f32.mrb[0].mxu0
      %v3882 = vadd.f32 0.0, %v3881
      %v3883 = vpop.f32.mrb[0].mxu0
      %3884 = vmatprep.mubr.bf16.mxu0 0
      %3885 = vmatmul.mubr.bf16.gmra.mrb[0].mxu0 %v3571
      %v3886 = vpop.f32.mrb[0].mxu0
      %v3887 = vadd.f32 0.0, %v3886
      %v3888 = vpop.f32.mrb[0].mxu0
      %v3889 = vpop.f32.mrb[0].mxu0
      %v3890 = vadd.f32 0.0, %v3889
      %v3891 = vpop.f32.mrb[0].mxu0
      %3892 = vmatprep.mubr.bf16.mxu0 0
      %3893 = vmatmul.mubr.bf16.gmra.mrb[0].mxu0 %v3573
      %v3894 = vpop.f32.mrb[0].mxu0
      %v3895 = vadd.f32 0.0, %v3894
      %v3896 = vpop.f32.mrb[0].mxu0
      %v3897 = vpop.f32.mrb[0].mxu0
      %v3898 = vadd.f32 0.0, %v3897
      %v3899 = vpop.f32.mrb[0].mxu0
      %3900 = vmatprep.mubr.bf16.mxu0 0
      %3901 = vmatmul.mubr.bf16.gmra.mrb[0].mxu0 %v3575
      %v3902 = vpop.f32.mrb[0].mxu0
      %v3903 = vadd.f32 0.0, %v3902
      %v3904 = vpop.f32.mrb[0].mxu0
      %v3905 = vpop.f32.mrb[0].mxu0
      %v3906 = vadd.f32 0.0, %v3905
      %v3907 = vpop.f32.mrb[0].mxu0
      %3908 = vmatprep.mubr.bf16.mxu0 0
      %3909 = vmatmul.mubr.bf16.gmra.mrb[0].mxu0 %v3577
      %v3910 = vpop.f32.mrb[0].mxu0
      %v3911 = vadd.f32 0.0, %v3910
      %v3912 = vpop.f32.mrb[0].mxu0
      %v3913 = vpop.f32.mrb[0].mxu0
      %v3914 = vadd.f32 0.0, %v3913
      %v3915 = vpop.f32.mrb[0].mxu0
      %3916 = vmatprep.mubr.bf16.mxu0 0
      %3917 = vmatmul.mubr.bf16.gmra.mrb[0].mxu0 %v3579
      %v3918 = vpop.f32.mrb[0].mxu0
      %v3919 = vadd.f32 0.0, %v3918
      %v3920 = vpop.f32.mrb[0].mxu0
      %v3921 = vpop.f32.mrb[0].mxu0
      %v3922 = vadd.f32 0.0, %v3921
      %v3923 = vpop.f32.mrb[0].mxu0
      %3924 = vmatprep.mubr.bf16.mxu0 0
      %3925 = vmatmul.mubr.bf16.gmra.mrb[0].mxu0 %v3581
      %v3926 = vpop.f32.mrb[0].mxu0
      %v3927 = vadd.f32 0.0, %v3926
      %v3928 = vpop.f32.mrb[0].mxu0
      %v3929 = vpop.f32.mrb[0].mxu0
      %v3930 = vadd.f32 0.0, %v3929
      %v3931 = vpop.f32.mrb[0].mxu0
      %3932 = vmatprep.mubr.bf16.mxu0 0
      %3933 = vmatmul.mubr.bf16.gmra.mrb[0].mxu0 %v3583
      %v3934 = vpop.f32.mrb[0].mxu0
      %v3935 = vadd.f32 0.0, %v3934
      %v3936 = vpop.f32.mrb[0].mxu0
      %v3937 = vpop.f32.mrb[0].mxu0
      %v3938 = vadd.f32 0.0, %v3937
      %v3939 = vpop.f32.mrb[0].mxu0
      %3940 = vmatprep.mubr.bf16.mxu0 0
      %3941 = vmatmul.mubr.bf16.gmra.mrb[0].mxu0 %v3585
      %v3942 = vpop.f32.mrb[0].mxu0
      %v3943 = vadd.f32 0.0, %v3942
      %v3944 = vpop.f32.mrb[0].mxu0
      %v3945 = vpop.f32.mrb[0].mxu0
      %v3946 = vadd.f32 0.0, %v3945
      %v3947 = vpop.f32.mrb[0].mxu0
      %3948 = vmatprep.mubr.bf16.mxu0 0
      %3949 = vmatmul.mubr.bf16.gmra.mrb[0].mxu0 %v3587
      %v3950 = vpop.f32.mrb[0].mxu0
      %v3951 = vadd.f32 0.0, %v3950
      %v3952 = vpop.f32.mrb[0].mxu0
      %v3953 = vpop.f32.mrb[0].mxu0
      %v3954 = vadd.f32 0.0, %v3953
      %v3955 = vpop.f32.mrb[0].mxu0
      %3956 = vmatprep.mubr.bf16.mxu0 0
      %3957 = vmatmul.mubr.bf16.gmra.mrb[0].mxu0 %v3799
      %v3958 = vpop.f32.mrb[0].mxu0
      %v3959 = vadd.f32 0.0, %v3958
      %v3960 = vpop.f32.mrb[0].mxu0
      %v3961 = vpop.f32.mrb[0].mxu0
      %v3962 = vadd.f32 0.0, %v3961
      %v3963 = vpop.f32.mrb[0].mxu0
      %3964 = vdwg.mxu0
      %v3965 = vld [vmem:[#allocation2] sm:$0xff]
      %v3966 = vld [vmem:[#allocation2 + $0x8] sm:$0xff]
      %v3967 = vld [vmem:[#allocation2 + $0x10] sm:$0xff]
      %v3968 = vld [vmem:[#allocation2 + $0x18] sm:$0xff]
      %v3969 = vld [vmem:[#allocation2 + $0x20] sm:$0xff]
      %v3970 = vld [vmem:[#allocation2 + $0x28] sm:$0xff]
      %v3971 = vld [vmem:[#allocation2 + $0x30] sm:$0xff]
      %v3972 = vld [vmem:[#allocation2 + $0x38] sm:$0xff]
      %v3973 = vld [vmem:[#allocation2 + $0x40] sm:$0xff]
      %v3974 = vld [vmem:[#allocation2 + $0x48] sm:$0xff]
      %v3975 = vld [vmem:[#allocation2 + $0x50] sm:$0xff]
      %v3976 = vld [vmem:[#allocation2 + $0x58] sm:$0xff]
      %v3977 = vld [vmem:[#allocation2 + $0x60] sm:$0xff]
      %v3978 = vld [vmem:[#allocation2 + $0x68] sm:$0xff]
      %v3979 = vld [vmem:[#allocation2 + $0x70] sm:$0xff]
      %v3980 = vld [vmem:[#allocation2 + $0x78] sm:$0xff]
      %v3981 = vld [vmem:[#allocation2 + $0x80] sm:$0xff]
      %v3982 = vld [vmem:[#allocation2 + $0x88] sm:$0xff]
      %v3983 = vld [vmem:[#allocation2 + $0x90] sm:$0xff]
      %v3984 = vld [vmem:[#allocation2 + $0x98] sm:$0xff]
      %v3985 = vld [vmem:[#allocation2 + $0xa0] sm:$0xff]
      %v3986 = vld [vmem:[#allocation2 + $0xa8] sm:$0xff]
      %v3987 = vld [vmem:[#allocation2 + $0xb0] sm:$0xff]
      %v3988 = vld [vmem:[#allocation2 + $0xb8] sm:$0xff]
      %v3989 = vld [vmem:[#allocation2 + $0xc0] sm:$0xff]
      %v3990 = vld [vmem:[#allocation2 + $0xc8] sm:$0xff]
      %v3991 = vld [vmem:[#allocation2 + $0xd0] sm:$0xff]
      %v3992 = vld [vmem:[#allocation2 + $0xd8] sm:$0xff]
      %v3993 = vld [vmem:[#allocation2 + $0xe0] sm:$0xff]
      %v3994 = vld [vmem:[#allocation2 + $0xe8] sm:$0xff]
      %v3995 = vld [vmem:[#allocation2 + $0xf0] sm:$0xff]
      %v3996 = vld [vmem:[#allocation2 + $0xf8] sm:$0xff]
      %v3997 = vadd.f32 %v3965, %v3839
      %v3998 = vadd.f32 %v3966, %v3842
      %v3999 = vadd.f32 %v3967, %v3847
      %v4000 = vadd.f32 %v3968, %v3850
      %v4001 = vadd.f32 %v3969, %v3855
      %v4002 = vadd.f32 %v3970, %v3858
      %v4003 = vadd.f32 %v3971, %v3863
      %v4004 = vadd.f32 %v3972, %v3866
      %v4005 = vadd.f32 %v3973, %v3871
      %v4006 = vadd.f32 %v3974, %v3874
      %v4007 = vadd.f32 %v3975, %v3879
      %v4008 = vadd.f32 %v3976, %v3882
      %v4009 = vadd.f32 %v3977, %v3887
      %v4010 = vadd.f32 %v3978, %v3890
      %v4011 = vadd.f32 %v3979, %v3895
      %v4012 = vadd.f32 %v3980, %v3898
      %v4013 = vadd.f32 %v3981, %v3903
      %v4014 = vadd.f32 %v3982, %v3906
      %v4015 = vadd.f32 %v3983, %v3911
      %v4016 = vadd.f32 %v3984, %v3914
      %v4017 = vadd.f32 %v3985, %v3919
      %v4018 = vadd.f32 %v3986, %v3922
      %v4019 = vadd.f32 %v3987, %v3927
      %v4020 = vadd.f32 %v3988, %v3930
      %v4021 = vadd.f32 %v3989, %v3935
      %v4022 = vadd.f32 %v3990, %v3938
      %v4023 = vadd.f32 %v3991, %v3943
      %v4024 = vadd.f32 %v3992, %v3946
      %v4025 = vadd.f32 %v3993, %v3951
      %v4026 = vadd.f32 %v3994, %v3954
      %v4027 = vadd.f32 %v3995, %v3959
      %v4028 = vadd.f32 %v3996, %v3962
      %4029 = vst.msk [vmem:[#allocation2] sm:$0xff] %vm1570, %v3997
      %4030 = vst.msk [vmem:[#allocation2 + $0x8] sm:$0xff] %vm1570, %v3998
      %4031 = vst.msk [vmem:[#allocation2 + $0x10] sm:$0xff] %vm1570, %v3999
      %4032 = vst.msk [vmem:[#allocation2 + $0x18] sm:$0xff] %vm1570, %v4000
      %4033 = vst.msk [vmem:[#allocation2 + $0x20] sm:$0xff] %vm1570, %v4001
      %4034 = vst.msk [vmem:[#allocation2 + $0x28] sm:$0xff] %vm1570, %v4002
      %4035 = vst.msk [vmem:[#allocation2 + $0x30] sm:$0xff] %vm1570, %v4003
      %4036 = vst.msk [vmem:[#allocation2 + $0x38] sm:$0xff] %vm1570, %v4004
      %4037 = vst.msk [vmem:[#allocation2 + $0x40] sm:$0xff] %vm1570, %v4005
      %4038 = vst.msk [vmem:[#allocation2 + $0x48] sm:$0xff] %vm1570, %v4006
      %4039 = vst.msk [vmem:[#allocation2 + $0x50] sm:$0xff] %vm1570, %v4007
      %4040 = vst.msk [vmem:[#allocation2 + $0x58] sm:$0xff] %vm1570, %v4008
      %4041 = vst.msk [vmem:[#allocation2 + $0x60] sm:$0xff] %vm1570, %v4009
      %4042 = vst.msk [vmem:[#allocation2 + $0x68] sm:$0xff] %vm1570, %v4010
      %4043 = vst.msk [vmem:[#allocation2 + $0x70] sm:$0xff] %vm1570, %v4011
      %4044 = vst.msk [vmem:[#allocation2 + $0x78] sm:$0xff] %vm1570, %v4012
      %4045 = vst.msk [vmem:[#allocation2 + $0x80] sm:$0xff] %vm1570, %v4013
      %4046 = vst.msk [vmem:[#allocation2 + $0x88] sm:$0xff] %vm1570, %v4014
      %4047 = vst.msk [vmem:[#allocation2 + $0x90] sm:$0xff] %vm1570, %v4015
      %4048 = vst.msk [vmem:[#allocation2 + $0x98] sm:$0xff] %vm1570, %v4016
      %4049 = vst.msk [vmem:[#allocation2 + $0xa0] sm:$0xff] %vm1570, %v4017
      %4050 = vst.msk [vmem:[#allocation2 + $0xa8] sm:$0xff] %vm1570, %v4018
      %4051 = vst.msk [vmem:[#allocation2 + $0xb0] sm:$0xff] %vm1570, %v4019
      %4052 = vst.msk [vmem:[#allocation2 + $0xb8] sm:$0xff] %vm1570, %v4020
      %4053 = vst.msk [vmem:[#allocation2 + $0xc0] sm:$0xff] %vm1570, %v4021
      %4054 = vst.msk [vmem:[#allocation2 + $0xc8] sm:$0xff] %vm1570, %v4022
      %4055 = vst.msk [vmem:[#allocation2 + $0xd0] sm:$0xff] %vm1570, %v4023
      %4056 = vst.msk [vmem:[#allocation2 + $0xd8] sm:$0xff] %vm1570, %v4024
      %4057 = vst.msk [vmem:[#allocation2 + $0xe0] sm:$0xff] %vm1570, %v4025
      %4058 = vst.msk [vmem:[#allocation2 + $0xe8] sm:$0xff] %vm1570, %v4026
      %4059 = vst.msk [vmem:[#allocation2 + $0xf0] sm:$0xff] %vm1570, %v4027
      %4060 = vst.msk [vmem:[#allocation2 + $0xf8] sm:$0xff] %vm1570, %v4028
      %s4061 = scalar_lea.vmem %s2, 24
      %v4062 = vld [vmem:[%s4061] sm:$0xf]
      %v4063 = vld [vmem:[%s4061 + $0x4] sm:$0xf]
      %v4064 = vld [vmem:[%s4061 + $0x8] sm:$0xf]
      %v4068 = vunpack.c.l.b16 %v4062
      %v4069 = vunpack.c.l.b16 %v4063
      %v4070 = vunpack.c.l.b16 %v4064
      %v4071 = vpack.c.b16 %v4069, %v4068
      %v4072 = vpack.c.b16 %v4070, %v4070
      %v4075 = vsel %vm3589, %v4072, 0
      %4077 = vmatprep.subr.bf16.mxu0 0
      %4078 = vmatpush1.bf16.msra.mxu0 %v4071
      %4079 = vmatprep.subr.bf16.mxu0 0
      %4080 = vmatpush1.bf16.msra.mxu0 %v4075
      %4081 = vmatprep.subr.bf16.mxu0 0
      %4082 = vmatpush1.bf16.msra.mxu0 0
      %4083 = vmatprep.subr.bf16.mxu0 0
      %4084 = vmatpush1.bf16.msra.mxu0 0
      %4085 = vmatprep.subr.bf16.mxu0 0
      %4086 = vmatpush1.bf16.msra.mxu0 0
      %4087 = vmatprep.subr.bf16.mxu0 0
      %4088 = vmatpush1.bf16.msra.mxu0 0
      %4089 = vmatprep.subr.bf16.mxu0 0
      %4090 = vmatpush1.bf16.msra.mxu0 0
      %4091 = vmatprep.subr.bf16.mxu0 0
      %4092 = vmatpush1.bf16.msra.mxu0 0
      %4093 = vmatprep.subr.bf16.mxu0 0
      %4094 = vmatpush1.bf16.msra.mxu0 0
      %4095 = vmatprep.subr.bf16.mxu0 0
      %4096 = vmatpush1.bf16.msra.mxu0 0
      %4097 = vmatprep.subr.bf16.mxu0 0
      %4098 = vmatpush1.bf16.msra.mxu0 0
      %4099 = vmatprep.subr.bf16.mxu0 0
      %4100 = vmatpush1.bf16.msra.mxu0 0
      %4101 = vmatprep.subr.bf16.mxu0 0
      %4102 = vmatpush1.bf16.msra.mxu0 0
      %4103 = vmatprep.subr.bf16.mxu0 0
      %4104 = vmatpush1.bf16.msra.mxu0 0
      %4105 = vmatprep.subr.bf16.mxu0 0
      %4106 = vmatpush1.bf16.msra.mxu0 0
      %4107 = vmatprep.subr.bf16.mxu0 0
      %4108 = vmatpush1.bf16.msra.mxu0 0
      %4109 = vmatprep.mubr.bf16.mxu0 0
      %4110 = vmatmul.mubr.bf16.gmra.mrb[0].mxu0 %v3561
      %v4111 = vpop.f32.mrb[0].mxu0
      %v4112 = vadd.f32 0.0, %v4111
      %v4113 = vpop.f32.mrb[0].mxu0
      %v4114 = vpop.f32.mrb[0].mxu0
      %v4115 = vadd.f32 0.0, %v4114
      %v4116 = vpop.f32.mrb[0].mxu0
      %4117 = vmatprep.mubr.bf16.mxu0 0
      %4118 = vmatmul.mubr.bf16.gmra.mrb[0].mxu0 %v3563
      %v4119 = vpop.f32.mrb[0].mxu0
      %v4120 = vadd.f32 0.0, %v4119
      %v4121 = vpop.f32.mrb[0].mxu0
      %v4122 = vpop.f32.mrb[0].mxu0
      %v4123 = vadd.f32 0.0, %v4122
      %v4124 = vpop.f32.mrb[0].mxu0
      %4125 = vmatprep.mubr.bf16.mxu0 0
      %4126 = vmatmul.mubr.bf16.gmra.mrb[0].mxu0 %v3565
      %v4127 = vpop.f32.mrb[0].mxu0
      %v4128 = vadd.f32 0.0, %v4127
      %v4129 = vpop.f32.mrb[0].mxu0
      %v4130 = vpop.f32.mrb[0].mxu0
      %v4131 = vadd.f32 0.0, %v4130
      %v4132 = vpop.f32.mrb[0].mxu0
      %4133 = vmatprep.mubr.bf16.mxu0 0
      %4134 = vmatmul.mubr.bf16.gmra.mrb[0].mxu0 %v3567
      %v4135 = vpop.f32.mrb[0].mxu0
      %v4136 = vadd.f32 0.0, %v4135
      %v4137 = vpop.f32.mrb[0].mxu0
      %v4138 = vpop.f32.mrb[0].mxu0
      %v4139 = vadd.f32 0.0, %v4138
      %v4140 = vpop.f32.mrb[0].mxu0
      %4141 = vmatprep.mubr.bf16.mxu0 0
      %4142 = vmatmul.mubr.bf16.gmra.mrb[0].mxu0 %v3569
      %v4143 = vpop.f32.mrb[0].mxu0
      %v4144 = vadd.f32 0.0, %v4143
      %v4145 = vpop.f32.mrb[0].mxu0
      %v4146 = vpop.f32.mrb[0].mxu0
      %v4147 = vadd.f32 0.0, %v4146
      %v4148 = vpop.f32.mrb[0].mxu0
      %4149 = vmatprep.mubr.bf16.mxu0 0
      %4150 = vmatmul.mubr.bf16.gmra.mrb[0].mxu0 %v3571
      %v4151 = vpop.f32.mrb[0].mxu0
      %v4152 = vadd.f32 0.0, %v4151
      %v4153 = vpop.f32.mrb[0].mxu0
      %v4154 = vpop.f32.mrb[0].mxu0
      %v4155 = vadd.f32 0.0, %v4154
      %v4156 = vpop.f32.mrb[0].mxu0
      %4157 = vmatprep.mubr.bf16.mxu0 0
      %4158 = vmatmul.mubr.bf16.gmra.mrb[0].mxu0 %v3573
      %v4159 = vpop.f32.mrb[0].mxu0
      %v4160 = vadd.f32 0.0, %v4159
      %v4161 = vpop.f32.mrb[0].mxu0
      %v4162 = vpop.f32.mrb[0].mxu0
      %v4163 = vadd.f32 0.0, %v4162
      %v4164 = vpop.f32.mrb[0].mxu0
      %4165 = vmatprep.mubr.bf16.mxu0 0
      %4166 = vmatmul.mubr.bf16.gmra.mrb[0].mxu0 %v3575
      %v4167 = vpop.f32.mrb[0].mxu0
      %v4168 = vadd.f32 0.0, %v4167
      %v4169 = vpop.f32.mrb[0].mxu0
      %v4170 = vpop.f32.mrb[0].mxu0
      %v4171 = vadd.f32 0.0, %v4170
      %v4172 = vpop.f32.mrb[0].mxu0
      %4173 = vmatprep.mubr.bf16.mxu0 0
      %4174 = vmatmul.mubr.bf16.gmra.mrb[0].mxu0 %v3577
      %v4175 = vpop.f32.mrb[0].mxu0
      %v4176 = vadd.f32 0.0, %v4175
      %v4177 = vpop.f32.mrb[0].mxu0
      %v4178 = vpop.f32.mrb[0].mxu0
      %v4179 = vadd.f32 0.0, %v4178
      %v4180 = vpop.f32.mrb[0].mxu0
      %4181 = vmatprep.mubr.bf16.mxu0 0
      %4182 = vmatmul.mubr.bf16.gmra.mrb[0].mxu0 %v3579
      %v4183 = vpop.f32.mrb[0].mxu0
      %v4184 = vadd.f32 0.0, %v4183
      %v4185 = vpop.f32.mrb[0].mxu0
      %v4186 = vpop.f32.mrb[0].mxu0
      %v4187 = vadd.f32 0.0, %v4186
      %v4188 = vpop.f32.mrb[0].mxu0
      %4189 = vmatprep.mubr.bf16.mxu0 0
      %4190 = vmatmul.mubr.bf16.gmra.mrb[0].mxu0 %v3581
      %v4191 = vpop.f32.mrb[0].mxu0
      %v4192 = vadd.f32 0.0, %v4191
      %v4193 = vpop.f32.mrb[0].mxu0
      %v4194 = vpop.f32.mrb[0].mxu0
      %v4195 = vadd.f32 0.0, %v4194
      %v4196 = vpop.f32.mrb[0].mxu0
      %4197 = vmatprep.mubr.bf16.mxu0 0
      %4198 = vmatmul.mubr.bf16.gmra.mrb[0].mxu0 %v3583
      %v4199 = vpop.f32.mrb[0].mxu0
      %v4200 = vadd.f32 0.0, %v4199
      %v4201 = vpop.f32.mrb[0].mxu0
      %v4202 = vpop.f32.mrb[0].mxu0
      %v4203 = vadd.f32 0.0, %v4202
      %v4204 = vpop.f32.mrb[0].mxu0
      %4205 = vmatprep.mubr.bf16.mxu0 0
      %4206 = vmatmul.mubr.bf16.gmra.mrb[0].mxu0 %v3585
      %v4207 = vpop.f32.mrb[0].mxu0
      %v4208 = vadd.f32 0.0, %v4207
      %v4209 = vpop.f32.mrb[0].mxu0
      %v4210 = vpop.f32.mrb[0].mxu0
      %v4211 = vadd.f32 0.0, %v4210
      %v4212 = vpop.f32.mrb[0].mxu0
      %4213 = vmatprep.mubr.bf16.mxu0 0
      %4214 = vmatmul.mubr.bf16.gmra.mrb[0].mxu0 %v3587
      %v4215 = vpop.f32.mrb[0].mxu0
      %v4216 = vadd.f32 0.0, %v4215
      %v4217 = vpop.f32.mrb[0].mxu0
      %v4218 = vpop.f32.mrb[0].mxu0
      %v4219 = vadd.f32 0.0, %v4218
      %v4220 = vpop.f32.mrb[0].mxu0
      %4221 = vmatprep.mubr.bf16.mxu0 0
      %4222 = vmatmul.mubr.bf16.gmra.mrb[0].mxu0 %v3799
      %v4223 = vpop.f32.mrb[0].mxu0
      %v4224 = vadd.f32 0.0, %v4223
      %v4225 = vpop.f32.mrb[0].mxu0
      %v4226 = vpop.f32.mrb[0].mxu0
      %v4227 = vadd.f32 0.0, %v4226
      %v4228 = vpop.f32.mrb[0].mxu0
      %4229 = vmatprep.mubr.bf16.mxu0 0
      %4230 = vmatmul.mubr.bf16.gmra.mrb[0].mxu0 %v3799
      %v4231 = vpop.f32.mrb[0].mxu0
      %v4232 = vadd.f32 0.0, %v4231
      %v4233 = vpop.f32.mrb[0].mxu0
      %v4234 = vpop.f32.mrb[0].mxu0
      %v4235 = vadd.f32 0.0, %v4234
      %v4236 = vpop.f32.mrb[0].mxu0
      %4237 = vdwg.mxu0
      %v4238 = vld [vmem:[#allocation2] sm:$0xff]
      %v4239 = vld [vmem:[#allocation2 + $0x8] sm:$0xff]
      %v4240 = vld [vmem:[#allocation2 + $0x10] sm:$0xff]
      %v4241 = vld [vmem:[#allocation2 + $0x18] sm:$0xff]
      %v4242 = vld [vmem:[#allocation2 + $0x20] sm:$0xff]
      %v4243 = vld [vmem:[#allocation2 + $0x28] sm:$0xff]
      %v4244 = vld [vmem:[#allocation2 + $0x30] sm:$0xff]
      %v4245 = vld [vmem:[#allocation2 + $0x38] sm:$0xff]
      %v4246 = vld [vmem:[#allocation2 + $0x40] sm:$0xff]
      %v4247 = vld [vmem:[#allocation2 + $0x48] sm:$0xff]
      %v4248 = vld [vmem:[#allocation2 + $0x50] sm:$0xff]
      %v4249 = vld [vmem:[#allocation2 + $0x58] sm:$0xff]
      %v4250 = vld [vmem:[#allocation2 + $0x60] sm:$0xff]
      %v4251 = vld [vmem:[#allocation2 + $0x68] sm:$0xff]
      %v4252 = vld [vmem:[#allocation2 + $0x70] sm:$0xff]
      %v4253 = vld [vmem:[#allocation2 + $0x78] sm:$0xff]
      %v4254 = vld [vmem:[#allocation2 + $0x80] sm:$0xff]
      %v4255 = vld [vmem:[#allocation2 + $0x88] sm:$0xff]
      %v4256 = vld [vmem:[#allocation2 + $0x90] sm:$0xff]
      %v4257 = vld [vmem:[#allocation2 + $0x98] sm:$0xff]
      %v4258 = vld [vmem:[#allocation2 + $0xa0] sm:$0xff]
      %v4259 = vld [vmem:[#allocation2 + $0xa8] sm:$0xff]
      %v4260 = vld [vmem:[#allocation2 + $0xb0] sm:$0xff]
      %v4261 = vld [vmem:[#allocation2 + $0xb8] sm:$0xff]
      %v4262 = vld [vmem:[#allocation2 + $0xc0] sm:$0xff]
      %v4263 = vld [vmem:[#allocation2 + $0xc8] sm:$0xff]
      %v4264 = vld [vmem:[#allocation2 + $0xd0] sm:$0xff]
      %v4265 = vld [vmem:[#allocation2 + $0xd8] sm:$0xff]
      %v4266 = vld [vmem:[#allocation2 + $0xe0] sm:$0xff]
      %v4267 = vld [vmem:[#allocation2 + $0xe8] sm:$0xff]
      %v4268 = vld [vmem:[#allocation2 + $0xf0] sm:$0xff]
      %v4269 = vld [vmem:[#allocation2 + $0xf8] sm:$0xff]
      %v4270 = vadd.f32 %v4238, %v4112
      %v4271 = vadd.f32 %v4239, %v4115
      %v4272 = vadd.f32 %v4240, %v4120
      %v4273 = vadd.f32 %v4241, %v4123
      %v4274 = vadd.f32 %v4242, %v4128
      %v4275 = vadd.f32 %v4243, %v4131
      %v4276 = vadd.f32 %v4244, %v4136
      %v4277 = vadd.f32 %v4245, %v4139
      %v4278 = vadd.f32 %v4246, %v4144
      %v4279 = vadd.f32 %v4247, %v4147
      %v4280 = vadd.f32 %v4248, %v4152
      %v4281 = vadd.f32 %v4249, %v4155
      %v4282 = vadd.f32 %v4250, %v4160
      %v4283 = vadd.f32 %v4251, %v4163
      %v4284 = vadd.f32 %v4252, %v4168
      %v4285 = vadd.f32 %v4253, %v4171
      %v4286 = vadd.f32 %v4254, %v4176
      %v4287 = vadd.f32 %v4255, %v4179
      %v4288 = vadd.f32 %v4256, %v4184
      %v4289 = vadd.f32 %v4257, %v4187
      %v4290 = vadd.f32 %v4258, %v4192
      %v4291 = vadd.f32 %v4259, %v4195
      %v4292 = vadd.f32 %v4260, %v4200
      %v4293 = vadd.f32 %v4261, %v4203
      %v4294 = vadd.f32 %v4262, %v4208
      %v4295 = vadd.f32 %v4263, %v4211
      %v4296 = vadd.f32 %v4264, %v4216
      %v4297 = vadd.f32 %v4265, %v4219
      %v4298 = vadd.f32 %v4266, %v4224
      %v4299 = vadd.f32 %v4267, %v4227
      %v4300 = vadd.f32 %v4268, %v4232
      %v4301 = vadd.f32 %v4269, %v4235
      %4302 = vst.msk [vmem:[#allocation2] sm:$0xff] %vm1570, %v4270
      %4303 = vst.msk [vmem:[#allocation2 + $0x8] sm:$0xff] %vm1570, %v4271
      %4304 = vst.msk [vmem:[#allocation2 + $0x10] sm:$0xff] %vm1570, %v4272
      %4305 = vst.msk [vmem:[#allocation2 + $0x18] sm:$0xff] %vm1570, %v4273
      %4306 = vst.msk [vmem:[#allocation2 + $0x20] sm:$0xff] %vm1570, %v4274
      %4307 = vst.msk [vmem:[#allocation2 + $0x28] sm:$0xff] %vm1570, %v4275
      %4308 = vst.msk [vmem:[#allocation2 + $0x30] sm:$0xff] %vm1570, %v4276
      %4309 = vst.msk [vmem:[#allocation2 + $0x38] sm:$0xff] %vm1570, %v4277
      %4310 = vst.msk [vmem:[#allocation2 + $0x40] sm:$0xff] %vm1570, %v4278
      %4311 = vst.msk [vmem:[#allocation2 + $0x48] sm:$0xff] %vm1570, %v4279
      %4312 = vst.msk [vmem:[#allocation2 + $0x50] sm:$0xff] %vm1570, %v4280
      %4313 = vst.msk [vmem:[#allocation2 + $0x58] sm:$0xff] %vm1570, %v4281
      %4314 = vst.msk [vmem:[#allocation2 + $0x60] sm:$0xff] %vm1570, %v4282
      %4315 = vst.msk [vmem:[#allocation2 + $0x68] sm:$0xff] %vm1570, %v4283
      %4316 = vst.msk [vmem:[#allocation2 + $0x70] sm:$0xff] %vm1570, %v4284
      %4317 = vst.msk [vmem:[#allocation2 + $0x78] sm:$0xff] %vm1570, %v4285
      %4318 = vst.msk [vmem:[#allocation2 + $0x80] sm:$0xff] %vm1570, %v4286
      %4319 = vst.msk [vmem:[#allocation2 + $0x88] sm:$0xff] %vm1570, %v4287
      %4320 = vst.msk [vmem:[#allocation2 + $0x90] sm:$0xff] %vm1570, %v4288
      %4321 = vst.msk [vmem:[#allocation2 + $0x98] sm:$0xff] %vm1570, %v4289
      %4322 = vst.msk [vmem:[#allocation2 + $0xa0] sm:$0xff] %vm1570, %v4290
      %4323 = vst.msk [vmem:[#allocation2 + $0xa8] sm:$0xff] %vm1570, %v4291
      %4324 = vst.msk [vmem:[#allocation2 + $0xb0] sm:$0xff] %vm1570, %v4292
      %4325 = vst.msk [vmem:[#allocation2 + $0xb8] sm:$0xff] %vm1570, %v4293
      %4326 = vst.msk [vmem:[#allocation2 + $0xc0] sm:$0xff] %vm1570, %v4294
      %4327 = vst.msk [vmem:[#allocation2 + $0xc8] sm:$0xff] %vm1570, %v4295
      %4328 = vst.msk [vmem:[#allocation2 + $0xd0] sm:$0xff] %vm1570, %v4296
      %4329 = vst.msk [vmem:[#allocation2 + $0xd8] sm:$0xff] %vm1570, %v4297
      %4330 = vst.msk [vmem:[#allocation2 + $0xe0] sm:$0xff] %vm1570, %v4298
      %4331 = vst.msk [vmem:[#allocation2 + $0xe8] sm:$0xff] %vm1570, %v4299
      %4332 = vst.msk [vmem:[#allocation2 + $0xf0] sm:$0xff] %vm1570, %v4300
      %4333 = vst.msk [vmem:[#allocation2 + $0xf8] sm:$0xff] %vm1570, %v4301
      %v4334 = vld [vmem:[#allocation2] sm:$0xff]
      %v4335 = vld [vmem:[#allocation2 + $0x8] sm:$0xff]
      %v4336 = vld [vmem:[#allocation2 + $0x10] sm:$0xff]
      %v4337 = vld [vmem:[#allocation2 + $0x18] sm:$0xff]
      %v4338 = vld [vmem:[#allocation2 + $0x20] sm:$0xff]
      %v4339 = vld [vmem:[#allocation2 + $0x28] sm:$0xff]
      %v4340 = vld [vmem:[#allocation2 + $0x30] sm:$0xff]
      %v4341 = vld [vmem:[#allocation2 + $0x38] sm:$0xff]
      %v4342 = vld [vmem:[#allocation2 + $0x40] sm:$0xff]
      %v4343 = vld [vmem:[#allocation2 + $0x48] sm:$0xff]
      %v4344 = vld [vmem:[#allocation2 + $0x50] sm:$0xff]
      %v4345 = vld [vmem:[#allocation2 + $0x58] sm:$0xff]
      %v4346 = vld [vmem:[#allocation2 + $0x60] sm:$0xff]
      %v4347 = vld [vmem:[#allocation2 + $0x68] sm:$0xff]
      %v4348 = vld [vmem:[#allocation2 + $0x70] sm:$0xff]
      %v4349 = vld [vmem:[#allocation2 + $0x78] sm:$0xff]
      %v4350 = vld [vmem:[#allocation2 + $0x80] sm:$0xff]
      %v4351 = vld [vmem:[#allocation2 + $0x88] sm:$0xff]
      %v4352 = vld [vmem:[#allocation2 + $0x90] sm:$0xff]
      %v4353 = vld [vmem:[#allocation2 + $0x98] sm:$0xff]
      %v4354 = vld [vmem:[#allocation2 + $0xa0] sm:$0xff]
      %v4355 = vld [vmem:[#allocation2 + $0xa8] sm:$0xff]
      %v4356 = vld [vmem:[#allocation2 + $0xb0] sm:$0xff]
      %v4357 = vld [vmem:[#allocation2 + $0xb8] sm:$0xff]
      %v4358 = vld [vmem:[#allocation2 + $0xc0] sm:$0xff]
      %v4359 = vld [vmem:[#allocation2 + $0xc8] sm:$0xff]
      %v4360 = vld [vmem:[#allocation2 + $0xd0] sm:$0xff]
      %v4361 = vld [vmem:[#allocation2 + $0xd8] sm:$0xff]
      %v4362 = vld [vmem:[#allocation2 + $0xe0] sm:$0xff]
      %v4363 = vld [vmem:[#allocation2 + $0xe8] sm:$0xff]
      %v4364 = vld [vmem:[#allocation2 + $0xf0] sm:$0xff]
      %v4365 = vld [vmem:[#allocation2 + $0xf8] sm:$0xff]
      %v4382 = vrot.slane %v4334, 7
      %v4383 = vrot.slane %v4336, 7
      %v4384 = vrot.slane %v4338, 7
      %v4385 = vrot.slane %v4340, 7
      %v4386 = vrot.slane %v4342, 7
      %v4387 = vrot.slane %v4344, 7
      %v4388 = vrot.slane %v4346, 7
      %v4389 = vrot.slane %v4348, 7
      %v4390 = vrot.slane %v4350, 7
      %v4391 = vrot.slane %v4352, 7
      %v4392 = vrot.slane %v4354, 7
      %v4393 = vrot.slane %v4356, 7
      %v4394 = vrot.slane %v4358, 7
      %v4395 = vrot.slane %v4360, 7
      %v4396 = vrot.slane %v4362, 7
      %v4397 = vrot.slane %v4364, 7
      %vm4430 = vcmask 1041408
      %v4431 = vrot.slane %v4334, 6
      %v4432 = vrot.slane %v4335, 6
      %v4433 = vsel %vm4430, %v4431, %v4432
      %v4434 = vrot.slane %v4336, 6
      %v4435 = vrot.slane %v4337, 6
      %v4436 = vsel %vm4430, %v4434, %v4435
      %v4437 = vrot.slane %v4338, 6
      %v4438 = vrot.slane %v4339, 6
      %v4439 = vsel %vm4430, %v4437, %v4438
      %v4440 = vrot.slane %v4340, 6
      %v4441 = vrot.slane %v4341, 6
      %v4442 = vsel %vm4430, %v4440, %v4441
      %v4443 = vrot.slane %v4342, 6
      %v4444 = vrot.slane %v4343, 6
      %v4445 = vsel %vm4430, %v4443, %v4444
      %v4446 = vrot.slane %v4344, 6
      %v4447 = vrot.slane %v4345, 6
      %v4448 = vsel %vm4430, %v4446, %v4447
      %v4449 = vrot.slane %v4346, 6
      %v4450 = vrot.slane %v4347, 6
      %v4451 = vsel %vm4430, %v4449, %v4450
      %v4452 = vrot.slane %v4348, 6
      %v4453 = vrot.slane %v4349, 6
      %v4454 = vsel %vm4430, %v4452, %v4453
      %v4455 = vrot.slane %v4350, 6
      %v4456 = vrot.slane %v4351, 6
      %v4457 = vsel %vm4430, %v4455, %v4456
      %v4458 = vrot.slane %v4352, 6
      %v4459 = vrot.slane %v4353, 6
      %v4460 = vsel %vm4430, %v4458, %v4459
      %v4461 = vrot.slane %v4354, 6
      %v4462 = vrot.slane %v4355, 6
      %v4463 = vsel %vm4430, %v4461, %v4462
      %v4464 = vrot.slane %v4356, 6
      %v4465 = vrot.slane %v4357, 6
      %v4466 = vsel %vm4430, %v4464, %v4465
      %v4467 = vrot.slane %v4358, 6
      %v4468 = vrot.slane %v4359, 6
      %v4469 = vsel %vm4430, %v4467, %v4468
      %v4470 = vrot.slane %v4360, 6
      %v4471 = vrot.slane %v4361, 6
      %v4472 = vsel %vm4430, %v4470, %v4471
      %v4473 = vrot.slane %v4362, 6
      %v4474 = vrot.slane %v4363, 6
      %v4475 = vsel %vm4430, %v4473, %v4474
      %v4476 = vrot.slane %v4364, 6
      %v4477 = vrot.slane %v4365, 6
      %v4478 = vsel %vm4430, %v4476, %v4477
      %v4527 = vrot.slane %v4335, 5
      %v4528 = vrot.slane %v4337, 5
      %v4529 = vrot.slane %v4339, 5
      %v4530 = vrot.slane %v4341, 5
      %v4531 = vrot.slane %v4343, 5
      %v4532 = vrot.slane %v4345, 5
      %v4533 = vrot.slane %v4347, 5
      %v4534 = vrot.slane %v4349, 5
      %v4535 = vrot.slane %v4351, 5
      %v4536 = vrot.slane %v4353, 5
      %v4537 = vrot.slane %v4355, 5
      %v4538 = vrot.slane %v4357, 5
      %v4539 = vrot.slane %v4359, 5
      %v4540 = vrot.slane %v4361, 5
      %v4541 = vrot.slane %v4363, 5
      %v4542 = vrot.slane %v4365, 5
      %v4559 = vrot.slane %v4335, 4
      %v4560 = vrot.slane %v4337, 4
      %v4561 = vrot.slane %v4339, 4
      %v4562 = vrot.slane %v4341, 4
      %v4563 = vrot.slane %v4343, 4
      %v4564 = vrot.slane %v4345, 4
      %v4565 = vrot.slane %v4347, 4
      %v4566 = vrot.slane %v4349, 4
      %v4567 = vrot.slane %v4351, 4
      %v4568 = vrot.slane %v4353, 4
      %v4569 = vrot.slane %v4355, 4
      %v4570 = vrot.slane %v4357, 4
      %v4571 = vrot.slane %v4359, 4
      %v4572 = vrot.slane %v4361, 4
      %v4573 = vrot.slane %v4363, 4
      %v4574 = vrot.slane %v4365, 4
      %v4591 = vsel %vm2953, %v4334, %v4382
      %v4592 = vsel %vm2953, %v4336, %v4383
      %v4593 = vsel %vm2953, %v4338, %v4384
      %v4594 = vsel %vm2953, %v4340, %v4385
      %v4595 = vsel %vm2953, %v4342, %v4386
      %v4596 = vsel %vm2953, %v4344, %v4387
      %v4597 = vsel %vm2953, %v4346, %v4388
      %v4598 = vsel %vm2953, %v4348, %v4389
      %v4599 = vsel %vm2953, %v4350, %v4390
      %v4600 = vsel %vm2953, %v4352, %v4391
      %v4601 = vsel %vm2953, %v4354, %v4392
      %v4602 = vsel %vm2953, %v4356, %v4393
      %v4603 = vsel %vm2953, %v4358, %v4394
      %v4604 = vsel %vm2953, %v4360, %v4395
      %v4605 = vsel %vm2953, %v4362, %v4396
      %v4606 = vsel %vm2953, %v4364, %v4397
      %v4607 = vsel %vm4430, %v4591, %v4431
      %v4608 = vsel %vm4430, %v4592, %v4434
      %v4609 = vsel %vm4430, %v4593, %v4437
      %v4610 = vsel %vm4430, %v4594, %v4440
      %v4611 = vsel %vm4430, %v4595, %v4443
      %v4612 = vsel %vm4430, %v4596, %v4446
      %v4613 = vsel %vm4430, %v4597, %v4449
      %v4614 = vsel %vm4430, %v4598, %v4452
      %v4615 = vsel %vm4430, %v4599, %v4455
      %v4616 = vsel %vm4430, %v4600, %v4458
      %v4617 = vsel %vm4430, %v4601, %v4461
      %v4618 = vsel %vm4430, %v4602, %v4464
      %v4619 = vsel %vm4430, %v4603, %v4467
      %v4620 = vsel %vm4430, %v4604, %v4470
      %v4621 = vsel %vm4430, %v4605, %v4473
      %v4622 = vsel %vm4430, %v4606, %v4476
      %v4623 = vsel %vm4430, %v4432, %v4527
      %v4624 = vsel %vm4430, %v4435, %v4528
      %v4625 = vsel %vm4430, %v4438, %v4529
      %v4626 = vsel %vm4430, %v4441, %v4530
      %v4627 = vsel %vm4430, %v4444, %v4531
      %v4628 = vsel %vm4430, %v4447, %v4532
      %v4629 = vsel %vm4430, %v4450, %v4533
      %v4630 = vsel %vm4430, %v4453, %v4534
      %v4631 = vsel %vm4430, %v4456, %v4535
      %v4632 = vsel %vm4430, %v4459, %v4536
      %v4633 = vsel %vm4430, %v4462, %v4537
      %v4634 = vsel %vm4430, %v4465, %v4538
      %v4635 = vsel %vm4430, %v4468, %v4539
      %v4636 = vsel %vm4430, %v4471, %v4540
      %v4637 = vsel %vm4430, %v4474, %v4541
      %v4638 = vsel %vm4430, %v4477, %v4542
      %vm4639 = vcmask 1042432
      %v4640 = vsel %vm4639, %v4623, %v4559
      %v4641 = vsel %vm4639, %v4624, %v4560
      %v4642 = vsel %vm4639, %v4625, %v4561
      %v4643 = vsel %vm4639, %v4626, %v4562
      %v4644 = vsel %vm4639, %v4627, %v4563
      %v4645 = vsel %vm4639, %v4628, %v4564
      %v4646 = vsel %vm4639, %v4629, %v4565
      %v4647 = vsel %vm4639, %v4630, %v4566
      %v4648 = vsel %vm4639, %v4631, %v4567
      %v4649 = vsel %vm4639, %v4632, %v4568
      %v4650 = vsel %vm4639, %v4633, %v4569
      %v4651 = vsel %vm4639, %v4634, %v4570
      %v4652 = vsel %vm4639, %v4635, %v4571
      %v4653 = vsel %vm4639, %v4636, %v4572
      %v4654 = vsel %vm4639, %v4637, %v4573
      %v4655 = vsel %vm4639, %v4638, %v4574
      %v4656 = vpack.c.bf16 %v4433, %v4607
      %v4657 = vpack.c.bf16 %v4640, %v4640
      %v4658 = vpack.c.bf16 %v4436, %v4608
      %v4659 = vpack.c.bf16 %v4641, %v4641
      %v4660 = vpack.c.bf16 %v4439, %v4609
      %v4661 = vpack.c.bf16 %v4642, %v4642
      %v4662 = vpack.c.bf16 %v4442, %v4610
      %v4663 = vpack.c.bf16 %v4643, %v4643
      %v4664 = vpack.c.bf16 %v4445, %v4611
      %v4665 = vpack.c.bf16 %v4644, %v4644
      %v4666 = vpack.c.bf16 %v4448, %v4612
      %v4667 = vpack.c.bf16 %v4645, %v4645
      %v4668 = vpack.c.bf16 %v4451, %v4613
      %v4669 = vpack.c.bf16 %v4646, %v4646
      %v4670 = vpack.c.bf16 %v4454, %v4614
      %v4671 = vpack.c.bf16 %v4647, %v4647
      %v4672 = vpack.c.bf16 %v4457, %v4615
      %v4673 = vpack.c.bf16 %v4648, %v4648
      %v4674 = vpack.c.bf16 %v4460, %v4616
      %v4675 = vpack.c.bf16 %v4649, %v4649
      %v4676 = vpack.c.bf16 %v4463, %v4617
      %v4677 = vpack.c.bf16 %v4650, %v4650
      %v4678 = vpack.c.bf16 %v4466, %v4618
      %v4679 = vpack.c.bf16 %v4651, %v4651
      %v4680 = vpack.c.bf16 %v4469, %v4619
      %v4681 = vpack.c.bf16 %v4652, %v4652
      %v4682 = vpack.c.bf16 %v4472, %v4620
      %v4683 = vpack.c.bf16 %v4653, %v4653
      %v4684 = vpack.c.bf16 %v4475, %v4621
      %v4685 = vpack.c.bf16 %v4654, %v4654
      %v4686 = vpack.c.bf16 %v4478, %v4622
      %v4687 = vpack.c.bf16 %v4655, %v4655
      %v4689 = vshrl.u32 %v4656, 16
      %v4691 = vshll.u32 %v4656, 16
      %v4693 = vrot.slane %v4691, 1
      %v4694 = vor.u32 %v4689, %v4693
      %v4696 = vshll.u32 %v4657, 16
      %v4698 = vrot.slane %v4696, 1
      %v4699 = vsel %vm473, %v4694, %v4698
      %v4701 = vshrl.u32 %v4658, 16
      %v4703 = vshll.u32 %v4658, 16
      %v4705 = vrot.slane %v4703, 1
      %v4706 = vor.u32 %v4701, %v4705
      %v4708 = vshll.u32 %v4659, 16
      %v4710 = vrot.slane %v4708, 1
      %v4711 = vsel %vm473, %v4706, %v4710
      %v4713 = vshrl.u32 %v4660, 16
      %v4715 = vshll.u32 %v4660, 16
      %v4717 = vrot.slane %v4715, 1
      %v4718 = vor.u32 %v4713, %v4717
      %v4720 = vshll.u32 %v4661, 16
      %v4722 = vrot.slane %v4720, 1
      %v4723 = vsel %vm473, %v4718, %v4722
      %v4725 = vshrl.u32 %v4662, 16
      %v4727 = vshll.u32 %v4662, 16
      %v4729 = vrot.slane %v4727, 1
      %v4730 = vor.u32 %v4725, %v4729
      %v4732 = vshll.u32 %v4663, 16
      %v4734 = vrot.slane %v4732, 1
      %v4735 = vsel %vm473, %v4730, %v4734
      %v4737 = vshrl.u32 %v4664, 16
      %v4739 = vshll.u32 %v4664, 16
      %v4741 = vrot.slane %v4739, 1
      %v4742 = vor.u32 %v4737, %v4741
      %v4744 = vshll.u32 %v4665, 16
      %v4746 = vrot.slane %v4744, 1
      %v4747 = vsel %vm473, %v4742, %v4746
      %v4749 = vshrl.u32 %v4666, 16
      %v4751 = vshll.u32 %v4666, 16
      %v4753 = vrot.slane %v4751, 1
      %v4754 = vor.u32 %v4749, %v4753
      %v4756 = vshll.u32 %v4667, 16
      %v4758 = vrot.slane %v4756, 1
      %v4759 = vsel %vm473, %v4754, %v4758
      %v4761 = vshrl.u32 %v4668, 16
      %v4763 = vshll.u32 %v4668, 16
      %v4765 = vrot.slane %v4763, 1
      %v4766 = vor.u32 %v4761, %v4765
      %v4768 = vshll.u32 %v4669, 16
      %v4770 = vrot.slane %v4768, 1
      %v4771 = vsel %vm473, %v4766, %v4770
      %v4773 = vshrl.u32 %v4670, 16
      %v4775 = vshll.u32 %v4670, 16
      %v4777 = vrot.slane %v4775, 1
      %v4778 = vor.u32 %v4773, %v4777
      %v4780 = vshll.u32 %v4671, 16
      %v4782 = vrot.slane %v4780, 1
      %v4783 = vsel %vm473, %v4778, %v4782
      %v4785 = vshrl.u32 %v4672, 16
      %v4787 = vshll.u32 %v4672, 16
      %v4789 = vrot.slane %v4787, 1
      %v4790 = vor.u32 %v4785, %v4789
      %v4792 = vshll.u32 %v4673, 16
      %v4794 = vrot.slane %v4792, 1
      %v4795 = vsel %vm473, %v4790, %v4794
      %v4797 = vshrl.u32 %v4674, 16
      %v4799 = vshll.u32 %v4674, 16
      %v4801 = vrot.slane %v4799, 1
      %v4802 = vor.u32 %v4797, %v4801
      %v4804 = vshll.u32 %v4675, 16
      %v4806 = vrot.slane %v4804, 1
      %v4807 = vsel %vm473, %v4802, %v4806
      %v4809 = vshrl.u32 %v4676, 16
      %v4811 = vshll.u32 %v4676, 16
      %v4813 = vrot.slane %v4811, 1
      %v4814 = vor.u32 %v4809, %v4813
      %v4816 = vshll.u32 %v4677, 16
      %v4818 = vrot.slane %v4816, 1
      %v4819 = vsel %vm473, %v4814, %v4818
      %v4821 = vshrl.u32 %v4678, 16
      %v4823 = vshll.u32 %v4678, 16
      %v4825 = vrot.slane %v4823, 1
      %v4826 = vor.u32 %v4821, %v4825
      %v4828 = vshll.u32 %v4679, 16
      %v4830 = vrot.slane %v4828, 1
      %v4831 = vsel %vm473, %v4826, %v4830
      %v4833 = vshrl.u32 %v4680, 16
      %v4835 = vshll.u32 %v4680, 16
      %v4837 = vrot.slane %v4835, 1
      %v4838 = vor.u32 %v4833, %v4837
      %v4840 = vshll.u32 %v4681, 16
      %v4842 = vrot.slane %v4840, 1
      %v4843 = vsel %vm473, %v4838, %v4842
      %v4845 = vshrl.u32 %v4682, 16
      %v4847 = vshll.u32 %v4682, 16
      %v4849 = vrot.slane %v4847, 1
      %v4850 = vor.u32 %v4845, %v4849
      %v4852 = vshll.u32 %v4683, 16
      %v4854 = vrot.slane %v4852, 1
      %v4855 = vsel %vm473, %v4850, %v4854
      %v4857 = vshrl.u32 %v4684, 16
      %v4859 = vshll.u32 %v4684, 16
      %v4861 = vrot.slane %v4859, 1
      %v4862 = vor.u32 %v4857, %v4861
      %v4864 = vshll.u32 %v4685, 16
      %v4866 = vrot.slane %v4864, 1
      %v4867 = vsel %vm473, %v4862, %v4866
      %v4869 = vshrl.u32 %v4686, 16
      %v4871 = vshll.u32 %v4686, 16
      %v4873 = vrot.slane %v4871, 1
      %v4874 = vor.u32 %v4869, %v4873
      %v4876 = vshll.u32 %v4687, 16
      %v4878 = vrot.slane %v4876, 1
      %v4879 = vsel %vm473, %v4874, %v4878
      %4880 = vrot.lane.b32.xlu0 %v4699, 8
      %v4881 = vpop.permute.xlu0 %4880
      %4882 = vrot.lane.b32.xlu0 %v4711, 8
      %v4883 = vpop.permute.xlu0 %4882
      %4884 = vrot.lane.b32.xlu0 %v4723, 8
      %v4885 = vpop.permute.xlu0 %4884
      %4886 = vrot.lane.b32.xlu0 %v4735, 8
      %v4887 = vpop.permute.xlu0 %4886
      %4888 = vrot.lane.b32.xlu0 %v4747, 8
      %v4889 = vpop.permute.xlu0 %4888
      %4890 = vrot.lane.b32.xlu0 %v4759, 8
      %v4891 = vpop.permute.xlu0 %4890
      %4892 = vrot.lane.b32.xlu0 %v4771, 8
      %v4893 = vpop.permute.xlu0 %4892
      %4894 = vrot.lane.b32.xlu0 %v4783, 8
      %v4895 = vpop.permute.xlu0 %4894
      %4896 = vrot.lane.b32.xlu0 %v4795, 8
      %v4897 = vpop.permute.xlu0 %4896
      %4898 = vrot.lane.b32.xlu0 %v4807, 8
      %v4899 = vpop.permute.xlu0 %4898
      %4900 = vrot.lane.b32.xlu0 %v4819, 8
      %v4901 = vpop.permute.xlu0 %4900
      %4902 = vrot.lane.b32.xlu0 %v4831, 8
      %v4903 = vpop.permute.xlu0 %4902
      %4904 = vrot.lane.b32.xlu0 %v4843, 8
      %v4905 = vpop.permute.xlu0 %4904
      %4906 = vrot.lane.b32.xlu0 %v4855, 8
      %v4907 = vpop.permute.xlu0 %4906
      %4908 = vrot.lane.b32.xlu0 %v4867, 8
      %v4909 = vpop.permute.xlu0 %4908
      %4910 = vrot.lane.b32.xlu0 %v4879, 8
      %v4911 = vpop.permute.xlu0 %4910
      %v4944 = vrot.slane %v4656, 1
      %v4945 = vrot.slane %v4657, 1
      %v4946 = vsel %vm754, %v4944, %v4945
      %v4947 = vrot.slane %v4658, 1
      %v4948 = vrot.slane %v4659, 1
      %v4949 = vsel %vm754, %v4947, %v4948
      %v4950 = vrot.slane %v4660, 1
      %v4951 = vrot.slane %v4661, 1
      %v4952 = vsel %vm754, %v4950, %v4951
      %v4953 = vrot.slane %v4662, 1
      %v4954 = vrot.slane %v4663, 1
      %v4955 = vsel %vm754, %v4953, %v4954
      %v4956 = vrot.slane %v4664, 1
      %v4957 = vrot.slane %v4665, 1
      %v4958 = vsel %vm754, %v4956, %v4957
      %v4959 = vrot.slane %v4666, 1
      %v4960 = vrot.slane %v4667, 1
      %v4961 = vsel %vm754, %v4959, %v4960
      %v4962 = vrot.slane %v4668, 1
      %v4963 = vrot.slane %v4669, 1
      %v4964 = vsel %vm754, %v4962, %v4963
      %v4965 = vrot.slane %v4670, 1
      %v4966 = vrot.slane %v4671, 1
      %v4967 = vsel %vm754, %v4965, %v4966
      %v4968 = vrot.slane %v4672, 1
      %v4969 = vrot.slane %v4673, 1
      %v4970 = vsel %vm754, %v4968, %v4969
      %v4971 = vrot.slane %v4674, 1
      %v4972 = vrot.slane %v4675, 1
      %v4973 = vsel %vm754, %v4971, %v4972
      %v4974 = vrot.slane %v4676, 1
      %v4975 = vrot.slane %v4677, 1
      %v4976 = vsel %vm754, %v4974, %v4975
      %v4977 = vrot.slane %v4678, 1
      %v4978 = vrot.slane %v4679, 1
      %v4979 = vsel %vm754, %v4977, %v4978
      %v4980 = vrot.slane %v4680, 1
      %v4981 = vrot.slane %v4681, 1
      %v4982 = vsel %vm754, %v4980, %v4981
      %v4983 = vrot.slane %v4682, 1
      %v4984 = vrot.slane %v4683, 1
      %v4985 = vsel %vm754, %v4983, %v4984
      %v4986 = vrot.slane %v4684, 1
      %v4987 = vrot.slane %v4685, 1
      %v4988 = vsel %vm754, %v4986, %v4987
      %v4989 = vrot.slane %v4686, 1
      %v4990 = vrot.slane %v4687, 1
      %v4991 = vsel %vm754, %v4989, %v4990
      %4992 = vrot.lane.b32.xlu0 %v4946, 16
      %v4993 = vpop.permute.xlu0 %4992
      %4994 = vrot.lane.b32.xlu0 %v4949, 16
      %v4995 = vpop.permute.xlu0 %4994
      %4996 = vrot.lane.b32.xlu0 %v4952, 16
      %v4997 = vpop.permute.xlu0 %4996
      %4998 = vrot.lane.b32.xlu0 %v4955, 16
      %v4999 = vpop.permute.xlu0 %4998
      %5000 = vrot.lane.b32.xlu0 %v4958, 16
      %v5001 = vpop.permute.xlu0 %5000
      %5002 = vrot.lane.b32.xlu0 %v4961, 16
      %v5003 = vpop.permute.xlu0 %5002
      %5004 = vrot.lane.b32.xlu0 %v4964, 16
      %v5005 = vpop.permute.xlu0 %5004
      %5006 = vrot.lane.b32.xlu0 %v4967, 16
      %v5007 = vpop.permute.xlu0 %5006
      %5008 = vrot.lane.b32.xlu0 %v4970, 16
      %v5009 = vpop.permute.xlu0 %5008
      %5010 = vrot.lane.b32.xlu0 %v4973, 16
      %v5011 = vpop.permute.xlu0 %5010
      %5012 = vrot.lane.b32.xlu0 %v4976, 16
      %v5013 = vpop.permute.xlu0 %5012
      %5014 = vrot.lane.b32.xlu0 %v4979, 16
      %v5015 = vpop.permute.xlu0 %5014
      %5016 = vrot.lane.b32.xlu0 %v4982, 16
      %v5017 = vpop.permute.xlu0 %5016
      %5018 = vrot.lane.b32.xlu0 %v4985, 16
      %v5019 = vpop.permute.xlu0 %5018
      %5020 = vrot.lane.b32.xlu0 %v4988, 16
      %v5021 = vpop.permute.xlu0 %5020
      %5022 = vrot.lane.b32.xlu0 %v4991, 16
      %v5023 = vpop.permute.xlu0 %5022
      %v5024 = vrot.slane %v4689, 1
      %v5025 = vrot.slane %v4691, 2
      %v5026 = vor.u32 %v5024, %v5025
      %v5027 = vshrl.u32 %v4657, 16
      %v5029 = vrot.slane %v5027, 1
      %v5030 = vrot.slane %v4696, 2
      %v5031 = vor.u32 %v5029, %v5030
      %v5032 = vsel %vm855, %v5026, %v5031
      %v5033 = vrot.slane %v4701, 1
      %v5034 = vrot.slane %v4703, 2
      %v5035 = vor.u32 %v5033, %v5034
      %v5036 = vshrl.u32 %v4659, 16
      %v5038 = vrot.slane %v5036, 1
      %v5039 = vrot.slane %v4708, 2
      %v5040 = vor.u32 %v5038, %v5039
      %v5041 = vsel %vm855, %v5035, %v5040
      %v5042 = vrot.slane %v4713, 1
      %v5043 = vrot.slane %v4715, 2
      %v5044 = vor.u32 %v5042, %v5043
      %v5045 = vshrl.u32 %v4661, 16
      %v5047 = vrot.slane %v5045, 1
      %v5048 = vrot.slane %v4720, 2
      %v5049 = vor.u32 %v5047, %v5048
      %v5050 = vsel %vm855, %v5044, %v5049
      %v5051 = vrot.slane %v4725, 1
      %v5052 = vrot.slane %v4727, 2
      %v5053 = vor.u32 %v5051, %v5052
      %v5054 = vshrl.u32 %v4663, 16
      %v5056 = vrot.slane %v5054, 1
      %v5057 = vrot.slane %v4732, 2
      %v5058 = vor.u32 %v5056, %v5057
      %v5059 = vsel %vm855, %v5053, %v5058
      %v5060 = vrot.slane %v4737, 1
      %v5061 = vrot.slane %v4739, 2
      %v5062 = vor.u32 %v5060, %v5061
      %v5063 = vshrl.u32 %v4665, 16
      %v5065 = vrot.slane %v5063, 1
      %v5066 = vrot.slane %v4744, 2
      %v5067 = vor.u32 %v5065, %v5066
      %v5068 = vsel %vm855, %v5062, %v5067
      %v5069 = vrot.slane %v4749, 1
      %v5070 = vrot.slane %v4751, 2
      %v5071 = vor.u32 %v5069, %v5070
      %v5072 = vshrl.u32 %v4667, 16
      %v5074 = vrot.slane %v5072, 1
      %v5075 = vrot.slane %v4756, 2
      %v5076 = vor.u32 %v5074, %v5075
      %v5077 = vsel %vm855, %v5071, %v5076
      %v5078 = vrot.slane %v4761, 1
      %v5079 = vrot.slane %v4763, 2
      %v5080 = vor.u32 %v5078, %v5079
      %v5081 = vshrl.u32 %v4669, 16
      %v5083 = vrot.slane %v5081, 1
      %v5084 = vrot.slane %v4768, 2
      %v5085 = vor.u32 %v5083, %v5084
      %v5086 = vsel %vm855, %v5080, %v5085
      %v5087 = vrot.slane %v4773, 1
      %v5088 = vrot.slane %v4775, 2
      %v5089 = vor.u32 %v5087, %v5088
      %v5090 = vshrl.u32 %v4671, 16
      %v5092 = vrot.slane %v5090, 1
      %v5093 = vrot.slane %v4780, 2
      %v5094 = vor.u32 %v5092, %v5093
      %v5095 = vsel %vm855, %v5089, %v5094
      %v5096 = vrot.slane %v4785, 1
      %v5097 = vrot.slane %v4787, 2
      %v5098 = vor.u32 %v5096, %v5097
      %v5099 = vshrl.u32 %v4673, 16
      %v5101 = vrot.slane %v5099, 1
      %v5102 = vrot.slane %v4792, 2
      %v5103 = vor.u32 %v5101, %v5102
      %v5104 = vsel %vm855, %v5098, %v5103
      %v5105 = vrot.slane %v4797, 1
      %v5106 = vrot.slane %v4799, 2
      %v5107 = vor.u32 %v5105, %v5106
      %v5108 = vshrl.u32 %v4675, 16
      %v5110 = vrot.slane %v5108, 1
      %v5111 = vrot.slane %v4804, 2
      %v5112 = vor.u32 %v5110, %v5111
      %v5113 = vsel %vm855, %v5107, %v5112
      %v5114 = vrot.slane %v4809, 1
      %v5115 = vrot.slane %v4811, 2
      %v5116 = vor.u32 %v5114, %v5115
      %v5117 = vshrl.u32 %v4677, 16
      %v5119 = vrot.slane %v5117, 1
      %v5120 = vrot.slane %v4816, 2
      %v5121 = vor.u32 %v5119, %v5120
      %v5122 = vsel %vm855, %v5116, %v5121
      %v5123 = vrot.slane %v4821, 1
      %v5124 = vrot.slane %v4823, 2
      %v5125 = vor.u32 %v5123, %v5124
      %v5126 = vshrl.u32 %v4679, 16
      %v5128 = vrot.slane %v5126, 1
      %v5129 = vrot.slane %v4828, 2
      %v5130 = vor.u32 %v5128, %v5129
      %v5131 = vsel %vm855, %v5125, %v5130
      %v5132 = vrot.slane %v4833, 1
      %v5133 = vrot.slane %v4835, 2
      %v5134 = vor.u32 %v5132, %v5133
      %v5135 = vshrl.u32 %v4681, 16
      %v5137 = vrot.slane %v5135, 1
      %v5138 = vrot.slane %v4840, 2
      %v5139 = vor.u32 %v5137, %v5138
      %v5140 = vsel %vm855, %v5134, %v5139
      %v5141 = vrot.slane %v4845, 1
      %v5142 = vrot.slane %v4847, 2
      %v5143 = vor.u32 %v5141, %v5142
      %v5144 = vshrl.u32 %v4683, 16
      %v5146 = vrot.slane %v5144, 1
      %v5147 = vrot.slane %v4852, 2
      %v5148 = vor.u32 %v5146, %v5147
      %v5149 = vsel %vm855, %v5143, %v5148
      %v5150 = vrot.slane %v4857, 1
      %v5151 = vrot.slane %v4859, 2
      %v5152 = vor.u32 %v5150, %v5151
      %v5153 = vshrl.u32 %v4685, 16
      %v5155 = vrot.slane %v5153, 1
      %v5156 = vrot.slane %v4864, 2
      %v5157 = vor.u32 %v5155, %v5156
      %v5158 = vsel %vm855, %v5152, %v5157
      %v5159 = vrot.slane %v4869, 1
      %v5160 = vrot.slane %v4871, 2
      %v5161 = vor.u32 %v5159, %v5160
      %v5162 = vshrl.u32 %v4687, 16
      %v5164 = vrot.slane %v5162, 1
      %v5165 = vrot.slane %v4876, 2
      %v5166 = vor.u32 %v5164, %v5165
      %v5167 = vsel %vm855, %v5161, %v5166
      %5168 = vrot.lane.b32.xlu0 %v5032, 24
      %v5169 = vpop.permute.xlu0 %5168
      %5170 = vrot.lane.b32.xlu0 %v5041, 24
      %v5171 = vpop.permute.xlu0 %5170
      %5172 = vrot.lane.b32.xlu0 %v5050, 24
      %v5173 = vpop.permute.xlu0 %5172
      %5174 = vrot.lane.b32.xlu0 %v5059, 24
      %v5175 = vpop.permute.xlu0 %5174
      %5176 = vrot.lane.b32.xlu0 %v5068, 24
      %v5177 = vpop.permute.xlu0 %5176
      %5178 = vrot.lane.b32.xlu0 %v5077, 24
      %v5179 = vpop.permute.xlu0 %5178
      %5180 = vrot.lane.b32.xlu0 %v5086, 24
      %v5181 = vpop.permute.xlu0 %5180
      %5182 = vrot.lane.b32.xlu0 %v5095, 24
      %v5183 = vpop.permute.xlu0 %5182
      %5184 = vrot.lane.b32.xlu0 %v5104, 24
      %v5185 = vpop.permute.xlu0 %5184
      %5186 = vrot.lane.b32.xlu0 %v5113, 24
      %v5187 = vpop.permute.xlu0 %5186
      %5188 = vrot.lane.b32.xlu0 %v5122, 24
      %v5189 = vpop.permute.xlu0 %5188
      %5190 = vrot.lane.b32.xlu0 %v5131, 24
      %v5191 = vpop.permute.xlu0 %5190
      %5192 = vrot.lane.b32.xlu0 %v5140, 24
      %v5193 = vpop.permute.xlu0 %5192
      %5194 = vrot.lane.b32.xlu0 %v5149, 24
      %v5195 = vpop.permute.xlu0 %5194
      %5196 = vrot.lane.b32.xlu0 %v5158, 24
      %v5197 = vpop.permute.xlu0 %5196
      %5198 = vrot.lane.b32.xlu0 %v5167, 24
      %v5199 = vpop.permute.xlu0 %5198
      %v5200 = vrot.slane %v4656, 2
      %v5201 = vrot.slane %v4657, 2
      %v5202 = vsel %vm1076, %v5200, %v5201
      %v5203 = vrot.slane %v4658, 2
      %v5204 = vrot.slane %v4659, 2
      %v5205 = vsel %vm1076, %v5203, %v5204
      %v5206 = vrot.slane %v4660, 2
      %v5207 = vrot.slane %v4661, 2
      %v5208 = vsel %vm1076, %v5206, %v5207
      %v5209 = vrot.slane %v4662, 2
      %v5210 = vrot.slane %v4663, 2
      %v5211 = vsel %vm1076, %v5209, %v5210
      %v5212 = vrot.slane %v4664, 2
      %v5213 = vrot.slane %v4665, 2
      %v5214 = vsel %vm1076, %v5212, %v5213
      %v5215 = vrot.slane %v4666, 2
      %v5216 = vrot.slane %v4667, 2
      %v5217 = vsel %vm1076, %v5215, %v5216
      %v5218 = vrot.slane %v4668, 2
      %v5219 = vrot.slane %v4669, 2
      %v5220 = vsel %vm1076, %v5218, %v5219
      %v5221 = vrot.slane %v4670, 2
      %v5222 = vrot.slane %v4671, 2
      %v5223 = vsel %vm1076, %v5221, %v5222
      %v5224 = vrot.slane %v4672, 2
      %v5225 = vrot.slane %v4673, 2
      %v5226 = vsel %vm1076, %v5224, %v5225
      %v5227 = vrot.slane %v4674, 2
      %v5228 = vrot.slane %v4675, 2
      %v5229 = vsel %vm1076, %v5227, %v5228
      %v5230 = vrot.slane %v4676, 2
      %v5231 = vrot.slane %v4677, 2
      %v5232 = vsel %vm1076, %v5230, %v5231
      %v5233 = vrot.slane %v4678, 2
      %v5234 = vrot.slane %v4679, 2
      %v5235 = vsel %vm1076, %v5233, %v5234
      %v5236 = vrot.slane %v4680, 2
      %v5237 = vrot.slane %v4681, 2
      %v5238 = vsel %vm1076, %v5236, %v5237
      %v5239 = vrot.slane %v4682, 2
      %v5240 = vrot.slane %v4683, 2
      %v5241 = vsel %vm1076, %v5239, %v5240
      %v5242 = vrot.slane %v4684, 2
      %v5243 = vrot.slane %v4685, 2
      %v5244 = vsel %vm1076, %v5242, %v5243
      %v5245 = vrot.slane %v4686, 2
      %v5246 = vrot.slane %v4687, 2
      %v5247 = vsel %vm1076, %v5245, %v5246
      %5248 = vrot.lane.b32.xlu0 %v5202, 32
      %v5249 = vpop.permute.xlu0 %5248
      %5250 = vrot.lane.b32.xlu0 %v5205, 32
      %v5251 = vpop.permute.xlu0 %5250
      %5252 = vrot.lane.b32.xlu0 %v5208, 32
      %v5253 = vpop.permute.xlu0 %5252
      %5254 = vrot.lane.b32.xlu0 %v5211, 32
      %v5255 = vpop.permute.xlu0 %5254
      %5256 = vrot.lane.b32.xlu0 %v5214, 32
      %v5257 = vpop.permute.xlu0 %5256
      %5258 = vrot.lane.b32.xlu0 %v5217, 32
      %v5259 = vpop.permute.xlu0 %5258
      %5260 = vrot.lane.b32.xlu0 %v5220, 32
      %v5261 = vpop.permute.xlu0 %5260
      %5262 = vrot.lane.b32.xlu0 %v5223, 32
      %v5263 = vpop.permute.xlu0 %5262
      %5264 = vrot.lane.b32.xlu0 %v5226, 32
      %v5265 = vpop.permute.xlu0 %5264
      %5266 = vrot.lane.b32.xlu0 %v5229, 32
      %v5267 = vpop.permute.xlu0 %5266
      %5268 = vrot.lane.b32.xlu0 %v5232, 32
      %v5269 = vpop.permute.xlu0 %5268
      %5270 = vrot.lane.b32.xlu0 %v5235, 32
      %v5271 = vpop.permute.xlu0 %5270
      %5272 = vrot.lane.b32.xlu0 %v5238, 32
      %v5273 = vpop.permute.xlu0 %5272
      %5274 = vrot.lane.b32.xlu0 %v5241, 32
      %v5275 = vpop.permute.xlu0 %5274
      %5276 = vrot.lane.b32.xlu0 %v5244, 32
      %v5277 = vpop.permute.xlu0 %5276
      %5278 = vrot.lane.b32.xlu0 %v5247, 32
      %v5279 = vpop.permute.xlu0 %5278
      %v5281 = vsel %vm1570, %v4656, %v4881
      %v5283 = vsel %vm1570, %v4658, %v4883
      %v5285 = vsel %vm1570, %v4660, %v4885
      %v5287 = vsel %vm1570, %v4662, %v4887
      %v5289 = vsel %vm1570, %v4664, %v4889
      %v5291 = vsel %vm1570, %v4666, %v4891
      %v5293 = vsel %vm1570, %v4668, %v4893
      %v5295 = vsel %vm1570, %v4670, %v4895
      %v5297 = vsel %vm1570, %v4672, %v4897
      %v5299 = vsel %vm1570, %v4674, %v4899
      %v5301 = vsel %vm1570, %v4676, %v4901
      %v5303 = vsel %vm1570, %v4678, %v4903
      %v5305 = vsel %vm1570, %v4680, %v4905
      %v5307 = vsel %vm1570, %v4682, %v4907
      %v5309 = vsel %vm1570, %v4684, %v4909
      %v5311 = vsel %vm1570, %v4686, %v4911
      %v5313 = vsel %vm3514, %v5281, %v4993
      %v5315 = vsel %vm3514, %v5283, %v4995
      %v5317 = vsel %vm3514, %v5285, %v4997
      %v5319 = vsel %vm3514, %v5287, %v4999
      %v5321 = vsel %vm3514, %v5289, %v5001
      %v5323 = vsel %vm3514, %v5291, %v5003
      %v5325 = vsel %vm3514, %v5293, %v5005
      %v5327 = vsel %vm3514, %v5295, %v5007
      %v5329 = vsel %vm3514, %v5297, %v5009
      %v5331 = vsel %vm3514, %v5299, %v5011
      %v5333 = vsel %vm3514, %v5301, %v5013
      %v5335 = vsel %vm3514, %v5303, %v5015
      %v5337 = vsel %vm3514, %v5305, %v5017
      %v5339 = vsel %vm3514, %v5307, %v5019
      %v5341 = vsel %vm3514, %v5309, %v5021
      %v5343 = vsel %vm3514, %v5311, %v5023
      %v5345 = vsel %vm1218, %v5313, %v5169
      %v5347 = vsel %vm1218, %v5315, %v5171
      %v5349 = vsel %vm1218, %v5317, %v5173
      %v5351 = vsel %vm1218, %v5319, %v5175
      %v5353 = vsel %vm1218, %v5321, %v5177
      %v5355 = vsel %vm1218, %v5323, %v5179
      %v5357 = vsel %vm1218, %v5325, %v5181
      %v5359 = vsel %vm1218, %v5327, %v5183
      %v5361 = vsel %vm1218, %v5329, %v5185
      %v5363 = vsel %vm1218, %v5331, %v5187
      %v5365 = vsel %vm1218, %v5333, %v5189
      %v5367 = vsel %vm1218, %v5335, %v5191
      %v5369 = vsel %vm1218, %v5337, %v5193
      %v5371 = vsel %vm1218, %v5339, %v5195
      %v5373 = vsel %vm1218, %v5341, %v5197
      %v5375 = vsel %vm1218, %v5343, %v5199
      %vm5376 = vcmask 261120
      %v5378 = vsel %vm5376, %v5345, %v5249
      %v5380 = vsel %vm5376, %v5347, %v5251
      %v5382 = vsel %vm5376, %v5349, %v5253
      %v5384 = vsel %vm5376, %v5351, %v5255
      %v5386 = vsel %vm5376, %v5353, %v5257
      %v5388 = vsel %vm5376, %v5355, %v5259
      %v5390 = vsel %vm5376, %v5357, %v5261
      %v5392 = vsel %vm5376, %v5359, %v5263
      %v5394 = vsel %vm5376, %v5361, %v5265
      %v5396 = vsel %vm5376, %v5363, %v5267
      %v5398 = vsel %vm5376, %v5365, %v5269
      %v5400 = vsel %vm5376, %v5367, %v5271
      %v5402 = vsel %vm5376, %v5369, %v5273
      %v5404 = vsel %vm5376, %v5371, %v5275
      %v5406 = vsel %vm5376, %v5373, %v5277
      %v5408 = vsel %vm5376, %v5375, %v5279
      %v5409 = vld [vmem:[%s3] sm:$0xf]
      %v5410 = vld [vmem:[%s3 + $0x4] sm:$0xf]
      %v5411 = vld [vmem:[%s3 + $0x8] sm:$0xf]
      %v5412 = vld [vmem:[%s3 + $0xc] sm:$0xf]
      %v5413 = vld [vmem:[%s3 + $0x10] sm:$0xf]
      %v5419 = vunpack.c.l.b16 %v5409
      %v5420 = vunpack.c.l.b16 %v5410
      %v5421 = vunpack.c.l.b16 %v5411
      %v5422 = vunpack.c.l.b16 %v5412
      %v5423 = vunpack.c.l.b16 %v5413
      %v5424 = vpack.c.b16 %v5420, %v5419
      %v5425 = vpack.c.b16 %v5422, %v5421
      %v5426 = vpack.c.b16 %v5423, %v5423
      %vm5429 = vcmask 326656
      %v5430 = vsel %vm5429, %v5378, 0
      %v5432 = vsel %vm5429, %v5380, 0
      %v5434 = vsel %vm5429, %v5382, 0
      %v5436 = vsel %vm5429, %v5384, 0
      %v5438 = vsel %vm5429, %v5386, 0
      %v5440 = vsel %vm5429, %v5388, 0
      %v5442 = vsel %vm5429, %v5390, 0
      %v5444 = vsel %vm5429, %v5392, 0
      %v5446 = vsel %vm5429, %v5394, 0
      %v5448 = vsel %vm5429, %v5396, 0
      %v5450 = vsel %vm5429, %v5398, 0
      %v5452 = vsel %vm5429, %v5400, 0
      %v5454 = vsel %vm5429, %v5402, 0
      %v5456 = vsel %vm5429, %v5404, 0
      %v5459 = vsel %vm3589, %v5426, 0
      %5461 = vmatprep.subr.bf16.mxu0 0
      %5462 = vmatpush1.bf16.msra.mxu0 %v5424
      %5463 = vmatprep.subr.bf16.mxu0 0
      %5464 = vmatpush1.bf16.msra.mxu0 %v5425
      %5465 = vmatprep.subr.bf16.mxu0 0
      %5466 = vmatpush1.bf16.msra.mxu0 %v5459
      %5467 = vmatprep.subr.bf16.mxu0 0
      %5468 = vmatpush1.bf16.msra.mxu0 0
      %5469 = vmatprep.subr.bf16.mxu0 0
      %5470 = vmatpush1.bf16.msra.mxu0 0
      %5471 = vmatprep.subr.bf16.mxu0 0
      %5472 = vmatpush1.bf16.msra.mxu0 0
      %5473 = vmatprep.subr.bf16.mxu0 0
      %5474 = vmatpush1.bf16.msra.mxu0 0
      %5475 = vmatprep.subr.bf16.mxu0 0
      %5476 = vmatpush1.bf16.msra.mxu0 0
      %5477 = vmatprep.subr.bf16.mxu0 0
      %5478 = vmatpush1.bf16.msra.mxu0 0
      %5479 = vmatprep.subr.bf16.mxu0 0
      %5480 = vmatpush1.bf16.msra.mxu0 0
      %5481 = vmatprep.subr.bf16.mxu0 0
      %5482 = vmatpush1.bf16.msra.mxu0 0
      %5483 = vmatprep.subr.bf16.mxu0 0
      %5484 = vmatpush1.bf16.msra.mxu0 0
      %5485 = vmatprep.subr.bf16.mxu0 0
      %5486 = vmatpush1.bf16.msra.mxu0 0
      %5487 = vmatprep.subr.bf16.mxu0 0
      %5488 = vmatpush1.bf16.msra.mxu0 0
      %5489 = vmatprep.subr.bf16.mxu0 0
      %5490 = vmatpush1.bf16.msra.mxu0 0
      %5491 = vmatprep.subr.bf16.mxu0 0
      %5492 = vmatpush1.bf16.msra.mxu0 0
      %5493 = vmatprep.mubr.bf16.mxu0 0
      %5494 = vmatmul.mubr.bf16.gmra.mrb[0].mxu0 %v5430
      %v5495 = vpop.f32.mrb[0].mxu0
      %v5496 = vadd.f32 0.0, %v5495
      %v5497 = vpop.f32.mrb[0].mxu0
      %v5498 = vpop.f32.mrb[0].mxu0
      %v5499 = vadd.f32 0.0, %v5498
      %v5500 = vpop.f32.mrb[0].mxu0
      %5501 = vmatprep.mubr.bf16.mxu0 0
      %5502 = vmatmul.mubr.bf16.gmra.mrb[0].mxu0 %v5430
      %v5503 = vpop.f32.mrb[0].mxu0
      %v5504 = vadd.f32 0.0, %v5503
      %v5505 = vpop.f32.mrb[0].mxu0
      %v5506 = vpop.f32.mrb[0].mxu0
      %v5507 = vadd.f32 0.0, %v5506
      %v5508 = vpop.f32.mrb[0].mxu0
      %5509 = vmatprep.mubr.bf16.mxu0 0
      %5510 = vmatmul.mubr.bf16.gmra.mrb[0].mxu0 %v5430
      %v5511 = vpop.f32.mrb[0].mxu0
      %v5512 = vadd.f32 0.0, %v5511
      %v5513 = vpop.f32.mrb[0].mxu0
      %v5514 = vpop.f32.mrb[0].mxu0
      %v5515 = vadd.f32 0.0, %v5514
      %v5516 = vpop.f32.mrb[0].mxu0
      %5517 = vmatprep.mubr.bf16.mxu0 0
      %5518 = vmatmul.mubr.bf16.gmra.mrb[0].mxu0 %v5432
      %v5519 = vpop.f32.mrb[0].mxu0
      %v5520 = vadd.f32 0.0, %v5519
      %v5521 = vpop.f32.mrb[0].mxu0
      %v5522 = vpop.f32.mrb[0].mxu0
      %v5523 = vadd.f32 0.0, %v5522
      %v5524 = vpop.f32.mrb[0].mxu0
      %5525 = vmatprep.mubr.bf16.mxu0 0
      %5526 = vmatmul.mubr.bf16.gmra.mrb[0].mxu0 %v5434
      %v5527 = vpop.f32.mrb[0].mxu0
      %v5528 = vadd.f32 0.0, %v5527
      %v5529 = vpop.f32.mrb[0].mxu0
      %v5530 = vpop.f32.mrb[0].mxu0
      %v5531 = vadd.f32 0.0, %v5530
      %v5532 = vpop.f32.mrb[0].mxu0
      %5533 = vmatprep.mubr.bf16.mxu0 0
      %5534 = vmatmul.mubr.bf16.gmra.mrb[0].mxu0 %v5436
      %v5535 = vpop.f32.mrb[0].mxu0
      %v5536 = vadd.f32 0.0, %v5535
      %v5537 = vpop.f32.mrb[0].mxu0
      %v5538 = vpop.f32.mrb[0].mxu0
      %v5539 = vadd.f32 0.0, %v5538
      %v5540 = vpop.f32.mrb[0].mxu0
      %5541 = vmatprep.mubr.bf16.mxu0 0
      %5542 = vmatmul.mubr.bf16.gmra.mrb[0].mxu0 %v5438
      %v5543 = vpop.f32.mrb[0].mxu0
      %v5544 = vadd.f32 0.0, %v5543
      %v5545 = vpop.f32.mrb[0].mxu0
      %v5546 = vpop.f32.mrb[0].mxu0
      %v5547 = vadd.f32 0.0, %v5546
      %v5548 = vpop.f32.mrb[0].mxu0
      %5549 = vmatprep.mubr.bf16.mxu0 0
      %5550 = vmatmul.mubr.bf16.gmra.mrb[0].mxu0 %v5440
      %v5551 = vpop.f32.mrb[0].mxu0
      %v5552 = vadd.f32 0.0, %v5551
      %v5553 = vpop.f32.mrb[0].mxu0
      %v5554 = vpop.f32.mrb[0].mxu0
      %v5555 = vadd.f32 0.0, %v5554
      %v5556 = vpop.f32.mrb[0].mxu0
      %5557 = vmatprep.mubr.bf16.mxu0 0
      %5558 = vmatmul.mubr.bf16.gmra.mrb[0].mxu0 %v5442
      %v5559 = vpop.f32.mrb[0].mxu0
      %v5560 = vadd.f32 0.0, %v5559
      %v5561 = vpop.f32.mrb[0].mxu0
      %v5562 = vpop.f32.mrb[0].mxu0
      %v5563 = vadd.f32 0.0, %v5562
      %v5564 = vpop.f32.mrb[0].mxu0
      %5565 = vmatprep.mubr.bf16.mxu0 0
      %5566 = vmatmul.mubr.bf16.gmra.mrb[0].mxu0 %v5444
      %v5567 = vpop.f32.mrb[0].mxu0
      %v5568 = vadd.f32 0.0, %v5567
      %v5569 = vpop.f32.mrb[0].mxu0
      %v5570 = vpop.f32.mrb[0].mxu0
      %v5571 = vadd.f32 0.0, %v5570
      %v5572 = vpop.f32.mrb[0].mxu0
      %5573 = vmatprep.mubr.bf16.mxu0 0
      %5574 = vmatmul.mubr.bf16.gmra.mrb[0].mxu0 %v5446
      %v5575 = vpop.f32.mrb[0].mxu0
      %v5576 = vadd.f32 0.0, %v5575
      %v5577 = vpop.f32.mrb[0].mxu0
      %v5578 = vpop.f32.mrb[0].mxu0
      %v5579 = vadd.f32 0.0, %v5578
      %v5580 = vpop.f32.mrb[0].mxu0
      %5581 = vmatprep.mubr.bf16.mxu0 0
      %5582 = vmatmul.mubr.bf16.gmra.mrb[0].mxu0 %v5448
      %v5583 = vpop.f32.mrb[0].mxu0
      %v5584 = vadd.f32 0.0, %v5583
      %v5585 = vpop.f32.mrb[0].mxu0
      %v5586 = vpop.f32.mrb[0].mxu0
      %v5587 = vadd.f32 0.0, %v5586
      %v5588 = vpop.f32.mrb[0].mxu0
      %5589 = vmatprep.mubr.bf16.mxu0 0
      %5590 = vmatmul.mubr.bf16.gmra.mrb[0].mxu0 %v5450
      %v5591 = vpop.f32.mrb[0].mxu0
      %v5592 = vadd.f32 0.0, %v5591
      %v5593 = vpop.f32.mrb[0].mxu0
      %v5594 = vpop.f32.mrb[0].mxu0
      %v5595 = vadd.f32 0.0, %v5594
      %v5596 = vpop.f32.mrb[0].mxu0
      %5597 = vmatprep.mubr.bf16.mxu0 0
      %5598 = vmatmul.mubr.bf16.gmra.mrb[0].mxu0 %v5452
      %v5599 = vpop.f32.mrb[0].mxu0
      %v5600 = vadd.f32 0.0, %v5599
      %v5601 = vpop.f32.mrb[0].mxu0
      %v5602 = vpop.f32.mrb[0].mxu0
      %v5603 = vadd.f32 0.0, %v5602
      %v5604 = vpop.f32.mrb[0].mxu0
      %5605 = vmatprep.mubr.bf16.mxu0 0
      %5606 = vmatmul.mubr.bf16.gmra.mrb[0].mxu0 %v5454
      %v5607 = vpop.f32.mrb[0].mxu0
      %v5608 = vadd.f32 0.0, %v5607
      %v5609 = vpop.f32.mrb[0].mxu0
      %v5610 = vpop.f32.mrb[0].mxu0
      %v5611 = vadd.f32 0.0, %v5610
      %v5612 = vpop.f32.mrb[0].mxu0
      %5613 = vmatprep.mubr.bf16.mxu0 0
      %5614 = vmatmul.mubr.bf16.gmra.mrb[0].mxu0 %v5456
      %v5615 = vpop.f32.mrb[0].mxu0
      %v5616 = vadd.f32 0.0, %v5615
      %v5617 = vpop.f32.mrb[0].mxu0
      %v5618 = vpop.f32.mrb[0].mxu0
      %v5619 = vadd.f32 0.0, %v5618
      %v5620 = vpop.f32.mrb[0].mxu0
      %5621 = vdwg.mxu0
      %5622 = vst.msk [vmem:[#allocation2] sm:$0xff] %vm1570, %v5496
      %5623 = vst.msk [vmem:[#allocation2 + $0x8] sm:$0xff] %vm1570, %v5499
      %5624 = vst.msk [vmem:[#allocation2 + $0x10] sm:$0xff] %vm1570, %v5504
      %5625 = vst.msk [vmem:[#allocation2 + $0x18] sm:$0xff] %vm1570, %v5507
      %5626 = vst.msk [vmem:[#allocation2 + $0x20] sm:$0xff] %vm1570, %v5512
      %5627 = vst.msk [vmem:[#allocation2 + $0x28] sm:$0xff] %vm1570, %v5515
      %5628 = vst.msk [vmem:[#allocation2 + $0x30] sm:$0xff] %vm1570, %v5520
      %5629 = vst.msk [vmem:[#allocation2 + $0x38] sm:$0xff] %vm1570, %v5523
      %5630 = vst.msk [vmem:[#allocation2 + $0x40] sm:$0xff] %vm1570, %v5528
      %5631 = vst.msk [vmem:[#allocation2 + $0x48] sm:$0xff] %vm1570, %v5531
      %5632 = vst.msk [vmem:[#allocation2 + $0x50] sm:$0xff] %vm1570, %v5536
      %5633 = vst.msk [vmem:[#allocation2 + $0x58] sm:$0xff] %vm1570, %v5539
      %5634 = vst.msk [vmem:[#allocation2 + $0x60] sm:$0xff] %vm1570, %v5544
      %5635 = vst.msk [vmem:[#allocation2 + $0x68] sm:$0xff] %vm1570, %v5547
      %5636 = vst.msk [vmem:[#allocation2 + $0x70] sm:$0xff] %vm1570, %v5552
      %5637 = vst.msk [vmem:[#allocation2 + $0x78] sm:$0xff] %vm1570, %v5555
      %5638 = vst.msk [vmem:[#allocation2 + $0x80] sm:$0xff] %vm1570, %v5560
      %5639 = vst.msk [vmem:[#allocation2 + $0x88] sm:$0xff] %vm1570, %v5563
      %5640 = vst.msk [vmem:[#allocation2 + $0x90] sm:$0xff] %vm1570, %v5568
      %5641 = vst.msk [vmem:[#allocation2 + $0x98] sm:$0xff] %vm1570, %v5571
      %5642 = vst.msk [vmem:[#allocation2 + $0xa0] sm:$0xff] %vm1570, %v5576
      %5643 = vst.msk [vmem:[#allocation2 + $0xa8] sm:$0xff] %vm1570, %v5579
      %5644 = vst.msk [vmem:[#allocation2 + $0xb0] sm:$0xff] %vm1570, %v5584
      %5645 = vst.msk [vmem:[#allocation2 + $0xb8] sm:$0xff] %vm1570, %v5587
      %5646 = vst.msk [vmem:[#allocation2 + $0xc0] sm:$0xff] %vm1570, %v5592
      %5647 = vst.msk [vmem:[#allocation2 + $0xc8] sm:$0xff] %vm1570, %v5595
      %5648 = vst.msk [vmem:[#allocation2 + $0xd0] sm:$0xff] %vm1570, %v5600
      %5649 = vst.msk [vmem:[#allocation2 + $0xd8] sm:$0xff] %vm1570, %v5603
      %5650 = vst.msk [vmem:[#allocation2 + $0xe0] sm:$0xff] %vm1570, %v5608
      %5651 = vst.msk [vmem:[#allocation2 + $0xe8] sm:$0xff] %vm1570, %v5611
      %5652 = vst.msk [vmem:[#allocation2 + $0xf0] sm:$0xff] %vm1570, %v5616
      %5653 = vst.msk [vmem:[#allocation2 + $0xf8] sm:$0xff] %vm1570, %v5619
      %s5654 = scalar_lea.vmem %s3, 20
      %v5655 = vld [vmem:[%s5654] sm:$0xf]
      %v5656 = vld [vmem:[%s5654 + $0x4] sm:$0xf]
      %v5657 = vld [vmem:[%s5654 + $0x8] sm:$0xf]
      %v5658 = vld [vmem:[%s5654 + $0xc] sm:$0xf]
      %v5659 = vld [vmem:[%s5654 + $0x10] sm:$0xf]
      %v5665 = vunpack.c.l.b16 %v5655
      %v5666 = vunpack.c.l.b16 %v5656
      %v5667 = vunpack.c.l.b16 %v5657
      %v5668 = vunpack.c.l.b16 %v5658
      %v5669 = vunpack.c.l.b16 %v5659
      %v5670 = vpack.c.b16 %v5666, %v5665
      %v5671 = vpack.c.b16 %v5668, %v5667
      %v5672 = vpack.c.b16 %v5669, %v5669
      %v5675 = vsel %vm5429, %v5406, 0
      %v5678 = vsel %vm3589, %v5672, 0
      %5680 = vmatprep.subr.bf16.mxu0 0
      %5681 = vmatpush1.bf16.msra.mxu0 %v5670
      %5682 = vmatprep.subr.bf16.mxu0 0
      %5683 = vmatpush1.bf16.msra.mxu0 %v5671
      %5684 = vmatprep.subr.bf16.mxu0 0
      %5685 = vmatpush1.bf16.msra.mxu0 %v5678
      %5686 = vmatprep.subr.bf16.mxu0 0
      %5687 = vmatpush1.bf16.msra.mxu0 0
      %5688 = vmatprep.subr.bf16.mxu0 0
      %5689 = vmatpush1.bf16.msra.mxu0 0
      %5690 = vmatprep.subr.bf16.mxu0 0
      %5691 = vmatpush1.bf16.msra.mxu0 0
      %5692 = vmatprep.subr.bf16.mxu0 0
      %5693 = vmatpush1.bf16.msra.mxu0 0
      %5694 = vmatprep.subr.bf16.mxu0 0
      %5695 = vmatpush1.bf16.msra.mxu0 0
      %5696 = vmatprep.subr.bf16.mxu0 0
      %5697 = vmatpush1.bf16.msra.mxu0 0
      %5698 = vmatprep.subr.bf16.mxu0 0
      %5699 = vmatpush1.bf16.msra.mxu0 0
      %5700 = vmatprep.subr.bf16.mxu0 0
      %5701 = vmatpush1.bf16.msra.mxu0 0
      %5702 = vmatprep.subr.bf16.mxu0 0
      %5703 = vmatpush1.bf16.msra.mxu0 0
      %5704 = vmatprep.subr.bf16.mxu0 0
      %5705 = vmatpush1.bf16.msra.mxu0 0
      %5706 = vmatprep.subr.bf16.mxu0 0
      %5707 = vmatpush1.bf16.msra.mxu0 0
      %5708 = vmatprep.subr.bf16.mxu0 0
      %5709 = vmatpush1.bf16.msra.mxu0 0
      %5710 = vmatprep.subr.bf16.mxu0 0
      %5711 = vmatpush1.bf16.msra.mxu0 0
      %5712 = vmatprep.mubr.bf16.mxu0 0
      %5713 = vmatmul.mubr.bf16.gmra.mrb[0].mxu0 %v5430
      %v5714 = vpop.f32.mrb[0].mxu0
      %v5715 = vadd.f32 0.0, %v5714
      %v5716 = vpop.f32.mrb[0].mxu0
      %v5717 = vpop.f32.mrb[0].mxu0
      %v5718 = vadd.f32 0.0, %v5717
      %v5719 = vpop.f32.mrb[0].mxu0
      %5720 = vmatprep.mubr.bf16.mxu0 0
      %5721 = vmatmul.mubr.bf16.gmra.mrb[0].mxu0 %v5430
      %v5722 = vpop.f32.mrb[0].mxu0
      %v5723 = vadd.f32 0.0, %v5722
      %v5724 = vpop.f32.mrb[0].mxu0
      %v5725 = vpop.f32.mrb[0].mxu0
      %v5726 = vadd.f32 0.0, %v5725
      %v5727 = vpop.f32.mrb[0].mxu0
      %5728 = vmatprep.mubr.bf16.mxu0 0
      %5729 = vmatmul.mubr.bf16.gmra.mrb[0].mxu0 %v5432
      %v5730 = vpop.f32.mrb[0].mxu0
      %v5731 = vadd.f32 0.0, %v5730
      %v5732 = vpop.f32.mrb[0].mxu0
      %v5733 = vpop.f32.mrb[0].mxu0
      %v5734 = vadd.f32 0.0, %v5733
      %v5735 = vpop.f32.mrb[0].mxu0
      %5736 = vmatprep.mubr.bf16.mxu0 0
      %5737 = vmatmul.mubr.bf16.gmra.mrb[0].mxu0 %v5434
      %v5738 = vpop.f32.mrb[0].mxu0
      %v5739 = vadd.f32 0.0, %v5738
      %v5740 = vpop.f32.mrb[0].mxu0
      %v5741 = vpop.f32.mrb[0].mxu0
      %v5742 = vadd.f32 0.0, %v5741
      %v5743 = vpop.f32.mrb[0].mxu0
      %5744 = vmatprep.mubr.bf16.mxu0 0
      %5745 = vmatmul.mubr.bf16.gmra.mrb[0].mxu0 %v5436
      %v5746 = vpop.f32.mrb[0].mxu0
      %v5747 = vadd.f32 0.0, %v5746
      %v5748 = vpop.f32.mrb[0].mxu0
      %v5749 = vpop.f32.mrb[0].mxu0
      %v5750 = vadd.f32 0.0, %v5749
      %v5751 = vpop.f32.mrb[0].mxu0
      %5752 = vmatprep.mubr.bf16.mxu0 0
      %5753 = vmatmul.mubr.bf16.gmra.mrb[0].mxu0 %v5438
      %v5754 = vpop.f32.mrb[0].mxu0
      %v5755 = vadd.f32 0.0, %v5754
      %v5756 = vpop.f32.mrb[0].mxu0
      %v5757 = vpop.f32.mrb[0].mxu0
      %v5758 = vadd.f32 0.0, %v5757
      %v5759 = vpop.f32.mrb[0].mxu0
      %5760 = vmatprep.mubr.bf16.mxu0 0
      %5761 = vmatmul.mubr.bf16.gmra.mrb[0].mxu0 %v5440
      %v5762 = vpop.f32.mrb[0].mxu0
      %v5763 = vadd.f32 0.0, %v5762
      %v5764 = vpop.f32.mrb[0].mxu0
      %v5765 = vpop.f32.mrb[0].mxu0
      %v5766 = vadd.f32 0.0, %v5765
      %v5767 = vpop.f32.mrb[0].mxu0
      %5768 = vmatprep.mubr.bf16.mxu0 0
      %5769 = vmatmul.mubr.bf16.gmra.mrb[0].mxu0 %v5442
      %v5770 = vpop.f32.mrb[0].mxu0
      %v5771 = vadd.f32 0.0, %v5770
      %v5772 = vpop.f32.mrb[0].mxu0
      %v5773 = vpop.f32.mrb[0].mxu0
      %v5774 = vadd.f32 0.0, %v5773
      %v5775 = vpop.f32.mrb[0].mxu0
      %5776 = vmatprep.mubr.bf16.mxu0 0
      %5777 = vmatmul.mubr.bf16.gmra.mrb[0].mxu0 %v5444
      %v5778 = vpop.f32.mrb[0].mxu0
      %v5779 = vadd.f32 0.0, %v5778
      %v5780 = vpop.f32.mrb[0].mxu0
      %v5781 = vpop.f32.mrb[0].mxu0
      %v5782 = vadd.f32 0.0, %v5781
      %v5783 = vpop.f32.mrb[0].mxu0
      %5784 = vmatprep.mubr.bf16.mxu0 0
      %5785 = vmatmul.mubr.bf16.gmra.mrb[0].mxu0 %v5446
      %v5786 = vpop.f32.mrb[0].mxu0
      %v5787 = vadd.f32 0.0, %v5786
      %v5788 = vpop.f32.mrb[0].mxu0
      %v5789 = vpop.f32.mrb[0].mxu0
      %v5790 = vadd.f32 0.0, %v5789
      %v5791 = vpop.f32.mrb[0].mxu0
      %5792 = vmatprep.mubr.bf16.mxu0 0
      %5793 = vmatmul.mubr.bf16.gmra.mrb[0].mxu0 %v5448
      %v5794 = vpop.f32.mrb[0].mxu0
      %v5795 = vadd.f32 0.0, %v5794
      %v5796 = vpop.f32.mrb[0].mxu0
      %v5797 = vpop.f32.mrb[0].mxu0
      %v5798 = vadd.f32 0.0, %v5797
      %v5799 = vpop.f32.mrb[0].mxu0
      %5800 = vmatprep.mubr.bf16.mxu0 0
      %5801 = vmatmul.mubr.bf16.gmra.mrb[0].mxu0 %v5450
      %v5802 = vpop.f32.mrb[0].mxu0
      %v5803 = vadd.f32 0.0, %v5802
      %v5804 = vpop.f32.mrb[0].mxu0
      %v5805 = vpop.f32.mrb[0].mxu0
      %v5806 = vadd.f32 0.0, %v5805
      %v5807 = vpop.f32.mrb[0].mxu0
      %5808 = vmatprep.mubr.bf16.mxu0 0
      %5809 = vmatmul.mubr.bf16.gmra.mrb[0].mxu0 %v5452
      %v5810 = vpop.f32.mrb[0].mxu0
      %v5811 = vadd.f32 0.0, %v5810
      %v5812 = vpop.f32.mrb[0].mxu0
      %v5813 = vpop.f32.mrb[0].mxu0
      %v5814 = vadd.f32 0.0, %v5813
      %v5815 = vpop.f32.mrb[0].mxu0
      %5816 = vmatprep.mubr.bf16.mxu0 0
      %5817 = vmatmul.mubr.bf16.gmra.mrb[0].mxu0 %v5454
      %v5818 = vpop.f32.mrb[0].mxu0
      %v5819 = vadd.f32 0.0, %v5818
      %v5820 = vpop.f32.mrb[0].mxu0
      %v5821 = vpop.f32.mrb[0].mxu0
      %v5822 = vadd.f32 0.0, %v5821
      %v5823 = vpop.f32.mrb[0].mxu0
      %5824 = vmatprep.mubr.bf16.mxu0 0
      %5825 = vmatmul.mubr.bf16.gmra.mrb[0].mxu0 %v5456
      %v5826 = vpop.f32.mrb[0].mxu0
      %v5827 = vadd.f32 0.0, %v5826
      %v5828 = vpop.f32.mrb[0].mxu0
      %v5829 = vpop.f32.mrb[0].mxu0
      %v5830 = vadd.f32 0.0, %v5829
      %v5831 = vpop.f32.mrb[0].mxu0
      %5832 = vmatprep.mubr.bf16.mxu0 0
      %5833 = vmatmul.mubr.bf16.gmra.mrb[0].mxu0 %v5675
      %v5834 = vpop.f32.mrb[0].mxu0
      %v5835 = vadd.f32 0.0, %v5834
      %v5836 = vpop.f32.mrb[0].mxu0
      %v5837 = vpop.f32.mrb[0].mxu0
      %v5838 = vadd.f32 0.0, %v5837
      %v5839 = vpop.f32.mrb[0].mxu0
      %5840 = vdwg.mxu0
      %v5841 = vld [vmem:[#allocation2] sm:$0xff]
      %v5842 = vld [vmem:[#allocation2 + $0x8] sm:$0xff]
      %v5843 = vld [vmem:[#allocation2 + $0x10] sm:$0xff]
      %v5844 = vld [vmem:[#allocation2 + $0x18] sm:$0xff]
      %v5845 = vld [vmem:[#allocation2 + $0x20] sm:$0xff]
      %v5846 = vld [vmem:[#allocation2 + $0x28] sm:$0xff]
      %v5847 = vld [vmem:[#allocation2 + $0x30] sm:$0xff]
      %v5848 = vld [vmem:[#allocation2 + $0x38] sm:$0xff]
      %v5849 = vld [vmem:[#allocation2 + $0x40] sm:$0xff]
      %v5850 = vld [vmem:[#allocation2 + $0x48] sm:$0xff]
      %v5851 = vld [vmem:[#allocation2 + $0x50] sm:$0xff]
      %v5852 = vld [vmem:[#allocation2 + $0x58] sm:$0xff]
      %v5853 = vld [vmem:[#allocation2 + $0x60] sm:$0xff]
      %v5854 = vld [vmem:[#allocation2 + $0x68] sm:$0xff]
      %v5855 = vld [vmem:[#allocation2 + $0x70] sm:$0xff]
      %v5856 = vld [vmem:[#allocation2 + $0x78] sm:$0xff]
      %v5857 = vld [vmem:[#allocation2 + $0x80] sm:$0xff]
      %v5858 = vld [vmem:[#allocation2 + $0x88] sm:$0xff]
      %v5859 = vld [vmem:[#allocation2 + $0x90] sm:$0xff]
      %v5860 = vld [vmem:[#allocation2 + $0x98] sm:$0xff]
      %v5861 = vld [vmem:[#allocation2 + $0xa0] sm:$0xff]
      %v5862 = vld [vmem:[#allocation2 + $0xa8] sm:$0xff]
      %v5863 = vld [vmem:[#allocation2 + $0xb0] sm:$0xff]
      %v5864 = vld [vmem:[#allocation2 + $0xb8] sm:$0xff]
      %v5865 = vld [vmem:[#allocation2 + $0xc0] sm:$0xff]
      %v5866 = vld [vmem:[#allocation2 + $0xc8] sm:$0xff]
      %v5867 = vld [vmem:[#allocation2 + $0xd0] sm:$0xff]
      %v5868 = vld [vmem:[#allocation2 + $0xd8] sm:$0xff]
      %v5869 = vld [vmem:[#allocation2 + $0xe0] sm:$0xff]
      %v5870 = vld [vmem:[#allocation2 + $0xe8] sm:$0xff]
      %v5871 = vld [vmem:[#allocation2 + $0xf0] sm:$0xff]
      %v5872 = vld [vmem:[#allocation2 + $0xf8] sm:$0xff]
      %v5873 = vadd.f32 %v5841, %v5715
      %v5874 = vadd.f32 %v5842, %v5718
      %v5875 = vadd.f32 %v5843, %v5723
      %v5876 = vadd.f32 %v5844, %v5726
      %v5877 = vadd.f32 %v5845, %v5731
      %v5878 = vadd.f32 %v5846, %v5734
      %v5879 = vadd.f32 %v5847, %v5739
      %v5880 = vadd.f32 %v5848, %v5742
      %v5881 = vadd.f32 %v5849, %v5747
      %v5882 = vadd.f32 %v5850, %v5750
      %v5883 = vadd.f32 %v5851, %v5755
      %v5884 = vadd.f32 %v5852, %v5758
      %v5885 = vadd.f32 %v5853, %v5763
      %v5886 = vadd.f32 %v5854, %v5766
      %v5887 = vadd.f32 %v5855, %v5771
      %v5888 = vadd.f32 %v5856, %v5774
      %v5889 = vadd.f32 %v5857, %v5779
      %v5890 = vadd.f32 %v5858, %v5782
      %v5891 = vadd.f32 %v5859, %v5787
      %v5892 = vadd.f32 %v5860, %v5790
      %v5893 = vadd.f32 %v5861, %v5795
      %v5894 = vadd.f32 %v5862, %v5798
      %v5895 = vadd.f32 %v5863, %v5803
      %v5896 = vadd.f32 %v5864, %v5806
      %v5897 = vadd.f32 %v5865, %v5811
      %v5898 = vadd.f32 %v5866, %v5814
      %v5899 = vadd.f32 %v5867, %v5819
      %v5900 = vadd.f32 %v5868, %v5822
      %v5901 = vadd.f32 %v5869, %v5827
      %v5902 = vadd.f32 %v5870, %v5830
      %v5903 = vadd.f32 %v5871, %v5835
      %v5904 = vadd.f32 %v5872, %v5838
      %5905 = vst.msk [vmem:[#allocation2] sm:$0xff] %vm1570, %v5873
      %5906 = vst.msk [vmem:[#allocation2 + $0x8] sm:$0xff] %vm1570, %v5874
      %5907 = vst.msk [vmem:[#allocation2 + $0x10] sm:$0xff] %vm1570, %v5875
      %5908 = vst.msk [vmem:[#allocation2 + $0x18] sm:$0xff] %vm1570, %v5876
      %5909 = vst.msk [vmem:[#allocation2 + $0x20] sm:$0xff] %vm1570, %v5877
      %5910 = vst.msk [vmem:[#allocation2 + $0x28] sm:$0xff] %vm1570, %v5878
      %5911 = vst.msk [vmem:[#allocation2 + $0x30] sm:$0xff] %vm1570, %v5879
      %5912 = vst.msk [vmem:[#allocation2 + $0x38] sm:$0xff] %vm1570, %v5880
      %5913 = vst.msk [vmem:[#allocation2 + $0x40] sm:$0xff] %vm1570, %v5881
      %5914 = vst.msk [vmem:[#allocation2 + $0x48] sm:$0xff] %vm1570, %v5882
      %5915 = vst.msk [vmem:[#allocation2 + $0x50] sm:$0xff] %vm1570, %v5883
      %5916 = vst.msk [vmem:[#allocation2 + $0x58] sm:$0xff] %vm1570, %v5884
      %5917 = vst.msk [vmem:[#allocation2 + $0x60] sm:$0xff] %vm1570, %v5885
      %5918 = vst.msk [vmem:[#allocation2 + $0x68] sm:$0xff] %vm1570, %v5886
      %5919 = vst.msk [vmem:[#allocation2 + $0x70] sm:$0xff] %vm1570, %v5887
      %5920 = vst.msk [vmem:[#allocation2 + $0x78] sm:$0xff] %vm1570, %v5888
      %5921 = vst.msk [vmem:[#allocation2 + $0x80] sm:$0xff] %vm1570, %v5889
      %5922 = vst.msk [vmem:[#allocation2 + $0x88] sm:$0xff] %vm1570, %v5890
      %5923 = vst.msk [vmem:[#allocation2 + $0x90] sm:$0xff] %vm1570, %v5891
      %5924 = vst.msk [vmem:[#allocation2 + $0x98] sm:$0xff] %vm1570, %v5892
      %5925 = vst.msk [vmem:[#allocation2 + $0xa0] sm:$0xff] %vm1570, %v5893
      %5926 = vst.msk [vmem:[#allocation2 + $0xa8] sm:$0xff] %vm1570, %v5894
      %5927 = vst.msk [vmem:[#allocation2 + $0xb0] sm:$0xff] %vm1570, %v5895
      %5928 = vst.msk [vmem:[#allocation2 + $0xb8] sm:$0xff] %vm1570, %v5896
      %5929 = vst.msk [vmem:[#allocation2 + $0xc0] sm:$0xff] %vm1570, %v5897
      %5930 = vst.msk [vmem:[#allocation2 + $0xc8] sm:$0xff] %vm1570, %v5898
      %5931 = vst.msk [vmem:[#allocation2 + $0xd0] sm:$0xff] %vm1570, %v5899
      %5932 = vst.msk [vmem:[#allocation2 + $0xd8] sm:$0xff] %vm1570, %v5900
      %5933 = vst.msk [vmem:[#allocation2 + $0xe0] sm:$0xff] %vm1570, %v5901
      %5934 = vst.msk [vmem:[#allocation2 + $0xe8] sm:$0xff] %vm1570, %v5902
      %5935 = vst.msk [vmem:[#allocation2 + $0xf0] sm:$0xff] %vm1570, %v5903
      %5936 = vst.msk [vmem:[#allocation2 + $0xf8] sm:$0xff] %vm1570, %v5904
      %s5937 = scalar_lea.vmem %s3, 40
      %v5938 = vld [vmem:[%s5937] sm:$0xf]
      %v5939 = vld [vmem:[%s5937 + $0x4] sm:$0xf]
      %v5940 = vld [vmem:[%s5937 + $0x8] sm:$0xf]
      %v5941 = vld [vmem:[%s5937 + $0xc] sm:$0xf]
      %v5942 = vld [vmem:[%s5937 + $0x10] sm:$0xf]
      %v5948 = vunpack.c.l.b16 %v5938
      %v5949 = vunpack.c.l.b16 %v5939
      %v5950 = vunpack.c.l.b16 %v5940
      %v5951 = vunpack.c.l.b16 %v5941
      %v5952 = vunpack.c.l.b16 %v5942
      %v5953 = vpack.c.b16 %v5949, %v5948
      %v5954 = vpack.c.b16 %v5951, %v5950
      %v5955 = vpack.c.b16 %v5952, %v5952
      %v5958 = vsel %vm5429, %v5408, 0
      %v5961 = vsel %vm3589, %v5955, 0
      %5963 = vmatprep.subr.bf16.mxu0 0
      %5964 = vmatpush1.bf16.msra.mxu0 %v5953
      %5965 = vmatprep.subr.bf16.mxu0 0
      %5966 = vmatpush1.bf16.msra.mxu0 %v5954
      %5967 = vmatprep.subr.bf16.mxu0 0
      %5968 = vmatpush1.bf16.msra.mxu0 %v5961
      %5969 = vmatprep.subr.bf16.mxu0 0
      %5970 = vmatpush1.bf16.msra.mxu0 0
      %5971 = vmatprep.subr.bf16.mxu0 0
      %5972 = vmatpush1.bf16.msra.mxu0 0
      %5973 = vmatprep.subr.bf16.mxu0 0
      %5974 = vmatpush1.bf16.msra.mxu0 0
      %5975 = vmatprep.subr.bf16.mxu0 0
      %5976 = vmatpush1.bf16.msra.mxu0 0
      %5977 = vmatprep.subr.bf16.mxu0 0
      %5978 = vmatpush1.bf16.msra.mxu0 0
      %5979 = vmatprep.subr.bf16.mxu0 0
      %5980 = vmatpush1.bf16.msra.mxu0 0
      %5981 = vmatprep.subr.bf16.mxu0 0
      %5982 = vmatpush1.bf16.msra.mxu0 0
      %5983 = vmatprep.subr.bf16.mxu0 0
      %5984 = vmatpush1.bf16.msra.mxu0 0
      %5985 = vmatprep.subr.bf16.mxu0 0
      %5986 = vmatpush1.bf16.msra.mxu0 0
      %5987 = vmatprep.subr.bf16.mxu0 0
      %5988 = vmatpush1.bf16.msra.mxu0 0
      %5989 = vmatprep.subr.bf16.mxu0 0
      %5990 = vmatpush1.bf16.msra.mxu0 0
      %5991 = vmatprep.subr.bf16.mxu0 0
      %5992 = vmatpush1.bf16.msra.mxu0 0
      %5993 = vmatprep.subr.bf16.mxu0 0
      %5994 = vmatpush1.bf16.msra.mxu0 0
      %5995 = vmatprep.mubr.bf16.mxu0 0
      %5996 = vmatmul.mubr.bf16.gmra.mrb[0].mxu0 %v5430
      %v5997 = vpop.f32.mrb[0].mxu0
      %v5998 = vadd.f32 0.0, %v5997
      %v5999 = vpop.f32.mrb[0].mxu0
      %v6000 = vpop.f32.mrb[0].mxu0
      %v6001 = vadd.f32 0.0, %v6000
      %v6002 = vpop.f32.mrb[0].mxu0
      %6003 = vmatprep.mubr.bf16.mxu0 0
      %6004 = vmatmul.mubr.bf16.gmra.mrb[0].mxu0 %v5432
      %v6005 = vpop.f32.mrb[0].mxu0
      %v6006 = vadd.f32 0.0, %v6005
      %v6007 = vpop.f32.mrb[0].mxu0
      %v6008 = vpop.f32.mrb[0].mxu0
      %v6009 = vadd.f32 0.0, %v6008
      %v6010 = vpop.f32.mrb[0].mxu0
      %6011 = vmatprep.mubr.bf16.mxu0 0
      %6012 = vmatmul.mubr.bf16.gmra.mrb[0].mxu0 %v5434
      %v6013 = vpop.f32.mrb[0].mxu0
      %v6014 = vadd.f32 0.0, %v6013
      %v6015 = vpop.f32.mrb[0].mxu0
      %v6016 = vpop.f32.mrb[0].mxu0
      %v6017 = vadd.f32 0.0, %v6016
      %v6018 = vpop.f32.mrb[0].mxu0
      %6019 = vmatprep.mubr.bf16.mxu0 0
      %6020 = vmatmul.mubr.bf16.gmra.mrb[0].mxu0 %v5436
      %v6021 = vpop.f32.mrb[0].mxu0
      %v6022 = vadd.f32 0.0, %v6021
      %v6023 = vpop.f32.mrb[0].mxu0
      %v6024 = vpop.f32.mrb[0].mxu0
      %v6025 = vadd.f32 0.0, %v6024
      %v6026 = vpop.f32.mrb[0].mxu0
      %6027 = vmatprep.mubr.bf16.mxu0 0
      %6028 = vmatmul.mubr.bf16.gmra.mrb[0].mxu0 %v5438
      %v6029 = vpop.f32.mrb[0].mxu0
      %v6030 = vadd.f32 0.0, %v6029
      %v6031 = vpop.f32.mrb[0].mxu0
      %v6032 = vpop.f32.mrb[0].mxu0
      %v6033 = vadd.f32 0.0, %v6032
      %v6034 = vpop.f32.mrb[0].mxu0
      %6035 = vmatprep.mubr.bf16.mxu0 0
      %6036 = vmatmul.mubr.bf16.gmra.mrb[0].mxu0 %v5440
      %v6037 = vpop.f32.mrb[0].mxu0
      %v6038 = vadd.f32 0.0, %v6037
      %v6039 = vpop.f32.mrb[0].mxu0
      %v6040 = vpop.f32.mrb[0].mxu0
      %v6041 = vadd.f32 0.0, %v6040
      %v6042 = vpop.f32.mrb[0].mxu0
      %6043 = vmatprep.mubr.bf16.mxu0 0
      %6044 = vmatmul.mubr.bf16.gmra.mrb[0].mxu0 %v5442
      %v6045 = vpop.f32.mrb[0].mxu0
      %v6046 = vadd.f32 0.0, %v6045
      %v6047 = vpop.f32.mrb[0].mxu0
      %v6048 = vpop.f32.mrb[0].mxu0
      %v6049 = vadd.f32 0.0, %v6048
      %v6050 = vpop.f32.mrb[0].mxu0
      %6051 = vmatprep.mubr.bf16.mxu0 0
      %6052 = vmatmul.mubr.bf16.gmra.mrb[0].mxu0 %v5444
      %v6053 = vpop.f32.mrb[0].mxu0
      %v6054 = vadd.f32 0.0, %v6053
      %v6055 = vpop.f32.mrb[0].mxu0
      %v6056 = vpop.f32.mrb[0].mxu0
      %v6057 = vadd.f32 0.0, %v6056
      %v6058 = vpop.f32.mrb[0].mxu0
      %6059 = vmatprep.mubr.bf16.mxu0 0
      %6060 = vmatmul.mubr.bf16.gmra.mrb[0].mxu0 %v5446
      %v6061 = vpop.f32.mrb[0].mxu0
      %v6062 = vadd.f32 0.0, %v6061
      %v6063 = vpop.f32.mrb[0].mxu0
      %v6064 = vpop.f32.mrb[0].mxu0
      %v6065 = vadd.f32 0.0, %v6064
      %v6066 = vpop.f32.mrb[0].mxu0
      %6067 = vmatprep.mubr.bf16.mxu0 0
      %6068 = vmatmul.mubr.bf16.gmra.mrb[0].mxu0 %v5448
      %v6069 = vpop.f32.mrb[0].mxu0
      %v6070 = vadd.f32 0.0, %v6069
      %v6071 = vpop.f32.mrb[0].mxu0
      %v6072 = vpop.f32.mrb[0].mxu0
      %v6073 = vadd.f32 0.0, %v6072
      %v6074 = vpop.f32.mrb[0].mxu0
      %6075 = vmatprep.mubr.bf16.mxu0 0
      %6076 = vmatmul.mubr.bf16.gmra.mrb[0].mxu0 %v5450
      %v6077 = vpop.f32.mrb[0].mxu0
      %v6078 = vadd.f32 0.0, %v6077
      %v6079 = vpop.f32.mrb[0].mxu0
      %v6080 = vpop.f32.mrb[0].mxu0
      %v6081 = vadd.f32 0.0, %v6080
      %v6082 = vpop.f32.mrb[0].mxu0
      %6083 = vmatprep.mubr.bf16.mxu0 0
      %6084 = vmatmul.mubr.bf16.gmra.mrb[0].mxu0 %v5452
      %v6085 = vpop.f32.mrb[0].mxu0
      %v6086 = vadd.f32 0.0, %v6085
      %v6087 = vpop.f32.mrb[0].mxu0
      %v6088 = vpop.f32.mrb[0].mxu0
      %v6089 = vadd.f32 0.0, %v6088
      %v6090 = vpop.f32.mrb[0].mxu0
      %6091 = vmatprep.mubr.bf16.mxu0 0
      %6092 = vmatmul.mubr.bf16.gmra.mrb[0].mxu0 %v5454
      %v6093 = vpop.f32.mrb[0].mxu0
      %v6094 = vadd.f32 0.0, %v6093
      %v6095 = vpop.f32.mrb[0].mxu0
      %v6096 = vpop.f32.mrb[0].mxu0
      %v6097 = vadd.f32 0.0, %v6096
      %v6098 = vpop.f32.mrb[0].mxu0
      %6099 = vmatprep.mubr.bf16.mxu0 0
      %6100 = vmatmul.mubr.bf16.gmra.mrb[0].mxu0 %v5456
      %v6101 = vpop.f32.mrb[0].mxu0
      %v6102 = vadd.f32 0.0, %v6101
      %v6103 = vpop.f32.mrb[0].mxu0
      %v6104 = vpop.f32.mrb[0].mxu0
      %v6105 = vadd.f32 0.0, %v6104
      %v6106 = vpop.f32.mrb[0].mxu0
      %6107 = vmatprep.mubr.bf16.mxu0 0
      %6108 = vmatmul.mubr.bf16.gmra.mrb[0].mxu0 %v5675
      %v6109 = vpop.f32.mrb[0].mxu0
      %v6110 = vadd.f32 0.0, %v6109
      %v6111 = vpop.f32.mrb[0].mxu0
      %v6112 = vpop.f32.mrb[0].mxu0
      %v6113 = vadd.f32 0.0, %v6112
      %v6114 = vpop.f32.mrb[0].mxu0
      %6115 = vmatprep.mubr.bf16.mxu0 0
      %6116 = vmatmul.mubr.bf16.gmra.mrb[0].mxu0 %v5958
      %v6117 = vpop.f32.mrb[0].mxu0
      %v6118 = vadd.f32 0.0, %v6117
      %v6119 = vpop.f32.mrb[0].mxu0
      %v6120 = vpop.f32.mrb[0].mxu0
      %v6121 = vadd.f32 0.0, %v6120
      %v6122 = vpop.f32.mrb[0].mxu0
      %6123 = vdwg.mxu0
      %v6124 = vld [vmem:[#allocation2] sm:$0xff]
      %v6125 = vld [vmem:[#allocation2 + $0x8] sm:$0xff]
      %v6126 = vld [vmem:[#allocation2 + $0x10] sm:$0xff]
      %v6127 = vld [vmem:[#allocation2 + $0x18] sm:$0xff]
      %v6128 = vld [vmem:[#allocation2 + $0x20] sm:$0xff]
      %v6129 = vld [vmem:[#allocation2 + $0x28] sm:$0xff]
      %v6130 = vld [vmem:[#allocation2 + $0x30] sm:$0xff]
      %v6131 = vld [vmem:[#allocation2 + $0x38] sm:$0xff]
      %v6132 = vld [vmem:[#allocation2 + $0x40] sm:$0xff]
      %v6133 = vld [vmem:[#allocation2 + $0x48] sm:$0xff]
      %v6134 = vld [vmem:[#allocation2 + $0x50] sm:$0xff]
      %v6135 = vld [vmem:[#allocation2 + $0x58] sm:$0xff]
      %v6136 = vld [vmem:[#allocation2 + $0x60] sm:$0xff]
      %v6137 = vld [vmem:[#allocation2 + $0x68] sm:$0xff]
      %v6138 = vld [vmem:[#allocation2 + $0x70] sm:$0xff]
      %v6139 = vld [vmem:[#allocation2 + $0x78] sm:$0xff]
      %v6140 = vld [vmem:[#allocation2 + $0x80] sm:$0xff]
      %v6141 = vld [vmem:[#allocation2 + $0x88] sm:$0xff]
      %v6142 = vld [vmem:[#allocation2 + $0x90] sm:$0xff]
      %v6143 = vld [vmem:[#allocation2 + $0x98] sm:$0xff]
      %v6144 = vld [vmem:[#allocation2 + $0xa0] sm:$0xff]
      %v6145 = vld [vmem:[#allocation2 + $0xa8] sm:$0xff]
      %v6146 = vld [vmem:[#allocation2 + $0xb0] sm:$0xff]
      %v6147 = vld [vmem:[#allocation2 + $0xb8] sm:$0xff]
      %v6148 = vld [vmem:[#allocation2 + $0xc0] sm:$0xff]
      %v6149 = vld [vmem:[#allocation2 + $0xc8] sm:$0xff]
      %v6150 = vld [vmem:[#allocation2 + $0xd0] sm:$0xff]
      %v6151 = vld [vmem:[#allocation2 + $0xd8] sm:$0xff]
      %v6152 = vld [vmem:[#allocation2 + $0xe0] sm:$0xff]
      %v6153 = vld [vmem:[#allocation2 + $0xe8] sm:$0xff]
      %v6154 = vld [vmem:[#allocation2 + $0xf0] sm:$0xff]
      %v6155 = vld [vmem:[#allocation2 + $0xf8] sm:$0xff]
      %v6156 = vadd.f32 %v6124, %v5998
      %v6157 = vadd.f32 %v6125, %v6001
      %v6158 = vadd.f32 %v6126, %v6006
      %v6159 = vadd.f32 %v6127, %v6009
      %v6160 = vadd.f32 %v6128, %v6014
      %v6161 = vadd.f32 %v6129, %v6017
      %v6162 = vadd.f32 %v6130, %v6022
      %v6163 = vadd.f32 %v6131, %v6025
      %v6164 = vadd.f32 %v6132, %v6030
      %v6165 = vadd.f32 %v6133, %v6033
      %v6166 = vadd.f32 %v6134, %v6038
      %v6167 = vadd.f32 %v6135, %v6041
      %v6168 = vadd.f32 %v6136, %v6046
      %v6169 = vadd.f32 %v6137, %v6049
      %v6170 = vadd.f32 %v6138, %v6054
      %v6171 = vadd.f32 %v6139, %v6057
      %v6172 = vadd.f32 %v6140, %v6062
      %v6173 = vadd.f32 %v6141, %v6065
      %v6174 = vadd.f32 %v6142, %v6070
      %v6175 = vadd.f32 %v6143, %v6073
      %v6176 = vadd.f32 %v6144, %v6078
      %v6177 = vadd.f32 %v6145, %v6081
      %v6178 = vadd.f32 %v6146, %v6086
      %v6179 = vadd.f32 %v6147, %v6089
      %v6180 = vadd.f32 %v6148, %v6094
      %v6181 = vadd.f32 %v6149, %v6097
      %v6182 = vadd.f32 %v6150, %v6102
      %v6183 = vadd.f32 %v6151, %v6105
      %v6184 = vadd.f32 %v6152, %v6110
      %v6185 = vadd.f32 %v6153, %v6113
      %v6186 = vadd.f32 %v6154, %v6118
      %v6187 = vadd.f32 %v6155, %v6121
      %6188 = vst.msk [vmem:[#allocation2] sm:$0xff] %vm1570, %v6156
      %6189 = vst.msk [vmem:[#allocation2 + $0x8] sm:$0xff] %vm1570, %v6157
      %6190 = vst.msk [vmem:[#allocation2 + $0x10] sm:$0xff] %vm1570, %v6158
      %6191 = vst.msk [vmem:[#allocation2 + $0x18] sm:$0xff] %vm1570, %v6159
      %6192 = vst.msk [vmem:[#allocation2 + $0x20] sm:$0xff] %vm1570, %v6160
      %6193 = vst.msk [vmem:[#allocation2 + $0x28] sm:$0xff] %vm1570, %v6161
      %6194 = vst.msk [vmem:[#allocation2 + $0x30] sm:$0xff] %vm1570, %v6162
      %6195 = vst.msk [vmem:[#allocation2 + $0x38] sm:$0xff] %vm1570, %v6163
      %6196 = vst.msk [vmem:[#allocation2 + $0x40] sm:$0xff] %vm1570, %v6164
      %6197 = vst.msk [vmem:[#allocation2 + $0x48] sm:$0xff] %vm1570, %v6165
      %6198 = vst.msk [vmem:[#allocation2 + $0x50] sm:$0xff] %vm1570, %v6166
      %6199 = vst.msk [vmem:[#allocation2 + $0x58] sm:$0xff] %vm1570, %v6167
      %6200 = vst.msk [vmem:[#allocation2 + $0x60] sm:$0xff] %vm1570, %v6168
      %6201 = vst.msk [vmem:[#allocation2 + $0x68] sm:$0xff] %vm1570, %v6169
      %6202 = vst.msk [vmem:[#allocation2 + $0x70] sm:$0xff] %vm1570, %v6170
      %6203 = vst.msk [vmem:[#allocation2 + $0x78] sm:$0xff] %vm1570, %v6171
      %6204 = vst.msk [vmem:[#allocation2 + $0x80] sm:$0xff] %vm1570, %v6172
      %6205 = vst.msk [vmem:[#allocation2 + $0x88] sm:$0xff] %vm1570, %v6173
      %6206 = vst.msk [vmem:[#allocation2 + $0x90] sm:$0xff] %vm1570, %v6174
      %6207 = vst.msk [vmem:[#allocation2 + $0x98] sm:$0xff] %vm1570, %v6175
      %6208 = vst.msk [vmem:[#allocation2 + $0xa0] sm:$0xff] %vm1570, %v6176
      %6209 = vst.msk [vmem:[#allocation2 + $0xa8] sm:$0xff] %vm1570, %v6177
      %6210 = vst.msk [vmem:[#allocation2 + $0xb0] sm:$0xff] %vm1570, %v6178
      %6211 = vst.msk [vmem:[#allocation2 + $0xb8] sm:$0xff] %vm1570, %v6179
      %6212 = vst.msk [vmem:[#allocation2 + $0xc0] sm:$0xff] %vm1570, %v6180
      %6213 = vst.msk [vmem:[#allocation2 + $0xc8] sm:$0xff] %vm1570, %v6181
      %6214 = vst.msk [vmem:[#allocation2 + $0xd0] sm:$0xff] %vm1570, %v6182
      %6215 = vst.msk [vmem:[#allocation2 + $0xd8] sm:$0xff] %vm1570, %v6183
      %6216 = vst.msk [vmem:[#allocation2 + $0xe0] sm:$0xff] %vm1570, %v6184
      %6217 = vst.msk [vmem:[#allocation2 + $0xe8] sm:$0xff] %vm1570, %v6185
      %6218 = vst.msk [vmem:[#allocation2 + $0xf0] sm:$0xff] %vm1570, %v6186
      %6219 = vst.msk [vmem:[#allocation2 + $0xf8] sm:$0xff] %vm1570, %v6187
      %s6220 = scalar_lea.vmem %s3, 60
      %v6221 = vld [vmem:[%s6220] sm:$0xf]
      %v6222 = vld [vmem:[%s6220 + $0x4] sm:$0xf]
      %v6223 = vld [vmem:[%s6220 + $0x8] sm:$0xf]
      %v6224 = vld [vmem:[%s6220 + $0xc] sm:$0xf]
      %v6225 = vld [vmem:[%s6220 + $0x10] sm:$0xf]
      %v6231 = vunpack.c.l.b16 %v6221
      %v6232 = vunpack.c.l.b16 %v6222
      %v6233 = vunpack.c.l.b16 %v6223
      %v6234 = vunpack.c.l.b16 %v6224
      %v6235 = vunpack.c.l.b16 %v6225
      %v6236 = vpack.c.b16 %v6232, %v6231
      %v6237 = vpack.c.b16 %v6234, %v6233
      %v6238 = vpack.c.b16 %v6235, %v6235
      %v6242 = vsel %vm3589, %v6238, 0
      %6244 = vmatprep.subr.bf16.mxu0 0
      %6245 = vmatpush1.bf16.msra.mxu0 %v6236
      %6246 = vmatprep.subr.bf16.mxu0 0
      %6247 = vmatpush1.bf16.msra.mxu0 %v6237
      %6248 = vmatprep.subr.bf16.mxu0 0
      %6249 = vmatpush1.bf16.msra.mxu0 %v6242
      %6250 = vmatprep.subr.bf16.mxu0 0
      %6251 = vmatpush1.bf16.msra.mxu0 0
      %6252 = vmatprep.subr.bf16.mxu0 0
      %6253 = vmatpush1.bf16.msra.mxu0 0
      %6254 = vmatprep.subr.bf16.mxu0 0
      %6255 = vmatpush1.bf16.msra.mxu0 0
      %6256 = vmatprep.subr.bf16.mxu0 0
      %6257 = vmatpush1.bf16.msra.mxu0 0
      %6258 = vmatprep.subr.bf16.mxu0 0
      %6259 = vmatpush1.bf16.msra.mxu0 0
      %6260 = vmatprep.subr.bf16.mxu0 0
      %6261 = vmatpush1.bf16.msra.mxu0 0
      %6262 = vmatprep.subr.bf16.mxu0 0
      %6263 = vmatpush1.bf16.msra.mxu0 0
      %6264 = vmatprep.subr.bf16.mxu0 0
      %6265 = vmatpush1.bf16.msra.mxu0 0
      %6266 = vmatprep.subr.bf16.mxu0 0
      %6267 = vmatpush1.bf16.msra.mxu0 0
      %6268 = vmatprep.subr.bf16.mxu0 0
      %6269 = vmatpush1.bf16.msra.mxu0 0
      %6270 = vmatprep.subr.bf16.mxu0 0
      %6271 = vmatpush1.bf16.msra.mxu0 0
      %6272 = vmatprep.subr.bf16.mxu0 0
      %6273 = vmatpush1.bf16.msra.mxu0 0
      %6274 = vmatprep.subr.bf16.mxu0 0
      %6275 = vmatpush1.bf16.msra.mxu0 0
      %6276 = vmatprep.mubr.bf16.mxu0 0
      %6277 = vmatmul.mubr.bf16.gmra.mrb[0].mxu0 %v5432
      %v6278 = vpop.f32.mrb[0].mxu0
      %v6279 = vadd.f32 0.0, %v6278
      %v6280 = vpop.f32.mrb[0].mxu0
      %v6281 = vpop.f32.mrb[0].mxu0
      %v6282 = vadd.f32 0.0, %v6281
      %v6283 = vpop.f32.mrb[0].mxu0
      %6284 = vmatprep.mubr.bf16.mxu0 0
      %6285 = vmatmul.mubr.bf16.gmra.mrb[0].mxu0 %v5434
      %v6286 = vpop.f32.mrb[0].mxu0
      %v6287 = vadd.f32 0.0, %v6286
      %v6288 = vpop.f32.mrb[0].mxu0
      %v6289 = vpop.f32.mrb[0].mxu0
      %v6290 = vadd.f32 0.0, %v6289
      %v6291 = vpop.f32.mrb[0].mxu0
      %6292 = vmatprep.mubr.bf16.mxu0 0
      %6293 = vmatmul.mubr.bf16.gmra.mrb[0].mxu0 %v5436
      %v6294 = vpop.f32.mrb[0].mxu0
      %v6295 = vadd.f32 0.0, %v6294
      %v6296 = vpop.f32.mrb[0].mxu0
      %v6297 = vpop.f32.mrb[0].mxu0
      %v6298 = vadd.f32 0.0, %v6297
      %v6299 = vpop.f32.mrb[0].mxu0
      %6300 = vmatprep.mubr.bf16.mxu0 0
      %6301 = vmatmul.mubr.bf16.gmra.mrb[0].mxu0 %v5438
      %v6302 = vpop.f32.mrb[0].mxu0
      %v6303 = vadd.f32 0.0, %v6302
      %v6304 = vpop.f32.mrb[0].mxu0
      %v6305 = vpop.f32.mrb[0].mxu0
      %v6306 = vadd.f32 0.0, %v6305
      %v6307 = vpop.f32.mrb[0].mxu0
      %6308 = vmatprep.mubr.bf16.mxu0 0
      %6309 = vmatmul.mubr.bf16.gmra.mrb[0].mxu0 %v5440
      %v6310 = vpop.f32.mrb[0].mxu0
      %v6311 = vadd.f32 0.0, %v6310
      %v6312 = vpop.f32.mrb[0].mxu0
      %v6313 = vpop.f32.mrb[0].mxu0
      %v6314 = vadd.f32 0.0, %v6313
      %v6315 = vpop.f32.mrb[0].mxu0
      %6316 = vmatprep.mubr.bf16.mxu0 0
      %6317 = vmatmul.mubr.bf16.gmra.mrb[0].mxu0 %v5442
      %v6318 = vpop.f32.mrb[0].mxu0
      %v6319 = vadd.f32 0.0, %v6318
      %v6320 = vpop.f32.mrb[0].mxu0
      %v6321 = vpop.f32.mrb[0].mxu0
      %v6322 = vadd.f32 0.0, %v6321
      %v6323 = vpop.f32.mrb[0].mxu0
      %6324 = vmatprep.mubr.bf16.mxu0 0
      %6325 = vmatmul.mubr.bf16.gmra.mrb[0].mxu0 %v5444
      %v6326 = vpop.f32.mrb[0].mxu0
      %v6327 = vadd.f32 0.0, %v6326
      %v6328 = vpop.f32.mrb[0].mxu0
      %v6329 = vpop.f32.mrb[0].mxu0
      %v6330 = vadd.f32 0.0, %v6329
      %v6331 = vpop.f32.mrb[0].mxu0
      %6332 = vmatprep.mubr.bf16.mxu0 0
      %6333 = vmatmul.mubr.bf16.gmra.mrb[0].mxu0 %v5446
      %v6334 = vpop.f32.mrb[0].mxu0
      %v6335 = vadd.f32 0.0, %v6334
      %v6336 = vpop.f32.mrb[0].mxu0
      %v6337 = vpop.f32.mrb[0].mxu0
      %v6338 = vadd.f32 0.0, %v6337
      %v6339 = vpop.f32.mrb[0].mxu0
      %6340 = vmatprep.mubr.bf16.mxu0 0
      %6341 = vmatmul.mubr.bf16.gmra.mrb[0].mxu0 %v5448
      %v6342 = vpop.f32.mrb[0].mxu0
      %v6343 = vadd.f32 0.0, %v6342
      %v6344 = vpop.f32.mrb[0].mxu0
      %v6345 = vpop.f32.mrb[0].mxu0
      %v6346 = vadd.f32 0.0, %v6345
      %v6347 = vpop.f32.mrb[0].mxu0
      %6348 = vmatprep.mubr.bf16.mxu0 0
      %6349 = vmatmul.mubr.bf16.gmra.mrb[0].mxu0 %v5450
      %v6350 = vpop.f32.mrb[0].mxu0
      %v6351 = vadd.f32 0.0, %v6350
      %v6352 = vpop.f32.mrb[0].mxu0
      %v6353 = vpop.f32.mrb[0].mxu0
      %v6354 = vadd.f32 0.0, %v6353
      %v6355 = vpop.f32.mrb[0].mxu0
      %6356 = vmatprep.mubr.bf16.mxu0 0
      %6357 = vmatmul.mubr.bf16.gmra.mrb[0].mxu0 %v5452
      %v6358 = vpop.f32.mrb[0].mxu0
      %v6359 = vadd.f32 0.0, %v6358
      %v6360 = vpop.f32.mrb[0].mxu0
      %v6361 = vpop.f32.mrb[0].mxu0
      %v6362 = vadd.f32 0.0, %v6361
      %v6363 = vpop.f32.mrb[0].mxu0
      %6364 = vmatprep.mubr.bf16.mxu0 0
      %6365 = vmatmul.mubr.bf16.gmra.mrb[0].mxu0 %v5454
      %v6366 = vpop.f32.mrb[0].mxu0
      %v6367 = vadd.f32 0.0, %v6366
      %v6368 = vpop.f32.mrb[0].mxu0
      %v6369 = vpop.f32.mrb[0].mxu0
      %v6370 = vadd.f32 0.0, %v6369
      %v6371 = vpop.f32.mrb[0].mxu0
      %6372 = vmatprep.mubr.bf16.mxu0 0
      %6373 = vmatmul.mubr.bf16.gmra.mrb[0].mxu0 %v5456
      %v6374 = vpop.f32.mrb[0].mxu0
      %v6375 = vadd.f32 0.0, %v6374
      %v6376 = vpop.f32.mrb[0].mxu0
      %v6377 = vpop.f32.mrb[0].mxu0
      %v6378 = vadd.f32 0.0, %v6377
      %v6379 = vpop.f32.mrb[0].mxu0
      %6380 = vmatprep.mubr.bf16.mxu0 0
      %6381 = vmatmul.mubr.bf16.gmra.mrb[0].mxu0 %v5675
      %v6382 = vpop.f32.mrb[0].mxu0
      %v6383 = vadd.f32 0.0, %v6382
      %v6384 = vpop.f32.mrb[0].mxu0
      %v6385 = vpop.f32.mrb[0].mxu0
      %v6386 = vadd.f32 0.0, %v6385
      %v6387 = vpop.f32.mrb[0].mxu0
      %6388 = vmatprep.mubr.bf16.mxu0 0
      %6389 = vmatmul.mubr.bf16.gmra.mrb[0].mxu0 %v5958
      %v6390 = vpop.f32.mrb[0].mxu0
      %v6391 = vadd.f32 0.0, %v6390
      %v6392 = vpop.f32.mrb[0].mxu0
      %v6393 = vpop.f32.mrb[0].mxu0
      %v6394 = vadd.f32 0.0, %v6393
      %v6395 = vpop.f32.mrb[0].mxu0
      %6396 = vmatprep.mubr.bf16.mxu0 0
      %6397 = vmatmul.mubr.bf16.gmra.mrb[0].mxu0 %v5958
      %v6398 = vpop.f32.mrb[0].mxu0
      %v6399 = vadd.f32 0.0, %v6398
      %v6400 = vpop.f32.mrb[0].mxu0
      %v6401 = vpop.f32.mrb[0].mxu0
      %v6402 = vadd.f32 0.0, %v6401
      %v6403 = vpop.f32.mrb[0].mxu0
      %6404 = vdwg.mxu0
      %v6405 = vld [vmem:[#allocation2] sm:$0xff]
      %v6406 = vld [vmem:[#allocation2 + $0x8] sm:$0xff]
      %v6407 = vld [vmem:[#allocation2 + $0x10] sm:$0xff]
      %v6408 = vld [vmem:[#allocation2 + $0x18] sm:$0xff]
      %v6409 = vld [vmem:[#allocation2 + $0x20] sm:$0xff]
      %v6410 = vld [vmem:[#allocation2 + $0x28] sm:$0xff]
      %v6411 = vld [vmem:[#allocation2 + $0x30] sm:$0xff]
      %v6412 = vld [vmem:[#allocation2 + $0x38] sm:$0xff]
      %v6413 = vld [vmem:[#allocation2 + $0x40] sm:$0xff]
      %v6414 = vld [vmem:[#allocation2 + $0x48] sm:$0xff]
      %v6415 = vld [vmem:[#allocation2 + $0x50] sm:$0xff]
      %v6416 = vld [vmem:[#allocation2 + $0x58] sm:$0xff]
      %v6417 = vld [vmem:[#allocation2 + $0x60] sm:$0xff]
      %v6418 = vld [vmem:[#allocation2 + $0x68] sm:$0xff]
      %v6419 = vld [vmem:[#allocation2 + $0x70] sm:$0xff]
      %v6420 = vld [vmem:[#allocation2 + $0x78] sm:$0xff]
      %v6421 = vld [vmem:[#allocation2 + $0x80] sm:$0xff]
      %v6422 = vld [vmem:[#allocation2 + $0x88] sm:$0xff]
      %v6423 = vld [vmem:[#allocation2 + $0x90] sm:$0xff]
      %v6424 = vld [vmem:[#allocation2 + $0x98] sm:$0xff]
      %v6425 = vld [vmem:[#allocation2 + $0xa0] sm:$0xff]
      %v6426 = vld [vmem:[#allocation2 + $0xa8] sm:$0xff]
      %v6427 = vld [vmem:[#allocation2 + $0xb0] sm:$0xff]
      %v6428 = vld [vmem:[#allocation2 + $0xb8] sm:$0xff]
      %v6429 = vld [vmem:[#allocation2 + $0xc0] sm:$0xff]
      %v6430 = vld [vmem:[#allocation2 + $0xc8] sm:$0xff]
      %v6431 = vld [vmem:[#allocation2 + $0xd0] sm:$0xff]
      %v6432 = vld [vmem:[#allocation2 + $0xd8] sm:$0xff]
      %v6433 = vld [vmem:[#allocation2 + $0xe0] sm:$0xff]
      %v6434 = vld [vmem:[#allocation2 + $0xe8] sm:$0xff]
      %v6435 = vld [vmem:[#allocation2 + $0xf0] sm:$0xff]
      %v6436 = vld [vmem:[#allocation2 + $0xf8] sm:$0xff]
      %v6437 = vadd.f32 %v6405, %v6279
      %v6438 = vadd.f32 %v6406, %v6282
      %v6439 = vadd.f32 %v6407, %v6287
      %v6440 = vadd.f32 %v6408, %v6290
      %v6441 = vadd.f32 %v6409, %v6295
      %v6442 = vadd.f32 %v6410, %v6298
      %v6443 = vadd.f32 %v6411, %v6303
      %v6444 = vadd.f32 %v6412, %v6306
      %v6445 = vadd.f32 %v6413, %v6311
      %v6446 = vadd.f32 %v6414, %v6314
      %v6447 = vadd.f32 %v6415, %v6319
      %v6448 = vadd.f32 %v6416, %v6322
      %v6449 = vadd.f32 %v6417, %v6327
      %v6450 = vadd.f32 %v6418, %v6330
      %v6451 = vadd.f32 %v6419, %v6335
      %v6452 = vadd.f32 %v6420, %v6338
      %v6453 = vadd.f32 %v6421, %v6343
      %v6454 = vadd.f32 %v6422, %v6346
      %v6455 = vadd.f32 %v6423, %v6351
      %v6456 = vadd.f32 %v6424, %v6354
      %v6457 = vadd.f32 %v6425, %v6359
      %v6458 = vadd.f32 %v6426, %v6362
      %v6459 = vadd.f32 %v6427, %v6367
      %v6460 = vadd.f32 %v6428, %v6370
      %v6461 = vadd.f32 %v6429, %v6375
      %v6462 = vadd.f32 %v6430, %v6378
      %v6463 = vadd.f32 %v6431, %v6383
      %v6464 = vadd.f32 %v6432, %v6386
      %v6465 = vadd.f32 %v6433, %v6391
      %v6466 = vadd.f32 %v6434, %v6394
      %v6467 = vadd.f32 %v6435, %v6399
      %v6468 = vadd.f32 %v6436, %v6402
      %6469 = vst.msk [vmem:[#allocation2] sm:$0xff] %vm1570, %v6437
      %6470 = vst.msk [vmem:[#allocation2 + $0x8] sm:$0xff] %vm1570, %v6438
      %6471 = vst.msk [vmem:[#allocation2 + $0x10] sm:$0xff] %vm1570, %v6439
      %6472 = vst.msk [vmem:[#allocation2 + $0x18] sm:$0xff] %vm1570, %v6440
      %6473 = vst.msk [vmem:[#allocation2 + $0x20] sm:$0xff] %vm1570, %v6441
      %6474 = vst.msk [vmem:[#allocation2 + $0x28] sm:$0xff] %vm1570, %v6442
      %6475 = vst.msk [vmem:[#allocation2 + $0x30] sm:$0xff] %vm1570, %v6443
      %6476 = vst.msk [vmem:[#allocation2 + $0x38] sm:$0xff] %vm1570, %v6444
      %6477 = vst.msk [vmem:[#allocation2 + $0x40] sm:$0xff] %vm1570, %v6445
      %6478 = vst.msk [vmem:[#allocation2 + $0x48] sm:$0xff] %vm1570, %v6446
      %6479 = vst.msk [vmem:[#allocation2 + $0x50] sm:$0xff] %vm1570, %v6447
      %6480 = vst.msk [vmem:[#allocation2 + $0x58] sm:$0xff] %vm1570, %v6448
      %6481 = vst.msk [vmem:[#allocation2 + $0x60] sm:$0xff] %vm1570, %v6449
      %6482 = vst.msk [vmem:[#allocation2 + $0x68] sm:$0xff] %vm1570, %v6450
      %6483 = vst.msk [vmem:[#allocation2 + $0x70] sm:$0xff] %vm1570, %v6451
      %6484 = vst.msk [vmem:[#allocation2 + $0x78] sm:$0xff] %vm1570, %v6452
      %6485 = vst.msk [vmem:[#allocation2 + $0x80] sm:$0xff] %vm1570, %v6453
      %6486 = vst.msk [vmem:[#allocation2 + $0x88] sm:$0xff] %vm1570, %v6454
      %6487 = vst.msk [vmem:[#allocation2 + $0x90] sm:$0xff] %vm1570, %v6455
      %6488 = vst.msk [vmem:[#allocation2 + $0x98] sm:$0xff] %vm1570, %v6456
      %6489 = vst.msk [vmem:[#allocation2 + $0xa0] sm:$0xff] %vm1570, %v6457
      %6490 = vst.msk [vmem:[#allocation2 + $0xa8] sm:$0xff] %vm1570, %v6458
      %6491 = vst.msk [vmem:[#allocation2 + $0xb0] sm:$0xff] %vm1570, %v6459
      %6492 = vst.msk [vmem:[#allocation2 + $0xb8] sm:$0xff] %vm1570, %v6460
      %6493 = vst.msk [vmem:[#allocation2 + $0xc0] sm:$0xff] %vm1570, %v6461
      %6494 = vst.msk [vmem:[#allocation2 + $0xc8] sm:$0xff] %vm1570, %v6462
      %6495 = vst.msk [vmem:[#allocation2 + $0xd0] sm:$0xff] %vm1570, %v6463
      %6496 = vst.msk [vmem:[#allocation2 + $0xd8] sm:$0xff] %vm1570, %v6464
      %6497 = vst.msk [vmem:[#allocation2 + $0xe0] sm:$0xff] %vm1570, %v6465
      %6498 = vst.msk [vmem:[#allocation2 + $0xe8] sm:$0xff] %vm1570, %v6466
      %6499 = vst.msk [vmem:[#allocation2 + $0xf0] sm:$0xff] %vm1570, %v6467
      %6500 = vst.msk [vmem:[#allocation2 + $0xf8] sm:$0xff] %vm1570, %v6468
      %s6501 = scalar_lea.vmem %s3, 80
      %v6502 = vld [vmem:[%s6501] sm:$0xf]
      %v6503 = vld [vmem:[%s6501 + $0x4] sm:$0xf]
      %v6504 = vld [vmem:[%s6501 + $0x8] sm:$0xf]
      %v6505 = vld [vmem:[%s6501 + $0xc] sm:$0xf]
      %v6506 = vld [vmem:[%s6501 + $0x10] sm:$0xf]
      %v6512 = vunpack.c.l.b16 %v6502
      %v6513 = vunpack.c.l.b16 %v6503
      %v6514 = vunpack.c.l.b16 %v6504
      %v6515 = vunpack.c.l.b16 %v6505
      %v6516 = vunpack.c.l.b16 %v6506
      %v6517 = vpack.c.b16 %v6513, %v6512
      %v6518 = vpack.c.b16 %v6515, %v6514
      %v6519 = vpack.c.b16 %v6516, %v6516
      %v6523 = vsel %vm3589, %v6519, 0
      %6525 = vmatprep.subr.bf16.mxu0 0
      %6526 = vmatpush1.bf16.msra.mxu0 %v6517
      %6527 = vmatprep.subr.bf16.mxu0 0
      %6528 = vmatpush1.bf16.msra.mxu0 %v6518
      %6529 = vmatprep.subr.bf16.mxu0 0
      %6530 = vmatpush1.bf16.msra.mxu0 %v6523
      %6531 = vmatprep.subr.bf16.mxu0 0
      %6532 = vmatpush1.bf16.msra.mxu0 0
      %6533 = vmatprep.subr.bf16.mxu0 0
      %6534 = vmatpush1.bf16.msra.mxu0 0
      %6535 = vmatprep.subr.bf16.mxu0 0
      %6536 = vmatpush1.bf16.msra.mxu0 0
      %6537 = vmatprep.subr.bf16.mxu0 0
      %6538 = vmatpush1.bf16.msra.mxu0 0
      %6539 = vmatprep.subr.bf16.mxu0 0
      %6540 = vmatpush1.bf16.msra.mxu0 0
      %6541 = vmatprep.subr.bf16.mxu0 0
      %6542 = vmatpush1.bf16.msra.mxu0 0
      %6543 = vmatprep.subr.bf16.mxu0 0
      %6544 = vmatpush1.bf16.msra.mxu0 0
      %6545 = vmatprep.subr.bf16.mxu0 0
      %6546 = vmatpush1.bf16.msra.mxu0 0
      %6547 = vmatprep.subr.bf16.mxu0 0
      %6548 = vmatpush1.bf16.msra.mxu0 0
      %6549 = vmatprep.subr.bf16.mxu0 0
      %6550 = vmatpush1.bf16.msra.mxu0 0
      %6551 = vmatprep.subr.bf16.mxu0 0
      %6552 = vmatpush1.bf16.msra.mxu0 0
      %6553 = vmatprep.subr.bf16.mxu0 0
      %6554 = vmatpush1.bf16.msra.mxu0 0
      %6555 = vmatprep.subr.bf16.mxu0 0
      %6556 = vmatpush1.bf16.msra.mxu0 0
      %6557 = vmatprep.mubr.bf16.mxu0 0
      %6558 = vmatmul.mubr.bf16.gmra.mrb[0].mxu0 %v5434
      %v6559 = vpop.f32.mrb[0].mxu0
      %v6560 = vadd.f32 0.0, %v6559
      %v6561 = vpop.f32.mrb[0].mxu0
      %v6562 = vpop.f32.mrb[0].mxu0
      %v6563 = vadd.f32 0.0, %v6562
      %v6564 = vpop.f32.mrb[0].mxu0
      %6565 = vmatprep.mubr.bf16.mxu0 0
      %6566 = vmatmul.mubr.bf16.gmra.mrb[0].mxu0 %v5436
      %v6567 = vpop.f32.mrb[0].mxu0
      %v6568 = vadd.f32 0.0, %v6567
      %v6569 = vpop.f32.mrb[0].mxu0
      %v6570 = vpop.f32.mrb[0].mxu0
      %v6571 = vadd.f32 0.0, %v6570
      %v6572 = vpop.f32.mrb[0].mxu0
      %6573 = vmatprep.mubr.bf16.mxu0 0
      %6574 = vmatmul.mubr.bf16.gmra.mrb[0].mxu0 %v5438
      %v6575 = vpop.f32.mrb[0].mxu0
      %v6576 = vadd.f32 0.0, %v6575
      %v6577 = vpop.f32.mrb[0].mxu0
      %v6578 = vpop.f32.mrb[0].mxu0
      %v6579 = vadd.f32 0.0, %v6578
      %v6580 = vpop.f32.mrb[0].mxu0
      %6581 = vmatprep.mubr.bf16.mxu0 0
      %6582 = vmatmul.mubr.bf16.gmra.mrb[0].mxu0 %v5440
      %v6583 = vpop.f32.mrb[0].mxu0
      %v6584 = vadd.f32 0.0, %v6583
      %v6585 = vpop.f32.mrb[0].mxu0
      %v6586 = vpop.f32.mrb[0].mxu0
      %v6587 = vadd.f32 0.0, %v6586
      %v6588 = vpop.f32.mrb[0].mxu0
      %6589 = vmatprep.mubr.bf16.mxu0 0
      %6590 = vmatmul.mubr.bf16.gmra.mrb[0].mxu0 %v5442
      %v6591 = vpop.f32.mrb[0].mxu0
      %v6592 = vadd.f32 0.0, %v6591
      %v6593 = vpop.f32.mrb[0].mxu0
      %v6594 = vpop.f32.mrb[0].mxu0
      %v6595 = vadd.f32 0.0, %v6594
      %v6596 = vpop.f32.mrb[0].mxu0
      %6597 = vmatprep.mubr.bf16.mxu0 0
      %6598 = vmatmul.mubr.bf16.gmra.mrb[0].mxu0 %v5444
      %v6599 = vpop.f32.mrb[0].mxu0
      %v6600 = vadd.f32 0.0, %v6599
      %v6601 = vpop.f32.mrb[0].mxu0
      %v6602 = vpop.f32.mrb[0].mxu0
      %v6603 = vadd.f32 0.0, %v6602
      %v6604 = vpop.f32.mrb[0].mxu0
      %6605 = vmatprep.mubr.bf16.mxu0 0
      %6606 = vmatmul.mubr.bf16.gmra.mrb[0].mxu0 %v5446
      %v6607 = vpop.f32.mrb[0].mxu0
      %v6608 = vadd.f32 0.0, %v6607
      %v6609 = vpop.f32.mrb[0].mxu0
      %v6610 = vpop.f32.mrb[0].mxu0
      %v6611 = vadd.f32 0.0, %v6610
      %v6612 = vpop.f32.mrb[0].mxu0
      %6613 = vmatprep.mubr.bf16.mxu0 0
      %6614 = vmatmul.mubr.bf16.gmra.mrb[0].mxu0 %v5448
      %v6615 = vpop.f32.mrb[0].mxu0
      %v6616 = vadd.f32 0.0, %v6615
      %v6617 = vpop.f32.mrb[0].mxu0
      %v6618 = vpop.f32.mrb[0].mxu0
      %v6619 = vadd.f32 0.0, %v6618
      %v6620 = vpop.f32.mrb[0].mxu0
      %6621 = vmatprep.mubr.bf16.mxu0 0
      %6622 = vmatmul.mubr.bf16.gmra.mrb[0].mxu0 %v5450
      %v6623 = vpop.f32.mrb[0].mxu0
      %v6624 = vadd.f32 0.0, %v6623
      %v6625 = vpop.f32.mrb[0].mxu0
      %v6626 = vpop.f32.mrb[0].mxu0
      %v6627 = vadd.f32 0.0, %v6626
      %v6628 = vpop.f32.mrb[0].mxu0
      %6629 = vmatprep.mubr.bf16.mxu0 0
      %6630 = vmatmul.mubr.bf16.gmra.mrb[0].mxu0 %v5452
      %v6631 = vpop.f32.mrb[0].mxu0
      %v6632 = vadd.f32 0.0, %v6631
      %v6633 = vpop.f32.mrb[0].mxu0
      %v6634 = vpop.f32.mrb[0].mxu0
      %v6635 = vadd.f32 0.0, %v6634
      %v6636 = vpop.f32.mrb[0].mxu0
      %6637 = vmatprep.mubr.bf16.mxu0 0
      %6638 = vmatmul.mubr.bf16.gmra.mrb[0].mxu0 %v5454
      %v6639 = vpop.f32.mrb[0].mxu0
      %v6640 = vadd.f32 0.0, %v6639
      %v6641 = vpop.f32.mrb[0].mxu0
      %v6642 = vpop.f32.mrb[0].mxu0
      %v6643 = vadd.f32 0.0, %v6642
      %v6644 = vpop.f32.mrb[0].mxu0
      %6645 = vmatprep.mubr.bf16.mxu0 0
      %6646 = vmatmul.mubr.bf16.gmra.mrb[0].mxu0 %v5456
      %v6647 = vpop.f32.mrb[0].mxu0
      %v6648 = vadd.f32 0.0, %v6647
      %v6649 = vpop.f32.mrb[0].mxu0
      %v6650 = vpop.f32.mrb[0].mxu0
      %v6651 = vadd.f32 0.0, %v6650
      %v6652 = vpop.f32.mrb[0].mxu0
      %6653 = vmatprep.mubr.bf16.mxu0 0
      %6654 = vmatmul.mubr.bf16.gmra.mrb[0].mxu0 %v5675
      %v6655 = vpop.f32.mrb[0].mxu0
      %v6656 = vadd.f32 0.0, %v6655
      %v6657 = vpop.f32.mrb[0].mxu0
      %v6658 = vpop.f32.mrb[0].mxu0
      %v6659 = vadd.f32 0.0, %v6658
      %v6660 = vpop.f32.mrb[0].mxu0
      %6661 = vmatprep.mubr.bf16.mxu0 0
      %6662 = vmatmul.mubr.bf16.gmra.mrb[0].mxu0 %v5958
      %v6663 = vpop.f32.mrb[0].mxu0
      %v6664 = vadd.f32 0.0, %v6663
      %v6665 = vpop.f32.mrb[0].mxu0
      %v6666 = vpop.f32.mrb[0].mxu0
      %v6667 = vadd.f32 0.0, %v6666
      %v6668 = vpop.f32.mrb[0].mxu0
      %6669 = vmatprep.mubr.bf16.mxu0 0
      %6670 = vmatmul.mubr.bf16.gmra.mrb[0].mxu0 %v5958
      %v6671 = vpop.f32.mrb[0].mxu0
      %v6672 = vadd.f32 0.0, %v6671
      %v6673 = vpop.f32.mrb[0].mxu0
      %v6674 = vpop.f32.mrb[0].mxu0
      %v6675 = vadd.f32 0.0, %v6674
      %v6676 = vpop.f32.mrb[0].mxu0
      %6677 = vmatprep.mubr.bf16.mxu0 0
      %6678 = vmatmul.mubr.bf16.gmra.mrb[0].mxu0 %v5958
      %v6679 = vpop.f32.mrb[0].mxu0
      %v6680 = vadd.f32 0.0, %v6679
      %v6681 = vpop.f32.mrb[0].mxu0
      %v6682 = vpop.f32.mrb[0].mxu0
      %v6683 = vadd.f32 0.0, %v6682
      %v6684 = vpop.f32.mrb[0].mxu0
      %6685 = vdwg.mxu0
      %v6686 = vld [vmem:[#allocation2] sm:$0xff]
      %v6687 = vld [vmem:[#allocation2 + $0x8] sm:$0xff]
      %v6688 = vld [vmem:[#allocation2 + $0x10] sm:$0xff]
      %v6689 = vld [vmem:[#allocation2 + $0x18] sm:$0xff]
      %v6690 = vld [vmem:[#allocation2 + $0x20] sm:$0xff]
      %v6691 = vld [vmem:[#allocation2 + $0x28] sm:$0xff]
      %v6692 = vld [vmem:[#allocation2 + $0x30] sm:$0xff]
      %v6693 = vld [vmem:[#allocation2 + $0x38] sm:$0xff]
      %v6694 = vld [vmem:[#allocation2 + $0x40] sm:$0xff]
      %v6695 = vld [vmem:[#allocation2 + $0x48] sm:$0xff]
      %v6696 = vld [vmem:[#allocation2 + $0x50] sm:$0xff]
      %v6697 = vld [vmem:[#allocation2 + $0x58] sm:$0xff]
      %v6698 = vld [vmem:[#allocation2 + $0x60] sm:$0xff]
      %v6699 = vld [vmem:[#allocation2 + $0x68] sm:$0xff]
      %v6700 = vld [vmem:[#allocation2 + $0x70] sm:$0xff]
      %v6701 = vld [vmem:[#allocation2 + $0x78] sm:$0xff]
      %v6702 = vld [vmem:[#allocation2 + $0x80] sm:$0xff]
      %v6703 = vld [vmem:[#allocation2 + $0x88] sm:$0xff]
      %v6704 = vld [vmem:[#allocation2 + $0x90] sm:$0xff]
      %v6705 = vld [vmem:[#allocation2 + $0x98] sm:$0xff]
      %v6706 = vld [vmem:[#allocation2 + $0xa0] sm:$0xff]
      %v6707 = vld [vmem:[#allocation2 + $0xa8] sm:$0xff]
      %v6708 = vld [vmem:[#allocation2 + $0xb0] sm:$0xff]
      %v6709 = vld [vmem:[#allocation2 + $0xb8] sm:$0xff]
      %v6710 = vld [vmem:[#allocation2 + $0xc0] sm:$0xff]
      %v6711 = vld [vmem:[#allocation2 + $0xc8] sm:$0xff]
      %v6712 = vld [vmem:[#allocation2 + $0xd0] sm:$0xff]
      %v6713 = vld [vmem:[#allocation2 + $0xd8] sm:$0xff]
      %v6714 = vld [vmem:[#allocation2 + $0xe0] sm:$0xff]
      %v6715 = vld [vmem:[#allocation2 + $0xe8] sm:$0xff]
      %v6716 = vld [vmem:[#allocation2 + $0xf0] sm:$0xff]
      %v6717 = vld [vmem:[#allocation2 + $0xf8] sm:$0xff]
      %v6718 = vadd.f32 %v6686, %v6560
      %v6719 = vadd.f32 %v6687, %v6563
      %v6720 = vadd.f32 %v6688, %v6568
      %v6721 = vadd.f32 %v6689, %v6571
      %v6722 = vadd.f32 %v6690, %v6576
      %v6723 = vadd.f32 %v6691, %v6579
      %v6724 = vadd.f32 %v6692, %v6584
      %v6725 = vadd.f32 %v6693, %v6587
      %v6726 = vadd.f32 %v6694, %v6592
      %v6727 = vadd.f32 %v6695, %v6595
      %v6728 = vadd.f32 %v6696, %v6600
      %v6729 = vadd.f32 %v6697, %v6603
      %v6730 = vadd.f32 %v6698, %v6608
      %v6731 = vadd.f32 %v6699, %v6611
      %v6732 = vadd.f32 %v6700, %v6616
      %v6733 = vadd.f32 %v6701, %v6619
      %v6734 = vadd.f32 %v6702, %v6624
      %v6735 = vadd.f32 %v6703, %v6627
      %v6736 = vadd.f32 %v6704, %v6632
      %v6737 = vadd.f32 %v6705, %v6635
      %v6738 = vadd.f32 %v6706, %v6640
      %v6739 = vadd.f32 %v6707, %v6643
      %v6740 = vadd.f32 %v6708, %v6648
      %v6741 = vadd.f32 %v6709, %v6651
      %v6742 = vadd.f32 %v6710, %v6656
      %v6743 = vadd.f32 %v6711, %v6659
      %v6744 = vadd.f32 %v6712, %v6664
      %v6745 = vadd.f32 %v6713, %v6667
      %v6746 = vadd.f32 %v6714, %v6672
      %v6747 = vadd.f32 %v6715, %v6675
      %v6748 = vadd.f32 %v6716, %v6680
      %v6749 = vadd.f32 %v6717, %v6683
      %6750 = vst.msk [vmem:[#allocation2] sm:$0xff] %vm1570, %v6718
      %6751 = vst.msk [vmem:[#allocation2 + $0x8] sm:$0xff] %vm1570, %v6719
      %6752 = vst.msk [vmem:[#allocation2 + $0x10] sm:$0xff] %vm1570, %v6720
      %6753 = vst.msk [vmem:[#allocation2 + $0x18] sm:$0xff] %vm1570, %v6721
      %6754 = vst.msk [vmem:[#allocation2 + $0x20] sm:$0xff] %vm1570, %v6722
      %6755 = vst.msk [vmem:[#allocation2 + $0x28] sm:$0xff] %vm1570, %v6723
      %6756 = vst.msk [vmem:[#allocation2 + $0x30] sm:$0xff] %vm1570, %v6724
      %6757 = vst.msk [vmem:[#allocation2 + $0x38] sm:$0xff] %vm1570, %v6725
      %6758 = vst.msk [vmem:[#allocation2 + $0x40] sm:$0xff] %vm1570, %v6726
      %6759 = vst.msk [vmem:[#allocation2 + $0x48] sm:$0xff] %vm1570, %v6727
      %6760 = vst.msk [vmem:[#allocation2 + $0x50] sm:$0xff] %vm1570, %v6728
      %6761 = vst.msk [vmem:[#allocation2 + $0x58] sm:$0xff] %vm1570, %v6729
      %6762 = vst.msk [vmem:[#allocation2 + $0x60] sm:$0xff] %vm1570, %v6730
      %6763 = vst.msk [vmem:[#allocation2 + $0x68] sm:$0xff] %vm1570, %v6731
      %6764 = vst.msk [vmem:[#allocation2 + $0x70] sm:$0xff] %vm1570, %v6732
      %6765 = vst.msk [vmem:[#allocation2 + $0x78] sm:$0xff] %vm1570, %v6733
      %6766 = vst.msk [vmem:[#allocation2 + $0x80] sm:$0xff] %vm1570, %v6734
      %6767 = vst.msk [vmem:[#allocation2 + $0x88] sm:$0xff] %vm1570, %v6735
      %6768 = vst.msk [vmem:[#allocation2 + $0x90] sm:$0xff] %vm1570, %v6736
      %6769 = vst.msk [vmem:[#allocation2 + $0x98] sm:$0xff] %vm1570, %v6737
      %6770 = vst.msk [vmem:[#allocation2 + $0xa0] sm:$0xff] %vm1570, %v6738
      %6771 = vst.msk [vmem:[#allocation2 + $0xa8] sm:$0xff] %vm1570, %v6739
      %6772 = vst.msk [vmem:[#allocation2 + $0xb0] sm:$0xff] %vm1570, %v6740
      %6773 = vst.msk [vmem:[#allocation2 + $0xb8] sm:$0xff] %vm1570, %v6741
      %6774 = vst.msk [vmem:[#allocation2 + $0xc0] sm:$0xff] %vm1570, %v6742
      %6775 = vst.msk [vmem:[#allocation2 + $0xc8] sm:$0xff] %vm1570, %v6743
      %6776 = vst.msk [vmem:[#allocation2 + $0xd0] sm:$0xff] %vm1570, %v6744
      %6777 = vst.msk [vmem:[#allocation2 + $0xd8] sm:$0xff] %vm1570, %v6745
      %6778 = vst.msk [vmem:[#allocation2 + $0xe0] sm:$0xff] %vm1570, %v6746
      %6779 = vst.msk [vmem:[#allocation2 + $0xe8] sm:$0xff] %vm1570, %v6747
      %6780 = vst.msk [vmem:[#allocation2 + $0xf0] sm:$0xff] %vm1570, %v6748
      %6781 = vst.msk [vmem:[#allocation2 + $0xf8] sm:$0xff] %vm1570, %v6749
      %v6782 = vld [vmem:[#allocation2] sm:$0xff]
      %v6783 = vld [vmem:[#allocation2 + $0x8] sm:$0xff]
      %v6784 = vld [vmem:[#allocation2 + $0x10] sm:$0xff]
      %v6785 = vld [vmem:[#allocation2 + $0x18] sm:$0xff]
      %v6786 = vld [vmem:[#allocation2 + $0x20] sm:$0xff]
      %v6787 = vld [vmem:[#allocation2 + $0x28] sm:$0xff]
      %v6788 = vld [vmem:[#allocation2 + $0x30] sm:$0xff]
      %v6789 = vld [vmem:[#allocation2 + $0x38] sm:$0xff]
      %v6790 = vld [vmem:[#allocation2 + $0x40] sm:$0xff]
      %v6791 = vld [vmem:[#allocation2 + $0x48] sm:$0xff]
      %v6792 = vld [vmem:[#allocation2 + $0x50] sm:$0xff]
      %v6793 = vld [vmem:[#allocation2 + $0x58] sm:$0xff]
      %v6794 = vld [vmem:[#allocation2 + $0x60] sm:$0xff]
      %v6795 = vld [vmem:[#allocation2 + $0x68] sm:$0xff]
      %v6796 = vld [vmem:[#allocation2 + $0x70] sm:$0xff]
      %v6797 = vld [vmem:[#allocation2 + $0x78] sm:$0xff]
      %v6798 = vld [vmem:[#allocation2 + $0x80] sm:$0xff]
      %v6799 = vld [vmem:[#allocation2 + $0x88] sm:$0xff]
      %v6800 = vld [vmem:[#allocation2 + $0x90] sm:$0xff]
      %v6801 = vld [vmem:[#allocation2 + $0x98] sm:$0xff]
      %v6802 = vld [vmem:[#allocation2 + $0xa0] sm:$0xff]
      %v6803 = vld [vmem:[#allocation2 + $0xa8] sm:$0xff]
      %v6804 = vld [vmem:[#allocation2 + $0xb0] sm:$0xff]
      %v6805 = vld [vmem:[#allocation2 + $0xb8] sm:$0xff]
      %v6806 = vld [vmem:[#allocation2 + $0xc0] sm:$0xff]
      %v6807 = vld [vmem:[#allocation2 + $0xc8] sm:$0xff]
      %v6808 = vld [vmem:[#allocation2 + $0xd0] sm:$0xff]
      %v6809 = vld [vmem:[#allocation2 + $0xd8] sm:$0xff]
      %v6810 = vld [vmem:[#allocation2 + $0xe0] sm:$0xff]
      %v6811 = vld [vmem:[#allocation2 + $0xe8] sm:$0xff]
      %v6812 = vld [vmem:[#allocation2 + $0xf0] sm:$0xff]
      %v6813 = vld [vmem:[#allocation2 + $0xf8] sm:$0xff]
      %6814 = vst.msk [vmem:[%s251] sm:$0xff] %vm1570, %v6782
      %6815 = vst.msk [vmem:[%s251 + $0x8] sm:$0xff] %vm1570, %v6783
      %6816 = vst.msk [vmem:[%s251 + $0x10] sm:$0xff] %vm1570, %v6784
      %6817 = vst.msk [vmem:[%s251 + $0x18] sm:$0xff] %vm1570, %v6785
      %6818 = vst.msk [vmem:[%s251 + $0x20] sm:$0xff] %vm1570, %v6786
      %6819 = vst.msk [vmem:[%s251 + $0x28] sm:$0xff] %vm1570, %v6787
      %6820 = vst.msk [vmem:[%s251 + $0x30] sm:$0xff] %vm1570, %v6788
      %6821 = vst.msk [vmem:[%s251 + $0x38] sm:$0xff] %vm1570, %v6789
      %6822 = vst.msk [vmem:[%s251 + $0x40] sm:$0xff] %vm1570, %v6790
      %6823 = vst.msk [vmem:[%s251 + $0x48] sm:$0xff] %vm1570, %v6791
      %6824 = vst.msk [vmem:[%s251 + $0x50] sm:$0xff] %vm1570, %v6792
      %6825 = vst.msk [vmem:[%s251 + $0x58] sm:$0xff] %vm1570, %v6793
      %6826 = vst.msk [vmem:[%s251 + $0x60] sm:$0xff] %vm1570, %v6794
      %6827 = vst.msk [vmem:[%s251 + $0x68] sm:$0xff] %vm1570, %v6795
      %6828 = vst.msk [vmem:[%s251 + $0x70] sm:$0xff] %vm1570, %v6796
      %6829 = vst.msk [vmem:[%s251 + $0x78] sm:$0xff] %vm1570, %v6797
      %6830 = vst.msk [vmem:[%s251 + $0x80] sm:$0xff] %vm1570, %v6798
      %6831 = vst.msk [vmem:[%s251 + $0x88] sm:$0xff] %vm1570, %v6799
      %6832 = vst.msk [vmem:[%s251 + $0x90] sm:$0xff] %vm1570, %v6800
      %6833 = vst.msk [vmem:[%s251 + $0x98] sm:$0xff] %vm1570, %v6801
      %6834 = vst.msk [vmem:[%s251 + $0xa0] sm:$0xff] %vm1570, %v6802
      %6835 = vst.msk [vmem:[%s251 + $0xa8] sm:$0xff] %vm1570, %v6803
      %6836 = vst.msk [vmem:[%s251 + $0xb0] sm:$0xff] %vm1570, %v6804
      %6837 = vst.msk [vmem:[%s251 + $0xb8] sm:$0xff] %vm1570, %v6805
      %6838 = vst.msk [vmem:[%s251 + $0xc0] sm:$0xff] %vm1570, %v6806
      %6839 = vst.msk [vmem:[%s251 + $0xc8] sm:$0xff] %vm1570, %v6807
      %6840 = vst.msk [vmem:[%s251 + $0xd0] sm:$0xff] %vm1570, %v6808
      %6841 = vst.msk [vmem:[%s251 + $0xd8] sm:$0xff] %vm1570, %v6809
      %6842 = vst.msk [vmem:[%s251 + $0xe0] sm:$0xff] %vm1570, %v6810
      %6843 = vst.msk [vmem:[%s251 + $0xe8] sm:$0xff] %vm1570, %v6811
      %6844 = vst.msk [vmem:[%s251 + $0xf0] sm:$0xff] %vm1570, %v6812
      %6845 = vst.msk [vmem:[%s251 + $0xf8] sm:$0xff] %vm1570, %v6813
      %p6846 = scmp.lt.s32.totalorder %s17, 1
      %s6847 = scalar_select %p6846, %s17, 1
      %s6848 = smul.addr %s6847, 32
      %s6849 = smul.addr %s6848, 8
      %s6850 = scalar_lea.vmem %s6, %s6849
      // Predicated region
      $region45: #{out_module_forward.3} parent=43 // pred_check
        %p6851 = pneg %p166
      $region46: #{out_module_forward.3} parent=43 // pred_check_branch
        %6853 = sbr.rel (%p6851) target = $region48
      $region47: #{out_module_forward.3} parent=43 // pred_region
        _
      $region48: #{out_module_forward.3} parent=43 // pred_fallthru
        _
    $region44: #{out_module_forward.3} parent=5 // pred_fallthru
      _
    %p6854 = scmp.le.s32.totalorder 2, %s12
    // Predicated region
    $region49: #{out_module_forward.3} parent=5 // pred_check
      %p6855 = pneg %p6854
    $region50: #{out_module_forward.3} parent=5 // pred_check_branch
      %6857 = sbr.rel (%p6855) target = $region52
    $region51: #{out_module_forward.3} parent=5 // pred_region
      %s6858 = ssub.s32 %s12, 2
      // Predicated region
      $region53: #{out_module_forward.3} parent=51 // pred_check
        %p6859 = pneg %p172
      $region54: #{out_module_forward.3} parent=51 // pred_check_branch
        %6861 = sbr.rel (%p6859) target = $region56
      $region55: #{out_module_forward.3} parent=51 // pred_region
        %p6862 = scmp.lt.s32.totalorder %s18, 1
        %s6863 = scalar_select %p6862, %s18, 1
        %s6864 = smul.addr %s6863, 32
        %s6865 = smul.addr %s6864, 8
        %s6866 = scalar_lea.vmem %s6, %s6865
      $region56: #{out_module_forward.3} parent=51 // pred_fallthru
        _
    $region52: #{out_module_forward.3} parent=5 // pred_fallthru
      _
  $region6: #{out_module_forward.3} parent=0 // loop_footer
    %s16 = sadd.s32 1, %s12
  $region7: #{out_module_forward.3} parent=0 // loop_footer_branch
    %11 = sbr.rel target = $region3
  $region8: #{out_module_forward.3} parent=0 // loop_exit
    _

</llo_original>
